<compile_context>
chip_gen: v7x
topology: tpu7x:2x2x1
jax: 0.10.0
libtpu: 0.0.40
codegen_flags: <defaults>
</compile_context>

<pallas_src>
import jax
import jax.numpy as jnp
from jax.experimental import pallas as pl
from jax.experimental.pallas import tpu as pltpu

# ----------------------------------------------------------------------------------
# Static problem description (depth = 2, in_channels = 4, out_channels = 2, 16x16 images)
# ----------------------------------------------------------------------------------
H = W = 16
HP, WP = H + 2, W + 2          # zero-padded spatial dims (SAME padding of the 3x3 convs)
LP = HP * WP                   # 324 flattened padded pixels per image
LPP = 384                      # per-image lane segment (next multiple of 128 -> dense vregs)
IN_CHANNELS = 4
OUT_CHANNELS = 2
C_MAX = 16                     # widest activation / conv output channel count

# lane offsets of the 9 conv taps inside the flattened padded image (kh-major, kw-minor)
TAP_SHIFTS = tuple((dy - 1) * WP + (dx - 1) for dy in range(3) for dx in range(3))

# (per-branch in-channels, out-channels) of the 11 conv blocks, in forward order.
# Multi-branch entries are the torch.cat((x, skip), 1) convs.
CONV_PLAN = (
    ((4,), 8),        # 0: encoders1[0]
    ((8,), 16),       # 1: encoders1[1]
    ((16,), 16),      # 2: base1
    ((16, 16), 8),    # 3: decoders1[0]   cat(x, enc1[1])
    ((8, 8), 4),      # 4: decoders1[1]   cat(x, enc1[0])
    ((4,), 8),        # 5: encoders2[0]
    ((8, 8), 16),     # 6: encoders2[1]   cat(x, dec1[1])
    ((16, 16), 16),   # 7: base2          cat(x, dec1[-1] = base1 out)
    ((16, 16), 8),    # 8: decoders2[0]   cat(x, enc1'[1])
    ((8, 8), 4),      # 9: decoders2[1]   cat(x, enc1'[0])
    ((4,), 2),        # 10: output conv (+ Sigmoid final activation)
)
NUM_CONVS = len(CONV_PLAN)


def _round_up(v, mult):
    return (v + mult - 1) // mult * mult


# per conv: K = 1 bias column + 9 taps * concatenated in-channels
CONV_K = tuple(1 + 9 * sum(cins) for cins, _ in CONV_PLAN)
CONV_K8 = tuple(_round_up(k, 8) for k in CONV_K)      # sublane-aligned patch read size
PATCH_ROWS = max(CONV_K8)                             # 296

# 128-aligned lane offset of every conv's (cout, K) block inside the packed weight slab
_koff, _off = [], 0
for _k in CONV_K8:
    _koff.append(_off)
    _off += _round_up(_k, 128)
KOFF = tuple(_koff)
TOTAL_KP = _off                                       # 2688


# ----------------------------------------------------------------------------------
# The fused Pallas kernel: the entire WNet forward for one batch tile per grid step
# ----------------------------------------------------------------------------------
def _wnet_kernel(x_ref, w_ref, mask_ref, o_ref, patch_ref):
    """x_ref:     (1, IN_CHANNELS, M)  padded-flat, channel-major input (M = B_TILE*LPP)
       w_ref:     (C_MAX, TOTAL_KP)    packed conv weights+biases, (cout, K) blocks
       mask_ref:  (1, M)               1.0 on interior (non-padding) pixels, else 0.0
       o_ref:     (1, OUT_CHANNELS, M)
       patch_ref: (PATCH_ROWS, M)      shared im2col scratch (row 0 = ones -> bias column)"""
    m = x_ref.shape[2]
    interior = mask_ref[...] > 0.5                    # (1, M) bool, hoisted

    patch_ref[0:1, :] = jnp.ones((1, m), jnp.float32)  # bias row, shared by every conv

    def conv(branch_vals, idx, act):
        cins, cout = CONV_PLAN[idx]
        k, k8 = CONV_K[idx], CONV_K8[idx]
        # im2col: 9 lane-rotated copies of every input branch -> rows of the shared patch.
        # Rotation wrap-around / cross-image leakage only lands on padding outputs, which
        # are zeroed below, so no per-tap masking is needed.
        row = 1
        for val, cin in zip(branch_vals, cins):
            for t, s in enumerate(TAP_SHIFTS):
                patch_ref[row + t * cin:row + (t + 1) * cin, :] = (
                    val if s == 0 else pltpu.roll(val, (-s) % m, axis=1))
            row += 9 * cin
        if k8 > k:                                    # keep the sublane-pad rows zero
            patch_ref[k:k8, :] = jnp.zeros((k8 - k, m), jnp.float32)
        # ONE MXU matmul per conv: (cout, K) @ (K, M); bias comes via the ones row.
        y = jax.lax.dot_general(
            w_ref[:cout, KOFF[idx]:KOFF[idx] + k8], patch_ref[:k8, :],
            (((1,), (0,)), ((), ())), preferred_element_type=jnp.float32)
        y = jnp.maximum(y, 0.0) if act == "relu" else jax.nn.sigmoid(y)
        # zero padding / dead lanes so they act as SAME-padding zeros for the next conv
        return jnp.where(interior, y, 0.0)

    # ---- forward pass: mirrors WNetSkeleton.forward (depth = 2) ----
    x = x_ref[0]                                      # (4, M)
    e0 = conv([x], 0, "relu")
    e1 = conv([e0], 1, "relu")
    xb = conv([e1], 2, "relu")                        # base1
    d0 = conv([xb, e1], 3, "relu")                    # decoders1[0](cat(x, enc1[1]))
    d1 = conv([d0, e0], 4, "relu")                    # decoders1[1](cat(x, enc1[0]))
    x2 = conv([d1], 5, "relu")                        # encoders2[0]
    e0 = e0 + x2                                      # residual add (dense VPU add)
    x2 = conv([x2, d0], 6, "relu")                    # encoders2[1](cat(x, dec1[1]))
    e1 = e1 + x2                                      # residual add
    x2 = conv([x2, xb], 7, "relu")                    # base2(cat(x, dec1[-1]))
    x2 = conv([x2, e1], 8, "relu")                    # decoders2[0](cat(x, enc1'[1]))
    x2 = conv([x2, e0], 9, "relu")                    # decoders2[1](cat(x, enc1'[0]))
    y = conv([x2], 10, "sigmoid")                     # output conv + Sigmoid
    o_ref[...] = y[None]


# ----------------------------------------------------------------------------------
# Parameters (synthetic, deterministic), packing and wrapper
# ----------------------------------------------------------------------------------
def build_params(key):
    """List of (tuple_of_branch_weights[(3,3,cin,cout) HWIO], bias[(cout,)]) per conv."""
    params = []
    for cins, cout in CONV_PLAN:
        ws = []
        for cin in cins:
            key, k = jax.random.split(key)
            scale = 0.1 / ((9.0 * cin) ** 0.5)
            ws.append(jax.random.normal(k, (3, 3, cin, cout), jnp.float32) * scale)
        key, k = jax.random.split(key)
        bias = jax.random.normal(k, (cout,), jnp.float32) * 0.01
        params.append((tuple(ws), bias))
    return params


def _pack_params(params):
    """One zero-filled (C_MAX, TOTAL_KP) slab; conv i occupies a 128-aligned (cout, K) block
    whose column 0 is the bias and whose remaining columns are the (kh, kw, cin) taps."""
    w_slab = jnp.zeros((C_MAX, TOTAL_KP), jnp.float32)
    for i, (ws, bias) in enumerate(params):
        cout = bias.shape[0]
        blocks = [bias[:, None]]
        blocks += [jnp.transpose(w, (3, 0, 1, 2)).reshape(cout, -1) for w in ws]
        wm = jnp.concatenate(blocks, axis=1)          # (cout, CONV_K[i])
        w_slab = w_slab.at[:cout, KOFF[i]:KOFF[i] + wm.shape[1]].set(wm)
    return w_slab


def _pick_b_tile(n):
    """Largest batch tile <= 8 dividing n that still leaves >= 2 grid steps (v7x: 2 TCs)."""
    best = 1
    for cand in range(2, min(8, n) + 1):
        if n % cand == 0 and n // cand >= 2:
            best = cand
    return best


def wnet_forward(params, x_nchw):
    """x_nchw: (N, 4, 16, 16) float32 -> (N, 2, 16, 16) float32 (PyTorch NCHW convention)."""
    n = x_nchw.shape[0]
    b_tile = _pick_b_tile(n)
    g = n // b_tile
    m = b_tile * LPP

    # Layout plumbing: zero-pad spatially, flatten to a channel-major lane-dense slab
    # (C, B_TILE*LPP); every image occupies one 384-lane segment with zero borders.
    x_pad = jnp.pad(x_nchw, ((0, 0), (0, 0), (1, 1), (1, 1)))            # (N, 4, 18, 18)
    x_flat = jnp.pad(x_pad.reshape(n, IN_CHANNELS, LP),
                     ((0, 0), (0, 0), (0, LPP - LP)))                    # (N, 4, 384)
    x_flat = x_flat.reshape(g, b_tile, IN_CHANNELS, LPP)
    x_flat = jnp.transpose(x_flat, (0, 2, 1, 3)).reshape(g, IN_CHANNELS, m)

    w_slab = _pack_params(params)                                        # (16, TOTAL_KP)

    interior = jnp.zeros((HP, WP), jnp.float32).at[1:H + 1, 1:W + 1].set(1.0)
    interior = jnp.pad(interior.reshape(1, LP), ((0, 0), (0, LPP - LP)))
    interior = jnp.tile(interior, (1, b_tile))                           # (1, M)

    out = pl.pallas_call(
        _wnet_kernel,
        out_shape=jax.ShapeDtypeStruct((g, OUT_CHANNELS, m), jnp.float32),
        grid=(g,),
        in_specs=[
            pl.BlockSpec((1, IN_CHANNELS, m), lambda i: (i, 0, 0)),
            pl.BlockSpec((C_MAX, TOTAL_KP), lambda i: (0, 0)),
            pl.BlockSpec((1, m), lambda i: (0, 0)),
        ],
        out_specs=pl.BlockSpec((1, OUT_CHANNELS, m), lambda i: (i, 0, 0)),
        scratch_shapes=[pltpu.VMEM((PATCH_ROWS, m), jnp.float32)],
        compiler_params=pltpu.CompilerParams(dimension_semantics=("parallel",)),
    )(x_flat, w_slab, interior)

    # lane-dense (G, 2, M) kernel output -> NCHW, cropping the zero border (wrapper plumbing)
    out = out.reshape(g, OUT_CHANNELS, b_tile, LPP)
    out = jnp.transpose(out, (0, 2, 1, 3)).reshape(n, OUT_CHANNELS, LPP)
    out = out[:, :, :LP].reshape(n, OUT_CHANNELS, HP, WP)
    return out[:, :, 1:H + 1, 1:W + 1]


# ----------------------------------------------------------------------------------
# Pure-XLA reference of the same WNet forward (numerical check)
# ----------------------------------------------------------------------------------
def wnet_reference(params, x_nchw):
    x = jnp.transpose(x_nchw, (0, 2, 3, 1))   # NHWC

    def conv(vals, idx, act):
        ws, bias = params[idx]
        out = None
        for v, w in zip(vals, ws):
            y = jax.lax.conv_general_dilated(
                v, w, window_strides=(1, 1), padding="SAME",
                dimension_numbers=("NHWC", "HWIO", "NHWC"),
                precision=jax.lax.Precision.HIGHEST)
            out = y if out is None else out + y
        out = out + bias.reshape(1, 1, 1, -1)
        return jnp.maximum(out, 0.0) if act == "relu" else jax.nn.sigmoid(out)

    e0 = conv([x], 0, "relu")
    e1 = conv([e0], 1, "relu")
    xb = conv([e1], 2, "relu")
    d0 = conv([xb, e1], 3, "relu")
    d1 = conv([d0, e0], 4, "relu")
    x2 = conv([d1], 5, "relu")
    e0 = e0 + x2
    x2 = conv([x2, d0], 6, "relu")
    e1 = e1 + x2
    x2 = conv([x2, xb], 7, "relu")
    x2 = conv([x2, e1], 8, "relu")
    x2 = conv([x2, e0], 9, "relu")
    y = conv([x2], 10, "sigmoid")
    return jnp.transpose(y, (0, 3, 1, 2))


# ----------------------------------------------------------------------------------
if __name__ == "__main__":
    key = jax.random.PRNGKey(0)
    kp, kx = jax.random.split(key)

    params = build_params(kp)

    # PyTorch-convention input: NCHW (batch=2, channels=4, 16x16)
    x = jax.random.normal(kx, (2, IN_CHANNELS, H, W), jnp.float32)

    fwd = jax.jit(wnet_forward)
    out = fwd(params, x)
    jax.block_until_ready(out)

    assert out.shape == (2, OUT_CHANNELS, H, W)
    assert bool(jnp.all(jnp.isfinite(out)))

    ref = jax.jit(wnet_reference)(params, x)
    max_err = float(jnp.max(jnp.abs(out - ref)))
    assert max_err < 5e-3, f"mismatch vs XLA reference: max abs err = {max_err}"

    print("KERNEL_OK")
</pallas_src>

<mosaic_0001>
module attributes {stable_mosaic.version = 11 : i64} {
  func.func @_wnet_kernel(%arg0: i32, %arg1: memref<1x4x384xf32, #tpu.memory_space<vmem>>, %arg2: memref<16x2688xf32, #tpu.memory_space<vmem>>, %arg3: memref<1x384xf32, #tpu.memory_space<vmem>>, %arg4: memref<1x2x384xf32, #tpu.memory_space<vmem>>, %arg5: memref<296x384xf32, #tpu.memory_space<vmem>>) attributes {dimension_semantics = [#tpu.dimension_semantics<parallel>], iteration_bounds = array<i64: 2>, scalar_prefetch = 0 : i64, scratch_operands = 1 : i64, tpu.core_type = #tpu.core_type<tc>, window_params = [{transform_indices = @transform_0, window_bounds = array<i64: 1, 4, 384>}, {pipeline_mode = #tpu.pipeline_mode<synchronous>, transform_indices = @transform_1, window_bounds = array<i64: 16, 2688>}, {pipeline_mode = #tpu.pipeline_mode<synchronous>, transform_indices = @transform_2, window_bounds = array<i64: 1, 384>}, {transform_indices = @transform_3, window_bounds = array<i64: 1, 2, 384>}]} {
    %c0 = arith.constant 0 : index
    %c0_0 = arith.constant 0 : index
    %0 = vector.load %arg3[%c0, %c0_0] : memref<1x384xf32, #tpu.memory_space<vmem>>, vector<1x384xf32>
    %cst = arith.constant 5.000000e-01 : f32
    %1 = vector.broadcast %cst : f32 to vector<1x384xf32>
    %2 = arith.cmpf ogt, %0, %1 : vector<1x384xf32>
    %cst_1 = arith.constant 1.000000e+00 : f32
    %3 = vector.broadcast %cst_1 : f32 to vector<1x384xf32>
    %c0_2 = arith.constant 0 : index
    %c0_3 = arith.constant 0 : index
    %4 = vector.load %arg5[%c0_2, %c0_3] : memref<296x384xf32, #tpu.memory_space<vmem>>, vector<1x384xf32>
    tpu.vector_store %arg5[%c0_2, %c0_3], %3 {strides = array<i32>} : memref<296x384xf32, #tpu.memory_space<vmem>>, vector<1x384xf32>,
    %c0_4 = arith.constant 0 : index
    %c0_5 = arith.constant 0 : index
    %c0_6 = arith.constant 0 : index
    %5 = vector.load %arg1[%c0_4, %c0_5, %c0_6] : memref<1x4x384xf32, #tpu.memory_space<vmem>>, vector<1x4x384xf32>
    %6 = vector.shape_cast %5 : vector<1x4x384xf32> to vector<4x384xf32>
    %c19_i32 = arith.constant 19 : i32
    %7 = tpu.dynamic_rotate %6 by %c19_i32 dim 1 : vector<4x384xf32>, i32 -> vector<4x384xf32>
    %c1 = arith.constant 1 : index
    %c0_7 = arith.constant 0 : index
    %8 = vector.load %arg5[%c1, %c0_7] : memref<296x384xf32, #tpu.memory_space<vmem>>, vector<4x384xf32>
    tpu.vector_store %arg5[%c1, %c0_7], %7 {strides = array<i32>} : memref<296x384xf32, #tpu.memory_space<vmem>>, vector<4x384xf32>,
    %c18_i32 = arith.constant 18 : i32
    %9 = tpu.dynamic_rotate %6 by %c18_i32 dim 1 : vector<4x384xf32>, i32 -> vector<4x384xf32>
    %c5 = arith.constant 5 : index
    %c0_8 = arith.constant 0 : index
    %10 = vector.load %arg5[%c5, %c0_8] : memref<296x384xf32, #tpu.memory_space<vmem>>, vector<4x384xf32>
    tpu.vector_store %arg5[%c5, %c0_8], %9 {strides = array<i32>} : memref<296x384xf32, #tpu.memory_space<vmem>>, vector<4x384xf32>,
    %c17_i32 = arith.constant 17 : i32
    %11 = tpu.dynamic_rotate %6 by %c17_i32 dim 1 : vector<4x384xf32>, i32 -> vector<4x384xf32>
    %c9 = arith.constant 9 : index
    %c0_9 = arith.constant 0 : index
    %12 = vector.load %arg5[%c9, %c0_9] : memref<296x384xf32, #tpu.memory_space<vmem>>, vector<4x384xf32>
    tpu.vector_store %arg5[%c9, %c0_9], %11 {strides = array<i32>} : memref<296x384xf32, #tpu.memory_space<vmem>>, vector<4x384xf32>,
    %c1_i32 = arith.constant 1 : i32
    %13 = tpu.dynamic_rotate %6 by %c1_i32 dim 1 : vector<4x384xf32>, i32 -> vector<4x384xf32>
    %c13 = arith.constant 13 : index
    %c0_10 = arith.constant 0 : index
    %14 = vector.load %arg5[%c13, %c0_10] : memref<296x384xf32, #tpu.memory_space<vmem>>, vector<4x384xf32>
    tpu.vector_store %arg5[%c13, %c0_10], %13 {strides = array<i32>} : memref<296x384xf32, #tpu.memory_space<vmem>>, vector<4x384xf32>,
    %c17 = arith.constant 17 : index
    %c0_11 = arith.constant 0 : index
    %15 = vector.load %arg5[%c17, %c0_11] : memref<296x384xf32, #tpu.memory_space<vmem>>, vector<4x384xf32>
    tpu.vector_store %arg5[%c17, %c0_11], %6 {strides = array<i32>} : memref<296x384xf32, #tpu.memory_space<vmem>>, vector<4x384xf32>,
    %c383_i32 = arith.constant 383 : i32
    %16 = tpu.dynamic_rotate %6 by %c383_i32 dim 1 : vector<4x384xf32>, i32 -> vector<4x384xf32>
    %c21 = arith.constant 21 : index
    %c0_12 = arith.constant 0 : index
    %17 = vector.load %arg5[%c21, %c0_12] : memref<296x384xf32, #tpu.memory_space<vmem>>, vector<4x384xf32>
    tpu.vector_store %arg5[%c21, %c0_12], %16 {strides = array<i32>} : memref<296x384xf32, #tpu.memory_space<vmem>>, vector<4x384xf32>,
    %c367_i32 = arith.constant 367 : i32
    %18 = tpu.dynamic_rotate %6 by %c367_i32 dim 1 : vector<4x384xf32>, i32 -> vector<4x384xf32>
    %c25 = arith.constant 25 : index
    %c0_13 = arith.constant 0 : index
    %19 = vector.load %arg5[%c25, %c0_13] : memref<296x384xf32, #tpu.memory_space<vmem>>, vector<4x384xf32>
    tpu.vector_store %arg5[%c25, %c0_13], %18 {strides = array<i32>} : memref<296x384xf32, #tpu.memory_space<vmem>>, vector<4x384xf32>,
    %c366_i32 = arith.constant 366 : i32
    %20 = tpu.dynamic_rotate %6 by %c366_i32 dim 1 : vector<4x384xf32>, i32 -> vector<4x384xf32>
    %c29 = arith.constant 29 : index
    %c0_14 = arith.constant 0 : index
    %21 = vector.load %arg5[%c29, %c0_14] : memref<296x384xf32, #tpu.memory_space<vmem>>, vector<4x384xf32>
    tpu.vector_store %arg5[%c29, %c0_14], %20 {strides = array<i32>} : memref<296x384xf32, #tpu.memory_space<vmem>>, vector<4x384xf32>,
    %c365_i32 = arith.constant 365 : i32
    %22 = tpu.dynamic_rotate %6 by %c365_i32 dim 1 : vector<4x384xf32>, i32 -> vector<4x384xf32>
    %c33 = arith.constant 33 : index
    %c0_15 = arith.constant 0 : index
    %23 = vector.load %arg5[%c33, %c0_15] : memref<296x384xf32, #tpu.memory_space<vmem>>, vector<4x384xf32>
    tpu.vector_store %arg5[%c33, %c0_15], %22 {strides = array<i32>} : memref<296x384xf32, #tpu.memory_space<vmem>>, vector<4x384xf32>,
    %cst_16 = arith.constant 0.000000e+00 : f32
    %24 = vector.broadcast %cst_16 : f32 to vector<3x384xf32>
    %c37 = arith.constant 37 : index
    %c0_17 = arith.constant 0 : index
    %25 = vector.load %arg5[%c37, %c0_17] : memref<296x384xf32, #tpu.memory_space<vmem>>, vector<3x384xf32>
    tpu.vector_store %arg5[%c37, %c0_17], %24 {strides = array<i32>} : memref<296x384xf32, #tpu.memory_space<vmem>>, vector<3x384xf32>,
    %c0_18 = arith.constant 0 : index
    %c0_19 = arith.constant 0 : index
    %26 = vector.load %arg2[%c0_18, %c0_19] : memref<16x2688xf32, #tpu.memory_space<vmem>>, vector<8x40xf32>
    %c0_20 = arith.constant 0 : index
    %c0_21 = arith.constant 0 : index
    %27 = vector.load %arg5[%c0_20, %c0_21] : memref<296x384xf32, #tpu.memory_space<vmem>>, vector<40x384xf32>
    %cst_22 = arith.constant dense<0.000000e+00> : vector<8x384xf32>
    %28 = tpu.matmul %26, %27, %cst_22 {dimension_numbers = #tpu.dot_dimension_numbers<[1], [0], [0], [1], [0, 0, 1, 1], [], []>} : vector<8x40xf32>, vector<40x384xf32>, vector<8x384xf32> -> vector<8x384xf32>
    %cst_23 = arith.constant 0.000000e+00 : f32
    %29 = vector.broadcast %cst_23 : f32 to vector<8x384xf32>
    %30 = arith.maximumf %28, %29 : vector<8x384xf32>
    %cst_24 = arith.constant 0.000000e+00 : f32
    %31 = vector.shape_cast %2 : vector<1x384xi1> to vector<1x384xi1>
    %32 = vector.broadcast %31 : vector<1x384xi1> to vector<8x384xi1>
    %33 = vector.broadcast %cst_24 : f32 to vector<8x384xf32>
    %34 = arith.select %32, %30, %33 : vector<8x384xi1>, vector<8x384xf32>
    %c19_i32_25 = arith.constant 19 : i32
    %35 = tpu.dynamic_rotate %34 by %c19_i32_25 dim 1 : vector<8x384xf32>, i32 -> vector<8x384xf32>
    %c1_26 = arith.constant 1 : index
    %c0_27 = arith.constant 0 : index
    %36 = vector.load %arg5[%c1_26, %c0_27] : memref<296x384xf32, #tpu.memory_space<vmem>>, vector<8x384xf32>
    tpu.vector_store %arg5[%c1_26, %c0_27], %35 {strides = array<i32>} : memref<296x384xf32, #tpu.memory_space<vmem>>, vector<8x384xf32>,
    %c18_i32_28 = arith.constant 18 : i32
    %37 = tpu.dynamic_rotate %34 by %c18_i32_28 dim 1 : vector<8x384xf32>, i32 -> vector<8x384xf32>
    %c9_29 = arith.constant 9 : index
    %c0_30 = arith.constant 0 : index
    %38 = vector.load %arg5[%c9_29, %c0_30] : memref<296x384xf32, #tpu.memory_space<vmem>>, vector<8x384xf32>
    tpu.vector_store %arg5[%c9_29, %c0_30], %37 {strides = array<i32>} : memref<296x384xf32, #tpu.memory_space<vmem>>, vector<8x384xf32>,
    %c17_i32_31 = arith.constant 17 : i32
    %39 = tpu.dynamic_rotate %34 by %c17_i32_31 dim 1 : vector<8x384xf32>, i32 -> vector<8x384xf32>
    %c17_32 = arith.constant 17 : index
    %c0_33 = arith.constant 0 : index
    %40 = vector.load %arg5[%c17_32, %c0_33] : memref<296x384xf32, #tpu.memory_space<vmem>>, vector<8x384xf32>
    tpu.vector_store %arg5[%c17_32, %c0_33], %39 {strides = array<i32>} : memref<296x384xf32, #tpu.memory_space<vmem>>, vector<8x384xf32>,
    %c1_i32_34 = arith.constant 1 : i32
    %41 = tpu.dynamic_rotate %34 by %c1_i32_34 dim 1 : vector<8x384xf32>, i32 -> vector<8x384xf32>
    %c25_35 = arith.constant 25 : index
    %c0_36 = arith.constant 0 : index
    %42 = vector.load %arg5[%c25_35, %c0_36] : memref<296x384xf32, #tpu.memory_space<vmem>>, vector<8x384xf32>
    tpu.vector_store %arg5[%c25_35, %c0_36], %41 {strides = array<i32>} : memref<296x384xf32, #tpu.memory_space<vmem>>, vector<8x384xf32>,
    %c33_37 = arith.constant 33 : index
    %c0_38 = arith.constant 0 : index
    %43 = vector.load %arg5[%c33_37, %c0_38] : memref<296x384xf32, #tpu.memory_space<vmem>>, vector<8x384xf32>
    tpu.vector_store %arg5[%c33_37, %c0_38], %34 {strides = array<i32>} : memref<296x384xf32, #tpu.memory_space<vmem>>, vector<8x384xf32>,
    %c383_i32_39 = arith.constant 383 : i32
    %44 = tpu.dynamic_rotate %34 by %c383_i32_39 dim 1 : vector<8x384xf32>, i32 -> vector<8x384xf32>
    %c41 = arith.constant 41 : index
    %c0_40 = arith.constant 0 : index
    %45 = vector.load %arg5[%c41, %c0_40] : memref<296x384xf32, #tpu.memory_space<vmem>>, vector<8x384xf32>
    tpu.vector_store %arg5[%c41, %c0_40], %44 {strides = array<i32>} : memref<296x384xf32, #tpu.memory_space<vmem>>, vector<8x384xf32>,
    %c367_i32_41 = arith.constant 367 : i32
    %46 = tpu.dynamic_rotate %34 by %c367_i32_41 dim 1 : vector<8x384xf32>, i32 -> vector<8x384xf32>
    %c49 = arith.constant 49 : index
    %c0_42 = arith.constant 0 : index
    %47 = vector.load %arg5[%c49, %c0_42] : memref<296x384xf32, #tpu.memory_space<vmem>>, vector<8x384xf32>
    tpu.vector_store %arg5[%c49, %c0_42], %46 {strides = array<i32>} : memref<296x384xf32, #tpu.memory_space<vmem>>, vector<8x384xf32>,
    %c366_i32_43 = arith.constant 366 : i32
    %48 = tpu.dynamic_rotate %34 by %c366_i32_43 dim 1 : vector<8x384xf32>, i32 -> vector<8x384xf32>
    %c57 = arith.constant 57 : index
    %c0_44 = arith.constant 0 : index
    %49 = vector.load %arg5[%c57, %c0_44] : memref<296x384xf32, #tpu.memory_space<vmem>>, vector<8x384xf32>
    tpu.vector_store %arg5[%c57, %c0_44], %48 {strides = array<i32>} : memref<296x384xf32, #tpu.memory_space<vmem>>, vector<8x384xf32>,
    %c365_i32_45 = arith.constant 365 : i32
    %50 = tpu.dynamic_rotate %34 by %c365_i32_45 dim 1 : vector<8x384xf32>, i32 -> vector<8x384xf32>
    %c65 = arith.constant 65 : index
    %c0_46 = arith.constant 0 : index
    %51 = vector.load %arg5[%c65, %c0_46] : memref<296x384xf32, #tpu.memory_space<vmem>>, vector<8x384xf32>
    tpu.vector_store %arg5[%c65, %c0_46], %50 {strides = array<i32>} : memref<296x384xf32, #tpu.memory_space<vmem>>, vector<8x384xf32>,
    %cst_47 = arith.constant 0.000000e+00 : f32
    %52 = vector.broadcast %cst_47 : f32 to vector<7x384xf32>
    %c73 = arith.constant 73 : index
    %c0_48 = arith.constant 0 : index
    %53 = vector.load %arg5[%c73, %c0_48] : memref<296x384xf32, #tpu.memory_space<vmem>>, vector<7x384xf32>
    tpu.vector_store %arg5[%c73, %c0_48], %52 {strides = array<i32>} : memref<296x384xf32, #tpu.memory_space<vmem>>, vector<7x384xf32>,
    %c0_49 = arith.constant 0 : index
    %c128 = arith.constant 128 : index
    %54 = vector.load %arg2[%c0_49, %c128] : memref<16x2688xf32, #tpu.memory_space<vmem>>, vector<16x80xf32>
    %c0_50 = arith.constant 0 : index
    %c0_51 = arith.constant 0 : index
    %55 = vector.load %arg5[%c0_50, %c0_51] : memref<296x384xf32, #tpu.memory_space<vmem>>, vector<80x384xf32>
    %cst_52 = arith.constant dense<0.000000e+00> : vector<16x384xf32>
    %56 = tpu.matmul %54, %55, %cst_52 {dimension_numbers = #tpu.dot_dimension_numbers<[1], [0], [0], [1], [0, 0, 1, 1], [], []>} : vector<16x80xf32>, vector<80x384xf32>, vector<16x384xf32> -> vector<16x384xf32>
    %cst_53 = arith.constant 0.000000e+00 : f32
    %57 = vector.broadcast %cst_53 : f32 to vector<16x384xf32>
    %58 = arith.maximumf %56, %57 : vector<16x384xf32>
    %cst_54 = arith.constant 0.000000e+00 : f32
    %59 = vector.shape_cast %2 : vector<1x384xi1> to vector<1x384xi1>
    %60 = vector.broadcast %59 : vector<1x384xi1> to vector<16x384xi1>
    %61 = vector.broadcast %cst_54 : f32 to vector<16x384xf32>
    %62 = arith.select %60, %58, %61 : vector<16x384xi1>, vector<16x384xf32>
    %c19_i32_55 = arith.constant 19 : i32
    %63 = tpu.dynamic_rotate %62 by %c19_i32_55 dim 1 : vector<16x384xf32>, i32 -> vector<16x384xf32>
    %c1_56 = arith.constant 1 : index
    %c0_57 = arith.constant 0 : index
    %64 = vector.load %arg5[%c1_56, %c0_57] : memref<296x384xf32, #tpu.memory_space<vmem>>, vector<16x384xf32>
    tpu.vector_store %arg5[%c1_56, %c0_57], %63 {strides = array<i32>} : memref<296x384xf32, #tpu.memory_space<vmem>>, vector<16x384xf32>,
    %c18_i32_58 = arith.constant 18 : i32
    %65 = tpu.dynamic_rotate %62 by %c18_i32_58 dim 1 : vector<16x384xf32>, i32 -> vector<16x384xf32>
    %c17_59 = arith.constant 17 : index
    %c0_60 = arith.constant 0 : index
    %66 = vector.load %arg5[%c17_59, %c0_60] : memref<296x384xf32, #tpu.memory_space<vmem>>, vector<16x384xf32>
    tpu.vector_store %arg5[%c17_59, %c0_60], %65 {strides = array<i32>} : memref<296x384xf32, #tpu.memory_space<vmem>>, vector<16x384xf32>,
    %c17_i32_61 = arith.constant 17 : i32
    %67 = tpu.dynamic_rotate %62 by %c17_i32_61 dim 1 : vector<16x384xf32>, i32 -> vector<16x384xf32>
    %c33_62 = arith.constant 33 : index
    %c0_63 = arith.constant 0 : index
    %68 = vector.load %arg5[%c33_62, %c0_63] : memref<296x384xf32, #tpu.memory_space<vmem>>, vector<16x384xf32>
    tpu.vector_store %arg5[%c33_62, %c0_63], %67 {strides = array<i32>} : memref<296x384xf32, #tpu.memory_space<vmem>>, vector<16x384xf32>,
    %c1_i32_64 = arith.constant 1 : i32
    %69 = tpu.dynamic_rotate %62 by %c1_i32_64 dim 1 : vector<16x384xf32>, i32 -> vector<16x384xf32>
    %c49_65 = arith.constant 49 : index
    %c0_66 = arith.constant 0 : index
    %70 = vector.load %arg5[%c49_65, %c0_66] : memref<296x384xf32, #tpu.memory_space<vmem>>, vector<16x384xf32>
    tpu.vector_store %arg5[%c49_65, %c0_66], %69 {strides = array<i32>} : memref<296x384xf32, #tpu.memory_space<vmem>>, vector<16x384xf32>,
    %c65_67 = arith.constant 65 : index
    %c0_68 = arith.constant 0 : index
    %71 = vector.load %arg5[%c65_67, %c0_68] : memref<296x384xf32, #tpu.memory_space<vmem>>, vector<16x384xf32>
    tpu.vector_store %arg5[%c65_67, %c0_68], %62 {strides = array<i32>} : memref<296x384xf32, #tpu.memory_space<vmem>>, vector<16x384xf32>,
    %c383_i32_69 = arith.constant 383 : i32
    %72 = tpu.dynamic_rotate %62 by %c383_i32_69 dim 1 : vector<16x384xf32>, i32 -> vector<16x384xf32>
    %c81 = arith.constant 81 : index
    %c0_70 = arith.constant 0 : index
    %73 = vector.load %arg5[%c81, %c0_70] : memref<296x384xf32, #tpu.memory_space<vmem>>, vector<16x384xf32>
    tpu.vector_store %arg5[%c81, %c0_70], %72 {strides = array<i32>} : memref<296x384xf32, #tpu.memory_space<vmem>>, vector<16x384xf32>,
    %c367_i32_71 = arith.constant 367 : i32
    %74 = tpu.dynamic_rotate %62 by %c367_i32_71 dim 1 : vector<16x384xf32>, i32 -> vector<16x384xf32>
    %c97 = arith.constant 97 : index
    %c0_72 = arith.constant 0 : index
    %75 = vector.load %arg5[%c97, %c0_72] : memref<296x384xf32, #tpu.memory_space<vmem>>, vector<16x384xf32>
    tpu.vector_store %arg5[%c97, %c0_72], %74 {strides = array<i32>} : memref<296x384xf32, #tpu.memory_space<vmem>>, vector<16x384xf32>,
    %c366_i32_73 = arith.constant 366 : i32
    %76 = tpu.dynamic_rotate %62 by %c366_i32_73 dim 1 : vector<16x384xf32>, i32 -> vector<16x384xf32>
    %c113 = arith.constant 113 : index
    %c0_74 = arith.constant 0 : index
    %77 = vector.load %arg5[%c113, %c0_74] : memref<296x384xf32, #tpu.memory_space<vmem>>, vector<16x384xf32>
    tpu.vector_store %arg5[%c113, %c0_74], %76 {strides = array<i32>} : memref<296x384xf32, #tpu.memory_space<vmem>>, vector<16x384xf32>,
    %c365_i32_75 = arith.constant 365 : i32
    %78 = tpu.dynamic_rotate %62 by %c365_i32_75 dim 1 : vector<16x384xf32>, i32 -> vector<16x384xf32>
    %c129 = arith.constant 129 : index
    %c0_76 = arith.constant 0 : index
    %79 = vector.load %arg5[%c129, %c0_76] : memref<296x384xf32, #tpu.memory_space<vmem>>, vector<16x384xf32>
    tpu.vector_store %arg5[%c129, %c0_76], %78 {strides = array<i32>} : memref<296x384xf32, #tpu.memory_space<vmem>>, vector<16x384xf32>,
    %cst_77 = arith.constant 0.000000e+00 : f32
    %80 = vector.broadcast %cst_77 : f32 to vector<7x384xf32>
    %c145 = arith.constant 145 : index
    %c0_78 = arith.constant 0 : index
    %81 = vector.load %arg5[%c145, %c0_78] : memref<296x384xf32, #tpu.memory_space<vmem>>, vector<7x384xf32>
    tpu.vector_store %arg5[%c145, %c0_78], %80 {strides = array<i32>} : memref<296x384xf32, #tpu.memory_space<vmem>>, vector<7x384xf32>,
    %c0_79 = arith.constant 0 : index
    %c256 = arith.constant 256 : index
    %82 = vector.load %arg2[%c0_79, %c256] : memref<16x2688xf32, #tpu.memory_space<vmem>>, vector<16x152xf32>
    %c0_80 = arith.constant 0 : index
    %c0_81 = arith.constant 0 : index
    %83 = vector.load %arg5[%c0_80, %c0_81] : memref<296x384xf32, #tpu.memory_space<vmem>>, vector<152x384xf32>
    %cst_82 = arith.constant dense<0.000000e+00> : vector<16x384xf32>
    %84 = tpu.matmul %82, %83, %cst_82 {dimension_numbers = #tpu.dot_dimension_numbers<[1], [0], [0], [1], [0, 0, 1, 1], [], []>} : vector<16x152xf32>, vector<152x384xf32>, vector<16x384xf32> -> vector<16x384xf32>
    %cst_83 = arith.constant 0.000000e+00 : f32
    %85 = vector.broadcast %cst_83 : f32 to vector<16x384xf32>
    %86 = arith.maximumf %84, %85 : vector<16x384xf32>
    %cst_84 = arith.constant 0.000000e+00 : f32
    %87 = vector.shape_cast %2 : vector<1x384xi1> to vector<1x384xi1>
    %88 = vector.broadcast %87 : vector<1x384xi1> to vector<16x384xi1>
    %89 = vector.broadcast %cst_84 : f32 to vector<16x384xf32>
    %90 = arith.select %88, %86, %89 : vector<16x384xi1>, vector<16x384xf32>
    %c19_i32_85 = arith.constant 19 : i32
    %91 = tpu.dynamic_rotate %90 by %c19_i32_85 dim 1 : vector<16x384xf32>, i32 -> vector<16x384xf32>
    %c1_86 = arith.constant 1 : index
    %c0_87 = arith.constant 0 : index
    %92 = vector.load %arg5[%c1_86, %c0_87] : memref<296x384xf32, #tpu.memory_space<vmem>>, vector<16x384xf32>
    tpu.vector_store %arg5[%c1_86, %c0_87], %91 {strides = array<i32>} : memref<296x384xf32, #tpu.memory_space<vmem>>, vector<16x384xf32>,
    %c18_i32_88 = arith.constant 18 : i32
    %93 = tpu.dynamic_rotate %90 by %c18_i32_88 dim 1 : vector<16x384xf32>, i32 -> vector<16x384xf32>
    %c17_89 = arith.constant 17 : index
    %c0_90 = arith.constant 0 : index
    %94 = vector.load %arg5[%c17_89, %c0_90] : memref<296x384xf32, #tpu.memory_space<vmem>>, vector<16x384xf32>
    tpu.vector_store %arg5[%c17_89, %c0_90], %93 {strides = array<i32>} : memref<296x384xf32, #tpu.memory_space<vmem>>, vector<16x384xf32>,
    %c17_i32_91 = arith.constant 17 : i32
    %95 = tpu.dynamic_rotate %90 by %c17_i32_91 dim 1 : vector<16x384xf32>, i32 -> vector<16x384xf32>
    %c33_92 = arith.constant 33 : index
    %c0_93 = arith.constant 0 : index
    %96 = vector.load %arg5[%c33_92, %c0_93] : memref<296x384xf32, #tpu.memory_space<vmem>>, vector<16x384xf32>
    tpu.vector_store %arg5[%c33_92, %c0_93], %95 {strides = array<i32>} : memref<296x384xf32, #tpu.memory_space<vmem>>, vector<16x384xf32>,
    %c1_i32_94 = arith.constant 1 : i32
    %97 = tpu.dynamic_rotate %90 by %c1_i32_94 dim 1 : vector<16x384xf32>, i32 -> vector<16x384xf32>
    %c49_95 = arith.constant 49 : index
    %c0_96 = arith.constant 0 : index
    %98 = vector.load %arg5[%c49_95, %c0_96] : memref<296x384xf32, #tpu.memory_space<vmem>>, vector<16x384xf32>
    tpu.vector_store %arg5[%c49_95, %c0_96], %97 {strides = array<i32>} : memref<296x384xf32, #tpu.memory_space<vmem>>, vector<16x384xf32>,
    %c65_97 = arith.constant 65 : index
    %c0_98 = arith.constant 0 : index
    %99 = vector.load %arg5[%c65_97, %c0_98] : memref<296x384xf32, #tpu.memory_space<vmem>>, vector<16x384xf32>
    tpu.vector_store %arg5[%c65_97, %c0_98], %90 {strides = array<i32>} : memref<296x384xf32, #tpu.memory_space<vmem>>, vector<16x384xf32>,
    %c383_i32_99 = arith.constant 383 : i32
    %100 = tpu.dynamic_rotate %90 by %c383_i32_99 dim 1 : vector<16x384xf32>, i32 -> vector<16x384xf32>
    %c81_100 = arith.constant 81 : index
    %c0_101 = arith.constant 0 : index
    %101 = vector.load %arg5[%c81_100, %c0_101] : memref<296x384xf32, #tpu.memory_space<vmem>>, vector<16x384xf32>
    tpu.vector_store %arg5[%c81_100, %c0_101], %100 {strides = array<i32>} : memref<296x384xf32, #tpu.memory_space<vmem>>, vector<16x384xf32>,
    %c367_i32_102 = arith.constant 367 : i32
    %102 = tpu.dynamic_rotate %90 by %c367_i32_102 dim 1 : vector<16x384xf32>, i32 -> vector<16x384xf32>
    %c97_103 = arith.constant 97 : index
    %c0_104 = arith.constant 0 : index
    %103 = vector.load %arg5[%c97_103, %c0_104] : memref<296x384xf32, #tpu.memory_space<vmem>>, vector<16x384xf32>
    tpu.vector_store %arg5[%c97_103, %c0_104], %102 {strides = array<i32>} : memref<296x384xf32, #tpu.memory_space<vmem>>, vector<16x384xf32>,
    %c366_i32_105 = arith.constant 366 : i32
    %104 = tpu.dynamic_rotate %90 by %c366_i32_105 dim 1 : vector<16x384xf32>, i32 -> vector<16x384xf32>
    %c113_106 = arith.constant 113 : index
    %c0_107 = arith.constant 0 : index
    %105 = vector.load %arg5[%c113_106, %c0_107] : memref<296x384xf32, #tpu.memory_space<vmem>>, vector<16x384xf32>
    tpu.vector_store %arg5[%c113_106, %c0_107], %104 {strides = array<i32>} : memref<296x384xf32, #tpu.memory_space<vmem>>, vector<16x384xf32>,
    %c365_i32_108 = arith.constant 365 : i32
    %106 = tpu.dynamic_rotate %90 by %c365_i32_108 dim 1 : vector<16x384xf32>, i32 -> vector<16x384xf32>
    %c129_109 = arith.constant 129 : index
    %c0_110 = arith.constant 0 : index
    %107 = vector.load %arg5[%c129_109, %c0_110] : memref<296x384xf32, #tpu.memory_space<vmem>>, vector<16x384xf32>
    tpu.vector_store %arg5[%c129_109, %c0_110], %106 {strides = array<i32>} : memref<296x384xf32, #tpu.memory_space<vmem>>, vector<16x384xf32>,
    %c19_i32_111 = arith.constant 19 : i32
    %108 = tpu.dynamic_rotate %62 by %c19_i32_111 dim 1 : vector<16x384xf32>, i32 -> vector<16x384xf32>
    %c145_112 = arith.constant 145 : index
    %c0_113 = arith.constant 0 : index
    %109 = vector.load %arg5[%c145_112, %c0_113] : memref<296x384xf32, #tpu.memory_space<vmem>>, vector<16x384xf32>
    tpu.vector_store %arg5[%c145_112, %c0_113], %108 {strides = array<i32>} : memref<296x384xf32, #tpu.memory_space<vmem>>, vector<16x384xf32>,
    %c18_i32_114 = arith.constant 18 : i32
    %110 = tpu.dynamic_rotate %62 by %c18_i32_114 dim 1 : vector<16x384xf32>, i32 -> vector<16x384xf32>
    %c161 = arith.constant 161 : index
    %c0_115 = arith.constant 0 : index
    %111 = vector.load %arg5[%c161, %c0_115] : memref<296x384xf32, #tpu.memory_space<vmem>>, vector<16x384xf32>
    tpu.vector_store %arg5[%c161, %c0_115], %110 {strides = array<i32>} : memref<296x384xf32, #tpu.memory_space<vmem>>, vector<16x384xf32>,
    %c17_i32_116 = arith.constant 17 : i32
    %112 = tpu.dynamic_rotate %62 by %c17_i32_116 dim 1 : vector<16x384xf32>, i32 -> vector<16x384xf32>
    %c177 = arith.constant 177 : index
    %c0_117 = arith.constant 0 : index
    %113 = vector.load %arg5[%c177, %c0_117] : memref<296x384xf32, #tpu.memory_space<vmem>>, vector<16x384xf32>
    tpu.vector_store %arg5[%c177, %c0_117], %112 {strides = array<i32>} : memref<296x384xf32, #tpu.memory_space<vmem>>, vector<16x384xf32>,
    %c1_i32_118 = arith.constant 1 : i32
    %114 = tpu.dynamic_rotate %62 by %c1_i32_118 dim 1 : vector<16x384xf32>, i32 -> vector<16x384xf32>
    %c193 = arith.constant 193 : index
    %c0_119 = arith.constant 0 : index
    %115 = vector.load %arg5[%c193, %c0_119] : memref<296x384xf32, #tpu.memory_space<vmem>>, vector<16x384xf32>
    tpu.vector_store %arg5[%c193, %c0_119], %114 {strides = array<i32>} : memref<296x384xf32, #tpu.memory_space<vmem>>, vector<16x384xf32>,
    %c209 = arith.constant 209 : index
    %c0_120 = arith.constant 0 : index
    %116 = vector.load %arg5[%c209, %c0_120] : memref<296x384xf32, #tpu.memory_space<vmem>>, vector<16x384xf32>
    tpu.vector_store %arg5[%c209, %c0_120], %62 {strides = array<i32>} : memref<296x384xf32, #tpu.memory_space<vmem>>, vector<16x384xf32>,
    %c383_i32_121 = arith.constant 383 : i32
    %117 = tpu.dynamic_rotate %62 by %c383_i32_121 dim 1 : vector<16x384xf32>, i32 -> vector<16x384xf32>
    %c225 = arith.constant 225 : index
    %c0_122 = arith.constant 0 : index
    %118 = vector.load %arg5[%c225, %c0_122] : memref<296x384xf32, #tpu.memory_space<vmem>>, vector<16x384xf32>
    tpu.vector_store %arg5[%c225, %c0_122], %117 {strides = array<i32>} : memref<296x384xf32, #tpu.memory_space<vmem>>, vector<16x384xf32>,
    %c367_i32_123 = arith.constant 367 : i32
    %119 = tpu.dynamic_rotate %62 by %c367_i32_123 dim 1 : vector<16x384xf32>, i32 -> vector<16x384xf32>
    %c241 = arith.constant 241 : index
    %c0_124 = arith.constant 0 : index
    %120 = vector.load %arg5[%c241, %c0_124] : memref<296x384xf32, #tpu.memory_space<vmem>>, vector<16x384xf32>
    tpu.vector_store %arg5[%c241, %c0_124], %119 {strides = array<i32>} : memref<296x384xf32, #tpu.memory_space<vmem>>, vector<16x384xf32>,
    %c366_i32_125 = arith.constant 366 : i32
    %121 = tpu.dynamic_rotate %62 by %c366_i32_125 dim 1 : vector<16x384xf32>, i32 -> vector<16x384xf32>
    %c257 = arith.constant 257 : index
    %c0_126 = arith.constant 0 : index
    %122 = vector.load %arg5[%c257, %c0_126] : memref<296x384xf32, #tpu.memory_space<vmem>>, vector<16x384xf32>
    tpu.vector_store %arg5[%c257, %c0_126], %121 {strides = array<i32>} : memref<296x384xf32, #tpu.memory_space<vmem>>, vector<16x384xf32>,
    %c365_i32_127 = arith.constant 365 : i32
    %123 = tpu.dynamic_rotate %62 by %c365_i32_127 dim 1 : vector<16x384xf32>, i32 -> vector<16x384xf32>
    %c273 = arith.constant 273 : index
    %c0_128 = arith.constant 0 : index
    %124 = vector.load %arg5[%c273, %c0_128] : memref<296x384xf32, #tpu.memory_space<vmem>>, vector<16x384xf32>
    tpu.vector_store %arg5[%c273, %c0_128], %123 {strides = array<i32>} : memref<296x384xf32, #tpu.memory_space<vmem>>, vector<16x384xf32>,
    %cst_129 = arith.constant 0.000000e+00 : f32
    %125 = vector.broadcast %cst_129 : f32 to vector<7x384xf32>
    %c289 = arith.constant 289 : index
    %c0_130 = arith.constant 0 : index
    %126 = vector.load %arg5[%c289, %c0_130] : memref<296x384xf32, #tpu.memory_space<vmem>>, vector<7x384xf32>
    tpu.vector_store %arg5[%c289, %c0_130], %125 {strides = array<i32>} : memref<296x384xf32, #tpu.memory_space<vmem>>, vector<7x384xf32>,
    %c0_131 = arith.constant 0 : index
    %c512 = arith.constant 512 : index
    %127 = vector.load %arg2[%c0_131, %c512] : memref<16x2688xf32, #tpu.memory_space<vmem>>, vector<8x296xf32>
    %c0_132 = arith.constant 0 : index
    %c0_133 = arith.constant 0 : index
    %128 = vector.load %arg5[%c0_132, %c0_133] : memref<296x384xf32, #tpu.memory_space<vmem>>, vector<296x384xf32>
    %cst_134 = arith.constant dense<0.000000e+00> : vector<8x384xf32>
    %129 = tpu.matmul %127, %128, %cst_134 {dimension_numbers = #tpu.dot_dimension_numbers<[1], [0], [0], [1], [0, 0, 1, 1], [], []>} : vector<8x296xf32>, vector<296x384xf32>, vector<8x384xf32> -> vector<8x384xf32>
    %cst_135 = arith.constant 0.000000e+00 : f32
    %130 = vector.broadcast %cst_135 : f32 to vector<8x384xf32>
    %131 = arith.maximumf %129, %130 : vector<8x384xf32>
    %cst_136 = arith.constant 0.000000e+00 : f32
    %132 = vector.shape_cast %2 : vector<1x384xi1> to vector<1x384xi1>
    %133 = vector.broadcast %132 : vector<1x384xi1> to vector<8x384xi1>
    %134 = vector.broadcast %cst_136 : f32 to vector<8x384xf32>
    %135 = arith.select %133, %131, %134 : vector<8x384xi1>, vector<8x384xf32>
    %c19_i32_137 = arith.constant 19 : i32
    %136 = tpu.dynamic_rotate %135 by %c19_i32_137 dim 1 : vector<8x384xf32>, i32 -> vector<8x384xf32>
    %c1_138 = arith.constant 1 : index
    %c0_139 = arith.constant 0 : index
    %137 = vector.load %arg5[%c1_138, %c0_139] : memref<296x384xf32, #tpu.memory_space<vmem>>, vector<8x384xf32>
    tpu.vector_store %arg5[%c1_138, %c0_139], %136 {strides = array<i32>} : memref<296x384xf32, #tpu.memory_space<vmem>>, vector<8x384xf32>,
    %c18_i32_140 = arith.constant 18 : i32
    %138 = tpu.dynamic_rotate %135 by %c18_i32_140 dim 1 : vector<8x384xf32>, i32 -> vector<8x384xf32>
    %c9_141 = arith.constant 9 : index
    %c0_142 = arith.constant 0 : index
    %139 = vector.load %arg5[%c9_141, %c0_142] : memref<296x384xf32, #tpu.memory_space<vmem>>, vector<8x384xf32>
    tpu.vector_store %arg5[%c9_141, %c0_142], %138 {strides = array<i32>} : memref<296x384xf32, #tpu.memory_space<vmem>>, vector<8x384xf32>,
    %c17_i32_143 = arith.constant 17 : i32
    %140 = tpu.dynamic_rotate %135 by %c17_i32_143 dim 1 : vector<8x384xf32>, i32 -> vector<8x384xf32>
    %c17_144 = arith.constant 17 : index
    %c0_145 = arith.constant 0 : index
    %141 = vector.load %arg5[%c17_144, %c0_145] : memref<296x384xf32, #tpu.memory_space<vmem>>, vector<8x384xf32>
    tpu.vector_store %arg5[%c17_144, %c0_145], %140 {strides = array<i32>} : memref<296x384xf32, #tpu.memory_space<vmem>>, vector<8x384xf32>,
    %c1_i32_146 = arith.constant 1 : i32
    %142 = tpu.dynamic_rotate %135 by %c1_i32_146 dim 1 : vector<8x384xf32>, i32 -> vector<8x384xf32>
    %c25_147 = arith.constant 25 : index
    %c0_148 = arith.constant 0 : index
    %143 = vector.load %arg5[%c25_147, %c0_148] : memref<296x384xf32, #tpu.memory_space<vmem>>, vector<8x384xf32>
    tpu.vector_store %arg5[%c25_147, %c0_148], %142 {strides = array<i32>} : memref<296x384xf32, #tpu.memory_space<vmem>>, vector<8x384xf32>,
    %c33_149 = arith.constant 33 : index
    %c0_150 = arith.constant 0 : index
    %144 = vector.load %arg5[%c33_149, %c0_150] : memref<296x384xf32, #tpu.memory_space<vmem>>, vector<8x384xf32>
    tpu.vector_store %arg5[%c33_149, %c0_150], %135 {strides = array<i32>} : memref<296x384xf32, #tpu.memory_space<vmem>>, vector<8x384xf32>,
    %c383_i32_151 = arith.constant 383 : i32
    %145 = tpu.dynamic_rotate %135 by %c383_i32_151 dim 1 : vector<8x384xf32>, i32 -> vector<8x384xf32>
    %c41_152 = arith.constant 41 : index
    %c0_153 = arith.constant 0 : index
    %146 = vector.load %arg5[%c41_152, %c0_153] : memref<296x384xf32, #tpu.memory_space<vmem>>, vector<8x384xf32>
    tpu.vector_store %arg5[%c41_152, %c0_153], %145 {strides = array<i32>} : memref<296x384xf32, #tpu.memory_space<vmem>>, vector<8x384xf32>,
    %c367_i32_154 = arith.constant 367 : i32
    %147 = tpu.dynamic_rotate %135 by %c367_i32_154 dim 1 : vector<8x384xf32>, i32 -> vector<8x384xf32>
    %c49_155 = arith.constant 49 : index
    %c0_156 = arith.constant 0 : index
    %148 = vector.load %arg5[%c49_155, %c0_156] : memref<296x384xf32, #tpu.memory_space<vmem>>, vector<8x384xf32>
    tpu.vector_store %arg5[%c49_155, %c0_156], %147 {strides = array<i32>} : memref<296x384xf32, #tpu.memory_space<vmem>>, vector<8x384xf32>,
    %c366_i32_157 = arith.constant 366 : i32
    %149 = tpu.dynamic_rotate %135 by %c366_i32_157 dim 1 : vector<8x384xf32>, i32 -> vector<8x384xf32>
    %c57_158 = arith.constant 57 : index
    %c0_159 = arith.constant 0 : index
    %150 = vector.load %arg5[%c57_158, %c0_159] : memref<296x384xf32, #tpu.memory_space<vmem>>, vector<8x384xf32>
    tpu.vector_store %arg5[%c57_158, %c0_159], %149 {strides = array<i32>} : memref<296x384xf32, #tpu.memory_space<vmem>>, vector<8x384xf32>,
    %c365_i32_160 = arith.constant 365 : i32
    %151 = tpu.dynamic_rotate %135 by %c365_i32_160 dim 1 : vector<8x384xf32>, i32 -> vector<8x384xf32>
    %c65_161 = arith.constant 65 : index
    %c0_162 = arith.constant 0 : index
    %152 = vector.load %arg5[%c65_161, %c0_162] : memref<296x384xf32, #tpu.memory_space<vmem>>, vector<8x384xf32>
    tpu.vector_store %arg5[%c65_161, %c0_162], %151 {strides = array<i32>} : memref<296x384xf32, #tpu.memory_space<vmem>>, vector<8x384xf32>,
    %c19_i32_163 = arith.constant 19 : i32
    %153 = tpu.dynamic_rotate %34 by %c19_i32_163 dim 1 : vector<8x384xf32>, i32 -> vector<8x384xf32>
    %c73_164 = arith.constant 73 : index
    %c0_165 = arith.constant 0 : index
    %154 = vector.load %arg5[%c73_164, %c0_165] : memref<296x384xf32, #tpu.memory_space<vmem>>, vector<8x384xf32>
    tpu.vector_store %arg5[%c73_164, %c0_165], %153 {strides = array<i32>} : memref<296x384xf32, #tpu.memory_space<vmem>>, vector<8x384xf32>,
    %c18_i32_166 = arith.constant 18 : i32
    %155 = tpu.dynamic_rotate %34 by %c18_i32_166 dim 1 : vector<8x384xf32>, i32 -> vector<8x384xf32>
    %c81_167 = arith.constant 81 : index
    %c0_168 = arith.constant 0 : index
    %156 = vector.load %arg5[%c81_167, %c0_168] : memref<296x384xf32, #tpu.memory_space<vmem>>, vector<8x384xf32>
    tpu.vector_store %arg5[%c81_167, %c0_168], %155 {strides = array<i32>} : memref<296x384xf32, #tpu.memory_space<vmem>>, vector<8x384xf32>,
    %c17_i32_169 = arith.constant 17 : i32
    %157 = tpu.dynamic_rotate %34 by %c17_i32_169 dim 1 : vector<8x384xf32>, i32 -> vector<8x384xf32>
    %c89 = arith.constant 89 : index
    %c0_170 = arith.constant 0 : index
    %158 = vector.load %arg5[%c89, %c0_170] : memref<296x384xf32, #tpu.memory_space<vmem>>, vector<8x384xf32>
    tpu.vector_store %arg5[%c89, %c0_170], %157 {strides = array<i32>} : memref<296x384xf32, #tpu.memory_space<vmem>>, vector<8x384xf32>,
    %c1_i32_171 = arith.constant 1 : i32
    %159 = tpu.dynamic_rotate %34 by %c1_i32_171 dim 1 : vector<8x384xf32>, i32 -> vector<8x384xf32>
    %c97_172 = arith.constant 97 : index
    %c0_173 = arith.constant 0 : index
    %160 = vector.load %arg5[%c97_172, %c0_173] : memref<296x384xf32, #tpu.memory_space<vmem>>, vector<8x384xf32>
    tpu.vector_store %arg5[%c97_172, %c0_173], %159 {strides = array<i32>} : memref<296x384xf32, #tpu.memory_space<vmem>>, vector<8x384xf32>,
    %c105 = arith.constant 105 : index
    %c0_174 = arith.constant 0 : index
    %161 = vector.load %arg5[%c105, %c0_174] : memref<296x384xf32, #tpu.memory_space<vmem>>, vector<8x384xf32>
    tpu.vector_store %arg5[%c105, %c0_174], %34 {strides = array<i32>} : memref<296x384xf32, #tpu.memory_space<vmem>>, vector<8x384xf32>,
    %c383_i32_175 = arith.constant 383 : i32
    %162 = tpu.dynamic_rotate %34 by %c383_i32_175 dim 1 : vector<8x384xf32>, i32 -> vector<8x384xf32>
    %c113_176 = arith.constant 113 : index
    %c0_177 = arith.constant 0 : index
    %163 = vector.load %arg5[%c113_176, %c0_177] : memref<296x384xf32, #tpu.memory_space<vmem>>, vector<8x384xf32>
    tpu.vector_store %arg5[%c113_176, %c0_177], %162 {strides = array<i32>} : memref<296x384xf32, #tpu.memory_space<vmem>>, vector<8x384xf32>,
    %c367_i32_178 = arith.constant 367 : i32
    %164 = tpu.dynamic_rotate %34 by %c367_i32_178 dim 1 : vector<8x384xf32>, i32 -> vector<8x384xf32>
    %c121 = arith.constant 121 : index
    %c0_179 = arith.constant 0 : index
    %165 = vector.load %arg5[%c121, %c0_179] : memref<296x384xf32, #tpu.memory_space<vmem>>, vector<8x384xf32>
    tpu.vector_store %arg5[%c121, %c0_179], %164 {strides = array<i32>} : memref<296x384xf32, #tpu.memory_space<vmem>>, vector<8x384xf32>,
    %c366_i32_180 = arith.constant 366 : i32
    %166 = tpu.dynamic_rotate %34 by %c366_i32_180 dim 1 : vector<8x384xf32>, i32 -> vector<8x384xf32>
    %c129_181 = arith.constant 129 : index
    %c0_182 = arith.constant 0 : index
    %167 = vector.load %arg5[%c129_181, %c0_182] : memref<296x384xf32, #tpu.memory_space<vmem>>, vector<8x384xf32>
    tpu.vector_store %arg5[%c129_181, %c0_182], %166 {strides = array<i32>} : memref<296x384xf32, #tpu.memory_space<vmem>>, vector<8x384xf32>,
    %c365_i32_183 = arith.constant 365 : i32
    %168 = tpu.dynamic_rotate %34 by %c365_i32_183 dim 1 : vector<8x384xf32>, i32 -> vector<8x384xf32>
    %c137 = arith.constant 137 : index
    %c0_184 = arith.constant 0 : index
    %169 = vector.load %arg5[%c137, %c0_184] : memref<296x384xf32, #tpu.memory_space<vmem>>, vector<8x384xf32>
    tpu.vector_store %arg5[%c137, %c0_184], %168 {strides = array<i32>} : memref<296x384xf32, #tpu.memory_space<vmem>>, vector<8x384xf32>,
    %cst_185 = arith.constant 0.000000e+00 : f32
    %170 = vector.broadcast %cst_185 : f32 to vector<7x384xf32>
    %c145_186 = arith.constant 145 : index
    %c0_187 = arith.constant 0 : index
    %171 = vector.load %arg5[%c145_186, %c0_187] : memref<296x384xf32, #tpu.memory_space<vmem>>, vector<7x384xf32>
    tpu.vector_store %arg5[%c145_186, %c0_187], %170 {strides = array<i32>} : memref<296x384xf32, #tpu.memory_space<vmem>>, vector<7x384xf32>,
    %c0_188 = arith.constant 0 : index
    %c896 = arith.constant 896 : index
    %172 = vector.load %arg2[%c0_188, %c896] : memref<16x2688xf32, #tpu.memory_space<vmem>>, vector<4x152xf32>
    %c0_189 = arith.constant 0 : index
    %c0_190 = arith.constant 0 : index
    %173 = vector.load %arg5[%c0_189, %c0_190] : memref<296x384xf32, #tpu.memory_space<vmem>>, vector<152x384xf32>
    %cst_191 = arith.constant dense<0.000000e+00> : vector<4x384xf32>
    %174 = tpu.matmul %172, %173, %cst_191 {dimension_numbers = #tpu.dot_dimension_numbers<[1], [0], [0], [1], [0, 0, 1, 1], [], []>} : vector<4x152xf32>, vector<152x384xf32>, vector<4x384xf32> -> vector<4x384xf32>
    %cst_192 = arith.constant 0.000000e+00 : f32
    %175 = vector.broadcast %cst_192 : f32 to vector<4x384xf32>
    %176 = arith.maximumf %174, %175 : vector<4x384xf32>
    %cst_193 = arith.constant 0.000000e+00 : f32
    %177 = vector.shape_cast %2 : vector<1x384xi1> to vector<1x384xi1>
    %178 = vector.broadcast %177 : vector<1x384xi1> to vector<4x384xi1>
    %179 = vector.broadcast %cst_193 : f32 to vector<4x384xf32>
    %180 = arith.select %178, %176, %179 : vector<4x384xi1>, vector<4x384xf32>
    %c19_i32_194 = arith.constant 19 : i32
    %181 = tpu.dynamic_rotate %180 by %c19_i32_194 dim 1 : vector<4x384xf32>, i32 -> vector<4x384xf32>
    %c1_195 = arith.constant 1 : index
    %c0_196 = arith.constant 0 : index
    %182 = vector.load %arg5[%c1_195, %c0_196] : memref<296x384xf32, #tpu.memory_space<vmem>>, vector<4x384xf32>
    tpu.vector_store %arg5[%c1_195, %c0_196], %181 {strides = array<i32>} : memref<296x384xf32, #tpu.memory_space<vmem>>, vector<4x384xf32>,
    %c18_i32_197 = arith.constant 18 : i32
    %183 = tpu.dynamic_rotate %180 by %c18_i32_197 dim 1 : vector<4x384xf32>, i32 -> vector<4x384xf32>
    %c5_198 = arith.constant 5 : index
    %c0_199 = arith.constant 0 : index
    %184 = vector.load %arg5[%c5_198, %c0_199] : memref<296x384xf32, #tpu.memory_space<vmem>>, vector<4x384xf32>
    tpu.vector_store %arg5[%c5_198, %c0_199], %183 {strides = array<i32>} : memref<296x384xf32, #tpu.memory_space<vmem>>, vector<4x384xf32>,
    %c17_i32_200 = arith.constant 17 : i32
    %185 = tpu.dynamic_rotate %180 by %c17_i32_200 dim 1 : vector<4x384xf32>, i32 -> vector<4x384xf32>
    %c9_201 = arith.constant 9 : index
    %c0_202 = arith.constant 0 : index
    %186 = vector.load %arg5[%c9_201, %c0_202] : memref<296x384xf32, #tpu.memory_space<vmem>>, vector<4x384xf32>
    tpu.vector_store %arg5[%c9_201, %c0_202], %185 {strides = array<i32>} : memref<296x384xf32, #tpu.memory_space<vmem>>, vector<4x384xf32>,
    %c1_i32_203 = arith.constant 1 : i32
    %187 = tpu.dynamic_rotate %180 by %c1_i32_203 dim 1 : vector<4x384xf32>, i32 -> vector<4x384xf32>
    %c13_204 = arith.constant 13 : index
    %c0_205 = arith.constant 0 : index
    %188 = vector.load %arg5[%c13_204, %c0_205] : memref<296x384xf32, #tpu.memory_space<vmem>>, vector<4x384xf32>
    tpu.vector_store %arg5[%c13_204, %c0_205], %187 {strides = array<i32>} : memref<296x384xf32, #tpu.memory_space<vmem>>, vector<4x384xf32>,
    %c17_206 = arith.constant 17 : index
    %c0_207 = arith.constant 0 : index
    %189 = vector.load %arg5[%c17_206, %c0_207] : memref<296x384xf32, #tpu.memory_space<vmem>>, vector<4x384xf32>
    tpu.vector_store %arg5[%c17_206, %c0_207], %180 {strides = array<i32>} : memref<296x384xf32, #tpu.memory_space<vmem>>, vector<4x384xf32>,
    %c383_i32_208 = arith.constant 383 : i32
    %190 = tpu.dynamic_rotate %180 by %c383_i32_208 dim 1 : vector<4x384xf32>, i32 -> vector<4x384xf32>
    %c21_209 = arith.constant 21 : index
    %c0_210 = arith.constant 0 : index
    %191 = vector.load %arg5[%c21_209, %c0_210] : memref<296x384xf32, #tpu.memory_space<vmem>>, vector<4x384xf32>
    tpu.vector_store %arg5[%c21_209, %c0_210], %190 {strides = array<i32>} : memref<296x384xf32, #tpu.memory_space<vmem>>, vector<4x384xf32>,
    %c367_i32_211 = arith.constant 367 : i32
    %192 = tpu.dynamic_rotate %180 by %c367_i32_211 dim 1 : vector<4x384xf32>, i32 -> vector<4x384xf32>
    %c25_212 = arith.constant 25 : index
    %c0_213 = arith.constant 0 : index
    %193 = vector.load %arg5[%c25_212, %c0_213] : memref<296x384xf32, #tpu.memory_space<vmem>>, vector<4x384xf32>
    tpu.vector_store %arg5[%c25_212, %c0_213], %192 {strides = array<i32>} : memref<296x384xf32, #tpu.memory_space<vmem>>, vector<4x384xf32>,
    %c366_i32_214 = arith.constant 366 : i32
    %194 = tpu.dynamic_rotate %180 by %c366_i32_214 dim 1 : vector<4x384xf32>, i32 -> vector<4x384xf32>
    %c29_215 = arith.constant 29 : index
    %c0_216 = arith.constant 0 : index
    %195 = vector.load %arg5[%c29_215, %c0_216] : memref<296x384xf32, #tpu.memory_space<vmem>>, vector<4x384xf32>
    tpu.vector_store %arg5[%c29_215, %c0_216], %194 {strides = array<i32>} : memref<296x384xf32, #tpu.memory_space<vmem>>, vector<4x384xf32>,
    %c365_i32_217 = arith.constant 365 : i32
    %196 = tpu.dynamic_rotate %180 by %c365_i32_217 dim 1 : vector<4x384xf32>, i32 -> vector<4x384xf32>
    %c33_218 = arith.constant 33 : index
    %c0_219 = arith.constant 0 : index
    %197 = vector.load %arg5[%c33_218, %c0_219] : memref<296x384xf32, #tpu.memory_space<vmem>>, vector<4x384xf32>
    tpu.vector_store %arg5[%c33_218, %c0_219], %196 {strides = array<i32>} : memref<296x384xf32, #tpu.memory_space<vmem>>, vector<4x384xf32>,
    %cst_220 = arith.constant 0.000000e+00 : f32
    %198 = vector.broadcast %cst_220 : f32 to vector<3x384xf32>
    %c37_221 = arith.constant 37 : index
    %c0_222 = arith.constant 0 : index
    %199 = vector.load %arg5[%c37_221, %c0_222] : memref<296x384xf32, #tpu.memory_space<vmem>>, vector<3x384xf32>
    tpu.vector_store %arg5[%c37_221, %c0_222], %198 {strides = array<i32>} : memref<296x384xf32, #tpu.memory_space<vmem>>, vector<3x384xf32>,
    %c0_223 = arith.constant 0 : index
    %c1152 = arith.constant 1152 : index
    %200 = vector.load %arg2[%c0_223, %c1152] : memref<16x2688xf32, #tpu.memory_space<vmem>>, vector<8x40xf32>
    %c0_224 = arith.constant 0 : index
    %c0_225 = arith.constant 0 : index
    %201 = vector.load %arg5[%c0_224, %c0_225] : memref<296x384xf32, #tpu.memory_space<vmem>>, vector<40x384xf32>
    %cst_226 = arith.constant dense<0.000000e+00> : vector<8x384xf32>
    %202 = tpu.matmul %200, %201, %cst_226 {dimension_numbers = #tpu.dot_dimension_numbers<[1], [0], [0], [1], [0, 0, 1, 1], [], []>} : vector<8x40xf32>, vector<40x384xf32>, vector<8x384xf32> -> vector<8x384xf32>
    %cst_227 = arith.constant 0.000000e+00 : f32
    %203 = vector.broadcast %cst_227 : f32 to vector<8x384xf32>
    %204 = arith.maximumf %202, %203 : vector<8x384xf32>
    %cst_228 = arith.constant 0.000000e+00 : f32
    %205 = vector.shape_cast %2 : vector<1x384xi1> to vector<1x384xi1>
    %206 = vector.broadcast %205 : vector<1x384xi1> to vector<8x384xi1>
    %207 = vector.broadcast %cst_228 : f32 to vector<8x384xf32>
    %208 = arith.select %206, %204, %207 : vector<8x384xi1>, vector<8x384xf32>
    %209 = arith.addf %34, %208 : vector<8x384xf32>
    %c19_i32_229 = arith.constant 19 : i32
    %210 = tpu.dynamic_rotate %208 by %c19_i32_229 dim 1 : vector<8x384xf32>, i32 -> vector<8x384xf32>
    %c1_230 = arith.constant 1 : index
    %c0_231 = arith.constant 0 : index
    %211 = vector.load %arg5[%c1_230, %c0_231] : memref<296x384xf32, #tpu.memory_space<vmem>>, vector<8x384xf32>
    tpu.vector_store %arg5[%c1_230, %c0_231], %210 {strides = array<i32>} : memref<296x384xf32, #tpu.memory_space<vmem>>, vector<8x384xf32>,
    %c18_i32_232 = arith.constant 18 : i32
    %212 = tpu.dynamic_rotate %208 by %c18_i32_232 dim 1 : vector<8x384xf32>, i32 -> vector<8x384xf32>
    %c9_233 = arith.constant 9 : index
    %c0_234 = arith.constant 0 : index
    %213 = vector.load %arg5[%c9_233, %c0_234] : memref<296x384xf32, #tpu.memory_space<vmem>>, vector<8x384xf32>
    tpu.vector_store %arg5[%c9_233, %c0_234], %212 {strides = array<i32>} : memref<296x384xf32, #tpu.memory_space<vmem>>, vector<8x384xf32>,
    %c17_i32_235 = arith.constant 17 : i32
    %214 = tpu.dynamic_rotate %208 by %c17_i32_235 dim 1 : vector<8x384xf32>, i32 -> vector<8x384xf32>
    %c17_236 = arith.constant 17 : index
    %c0_237 = arith.constant 0 : index
    %215 = vector.load %arg5[%c17_236, %c0_237] : memref<296x384xf32, #tpu.memory_space<vmem>>, vector<8x384xf32>
    tpu.vector_store %arg5[%c17_236, %c0_237], %214 {strides = array<i32>} : memref<296x384xf32, #tpu.memory_space<vmem>>, vector<8x384xf32>,
    %c1_i32_238 = arith.constant 1 : i32
    %216 = tpu.dynamic_rotate %208 by %c1_i32_238 dim 1 : vector<8x384xf32>, i32 -> vector<8x384xf32>
    %c25_239 = arith.constant 25 : index
    %c0_240 = arith.constant 0 : index
    %217 = vector.load %arg5[%c25_239, %c0_240] : memref<296x384xf32, #tpu.memory_space<vmem>>, vector<8x384xf32>
    tpu.vector_store %arg5[%c25_239, %c0_240], %216 {strides = array<i32>} : memref<296x384xf32, #tpu.memory_space<vmem>>, vector<8x384xf32>,
    %c33_241 = arith.constant 33 : index
    %c0_242 = arith.constant 0 : index
    %218 = vector.load %arg5[%c33_241, %c0_242] : memref<296x384xf32, #tpu.memory_space<vmem>>, vector<8x384xf32>
    tpu.vector_store %arg5[%c33_241, %c0_242], %208 {strides = array<i32>} : memref<296x384xf32, #tpu.memory_space<vmem>>, vector<8x384xf32>,
    %c383_i32_243 = arith.constant 383 : i32
    %219 = tpu.dynamic_rotate %208 by %c383_i32_243 dim 1 : vector<8x384xf32>, i32 -> vector<8x384xf32>
    %c41_244 = arith.constant 41 : index
    %c0_245 = arith.constant 0 : index
    %220 = vector.load %arg5[%c41_244, %c0_245] : memref<296x384xf32, #tpu.memory_space<vmem>>, vector<8x384xf32>
    tpu.vector_store %arg5[%c41_244, %c0_245], %219 {strides = array<i32>} : memref<296x384xf32, #tpu.memory_space<vmem>>, vector<8x384xf32>,
    %c367_i32_246 = arith.constant 367 : i32
    %221 = tpu.dynamic_rotate %208 by %c367_i32_246 dim 1 : vector<8x384xf32>, i32 -> vector<8x384xf32>
    %c49_247 = arith.constant 49 : index
    %c0_248 = arith.constant 0 : index
    %222 = vector.load %arg5[%c49_247, %c0_248] : memref<296x384xf32, #tpu.memory_space<vmem>>, vector<8x384xf32>
    tpu.vector_store %arg5[%c49_247, %c0_248], %221 {strides = array<i32>} : memref<296x384xf32, #tpu.memory_space<vmem>>, vector<8x384xf32>,
    %c366_i32_249 = arith.constant 366 : i32
    %223 = tpu.dynamic_rotate %208 by %c366_i32_249 dim 1 : vector<8x384xf32>, i32 -> vector<8x384xf32>
    %c57_250 = arith.constant 57 : index
    %c0_251 = arith.constant 0 : index
    %224 = vector.load %arg5[%c57_250, %c0_251] : memref<296x384xf32, #tpu.memory_space<vmem>>, vector<8x384xf32>
    tpu.vector_store %arg5[%c57_250, %c0_251], %223 {strides = array<i32>} : memref<296x384xf32, #tpu.memory_space<vmem>>, vector<8x384xf32>,
    %c365_i32_252 = arith.constant 365 : i32
    %225 = tpu.dynamic_rotate %208 by %c365_i32_252 dim 1 : vector<8x384xf32>, i32 -> vector<8x384xf32>
    %c65_253 = arith.constant 65 : index
    %c0_254 = arith.constant 0 : index
    %226 = vector.load %arg5[%c65_253, %c0_254] : memref<296x384xf32, #tpu.memory_space<vmem>>, vector<8x384xf32>
    tpu.vector_store %arg5[%c65_253, %c0_254], %225 {strides = array<i32>} : memref<296x384xf32, #tpu.memory_space<vmem>>, vector<8x384xf32>,
    %c19_i32_255 = arith.constant 19 : i32
    %227 = tpu.dynamic_rotate %135 by %c19_i32_255 dim 1 : vector<8x384xf32>, i32 -> vector<8x384xf32>
    %c73_256 = arith.constant 73 : index
    %c0_257 = arith.constant 0 : index
    %228 = vector.load %arg5[%c73_256, %c0_257] : memref<296x384xf32, #tpu.memory_space<vmem>>, vector<8x384xf32>
    tpu.vector_store %arg5[%c73_256, %c0_257], %227 {strides = array<i32>} : memref<296x384xf32, #tpu.memory_space<vmem>>, vector<8x384xf32>,
    %c18_i32_258 = arith.constant 18 : i32
    %229 = tpu.dynamic_rotate %135 by %c18_i32_258 dim 1 : vector<8x384xf32>, i32 -> vector<8x384xf32>
    %c81_259 = arith.constant 81 : index
    %c0_260 = arith.constant 0 : index
    %230 = vector.load %arg5[%c81_259, %c0_260] : memref<296x384xf32, #tpu.memory_space<vmem>>, vector<8x384xf32>
    tpu.vector_store %arg5[%c81_259, %c0_260], %229 {strides = array<i32>} : memref<296x384xf32, #tpu.memory_space<vmem>>, vector<8x384xf32>,
    %c17_i32_261 = arith.constant 17 : i32
    %231 = tpu.dynamic_rotate %135 by %c17_i32_261 dim 1 : vector<8x384xf32>, i32 -> vector<8x384xf32>
    %c89_262 = arith.constant 89 : index
    %c0_263 = arith.constant 0 : index
    %232 = vector.load %arg5[%c89_262, %c0_263] : memref<296x384xf32, #tpu.memory_space<vmem>>, vector<8x384xf32>
    tpu.vector_store %arg5[%c89_262, %c0_263], %231 {strides = array<i32>} : memref<296x384xf32, #tpu.memory_space<vmem>>, vector<8x384xf32>,
    %c1_i32_264 = arith.constant 1 : i32
    %233 = tpu.dynamic_rotate %135 by %c1_i32_264 dim 1 : vector<8x384xf32>, i32 -> vector<8x384xf32>
    %c97_265 = arith.constant 97 : index
    %c0_266 = arith.constant 0 : index
    %234 = vector.load %arg5[%c97_265, %c0_266] : memref<296x384xf32, #tpu.memory_space<vmem>>, vector<8x384xf32>
    tpu.vector_store %arg5[%c97_265, %c0_266], %233 {strides = array<i32>} : memref<296x384xf32, #tpu.memory_space<vmem>>, vector<8x384xf32>,
    %c105_267 = arith.constant 105 : index
    %c0_268 = arith.constant 0 : index
    %235 = vector.load %arg5[%c105_267, %c0_268] : memref<296x384xf32, #tpu.memory_space<vmem>>, vector<8x384xf32>
    tpu.vector_store %arg5[%c105_267, %c0_268], %135 {strides = array<i32>} : memref<296x384xf32, #tpu.memory_space<vmem>>, vector<8x384xf32>,
    %c383_i32_269 = arith.constant 383 : i32
    %236 = tpu.dynamic_rotate %135 by %c383_i32_269 dim 1 : vector<8x384xf32>, i32 -> vector<8x384xf32>
    %c113_270 = arith.constant 113 : index
    %c0_271 = arith.constant 0 : index
    %237 = vector.load %arg5[%c113_270, %c0_271] : memref<296x384xf32, #tpu.memory_space<vmem>>, vector<8x384xf32>
    tpu.vector_store %arg5[%c113_270, %c0_271], %236 {strides = array<i32>} : memref<296x384xf32, #tpu.memory_space<vmem>>, vector<8x384xf32>,
    %c367_i32_272 = arith.constant 367 : i32
    %238 = tpu.dynamic_rotate %135 by %c367_i32_272 dim 1 : vector<8x384xf32>, i32 -> vector<8x384xf32>
    %c121_273 = arith.constant 121 : index
    %c0_274 = arith.constant 0 : index
    %239 = vector.load %arg5[%c121_273, %c0_274] : memref<296x384xf32, #tpu.memory_space<vmem>>, vector<8x384xf32>
    tpu.vector_store %arg5[%c121_273, %c0_274], %238 {strides = array<i32>} : memref<296x384xf32, #tpu.memory_space<vmem>>, vector<8x384xf32>,
    %c366_i32_275 = arith.constant 366 : i32
    %240 = tpu.dynamic_rotate %135 by %c366_i32_275 dim 1 : vector<8x384xf32>, i32 -> vector<8x384xf32>
    %c129_276 = arith.constant 129 : index
    %c0_277 = arith.constant 0 : index
    %241 = vector.load %arg5[%c129_276, %c0_277] : memref<296x384xf32, #tpu.memory_space<vmem>>, vector<8x384xf32>
    tpu.vector_store %arg5[%c129_276, %c0_277], %240 {strides = array<i32>} : memref<296x384xf32, #tpu.memory_space<vmem>>, vector<8x384xf32>,
    %c365_i32_278 = arith.constant 365 : i32
    %242 = tpu.dynamic_rotate %135 by %c365_i32_278 dim 1 : vector<8x384xf32>, i32 -> vector<8x384xf32>
    %c137_279 = arith.constant 137 : index
    %c0_280 = arith.constant 0 : index
    %243 = vector.load %arg5[%c137_279, %c0_280] : memref<296x384xf32, #tpu.memory_space<vmem>>, vector<8x384xf32>
    tpu.vector_store %arg5[%c137_279, %c0_280], %242 {strides = array<i32>} : memref<296x384xf32, #tpu.memory_space<vmem>>, vector<8x384xf32>,
    %cst_281 = arith.constant 0.000000e+00 : f32
    %244 = vector.broadcast %cst_281 : f32 to vector<7x384xf32>
    %c145_282 = arith.constant 145 : index
    %c0_283 = arith.constant 0 : index
    %245 = vector.load %arg5[%c145_282, %c0_283] : memref<296x384xf32, #tpu.memory_space<vmem>>, vector<7x384xf32>
    tpu.vector_store %arg5[%c145_282, %c0_283], %244 {strides = array<i32>} : memref<296x384xf32, #tpu.memory_space<vmem>>, vector<7x384xf32>,
    %c0_284 = arith.constant 0 : index
    %c1280 = arith.constant 1280 : index
    %246 = vector.load %arg2[%c0_284, %c1280] : memref<16x2688xf32, #tpu.memory_space<vmem>>, vector<16x152xf32>
    %c0_285 = arith.constant 0 : index
    %c0_286 = arith.constant 0 : index
    %247 = vector.load %arg5[%c0_285, %c0_286] : memref<296x384xf32, #tpu.memory_space<vmem>>, vector<152x384xf32>
    %cst_287 = arith.constant dense<0.000000e+00> : vector<16x384xf32>
    %248 = tpu.matmul %246, %247, %cst_287 {dimension_numbers = #tpu.dot_dimension_numbers<[1], [0], [0], [1], [0, 0, 1, 1], [], []>} : vector<16x152xf32>, vector<152x384xf32>, vector<16x384xf32> -> vector<16x384xf32>
    %cst_288 = arith.constant 0.000000e+00 : f32
    %249 = vector.broadcast %cst_288 : f32 to vector<16x384xf32>
    %250 = arith.maximumf %248, %249 : vector<16x384xf32>
    %cst_289 = arith.constant 0.000000e+00 : f32
    %251 = vector.shape_cast %2 : vector<1x384xi1> to vector<1x384xi1>
    %252 = vector.broadcast %251 : vector<1x384xi1> to vector<16x384xi1>
    %253 = vector.broadcast %cst_289 : f32 to vector<16x384xf32>
    %254 = arith.select %252, %250, %253 : vector<16x384xi1>, vector<16x384xf32>
    %255 = arith.addf %62, %254 : vector<16x384xf32>
    %c19_i32_290 = arith.constant 19 : i32
    %256 = tpu.dynamic_rotate %254 by %c19_i32_290 dim 1 : vector<16x384xf32>, i32 -> vector<16x384xf32>
    %c1_291 = arith.constant 1 : index
    %c0_292 = arith.constant 0 : index
    %257 = vector.load %arg5[%c1_291, %c0_292] : memref<296x384xf32, #tpu.memory_space<vmem>>, vector<16x384xf32>
    tpu.vector_store %arg5[%c1_291, %c0_292], %256 {strides = array<i32>} : memref<296x384xf32, #tpu.memory_space<vmem>>, vector<16x384xf32>,
    %c18_i32_293 = arith.constant 18 : i32
    %258 = tpu.dynamic_rotate %254 by %c18_i32_293 dim 1 : vector<16x384xf32>, i32 -> vector<16x384xf32>
    %c17_294 = arith.constant 17 : index
    %c0_295 = arith.constant 0 : index
    %259 = vector.load %arg5[%c17_294, %c0_295] : memref<296x384xf32, #tpu.memory_space<vmem>>, vector<16x384xf32>
    tpu.vector_store %arg5[%c17_294, %c0_295], %258 {strides = array<i32>} : memref<296x384xf32, #tpu.memory_space<vmem>>, vector<16x384xf32>,
    %c17_i32_296 = arith.constant 17 : i32
    %260 = tpu.dynamic_rotate %254 by %c17_i32_296 dim 1 : vector<16x384xf32>, i32 -> vector<16x384xf32>
    %c33_297 = arith.constant 33 : index
    %c0_298 = arith.constant 0 : index
    %261 = vector.load %arg5[%c33_297, %c0_298] : memref<296x384xf32, #tpu.memory_space<vmem>>, vector<16x384xf32>
    tpu.vector_store %arg5[%c33_297, %c0_298], %260 {strides = array<i32>} : memref<296x384xf32, #tpu.memory_space<vmem>>, vector<16x384xf32>,
    %c1_i32_299 = arith.constant 1 : i32
    %262 = tpu.dynamic_rotate %254 by %c1_i32_299 dim 1 : vector<16x384xf32>, i32 -> vector<16x384xf32>
    %c49_300 = arith.constant 49 : index
    %c0_301 = arith.constant 0 : index
    %263 = vector.load %arg5[%c49_300, %c0_301] : memref<296x384xf32, #tpu.memory_space<vmem>>, vector<16x384xf32>
    tpu.vector_store %arg5[%c49_300, %c0_301], %262 {strides = array<i32>} : memref<296x384xf32, #tpu.memory_space<vmem>>, vector<16x384xf32>,
    %c65_302 = arith.constant 65 : index
    %c0_303 = arith.constant 0 : index
    %264 = vector.load %arg5[%c65_302, %c0_303] : memref<296x384xf32, #tpu.memory_space<vmem>>, vector<16x384xf32>
    tpu.vector_store %arg5[%c65_302, %c0_303], %254 {strides = array<i32>} : memref<296x384xf32, #tpu.memory_space<vmem>>, vector<16x384xf32>,
    %c383_i32_304 = arith.constant 383 : i32
    %265 = tpu.dynamic_rotate %254 by %c383_i32_304 dim 1 : vector<16x384xf32>, i32 -> vector<16x384xf32>
    %c81_305 = arith.constant 81 : index
    %c0_306 = arith.constant 0 : index
    %266 = vector.load %arg5[%c81_305, %c0_306] : memref<296x384xf32, #tpu.memory_space<vmem>>, vector<16x384xf32>
    tpu.vector_store %arg5[%c81_305, %c0_306], %265 {strides = array<i32>} : memref<296x384xf32, #tpu.memory_space<vmem>>, vector<16x384xf32>,
    %c367_i32_307 = arith.constant 367 : i32
    %267 = tpu.dynamic_rotate %254 by %c367_i32_307 dim 1 : vector<16x384xf32>, i32 -> vector<16x384xf32>
    %c97_308 = arith.constant 97 : index
    %c0_309 = arith.constant 0 : index
    %268 = vector.load %arg5[%c97_308, %c0_309] : memref<296x384xf32, #tpu.memory_space<vmem>>, vector<16x384xf32>
    tpu.vector_store %arg5[%c97_308, %c0_309], %267 {strides = array<i32>} : memref<296x384xf32, #tpu.memory_space<vmem>>, vector<16x384xf32>,
    %c366_i32_310 = arith.constant 366 : i32
    %269 = tpu.dynamic_rotate %254 by %c366_i32_310 dim 1 : vector<16x384xf32>, i32 -> vector<16x384xf32>
    %c113_311 = arith.constant 113 : index
    %c0_312 = arith.constant 0 : index
    %270 = vector.load %arg5[%c113_311, %c0_312] : memref<296x384xf32, #tpu.memory_space<vmem>>, vector<16x384xf32>
    tpu.vector_store %arg5[%c113_311, %c0_312], %269 {strides = array<i32>} : memref<296x384xf32, #tpu.memory_space<vmem>>, vector<16x384xf32>,
    %c365_i32_313 = arith.constant 365 : i32
    %271 = tpu.dynamic_rotate %254 by %c365_i32_313 dim 1 : vector<16x384xf32>, i32 -> vector<16x384xf32>
    %c129_314 = arith.constant 129 : index
    %c0_315 = arith.constant 0 : index
    %272 = vector.load %arg5[%c129_314, %c0_315] : memref<296x384xf32, #tpu.memory_space<vmem>>, vector<16x384xf32>
    tpu.vector_store %arg5[%c129_314, %c0_315], %271 {strides = array<i32>} : memref<296x384xf32, #tpu.memory_space<vmem>>, vector<16x384xf32>,
    %c19_i32_316 = arith.constant 19 : i32
    %273 = tpu.dynamic_rotate %90 by %c19_i32_316 dim 1 : vector<16x384xf32>, i32 -> vector<16x384xf32>
    %c145_317 = arith.constant 145 : index
    %c0_318 = arith.constant 0 : index
    %274 = vector.load %arg5[%c145_317, %c0_318] : memref<296x384xf32, #tpu.memory_space<vmem>>, vector<16x384xf32>
    tpu.vector_store %arg5[%c145_317, %c0_318], %273 {strides = array<i32>} : memref<296x384xf32, #tpu.memory_space<vmem>>, vector<16x384xf32>,
    %c18_i32_319 = arith.constant 18 : i32
    %275 = tpu.dynamic_rotate %90 by %c18_i32_319 dim 1 : vector<16x384xf32>, i32 -> vector<16x384xf32>
    %c161_320 = arith.constant 161 : index
    %c0_321 = arith.constant 0 : index
    %276 = vector.load %arg5[%c161_320, %c0_321] : memref<296x384xf32, #tpu.memory_space<vmem>>, vector<16x384xf32>
    tpu.vector_store %arg5[%c161_320, %c0_321], %275 {strides = array<i32>} : memref<296x384xf32, #tpu.memory_space<vmem>>, vector<16x384xf32>,
    %c17_i32_322 = arith.constant 17 : i32
    %277 = tpu.dynamic_rotate %90 by %c17_i32_322 dim 1 : vector<16x384xf32>, i32 -> vector<16x384xf32>
    %c177_323 = arith.constant 177 : index
    %c0_324 = arith.constant 0 : index
    %278 = vector.load %arg5[%c177_323, %c0_324] : memref<296x384xf32, #tpu.memory_space<vmem>>, vector<16x384xf32>
    tpu.vector_store %arg5[%c177_323, %c0_324], %277 {strides = array<i32>} : memref<296x384xf32, #tpu.memory_space<vmem>>, vector<16x384xf32>,
    %c1_i32_325 = arith.constant 1 : i32
    %279 = tpu.dynamic_rotate %90 by %c1_i32_325 dim 1 : vector<16x384xf32>, i32 -> vector<16x384xf32>
    %c193_326 = arith.constant 193 : index
    %c0_327 = arith.constant 0 : index
    %280 = vector.load %arg5[%c193_326, %c0_327] : memref<296x384xf32, #tpu.memory_space<vmem>>, vector<16x384xf32>
    tpu.vector_store %arg5[%c193_326, %c0_327], %279 {strides = array<i32>} : memref<296x384xf32, #tpu.memory_space<vmem>>, vector<16x384xf32>,
    %c209_328 = arith.constant 209 : index
    %c0_329 = arith.constant 0 : index
    %281 = vector.load %arg5[%c209_328, %c0_329] : memref<296x384xf32, #tpu.memory_space<vmem>>, vector<16x384xf32>
    tpu.vector_store %arg5[%c209_328, %c0_329], %90 {strides = array<i32>} : memref<296x384xf32, #tpu.memory_space<vmem>>, vector<16x384xf32>,
    %c383_i32_330 = arith.constant 383 : i32
    %282 = tpu.dynamic_rotate %90 by %c383_i32_330 dim 1 : vector<16x384xf32>, i32 -> vector<16x384xf32>
    %c225_331 = arith.constant 225 : index
    %c0_332 = arith.constant 0 : index
    %283 = vector.load %arg5[%c225_331, %c0_332] : memref<296x384xf32, #tpu.memory_space<vmem>>, vector<16x384xf32>
    tpu.vector_store %arg5[%c225_331, %c0_332], %282 {strides = array<i32>} : memref<296x384xf32, #tpu.memory_space<vmem>>, vector<16x384xf32>,
    %c367_i32_333 = arith.constant 367 : i32
    %284 = tpu.dynamic_rotate %90 by %c367_i32_333 dim 1 : vector<16x384xf32>, i32 -> vector<16x384xf32>
    %c241_334 = arith.constant 241 : index
    %c0_335 = arith.constant 0 : index
    %285 = vector.load %arg5[%c241_334, %c0_335] : memref<296x384xf32, #tpu.memory_space<vmem>>, vector<16x384xf32>
    tpu.vector_store %arg5[%c241_334, %c0_335], %284 {strides = array<i32>} : memref<296x384xf32, #tpu.memory_space<vmem>>, vector<16x384xf32>,
    %c366_i32_336 = arith.constant 366 : i32
    %286 = tpu.dynamic_rotate %90 by %c366_i32_336 dim 1 : vector<16x384xf32>, i32 -> vector<16x384xf32>
    %c257_337 = arith.constant 257 : index
    %c0_338 = arith.constant 0 : index
    %287 = vector.load %arg5[%c257_337, %c0_338] : memref<296x384xf32, #tpu.memory_space<vmem>>, vector<16x384xf32>
    tpu.vector_store %arg5[%c257_337, %c0_338], %286 {strides = array<i32>} : memref<296x384xf32, #tpu.memory_space<vmem>>, vector<16x384xf32>,
    %c365_i32_339 = arith.constant 365 : i32
    %288 = tpu.dynamic_rotate %90 by %c365_i32_339 dim 1 : vector<16x384xf32>, i32 -> vector<16x384xf32>
    %c273_340 = arith.constant 273 : index
    %c0_341 = arith.constant 0 : index
    %289 = vector.load %arg5[%c273_340, %c0_341] : memref<296x384xf32, #tpu.memory_space<vmem>>, vector<16x384xf32>
    tpu.vector_store %arg5[%c273_340, %c0_341], %288 {strides = array<i32>} : memref<296x384xf32, #tpu.memory_space<vmem>>, vector<16x384xf32>,
    %cst_342 = arith.constant 0.000000e+00 : f32
    %290 = vector.broadcast %cst_342 : f32 to vector<7x384xf32>
    %c289_343 = arith.constant 289 : index
    %c0_344 = arith.constant 0 : index
    %291 = vector.load %arg5[%c289_343, %c0_344] : memref<296x384xf32, #tpu.memory_space<vmem>>, vector<7x384xf32>
    tpu.vector_store %arg5[%c289_343, %c0_344], %290 {strides = array<i32>} : memref<296x384xf32, #tpu.memory_space<vmem>>, vector<7x384xf32>,
    %c0_345 = arith.constant 0 : index
    %c1536 = arith.constant 1536 : index
    %292 = vector.load %arg2[%c0_345, %c1536] : memref<16x2688xf32, #tpu.memory_space<vmem>>, vector<16x296xf32>
    %c0_346 = arith.constant 0 : index
    %c0_347 = arith.constant 0 : index
    %293 = vector.load %arg5[%c0_346, %c0_347] : memref<296x384xf32, #tpu.memory_space<vmem>>, vector<296x384xf32>
    %cst_348 = arith.constant dense<0.000000e+00> : vector<16x384xf32>
    %294 = tpu.matmul %292, %293, %cst_348 {dimension_numbers = #tpu.dot_dimension_numbers<[1], [0], [0], [1], [0, 0, 1, 1], [], []>} : vector<16x296xf32>, vector<296x384xf32>, vector<16x384xf32> -> vector<16x384xf32>
    %cst_349 = arith.constant 0.000000e+00 : f32
    %295 = vector.broadcast %cst_349 : f32 to vector<16x384xf32>
    %296 = arith.maximumf %294, %295 : vector<16x384xf32>
    %cst_350 = arith.constant 0.000000e+00 : f32
    %297 = vector.shape_cast %2 : vector<1x384xi1> to vector<1x384xi1>
    %298 = vector.broadcast %297 : vector<1x384xi1> to vector<16x384xi1>
    %299 = vector.broadcast %cst_350 : f32 to vector<16x384xf32>
    %300 = arith.select %298, %296, %299 : vector<16x384xi1>, vector<16x384xf32>
    %c19_i32_351 = arith.constant 19 : i32
    %301 = tpu.dynamic_rotate %300 by %c19_i32_351 dim 1 : vector<16x384xf32>, i32 -> vector<16x384xf32>
    %c1_352 = arith.constant 1 : index
    %c0_353 = arith.constant 0 : index
    %302 = vector.load %arg5[%c1_352, %c0_353] : memref<296x384xf32, #tpu.memory_space<vmem>>, vector<16x384xf32>
    tpu.vector_store %arg5[%c1_352, %c0_353], %301 {strides = array<i32>} : memref<296x384xf32, #tpu.memory_space<vmem>>, vector<16x384xf32>,
    %c18_i32_354 = arith.constant 18 : i32
    %303 = tpu.dynamic_rotate %300 by %c18_i32_354 dim 1 : vector<16x384xf32>, i32 -> vector<16x384xf32>
    %c17_355 = arith.constant 17 : index
    %c0_356 = arith.constant 0 : index
    %304 = vector.load %arg5[%c17_355, %c0_356] : memref<296x384xf32, #tpu.memory_space<vmem>>, vector<16x384xf32>
    tpu.vector_store %arg5[%c17_355, %c0_356], %303 {strides = array<i32>} : memref<296x384xf32, #tpu.memory_space<vmem>>, vector<16x384xf32>,
    %c17_i32_357 = arith.constant 17 : i32
    %305 = tpu.dynamic_rotate %300 by %c17_i32_357 dim 1 : vector<16x384xf32>, i32 -> vector<16x384xf32>
    %c33_358 = arith.constant 33 : index
    %c0_359 = arith.constant 0 : index
    %306 = vector.load %arg5[%c33_358, %c0_359] : memref<296x384xf32, #tpu.memory_space<vmem>>, vector<16x384xf32>
    tpu.vector_store %arg5[%c33_358, %c0_359], %305 {strides = array<i32>} : memref<296x384xf32, #tpu.memory_space<vmem>>, vector<16x384xf32>,
    %c1_i32_360 = arith.constant 1 : i32
    %307 = tpu.dynamic_rotate %300 by %c1_i32_360 dim 1 : vector<16x384xf32>, i32 -> vector<16x384xf32>
    %c49_361 = arith.constant 49 : index
    %c0_362 = arith.constant 0 : index
    %308 = vector.load %arg5[%c49_361, %c0_362] : memref<296x384xf32, #tpu.memory_space<vmem>>, vector<16x384xf32>
    tpu.vector_store %arg5[%c49_361, %c0_362], %307 {strides = array<i32>} : memref<296x384xf32, #tpu.memory_space<vmem>>, vector<16x384xf32>,
    %c65_363 = arith.constant 65 : index
    %c0_364 = arith.constant 0 : index
    %309 = vector.load %arg5[%c65_363, %c0_364] : memref<296x384xf32, #tpu.memory_space<vmem>>, vector<16x384xf32>
    tpu.vector_store %arg5[%c65_363, %c0_364], %300 {strides = array<i32>} : memref<296x384xf32, #tpu.memory_space<vmem>>, vector<16x384xf32>,
    %c383_i32_365 = arith.constant 383 : i32
    %310 = tpu.dynamic_rotate %300 by %c383_i32_365 dim 1 : vector<16x384xf32>, i32 -> vector<16x384xf32>
    %c81_366 = arith.constant 81 : index
    %c0_367 = arith.constant 0 : index
    %311 = vector.load %arg5[%c81_366, %c0_367] : memref<296x384xf32, #tpu.memory_space<vmem>>, vector<16x384xf32>
    tpu.vector_store %arg5[%c81_366, %c0_367], %310 {strides = array<i32>} : memref<296x384xf32, #tpu.memory_space<vmem>>, vector<16x384xf32>,
    %c367_i32_368 = arith.constant 367 : i32
    %312 = tpu.dynamic_rotate %300 by %c367_i32_368 dim 1 : vector<16x384xf32>, i32 -> vector<16x384xf32>
    %c97_369 = arith.constant 97 : index
    %c0_370 = arith.constant 0 : index
    %313 = vector.load %arg5[%c97_369, %c0_370] : memref<296x384xf32, #tpu.memory_space<vmem>>, vector<16x384xf32>
    tpu.vector_store %arg5[%c97_369, %c0_370], %312 {strides = array<i32>} : memref<296x384xf32, #tpu.memory_space<vmem>>, vector<16x384xf32>,
    %c366_i32_371 = arith.constant 366 : i32
    %314 = tpu.dynamic_rotate %300 by %c366_i32_371 dim 1 : vector<16x384xf32>, i32 -> vector<16x384xf32>
    %c113_372 = arith.constant 113 : index
    %c0_373 = arith.constant 0 : index
    %315 = vector.load %arg5[%c113_372, %c0_373] : memref<296x384xf32, #tpu.memory_space<vmem>>, vector<16x384xf32>
    tpu.vector_store %arg5[%c113_372, %c0_373], %314 {strides = array<i32>} : memref<296x384xf32, #tpu.memory_space<vmem>>, vector<16x384xf32>,
    %c365_i32_374 = arith.constant 365 : i32
    %316 = tpu.dynamic_rotate %300 by %c365_i32_374 dim 1 : vector<16x384xf32>, i32 -> vector<16x384xf32>
    %c129_375 = arith.constant 129 : index
    %c0_376 = arith.constant 0 : index
    %317 = vector.load %arg5[%c129_375, %c0_376] : memref<296x384xf32, #tpu.memory_space<vmem>>, vector<16x384xf32>
    tpu.vector_store %arg5[%c129_375, %c0_376], %316 {strides = array<i32>} : memref<296x384xf32, #tpu.memory_space<vmem>>, vector<16x384xf32>,
    %c19_i32_377 = arith.constant 19 : i32
    %318 = tpu.dynamic_rotate %255 by %c19_i32_377 dim 1 : vector<16x384xf32>, i32 -> vector<16x384xf32>
    %c145_378 = arith.constant 145 : index
    %c0_379 = arith.constant 0 : index
    %319 = vector.load %arg5[%c145_378, %c0_379] : memref<296x384xf32, #tpu.memory_space<vmem>>, vector<16x384xf32>
    tpu.vector_store %arg5[%c145_378, %c0_379], %318 {strides = array<i32>} : memref<296x384xf32, #tpu.memory_space<vmem>>, vector<16x384xf32>,
    %c18_i32_380 = arith.constant 18 : i32
    %320 = tpu.dynamic_rotate %255 by %c18_i32_380 dim 1 : vector<16x384xf32>, i32 -> vector<16x384xf32>
    %c161_381 = arith.constant 161 : index
    %c0_382 = arith.constant 0 : index
    %321 = vector.load %arg5[%c161_381, %c0_382] : memref<296x384xf32, #tpu.memory_space<vmem>>, vector<16x384xf32>
    tpu.vector_store %arg5[%c161_381, %c0_382], %320 {strides = array<i32>} : memref<296x384xf32, #tpu.memory_space<vmem>>, vector<16x384xf32>,
    %c17_i32_383 = arith.constant 17 : i32
    %322 = tpu.dynamic_rotate %255 by %c17_i32_383 dim 1 : vector<16x384xf32>, i32 -> vector<16x384xf32>
    %c177_384 = arith.constant 177 : index
    %c0_385 = arith.constant 0 : index
    %323 = vector.load %arg5[%c177_384, %c0_385] : memref<296x384xf32, #tpu.memory_space<vmem>>, vector<16x384xf32>
    tpu.vector_store %arg5[%c177_384, %c0_385], %322 {strides = array<i32>} : memref<296x384xf32, #tpu.memory_space<vmem>>, vector<16x384xf32>,
    %c1_i32_386 = arith.constant 1 : i32
    %324 = tpu.dynamic_rotate %255 by %c1_i32_386 dim 1 : vector<16x384xf32>, i32 -> vector<16x384xf32>
    %c193_387 = arith.constant 193 : index
    %c0_388 = arith.constant 0 : index
    %325 = vector.load %arg5[%c193_387, %c0_388] : memref<296x384xf32, #tpu.memory_space<vmem>>, vector<16x384xf32>
    tpu.vector_store %arg5[%c193_387, %c0_388], %324 {strides = array<i32>} : memref<296x384xf32, #tpu.memory_space<vmem>>, vector<16x384xf32>,
    %c209_389 = arith.constant 209 : index
    %c0_390 = arith.constant 0 : index
    %326 = vector.load %arg5[%c209_389, %c0_390] : memref<296x384xf32, #tpu.memory_space<vmem>>, vector<16x384xf32>
    tpu.vector_store %arg5[%c209_389, %c0_390], %255 {strides = array<i32>} : memref<296x384xf32, #tpu.memory_space<vmem>>, vector<16x384xf32>,
    %c383_i32_391 = arith.constant 383 : i32
    %327 = tpu.dynamic_rotate %255 by %c383_i32_391 dim 1 : vector<16x384xf32>, i32 -> vector<16x384xf32>
    %c225_392 = arith.constant 225 : index
    %c0_393 = arith.constant 0 : index
    %328 = vector.load %arg5[%c225_392, %c0_393] : memref<296x384xf32, #tpu.memory_space<vmem>>, vector<16x384xf32>
    tpu.vector_store %arg5[%c225_392, %c0_393], %327 {strides = array<i32>} : memref<296x384xf32, #tpu.memory_space<vmem>>, vector<16x384xf32>,
    %c367_i32_394 = arith.constant 367 : i32
    %329 = tpu.dynamic_rotate %255 by %c367_i32_394 dim 1 : vector<16x384xf32>, i32 -> vector<16x384xf32>
    %c241_395 = arith.constant 241 : index
    %c0_396 = arith.constant 0 : index
    %330 = vector.load %arg5[%c241_395, %c0_396] : memref<296x384xf32, #tpu.memory_space<vmem>>, vector<16x384xf32>
    tpu.vector_store %arg5[%c241_395, %c0_396], %329 {strides = array<i32>} : memref<296x384xf32, #tpu.memory_space<vmem>>, vector<16x384xf32>,
    %c366_i32_397 = arith.constant 366 : i32
    %331 = tpu.dynamic_rotate %255 by %c366_i32_397 dim 1 : vector<16x384xf32>, i32 -> vector<16x384xf32>
    %c257_398 = arith.constant 257 : index
    %c0_399 = arith.constant 0 : index
    %332 = vector.load %arg5[%c257_398, %c0_399] : memref<296x384xf32, #tpu.memory_space<vmem>>, vector<16x384xf32>
    tpu.vector_store %arg5[%c257_398, %c0_399], %331 {strides = array<i32>} : memref<296x384xf32, #tpu.memory_space<vmem>>, vector<16x384xf32>,
    %c365_i32_400 = arith.constant 365 : i32
    %333 = tpu.dynamic_rotate %255 by %c365_i32_400 dim 1 : vector<16x384xf32>, i32 -> vector<16x384xf32>
    %c273_401 = arith.constant 273 : index
    %c0_402 = arith.constant 0 : index
    %334 = vector.load %arg5[%c273_401, %c0_402] : memref<296x384xf32, #tpu.memory_space<vmem>>, vector<16x384xf32>
    tpu.vector_store %arg5[%c273_401, %c0_402], %333 {strides = array<i32>} : memref<296x384xf32, #tpu.memory_space<vmem>>, vector<16x384xf32>,
    %cst_403 = arith.constant 0.000000e+00 : f32
    %335 = vector.broadcast %cst_403 : f32 to vector<7x384xf32>
    %c289_404 = arith.constant 289 : index
    %c0_405 = arith.constant 0 : index
    %336 = vector.load %arg5[%c289_404, %c0_405] : memref<296x384xf32, #tpu.memory_space<vmem>>, vector<7x384xf32>
    tpu.vector_store %arg5[%c289_404, %c0_405], %335 {strides = array<i32>} : memref<296x384xf32, #tpu.memory_space<vmem>>, vector<7x384xf32>,
    %c0_406 = arith.constant 0 : index
    %c1920 = arith.constant 1920 : index
    %337 = vector.load %arg2[%c0_406, %c1920] : memref<16x2688xf32, #tpu.memory_space<vmem>>, vector<8x296xf32>
    %c0_407 = arith.constant 0 : index
    %c0_408 = arith.constant 0 : index
    %338 = vector.load %arg5[%c0_407, %c0_408] : memref<296x384xf32, #tpu.memory_space<vmem>>, vector<296x384xf32>
    %cst_409 = arith.constant dense<0.000000e+00> : vector<8x384xf32>
    %339 = tpu.matmul %337, %338, %cst_409 {dimension_numbers = #tpu.dot_dimension_numbers<[1], [0], [0], [1], [0, 0, 1, 1], [], []>} : vector<8x296xf32>, vector<296x384xf32>, vector<8x384xf32> -> vector<8x384xf32>
    %cst_410 = arith.constant 0.000000e+00 : f32
    %340 = vector.broadcast %cst_410 : f32 to vector<8x384xf32>
    %341 = arith.maximumf %339, %340 : vector<8x384xf32>
    %cst_411 = arith.constant 0.000000e+00 : f32
    %342 = vector.shape_cast %2 : vector<1x384xi1> to vector<1x384xi1>
    %343 = vector.broadcast %342 : vector<1x384xi1> to vector<8x384xi1>
    %344 = vector.broadcast %cst_411 : f32 to vector<8x384xf32>
    %345 = arith.select %343, %341, %344 : vector<8x384xi1>, vector<8x384xf32>
    %c19_i32_412 = arith.constant 19 : i32
    %346 = tpu.dynamic_rotate %345 by %c19_i32_412 dim 1 : vector<8x384xf32>, i32 -> vector<8x384xf32>
    %c1_413 = arith.constant 1 : index
    %c0_414 = arith.constant 0 : index
    %347 = vector.load %arg5[%c1_413, %c0_414] : memref<296x384xf32, #tpu.memory_space<vmem>>, vector<8x384xf32>
    tpu.vector_store %arg5[%c1_413, %c0_414], %346 {strides = array<i32>} : memref<296x384xf32, #tpu.memory_space<vmem>>, vector<8x384xf32>,
    %c18_i32_415 = arith.constant 18 : i32
    %348 = tpu.dynamic_rotate %345 by %c18_i32_415 dim 1 : vector<8x384xf32>, i32 -> vector<8x384xf32>
    %c9_416 = arith.constant 9 : index
    %c0_417 = arith.constant 0 : index
    %349 = vector.load %arg5[%c9_416, %c0_417] : memref<296x384xf32, #tpu.memory_space<vmem>>, vector<8x384xf32>
    tpu.vector_store %arg5[%c9_416, %c0_417], %348 {strides = array<i32>} : memref<296x384xf32, #tpu.memory_space<vmem>>, vector<8x384xf32>,
    %c17_i32_418 = arith.constant 17 : i32
    %350 = tpu.dynamic_rotate %345 by %c17_i32_418 dim 1 : vector<8x384xf32>, i32 -> vector<8x384xf32>
    %c17_419 = arith.constant 17 : index
    %c0_420 = arith.constant 0 : index
    %351 = vector.load %arg5[%c17_419, %c0_420] : memref<296x384xf32, #tpu.memory_space<vmem>>, vector<8x384xf32>
    tpu.vector_store %arg5[%c17_419, %c0_420], %350 {strides = array<i32>} : memref<296x384xf32, #tpu.memory_space<vmem>>, vector<8x384xf32>,
    %c1_i32_421 = arith.constant 1 : i32
    %352 = tpu.dynamic_rotate %345 by %c1_i32_421 dim 1 : vector<8x384xf32>, i32 -> vector<8x384xf32>
    %c25_422 = arith.constant 25 : index
    %c0_423 = arith.constant 0 : index
    %353 = vector.load %arg5[%c25_422, %c0_423] : memref<296x384xf32, #tpu.memory_space<vmem>>, vector<8x384xf32>
    tpu.vector_store %arg5[%c25_422, %c0_423], %352 {strides = array<i32>} : memref<296x384xf32, #tpu.memory_space<vmem>>, vector<8x384xf32>,
    %c33_424 = arith.constant 33 : index
    %c0_425 = arith.constant 0 : index
    %354 = vector.load %arg5[%c33_424, %c0_425] : memref<296x384xf32, #tpu.memory_space<vmem>>, vector<8x384xf32>
    tpu.vector_store %arg5[%c33_424, %c0_425], %345 {strides = array<i32>} : memref<296x384xf32, #tpu.memory_space<vmem>>, vector<8x384xf32>,
    %c383_i32_426 = arith.constant 383 : i32
    %355 = tpu.dynamic_rotate %345 by %c383_i32_426 dim 1 : vector<8x384xf32>, i32 -> vector<8x384xf32>
    %c41_427 = arith.constant 41 : index
    %c0_428 = arith.constant 0 : index
    %356 = vector.load %arg5[%c41_427, %c0_428] : memref<296x384xf32, #tpu.memory_space<vmem>>, vector<8x384xf32>
    tpu.vector_store %arg5[%c41_427, %c0_428], %355 {strides = array<i32>} : memref<296x384xf32, #tpu.memory_space<vmem>>, vector<8x384xf32>,
    %c367_i32_429 = arith.constant 367 : i32
    %357 = tpu.dynamic_rotate %345 by %c367_i32_429 dim 1 : vector<8x384xf32>, i32 -> vector<8x384xf32>
    %c49_430 = arith.constant 49 : index
    %c0_431 = arith.constant 0 : index
    %358 = vector.load %arg5[%c49_430, %c0_431] : memref<296x384xf32, #tpu.memory_space<vmem>>, vector<8x384xf32>
    tpu.vector_store %arg5[%c49_430, %c0_431], %357 {strides = array<i32>} : memref<296x384xf32, #tpu.memory_space<vmem>>, vector<8x384xf32>,
    %c366_i32_432 = arith.constant 366 : i32
    %359 = tpu.dynamic_rotate %345 by %c366_i32_432 dim 1 : vector<8x384xf32>, i32 -> vector<8x384xf32>
    %c57_433 = arith.constant 57 : index
    %c0_434 = arith.constant 0 : index
    %360 = vector.load %arg5[%c57_433, %c0_434] : memref<296x384xf32, #tpu.memory_space<vmem>>, vector<8x384xf32>
    tpu.vector_store %arg5[%c57_433, %c0_434], %359 {strides = array<i32>} : memref<296x384xf32, #tpu.memory_space<vmem>>, vector<8x384xf32>,
    %c365_i32_435 = arith.constant 365 : i32
    %361 = tpu.dynamic_rotate %345 by %c365_i32_435 dim 1 : vector<8x384xf32>, i32 -> vector<8x384xf32>
    %c65_436 = arith.constant 65 : index
    %c0_437 = arith.constant 0 : index
    %362 = vector.load %arg5[%c65_436, %c0_437] : memref<296x384xf32, #tpu.memory_space<vmem>>, vector<8x384xf32>
    tpu.vector_store %arg5[%c65_436, %c0_437], %361 {strides = array<i32>} : memref<296x384xf32, #tpu.memory_space<vmem>>, vector<8x384xf32>,
    %c19_i32_438 = arith.constant 19 : i32
    %363 = tpu.dynamic_rotate %209 by %c19_i32_438 dim 1 : vector<8x384xf32>, i32 -> vector<8x384xf32>
    %c73_439 = arith.constant 73 : index
    %c0_440 = arith.constant 0 : index
    %364 = vector.load %arg5[%c73_439, %c0_440] : memref<296x384xf32, #tpu.memory_space<vmem>>, vector<8x384xf32>
    tpu.vector_store %arg5[%c73_439, %c0_440], %363 {strides = array<i32>} : memref<296x384xf32, #tpu.memory_space<vmem>>, vector<8x384xf32>,
    %c18_i32_441 = arith.constant 18 : i32
    %365 = tpu.dynamic_rotate %209 by %c18_i32_441 dim 1 : vector<8x384xf32>, i32 -> vector<8x384xf32>
    %c81_442 = arith.constant 81 : index
    %c0_443 = arith.constant 0 : index
    %366 = vector.load %arg5[%c81_442, %c0_443] : memref<296x384xf32, #tpu.memory_space<vmem>>, vector<8x384xf32>
    tpu.vector_store %arg5[%c81_442, %c0_443], %365 {strides = array<i32>} : memref<296x384xf32, #tpu.memory_space<vmem>>, vector<8x384xf32>,
    %c17_i32_444 = arith.constant 17 : i32
    %367 = tpu.dynamic_rotate %209 by %c17_i32_444 dim 1 : vector<8x384xf32>, i32 -> vector<8x384xf32>
    %c89_445 = arith.constant 89 : index
    %c0_446 = arith.constant 0 : index
    %368 = vector.load %arg5[%c89_445, %c0_446] : memref<296x384xf32, #tpu.memory_space<vmem>>, vector<8x384xf32>
    tpu.vector_store %arg5[%c89_445, %c0_446], %367 {strides = array<i32>} : memref<296x384xf32, #tpu.memory_space<vmem>>, vector<8x384xf32>,
    %c1_i32_447 = arith.constant 1 : i32
    %369 = tpu.dynamic_rotate %209 by %c1_i32_447 dim 1 : vector<8x384xf32>, i32 -> vector<8x384xf32>
    %c97_448 = arith.constant 97 : index
    %c0_449 = arith.constant 0 : index
    %370 = vector.load %arg5[%c97_448, %c0_449] : memref<296x384xf32, #tpu.memory_space<vmem>>, vector<8x384xf32>
    tpu.vector_store %arg5[%c97_448, %c0_449], %369 {strides = array<i32>} : memref<296x384xf32, #tpu.memory_space<vmem>>, vector<8x384xf32>,
    %c105_450 = arith.constant 105 : index
    %c0_451 = arith.constant 0 : index
    %371 = vector.load %arg5[%c105_450, %c0_451] : memref<296x384xf32, #tpu.memory_space<vmem>>, vector<8x384xf32>
    tpu.vector_store %arg5[%c105_450, %c0_451], %209 {strides = array<i32>} : memref<296x384xf32, #tpu.memory_space<vmem>>, vector<8x384xf32>,
    %c383_i32_452 = arith.constant 383 : i32
    %372 = tpu.dynamic_rotate %209 by %c383_i32_452 dim 1 : vector<8x384xf32>, i32 -> vector<8x384xf32>
    %c113_453 = arith.constant 113 : index
    %c0_454 = arith.constant 0 : index
    %373 = vector.load %arg5[%c113_453, %c0_454] : memref<296x384xf32, #tpu.memory_space<vmem>>, vector<8x384xf32>
    tpu.vector_store %arg5[%c113_453, %c0_454], %372 {strides = array<i32>} : memref<296x384xf32, #tpu.memory_space<vmem>>, vector<8x384xf32>,
    %c367_i32_455 = arith.constant 367 : i32
    %374 = tpu.dynamic_rotate %209 by %c367_i32_455 dim 1 : vector<8x384xf32>, i32 -> vector<8x384xf32>
    %c121_456 = arith.constant 121 : index
    %c0_457 = arith.constant 0 : index
    %375 = vector.load %arg5[%c121_456, %c0_457] : memref<296x384xf32, #tpu.memory_space<vmem>>, vector<8x384xf32>
    tpu.vector_store %arg5[%c121_456, %c0_457], %374 {strides = array<i32>} : memref<296x384xf32, #tpu.memory_space<vmem>>, vector<8x384xf32>,
    %c366_i32_458 = arith.constant 366 : i32
    %376 = tpu.dynamic_rotate %209 by %c366_i32_458 dim 1 : vector<8x384xf32>, i32 -> vector<8x384xf32>
    %c129_459 = arith.constant 129 : index
    %c0_460 = arith.constant 0 : index
    %377 = vector.load %arg5[%c129_459, %c0_460] : memref<296x384xf32, #tpu.memory_space<vmem>>, vector<8x384xf32>
    tpu.vector_store %arg5[%c129_459, %c0_460], %376 {strides = array<i32>} : memref<296x384xf32, #tpu.memory_space<vmem>>, vector<8x384xf32>,
    %c365_i32_461 = arith.constant 365 : i32
    %378 = tpu.dynamic_rotate %209 by %c365_i32_461 dim 1 : vector<8x384xf32>, i32 -> vector<8x384xf32>
    %c137_462 = arith.constant 137 : index
    %c0_463 = arith.constant 0 : index
    %379 = vector.load %arg5[%c137_462, %c0_463] : memref<296x384xf32, #tpu.memory_space<vmem>>, vector<8x384xf32>
    tpu.vector_store %arg5[%c137_462, %c0_463], %378 {strides = array<i32>} : memref<296x384xf32, #tpu.memory_space<vmem>>, vector<8x384xf32>,
    %cst_464 = arith.constant 0.000000e+00 : f32
    %380 = vector.broadcast %cst_464 : f32 to vector<7x384xf32>
    %c145_465 = arith.constant 145 : index
    %c0_466 = arith.constant 0 : index
    %381 = vector.load %arg5[%c145_465, %c0_466] : memref<296x384xf32, #tpu.memory_space<vmem>>, vector<7x384xf32>
    tpu.vector_store %arg5[%c145_465, %c0_466], %380 {strides = array<i32>} : memref<296x384xf32, #tpu.memory_space<vmem>>, vector<7x384xf32>,
    %c0_467 = arith.constant 0 : index
    %c2304 = arith.constant 2304 : index
    %382 = vector.load %arg2[%c0_467, %c2304] : memref<16x2688xf32, #tpu.memory_space<vmem>>, vector<4x152xf32>
    %c0_468 = arith.constant 0 : index
    %c0_469 = arith.constant 0 : index
    %383 = vector.load %arg5[%c0_468, %c0_469] : memref<296x384xf32, #tpu.memory_space<vmem>>, vector<152x384xf32>
    %cst_470 = arith.constant dense<0.000000e+00> : vector<4x384xf32>
    %384 = tpu.matmul %382, %383, %cst_470 {dimension_numbers = #tpu.dot_dimension_numbers<[1], [0], [0], [1], [0, 0, 1, 1], [], []>} : vector<4x152xf32>, vector<152x384xf32>, vector<4x384xf32> -> vector<4x384xf32>
    %cst_471 = arith.constant 0.000000e+00 : f32
    %385 = vector.broadcast %cst_471 : f32 to vector<4x384xf32>
    %386 = arith.maximumf %384, %385 : vector<4x384xf32>
    %cst_472 = arith.constant 0.000000e+00 : f32
    %387 = vector.shape_cast %2 : vector<1x384xi1> to vector<1x384xi1>
    %388 = vector.broadcast %387 : vector<1x384xi1> to vector<4x384xi1>
    %389 = vector.broadcast %cst_472 : f32 to vector<4x384xf32>
    %390 = arith.select %388, %386, %389 : vector<4x384xi1>, vector<4x384xf32>
    %c19_i32_473 = arith.constant 19 : i32
    %391 = tpu.dynamic_rotate %390 by %c19_i32_473 dim 1 : vector<4x384xf32>, i32 -> vector<4x384xf32>
    %c1_474 = arith.constant 1 : index
    %c0_475 = arith.constant 0 : index
    %392 = vector.load %arg5[%c1_474, %c0_475] : memref<296x384xf32, #tpu.memory_space<vmem>>, vector<4x384xf32>
    tpu.vector_store %arg5[%c1_474, %c0_475], %391 {strides = array<i32>} : memref<296x384xf32, #tpu.memory_space<vmem>>, vector<4x384xf32>,
    %c18_i32_476 = arith.constant 18 : i32
    %393 = tpu.dynamic_rotate %390 by %c18_i32_476 dim 1 : vector<4x384xf32>, i32 -> vector<4x384xf32>
    %c5_477 = arith.constant 5 : index
    %c0_478 = arith.constant 0 : index
    %394 = vector.load %arg5[%c5_477, %c0_478] : memref<296x384xf32, #tpu.memory_space<vmem>>, vector<4x384xf32>
    tpu.vector_store %arg5[%c5_477, %c0_478], %393 {strides = array<i32>} : memref<296x384xf32, #tpu.memory_space<vmem>>, vector<4x384xf32>,
    %c17_i32_479 = arith.constant 17 : i32
    %395 = tpu.dynamic_rotate %390 by %c17_i32_479 dim 1 : vector<4x384xf32>, i32 -> vector<4x384xf32>
    %c9_480 = arith.constant 9 : index
    %c0_481 = arith.constant 0 : index
    %396 = vector.load %arg5[%c9_480, %c0_481] : memref<296x384xf32, #tpu.memory_space<vmem>>, vector<4x384xf32>
    tpu.vector_store %arg5[%c9_480, %c0_481], %395 {strides = array<i32>} : memref<296x384xf32, #tpu.memory_space<vmem>>, vector<4x384xf32>,
    %c1_i32_482 = arith.constant 1 : i32
    %397 = tpu.dynamic_rotate %390 by %c1_i32_482 dim 1 : vector<4x384xf32>, i32 -> vector<4x384xf32>
    %c13_483 = arith.constant 13 : index
    %c0_484 = arith.constant 0 : index
    %398 = vector.load %arg5[%c13_483, %c0_484] : memref<296x384xf32, #tpu.memory_space<vmem>>, vector<4x384xf32>
    tpu.vector_store %arg5[%c13_483, %c0_484], %397 {strides = array<i32>} : memref<296x384xf32, #tpu.memory_space<vmem>>, vector<4x384xf32>,
    %c17_485 = arith.constant 17 : index
    %c0_486 = arith.constant 0 : index
    %399 = vector.load %arg5[%c17_485, %c0_486] : memref<296x384xf32, #tpu.memory_space<vmem>>, vector<4x384xf32>
    tpu.vector_store %arg5[%c17_485, %c0_486], %390 {strides = array<i32>} : memref<296x384xf32, #tpu.memory_space<vmem>>, vector<4x384xf32>,
    %c383_i32_487 = arith.constant 383 : i32
    %400 = tpu.dynamic_rotate %390 by %c383_i32_487 dim 1 : vector<4x384xf32>, i32 -> vector<4x384xf32>
    %c21_488 = arith.constant 21 : index
    %c0_489 = arith.constant 0 : index
    %401 = vector.load %arg5[%c21_488, %c0_489] : memref<296x384xf32, #tpu.memory_space<vmem>>, vector<4x384xf32>
    tpu.vector_store %arg5[%c21_488, %c0_489], %400 {strides = array<i32>} : memref<296x384xf32, #tpu.memory_space<vmem>>, vector<4x384xf32>,
    %c367_i32_490 = arith.constant 367 : i32
    %402 = tpu.dynamic_rotate %390 by %c367_i32_490 dim 1 : vector<4x384xf32>, i32 -> vector<4x384xf32>
    %c25_491 = arith.constant 25 : index
    %c0_492 = arith.constant 0 : index
    %403 = vector.load %arg5[%c25_491, %c0_492] : memref<296x384xf32, #tpu.memory_space<vmem>>, vector<4x384xf32>
    tpu.vector_store %arg5[%c25_491, %c0_492], %402 {strides = array<i32>} : memref<296x384xf32, #tpu.memory_space<vmem>>, vector<4x384xf32>,
    %c366_i32_493 = arith.constant 366 : i32
    %404 = tpu.dynamic_rotate %390 by %c366_i32_493 dim 1 : vector<4x384xf32>, i32 -> vector<4x384xf32>
    %c29_494 = arith.constant 29 : index
    %c0_495 = arith.constant 0 : index
    %405 = vector.load %arg5[%c29_494, %c0_495] : memref<296x384xf32, #tpu.memory_space<vmem>>, vector<4x384xf32>
    tpu.vector_store %arg5[%c29_494, %c0_495], %404 {strides = array<i32>} : memref<296x384xf32, #tpu.memory_space<vmem>>, vector<4x384xf32>,
    %c365_i32_496 = arith.constant 365 : i32
    %406 = tpu.dynamic_rotate %390 by %c365_i32_496 dim 1 : vector<4x384xf32>, i32 -> vector<4x384xf32>
    %c33_497 = arith.constant 33 : index
    %c0_498 = arith.constant 0 : index
    %407 = vector.load %arg5[%c33_497, %c0_498] : memref<296x384xf32, #tpu.memory_space<vmem>>, vector<4x384xf32>
    tpu.vector_store %arg5[%c33_497, %c0_498], %406 {strides = array<i32>} : memref<296x384xf32, #tpu.memory_space<vmem>>, vector<4x384xf32>,
    %cst_499 = arith.constant 0.000000e+00 : f32
    %408 = vector.broadcast %cst_499 : f32 to vector<3x384xf32>
    %c37_500 = arith.constant 37 : index
    %c0_501 = arith.constant 0 : index
    %409 = vector.load %arg5[%c37_500, %c0_501] : memref<296x384xf32, #tpu.memory_space<vmem>>, vector<3x384xf32>
    tpu.vector_store %arg5[%c37_500, %c0_501], %408 {strides = array<i32>} : memref<296x384xf32, #tpu.memory_space<vmem>>, vector<3x384xf32>,
    %c0_502 = arith.constant 0 : index
    %c2560 = arith.constant 2560 : index
    %410 = vector.load %arg2[%c0_502, %c2560] : memref<16x2688xf32, #tpu.memory_space<vmem>>, vector<2x40xf32>
    %c0_503 = arith.constant 0 : index
    %c0_504 = arith.constant 0 : index
    %411 = vector.load %arg5[%c0_503, %c0_504] : memref<296x384xf32, #tpu.memory_space<vmem>>, vector<40x384xf32>
    %cst_505 = arith.constant dense<0.000000e+00> : vector<2x384xf32>
    %412 = tpu.matmul %410, %411, %cst_505 {dimension_numbers = #tpu.dot_dimension_numbers<[1], [0], [0], [1], [0, 0, 1, 1], [], []>} : vector<2x40xf32>, vector<40x384xf32>, vector<2x384xf32> -> vector<2x384xf32>
    %413 = arith.negf %412 : vector<2x384xf32>
    %414 = math.exp %413 : vector<2x384xf32>
    %cst_506 = arith.constant 1.000000e+00 : f32
    %415 = vector.broadcast %cst_506 : f32 to vector<2x384xf32>
    %416 = arith.addf %415, %414 : vector<2x384xf32>
    %417 = arith.divf %415, %416 : vector<2x384xf32>
    %cst_507 = arith.constant 0.000000e+00 : f32
    %418 = vector.shape_cast %2 : vector<1x384xi1> to vector<1x384xi1>
    %419 = vector.broadcast %418 : vector<1x384xi1> to vector<2x384xi1>
    %420 = vector.broadcast %cst_507 : f32 to vector<2x384xf32>
    %421 = arith.select %419, %417, %420 : vector<2x384xi1>, vector<2x384xf32>
    %422 = vector.shape_cast %421 : vector<2x384xf32> to vector<1x2x384xf32>
    %c0_508 = arith.constant 0 : index
    %c0_509 = arith.constant 0 : index
    %c0_510 = arith.constant 0 : index
    %423 = vector.load %arg4[%c0_508, %c0_509, %c0_510] : memref<1x2x384xf32, #tpu.memory_space<vmem>>, vector<1x2x384xf32>
    tpu.vector_store %arg4[%c0_508, %c0_509, %c0_510], %422 {strides = array<i32>} : memref<1x2x384xf32, #tpu.memory_space<vmem>>, vector<1x2x384xf32>,
    return
  }
  func.func @transform_0(%arg0: i32) -> (i32, i32, i32) {
    %c0_i32 = arith.constant 0 : i32
    %c0_i32_0 = arith.constant 0 : i32
    %c0_i32_1 = arith.constant 0 : i32
    return %arg0, %c0_i32, %c0_i32_0 : i32, i32, i32
  }
  func.func @transform_1(%arg0: i32) -> (i32, i32) {
    %c0_i32 = arith.constant 0 : i32
    %c0_i32_0 = arith.constant 0 : i32
    %c0_i32_1 = arith.constant 0 : i32
    return %c0_i32, %c0_i32_0 : i32, i32
  }
  func.func @transform_2(%arg0: i32) -> (i32, i32) {
    %c0_i32 = arith.constant 0 : i32
    %c0_i32_0 = arith.constant 0 : i32
    %c0_i32_1 = arith.constant 0 : i32
    return %c0_i32, %c0_i32_0 : i32, i32
  }
  func.func @transform_3(%arg0: i32) -> (i32, i32, i32) {
    %c0_i32 = arith.constant 0 : i32
    %c0_i32_0 = arith.constant 0 : i32
    %c0_i32_1 = arith.constant 0 : i32
    return %arg0, %c0_i32, %c0_i32_0 : i32, i32, i32
  }
}

</mosaic_0001>

<llo_original>
// kernel: wnet_forward.1
$region0: #{wnet_forward.1}
  #allocation0 [shape = 'u32[]', space=smem, size = 0x4, offset = 0x4, fixed_abs, tag = 'smem constant byte address 0x4 - core index']
  #allocation1 [shape = 'u32[144,128]{1,0:T(1,128)}', space=vmem, size = 0x12000, scoped, tag = 'internal scratch']
  #allocation2 [shape = 'f32[296,384]{1,0:T(8,128)}', space=vmem, size = 0x6f000, scoped, tag = 'scratch operand']
  %s0 = inlined_call_operand.vmem [shape: f32[2,4,384], index: 0, kind: input, shape index: {}]
  %s1 = inlined_call_operand.vmem [shape: f32[16,2688], index: 1, kind: input, shape index: {}]
  %s2 = inlined_call_operand.vmem [shape: f32[1,384], index: 2, kind: input, shape index: {}]
  %s3 = inlined_call_operand.vmem [shape: f32[2,2,384], index: 3, kind: output, shape index: {}]
  %s4 = sld [smem:[#allocation0]]
  $region45: #{wnet_forward.1} parent=0
    _
  %s6 = ssub.s32 1, %s4
  %s7 = scalar_select 0, %s6, %s4
  loop: start=0, step=1, limit=4
  $region2: #{wnet_forward.1} parent=0 // loop_pre_header
    _
  $region3: #{wnet_forward.1} parent=0 // loop_header
    %s9 = sphi 0, %s13
    %p10 = scmp.ge.s32.totalorder %s9, 4
    %s19 = sphi 0, %s21
    %s22 = sphi 0, %s19
    %s23 = sphi 0, %s22
    %s39 = sphi 0, %s23
    %s43 = sphi 0, %s43
    %s45 = sphi 0, %s43
    %s46 = sphi 0, %s45
    %s60 = sphi 0, %s46
    %s64 = sphi 0, %s64
    %s66 = sphi 0, %s64
    %s67 = sphi 0, %s66
    %s81 = sphi 0, %s67
    %s87 = sphi 0, %s89
    %s90 = sphi 0, %s87
    %s91 = sphi 0, %s90
    %s107 = sphi 0, %s91
  $region4: #{wnet_forward.1} parent=0 // loop_header_branch
    %12 = sbr.rel (%p10) target = $region8
  $region5: #{wnet_forward.1} parent=0 // loop_body
    %s14 = ssub.s32 %s9, 1
    %s15 = ssub.s32 %s9, 2
    %s16 = sadd.s32 %s9, 1
    %s17 = ssub.s32 %s9, %s16
    %p18 = scmp.eq.s32.totalorder %s17, 0
    %s20 = sadd.s32 %s19, 1
    %s21 = scalar_select %p18, %s19, %s20
    %p24 = pneg %p18
    %p25 = scmp.eq.s32.totalorder %s9, 1
    %p26 = por %p24, %p25
    %p27 = scmp.ne.s32.totalorder %s19, %s22
    %p28 = scmp.eq.s32.totalorder %s9, 0
    %p29 = por %p27, %p28
    %p30 = scmp.ne.s32.totalorder %s19, %s22
    %p31 = scmp.eq.s32.totalorder %s14, 1
    %p32 = por %p30, %p31
    %p33 = scmp.ne.s32.totalorder %s22, %s23
    %p34 = scmp.eq.s32.totalorder %s14, 0
    %p35 = por %p33, %p34
    %p36 = scmp.ne.s32.totalorder %s22, %s23
    %p37 = scmp.eq.s32.totalorder %s15, 1
    %p38 = por %p36, %p37
    %p40 = scmp.ne.s32.totalorder %s23, %s39
    %p41 = scmp.eq.s32.totalorder %s15, 0
    %p42 = por %p40, %p41
    %s44 = sadd.s32 %s43, 1
    %p47 = scmp.eq.s32.totalorder %s9, 1
    %p48 = scmp.ne.s32.totalorder %s43, %s45
    %p49 = scmp.eq.s32.totalorder %s9, 0
    %p50 = por %p48, %p49
    %p51 = scmp.ne.s32.totalorder %s43, %s45
    %p52 = scmp.eq.s32.totalorder %s14, 1
    %p53 = por %p51, %p52
    %p54 = scmp.ne.s32.totalorder %s45, %s46
    %p55 = scmp.eq.s32.totalorder %s14, 0
    %p56 = por %p54, %p55
    %p57 = scmp.ne.s32.totalorder %s45, %s46
    %p58 = scmp.eq.s32.totalorder %s15, 1
    %p59 = por %p57, %p58
    %p61 = scmp.ne.s32.totalorder %s46, %s60
    %p62 = scmp.eq.s32.totalorder %s15, 0
    %p63 = por %p61, %p62
    %s65 = sadd.s32 %s64, 1
    %p68 = scmp.eq.s32.totalorder %s9, 1
    %p69 = scmp.ne.s32.totalorder %s64, %s66
    %p70 = scmp.eq.s32.totalorder %s9, 0
    %p71 = por %p69, %p70
    %p72 = scmp.ne.s32.totalorder %s64, %s66
    %p73 = scmp.eq.s32.totalorder %s14, 1
    %p74 = por %p72, %p73
    %p75 = scmp.ne.s32.totalorder %s66, %s67
    %p76 = scmp.eq.s32.totalorder %s14, 0
    %p77 = por %p75, %p76
    %p78 = scmp.ne.s32.totalorder %s66, %s67
    %p79 = scmp.eq.s32.totalorder %s15, 1
    %p80 = por %p78, %p79
    %p82 = scmp.ne.s32.totalorder %s67, %s81
    %p83 = scmp.eq.s32.totalorder %s15, 0
    %p84 = por %p82, %p83
    %s85 = ssub.s32 %s9, %s16
    %p86 = scmp.eq.s32.totalorder %s85, 0
    %s88 = sadd.s32 %s87, 1
    %s89 = scalar_select %p86, %s87, %s88
    %p92 = pneg %p86
    %p93 = scmp.eq.s32.totalorder %s9, 1
    %p94 = por %p92, %p93
    %p95 = scmp.ne.s32.totalorder %s87, %s90
    %p96 = scmp.eq.s32.totalorder %s9, 0
    %p97 = por %p95, %p96
    %p98 = scmp.ne.s32.totalorder %s87, %s90
    %p99 = scmp.eq.s32.totalorder %s14, 1
    %p100 = por %p98, %p99
    %p101 = scmp.ne.s32.totalorder %s90, %s91
    %p102 = scmp.eq.s32.totalorder %s14, 0
    %p103 = por %p101, %p102
    %p104 = scmp.ne.s32.totalorder %s90, %s91
    %p105 = scmp.eq.s32.totalorder %s15, 1
    %p106 = por %p104, %p105
    %p108 = scmp.ne.s32.totalorder %s91, %s107
    %p109 = scmp.eq.s32.totalorder %s15, 0
    %p110 = por %p108, %p109
    %p111 = scmp.le.s32.totalorder 1, %s9
    %p112 = scmp.lt.s32.totalorder %s9, 3
    %p113 = pnand %p111, %p112
    %p114 = pneg %p113
    // Predicated region
    $region9: #{wnet_forward.1} parent=5 // pred_check
      _
    $region10: #{wnet_forward.1} parent=5 // pred_check_branch
      %116 = sbr.rel (%p113) target = $region12
    $region11: #{wnet_forward.1} parent=5 // pred_region
      %s117 = ssub.s32 %s9, 1
      // Predicated region
      $region13: #{wnet_forward.1} parent=11 // pred_check
        %p118 = pneg %p56
      $region14: #{wnet_forward.1} parent=11 // pred_check_branch
        %120 = sbr.rel (%p118) target = $region16
      $region15: #{wnet_forward.1} parent=11 // pred_region
        _
      $region16: #{wnet_forward.1} parent=11 // pred_fallthru
        _
      // Predicated region
      $region17: #{wnet_forward.1} parent=11 // pred_check
        %p121 = pneg %p77
      $region18: #{wnet_forward.1} parent=11 // pred_check_branch
        %123 = sbr.rel (%p121) target = $region20
      $region19: #{wnet_forward.1} parent=11 // pred_region
        _
      $region20: #{wnet_forward.1} parent=11 // pred_fallthru
        _
    $region12: #{wnet_forward.1} parent=5 // pred_fallthru
      _
    %p124 = scmp.lt.s32.totalorder %s9, 2
    // Predicated region
    $region21: #{wnet_forward.1} parent=5 // pred_check
      %p125 = pneg %p124
    $region22: #{wnet_forward.1} parent=5 // pred_check_branch
      %127 = sbr.rel (%p125) target = $region24
    $region23: #{wnet_forward.1} parent=5 // pred_region
      // Predicated region
      $region25: #{wnet_forward.1} parent=23 // pred_check
        %p128 = pneg %p29
      $region26: #{wnet_forward.1} parent=23 // pred_check_branch
        %130 = sbr.rel (%p128) target = $region28
      $region27: #{wnet_forward.1} parent=23 // pred_region
        %p131 = scmp.lt.s32.totalorder %s9, 1
        %s132 = scalar_select %p131, %s9, 1
        %s133 = smul.addr %s132, 3
        %s134 = smul.addr %s133, 4
        %s135 = scalar_lea.vmem %s0, %s134
      $region28: #{wnet_forward.1} parent=23 // pred_fallthru
        _
    $region24: #{wnet_forward.1} parent=5 // pred_fallthru
      _
    %p136 = scmp.le.s32.totalorder 1, %s9
    %p137 = scmp.lt.s32.totalorder %s9, 3
    %p138 = pnand %p136, %p137
    %p139 = pneg %p138
    // Predicated region
    $region29: #{wnet_forward.1} parent=5 // pred_check
      _
    $region30: #{wnet_forward.1} parent=5 // pred_check_branch
      %141 = sbr.rel (%p138) target = $region32
    $region31: #{wnet_forward.1} parent=5 // pred_region
      %s142 = ssub.s32 %s9, 1
      %p143 = scmp.lt.s32.totalorder %s14, 1
      %s144 = scalar_select %p143, %s14, 1
      %s145 = smul.addr %s144, 3
      %s146 = smul.addr %s145, 4
      %s147 = scalar_lea.vmem %s0, %s146
      %p148 = pneg %p35
      %p149 = pneg %p32
      %p150 = pneg %p56
      %p151 = pneg %p53
      %p152 = pneg %p77
      %p153 = pneg %p74
      %p154 = pneg %p103
      %p155 = pneg %p100
      %p156 = scmp.lt.s32.totalorder %s14, 1
      %s157 = scalar_select %p156, %s14, 1
      %s158 = smul.addr %s157, 3
      %s159 = smul.addr %s158, 2
      %s160 = scalar_lea.vmem %s3, %s159
      %p161 = scmp.lt.s32.totalorder %s14, 1
      %s162 = scalar_select %p161, %s14, 1
      %s163 = smul.addr %s162, 3
      %s164 = smul.addr %s163, 4
      %s165 = scalar_lea.vmem %s0, %s164
      %p166 = scmp.lt.s32.totalorder %s14, 1
      %s167 = scalar_select %p166, %s14, 1
      %s168 = smul.addr %s167, 3
      %s169 = smul.addr %s168, 2
      %s170 = scalar_lea.vmem %s3, %s169
      %v171 = vld [vmem:[%s2] sm:$0x7]
      %vm172 = vcmp.gt.f32.partialorder %v171, 0.5
      %v173 = vlaneseq
      %vm174 = vcmp.ge.s32.totalorder %v173, 0
      %vm175 = vcmp.lt.s32.totalorder %v173, 384
      %vm176 = vmand %vm174, %vm175
      %177 = vst.msk [vmem:[#allocation2] ss:$8 sm:$0x7] %vm176, 1.0
      %178 = vst.msk [vmem:[#allocation2] ss:$8 sm:$0x0] %vm176, 1.0
      %v179 = vld [vmem:[%s165] sm:$0xff]
      %v180 = vld [vmem:[%s165 + $0x8] sm:$0xf]
      %v183 = vcombine.high %v179, %v179
      %185 = vrot.lane.b32.xlu0 %v179, 19
      %v186 = vpop.permute.xlu0 %185
      %187 = vrot.lane.b32.xlu0 %v183, 19
      %v188 = vpop.permute.xlu0 %187
      %189 = vrot.lane.b32.xlu0 %v180, 19
      %v190 = vpop.permute.xlu0 %189
      %v191 = vlaneseq
      %v192 = vand.u32 %v191, 127
      %vm193 = vcmp.lt.s32.totalorder %v192, 19
      %v194 = vsel %vm193, %v188, %v190
      %v195 = vsel %vm193, %v186, %v188
      %v196 = vsel %vm193, %v190, %v186
      %v200 = vrot.slane %v196, 7
      %v201 = vrot.slane %v195, 7
      %v202 = vrot.slane %v194, 7
      %206 = vst [vmem:[#allocation2] sm:$0x1e] %v200
      %207 = vst [vmem:[#allocation2 + $0x8] sm:$0x1e] %v201
      %208 = vst [vmem:[#allocation2 + $0x10] sm:$0x1e] %v202
      %209 = vrot.lane.b32.xlu0 %v179, 18
      %v210 = vpop.permute.xlu0 %209
      %211 = vrot.lane.b32.xlu0 %v183, 18
      %v212 = vpop.permute.xlu0 %211
      %213 = vrot.lane.b32.xlu0 %v180, 18
      %v214 = vpop.permute.xlu0 %213
      %vm215 = vcmp.lt.s32.totalorder %v192, 18
      %v216 = vsel %vm215, %v212, %v214
      %v217 = vsel %vm215, %v210, %v212
      %v218 = vsel %vm215, %v214, %v210
      %v222 = vrot.slane %v218, 3
      %v223 = vrot.slane %v217, 3
      %v224 = vrot.slane %v216, 3
      %228 = vst [vmem:[#allocation2] sm:$0xe0] %v222
      %229 = vst [vmem:[#allocation2 + $0x8] sm:$0xe0] %v223
      %230 = vst [vmem:[#allocation2 + $0x10] sm:$0xe0] %v224
      %231 = vst [vmem:[#allocation2 + $0x18] sm:$0x1] %v222
      %232 = vst [vmem:[#allocation2 + $0x20] sm:$0x1] %v223
      %233 = vst [vmem:[#allocation2 + $0x28] sm:$0x1] %v224
      %234 = vrot.lane.b32.xlu0 %v179, 17
      %v235 = vpop.permute.xlu0 %234
      %236 = vrot.lane.b32.xlu0 %v183, 17
      %v237 = vpop.permute.xlu0 %236
      %238 = vrot.lane.b32.xlu0 %v180, 17
      %v239 = vpop.permute.xlu0 %238
      %vm240 = vcmp.lt.s32.totalorder %v192, 17
      %v241 = vsel %vm240, %v237, %v239
      %v242 = vsel %vm240, %v235, %v237
      %v243 = vsel %vm240, %v239, %v235
      %v247 = vrot.slane %v243, 7
      %v248 = vrot.slane %v242, 7
      %v249 = vrot.slane %v241, 7
      %253 = vst [vmem:[#allocation2 + $0x18] sm:$0x1e] %v247
      %254 = vst [vmem:[#allocation2 + $0x20] sm:$0x1e] %v248
      %255 = vst [vmem:[#allocation2 + $0x28] sm:$0x1e] %v249
      %256 = vrot.lane.b32.xlu0 %v179, 1
      %v257 = vpop.permute.xlu0 %256
      %258 = vrot.lane.b32.xlu0 %v183, 1
      %v259 = vpop.permute.xlu0 %258
      %260 = vrot.lane.b32.xlu0 %v180, 1
      %v261 = vpop.permute.xlu0 %260
      %vm262 = vcmp.lt.s32.totalorder %v192, 1
      %v263 = vsel %vm262, %v259, %v261
      %v264 = vsel %vm262, %v257, %v259
      %v265 = vsel %vm262, %v261, %v257
      %v269 = vrot.slane %v265, 3
      %v270 = vrot.slane %v264, 3
      %v271 = vrot.slane %v263, 3
      %275 = vst [vmem:[#allocation2 + $0x18] sm:$0xe0] %v269
      %276 = vst [vmem:[#allocation2 + $0x20] sm:$0xe0] %v270
      %277 = vst [vmem:[#allocation2 + $0x28] sm:$0xe0] %v271
      %278 = vst [vmem:[#allocation2 + $0x30] sm:$0x1] %v269
      %279 = vst [vmem:[#allocation2 + $0x38] sm:$0x1] %v270
      %280 = vst [vmem:[#allocation2 + $0x40] sm:$0x1] %v271
      %v281 = vrot.slane %v179, 7
      %v282 = vrot.slane %v183, 7
      %v283 = vrot.slane %v180, 7
      %287 = vst [vmem:[#allocation2 + $0x30] sm:$0x1e] %v281
      %288 = vst [vmem:[#allocation2 + $0x38] sm:$0x1e] %v282
      %289 = vst [vmem:[#allocation2 + $0x40] sm:$0x1e] %v283
      %290 = vrot.lane.b32.xlu0 %v179, 127
      %v291 = vpop.permute.xlu0 %290
      %292 = vrot.lane.b32.xlu0 %v183, 127
      %v293 = vpop.permute.xlu0 %292
      %294 = vrot.lane.b32.xlu0 %v180, 127
      %v295 = vpop.permute.xlu0 %294
      %vm296 = vcmp.lt.s32.totalorder %v192, 127
      %v297 = vsel %vm296, %v293, %v295
      %v298 = vsel %vm296, %v291, %v293
      %v299 = vsel %vm296, %v295, %v291
      %v303 = vrot.slane %v298, 3
      %v304 = vrot.slane %v297, 3
      %v305 = vrot.slane %v299, 3
      %309 = vst [vmem:[#allocation2 + $0x30] sm:$0xe0] %v303
      %310 = vst [vmem:[#allocation2 + $0x38] sm:$0xe0] %v304
      %311 = vst [vmem:[#allocation2 + $0x40] sm:$0xe0] %v305
      %312 = vst [vmem:[#allocation2 + $0x48] sm:$0x1] %v303
      %313 = vst [vmem:[#allocation2 + $0x50] sm:$0x1] %v304
      %314 = vst [vmem:[#allocation2 + $0x58] sm:$0x1] %v305
      %315 = vrot.lane.b32.xlu0 %v179, 111
      %v316 = vpop.permute.xlu0 %315
      %317 = vrot.lane.b32.xlu0 %v183, 111
      %v318 = vpop.permute.xlu0 %317
      %319 = vrot.lane.b32.xlu0 %v180, 111
      %v320 = vpop.permute.xlu0 %319
      %vm321 = vcmp.lt.s32.totalorder %v192, 111
      %v322 = vsel %vm321, %v318, %v320
      %v323 = vsel %vm321, %v316, %v318
      %v324 = vsel %vm321, %v320, %v316
      %v328 = vrot.slane %v323, 7
      %v329 = vrot.slane %v322, 7
      %v330 = vrot.slane %v324, 7
      %334 = vst [vmem:[#allocation2 + $0x48] sm:$0x1e] %v328
      %335 = vst [vmem:[#allocation2 + $0x50] sm:$0x1e] %v329
      %336 = vst [vmem:[#allocation2 + $0x58] sm:$0x1e] %v330
      %337 = vrot.lane.b32.xlu0 %v179, 110
      %v338 = vpop.permute.xlu0 %337
      %339 = vrot.lane.b32.xlu0 %v183, 110
      %v340 = vpop.permute.xlu0 %339
      %341 = vrot.lane.b32.xlu0 %v180, 110
      %v342 = vpop.permute.xlu0 %341
      %vm343 = vcmp.lt.s32.totalorder %v192, 110
      %v344 = vsel %vm343, %v340, %v342
      %v345 = vsel %vm343, %v338, %v340
      %v346 = vsel %vm343, %v342, %v338
      %v350 = vrot.slane %v345, 3
      %v351 = vrot.slane %v344, 3
      %v352 = vrot.slane %v346, 3
      %356 = vst [vmem:[#allocation2 + $0x48] sm:$0xe0] %v350
      %357 = vst [vmem:[#allocation2 + $0x50] sm:$0xe0] %v351
      %358 = vst [vmem:[#allocation2 + $0x58] sm:$0xe0] %v352
      %359 = vst [vmem:[#allocation2 + $0x60] sm:$0x1] %v350
      %360 = vst [vmem:[#allocation2 + $0x68] sm:$0x1] %v351
      %361 = vst [vmem:[#allocation2 + $0x70] sm:$0x1] %v352
      %362 = vrot.lane.b32.xlu0 %v179, 109
      %v363 = vpop.permute.xlu0 %362
      %364 = vrot.lane.b32.xlu0 %v183, 109
      %v365 = vpop.permute.xlu0 %364
      %366 = vrot.lane.b32.xlu0 %v180, 109
      %v367 = vpop.permute.xlu0 %366
      %vm368 = vcmp.lt.s32.totalorder %v192, 109
      %v369 = vsel %vm368, %v365, %v367
      %v370 = vsel %vm368, %v363, %v365
      %v371 = vsel %vm368, %v367, %v363
      %v375 = vrot.slane %v370, 7
      %v376 = vrot.slane %v369, 7
      %v377 = vrot.slane %v371, 7
      %381 = vst [vmem:[#allocation2 + $0x60] sm:$0x1e] %v375
      %382 = vst [vmem:[#allocation2 + $0x68] sm:$0x1e] %v376
      %383 = vst [vmem:[#allocation2 + $0x70] sm:$0x1e] %v377
      %384 = vst [vmem:[#allocation2 + $0x60] sm:$0xe0] 0.0
      %385 = vst [vmem:[#allocation2 + $0x68] sm:$0xe0] 0.0
      %386 = vst [vmem:[#allocation2 + $0x70] sm:$0xe0] 0.0
      %v387 = vld [vmem:[%s1] sm:$0xff]
      %v388 = vld [vmem:[#allocation2] sm:$0xff]
      %v389 = vld [vmem:[#allocation2 + $0x8] sm:$0xff]
      %v390 = vld [vmem:[#allocation2 + $0x10] sm:$0xff]
      %v391 = vld [vmem:[#allocation2 + $0x18] sm:$0xff]
      %v392 = vld [vmem:[#allocation2 + $0x20] sm:$0xff]
      %v393 = vld [vmem:[#allocation2 + $0x28] sm:$0xff]
      %v394 = vld [vmem:[#allocation2 + $0x30] sm:$0xff]
      %v395 = vld [vmem:[#allocation2 + $0x38] sm:$0xff]
      %v396 = vld [vmem:[#allocation2 + $0x40] sm:$0xff]
      %v397 = vld [vmem:[#allocation2 + $0x48] sm:$0xff]
      %v398 = vld [vmem:[#allocation2 + $0x50] sm:$0xff]
      %v399 = vld [vmem:[#allocation2 + $0x58] sm:$0xff]
      %v400 = vld [vmem:[#allocation2 + $0x60] sm:$0xff]
      %v401 = vld [vmem:[#allocation2 + $0x68] sm:$0xff]
      %v402 = vld [vmem:[#allocation2 + $0x70] sm:$0xff]
      %vm403 = vcmask 326656
      %v405 = vsel %vm403, %v387, 0
      %407 = vmatprep.subr.mxu0 %v389
      %408 = vmatpush1.msra.mxu0 %v388
      %409 = vmatprep.subr.mxu0 %v392
      %410 = vmatpush1.msra.mxu0 %v391
      %411 = vmatprep.subr.mxu0 %v395
      %412 = vmatpush1.msra.mxu0 %v394
      %413 = vmatprep.subr.mxu0 %v398
      %414 = vmatpush1.msra.mxu0 %v397
      %415 = vmatprep.subr.mxu0 %v401
      %416 = vmatpush1.msra.mxu0 %v400
      %417 = vmatprep.subr.mxu0 0.0
      %418 = vmatpush1.msra.mxu0 0.0
      %419 = vmatprep.subr.mxu0 0.0
      %420 = vmatpush1.msra.mxu0 0.0
      %421 = vmatprep.subr.mxu0 0.0
      %422 = vmatpush1.msra.mxu0 0.0
      %423 = vmatprep.subr.mxu0 0.0
      %424 = vmatpush1.msra.mxu0 0.0
      %425 = vmatprep.subr.mxu0 0.0
      %426 = vmatpush1.msra.mxu0 0.0
      %427 = vmatprep.subr.mxu0 0.0
      %428 = vmatpush1.msra.mxu0 0.0
      %429 = vmatprep.subr.mxu0 0.0
      %430 = vmatpush1.msra.mxu0 0.0
      %431 = vmatprep.subr.mxu0 0.0
      %432 = vmatpush1.msra.mxu0 0.0
      %433 = vmatprep.subr.mxu0 0.0
      %434 = vmatpush1.msra.mxu0 0.0
      %435 = vmatprep.subr.mxu0 0.0
      %436 = vmatpush1.msra.mxu0 0.0
      %437 = vmatprep.subr.mxu0 0.0
      %438 = vmatpush1.msra.mxu0 0.0
      %439 = vmatprep.subr.mxu0 0.0
      %440 = vmatpush1.msra.mxu0 0.0
      %441 = vmatprep.subr.mxu0 0.0
      %442 = vmatpush1.msra.mxu0 0.0
      %443 = vmatprep.subr.mxu0 0.0
      %444 = vmatpush1.msra.mxu0 0.0
      %445 = vmatprep.subr.mxu0 0.0
      %446 = vmatpush1.msra.mxu0 0.0
      %447 = vmatprep.subr.mxu0 0.0
      %448 = vmatpush1.msra.mxu0 0.0
      %449 = vmatprep.subr.mxu0 0.0
      %450 = vmatpush1.msra.mxu0 0.0
      %451 = vmatprep.subr.mxu0 0.0
      %452 = vmatpush1.msra.mxu0 0.0
      %453 = vmatprep.subr.mxu0 0.0
      %454 = vmatpush1.msra.mxu0 0.0
      %455 = vmatprep.subr.mxu0 0.0
      %456 = vmatpush1.msra.mxu0 0.0
      %457 = vmatprep.subr.mxu0 0.0
      %458 = vmatpush1.msra.mxu0 0.0
      %459 = vmatprep.subr.mxu0 0.0
      %460 = vmatpush1.msra.mxu0 0.0
      %461 = vmatprep.subr.mxu0 0.0
      %462 = vmatpush1.msra.mxu0 0.0
      %463 = vmatprep.subr.mxu0 0.0
      %464 = vmatpush1.msra.mxu0 0.0
      %465 = vmatprep.subr.mxu0 0.0
      %466 = vmatpush1.msra.mxu0 0.0
      %467 = vmatprep.subr.mxu0 0.0
      %468 = vmatpush1.msra.mxu0 0.0
      %469 = vmatprep.subr.mxu0 0.0
      %470 = vmatpush1.msra.mxu0 0.0
      %471 = vmatprep.mubr.f32.mxu0 0.0
      %472 = vmatmul.mubr.f32.gmra.mrb[0].mxu0 %v405
      %v473 = vpop.f32.mrb[0].mxu0
      %v474 = vadd.f32 0.0, %v473
      %v475 = vpop.f32.mrb[0].mxu0
      %v476 = vadd.f32 0.0, %v475
      %477 = vdwg.mxu0
      %478 = vmatprep.subr.mxu0 0.0
      %479 = vmatpush1.msra.mxu0 %v390
      %480 = vmatprep.subr.mxu0 0.0
      %481 = vmatpush1.msra.mxu0 %v393
      %482 = vmatprep.subr.mxu0 0.0
      %483 = vmatpush1.msra.mxu0 %v396
      %484 = vmatprep.subr.mxu0 0.0
      %485 = vmatpush1.msra.mxu0 %v399
      %486 = vmatprep.subr.mxu0 0.0
      %487 = vmatpush1.msra.mxu0 %v402
      %488 = vmatprep.subr.mxu0 0.0
      %489 = vmatpush1.msra.mxu0 0.0
      %490 = vmatprep.subr.mxu0 0.0
      %491 = vmatpush1.msra.mxu0 0.0
      %492 = vmatprep.subr.mxu0 0.0
      %493 = vmatpush1.msra.mxu0 0.0
      %494 = vmatprep.subr.mxu0 0.0
      %495 = vmatpush1.msra.mxu0 0.0
      %496 = vmatprep.subr.mxu0 0.0
      %497 = vmatpush1.msra.mxu0 0.0
      %498 = vmatprep.subr.mxu0 0.0
      %499 = vmatpush1.msra.mxu0 0.0
      %500 = vmatprep.subr.mxu0 0.0
      %501 = vmatpush1.msra.mxu0 0.0
      %502 = vmatprep.subr.mxu0 0.0
      %503 = vmatpush1.msra.mxu0 0.0
      %504 = vmatprep.subr.mxu0 0.0
      %505 = vmatpush1.msra.mxu0 0.0
      %506 = vmatprep.subr.mxu0 0.0
      %507 = vmatpush1.msra.mxu0 0.0
      %508 = vmatprep.subr.mxu0 0.0
      %509 = vmatpush1.msra.mxu0 0.0
      %510 = vmatprep.subr.mxu0 0.0
      %511 = vmatpush1.msra.mxu0 0.0
      %512 = vmatprep.subr.mxu0 0.0
      %513 = vmatpush1.msra.mxu0 0.0
      %514 = vmatprep.subr.mxu0 0.0
      %515 = vmatpush1.msra.mxu0 0.0
      %516 = vmatprep.subr.mxu0 0.0
      %517 = vmatpush1.msra.mxu0 0.0
      %518 = vmatprep.subr.mxu0 0.0
      %519 = vmatpush1.msra.mxu0 0.0
      %520 = vmatprep.subr.mxu0 0.0
      %521 = vmatpush1.msra.mxu0 0.0
      %522 = vmatprep.subr.mxu0 0.0
      %523 = vmatpush1.msra.mxu0 0.0
      %524 = vmatprep.subr.mxu0 0.0
      %525 = vmatpush1.msra.mxu0 0.0
      %526 = vmatprep.subr.mxu0 0.0
      %527 = vmatpush1.msra.mxu0 0.0
      %528 = vmatprep.subr.mxu0 0.0
      %529 = vmatpush1.msra.mxu0 0.0
      %530 = vmatprep.subr.mxu0 0.0
      %531 = vmatpush1.msra.mxu0 0.0
      %532 = vmatprep.subr.mxu0 0.0
      %533 = vmatpush1.msra.mxu0 0.0
      %534 = vmatprep.subr.mxu0 0.0
      %535 = vmatpush1.msra.mxu0 0.0
      %536 = vmatprep.subr.mxu0 0.0
      %537 = vmatpush1.msra.mxu0 0.0
      %538 = vmatprep.subr.mxu0 0.0
      %539 = vmatpush1.msra.mxu0 0.0
      %540 = vmatprep.subr.mxu0 0.0
      %541 = vmatpush1.msra.mxu0 0.0
      %542 = vmatprep.mubr.f32.mxu0 0.0
      %543 = vmatmul.mubr.f32.gmra.mrb[0].mxu0 %v405
      %v544 = vpop.f32.mrb[0].mxu0
      %v545 = vadd.f32 0.0, %v544
      %v546 = vpop.f32.mrb[0].mxu0
      %547 = vdwg.mxu0
      %v548 = vmax.f32 %v474, 0.0
      %v549 = vmax.f32 %v476, 0.0
      %v550 = vmax.f32 %v545, 0.0
      %v551 = vsel %vm172, 1, 0
      %v552 = vlaneseq
      %v553 = vshrl.u32 %v552, 7
      %v554 = vsub.s32 0, %v553
      %v555 = vrot.slane %v551, %v554
      %v556 = vlaneseq
      %v557 = vshrl.u32 %v556, 7
      %v558 = vsub.s32 1, %v557
      %v559 = vrot.slane %v551, %v558
      %v560 = vlaneseq
      %v561 = vshrl.u32 %v560, 7
      %v562 = vsub.s32 2, %v561
      %v563 = vrot.slane %v551, %v562
      %vm564 = vcmp.eq.s32.totalorder %v555, 1
      %vm565 = vcmp.eq.s32.totalorder %v559, 1
      %vm566 = vcmp.eq.s32.totalorder %v563, 1
      %v567 = vsel %vm564, %v548, 0.0
      %v568 = vsel %vm565, %v549, 0.0
      %v569 = vsel %vm566, %v550, 0.0
      %570 = vrot.lane.b32.xlu0 %v567, 19
      %v571 = vpop.permute.xlu0 %570
      %572 = vrot.lane.b32.xlu0 %v568, 19
      %v573 = vpop.permute.xlu0 %572
      %574 = vrot.lane.b32.xlu0 %v569, 19
      %v575 = vpop.permute.xlu0 %574
      %v576 = vsel %vm193, %v573, %v575
      %v577 = vsel %vm193, %v571, %v573
      %v578 = vsel %vm193, %v575, %v571
      %v582 = vrot.slane %v578, 7
      %v583 = vrot.slane %v577, 7
      %v584 = vrot.slane %v576, 7
      %588 = vst [vmem:[#allocation2] sm:$0xfe] %v582
      %589 = vst [vmem:[#allocation2 + $0x8] sm:$0xfe] %v583
      %590 = vst [vmem:[#allocation2 + $0x10] sm:$0xfe] %v584
      %591 = vst [vmem:[#allocation2 + $0x18] sm:$0x1] %v582
      %592 = vst [vmem:[#allocation2 + $0x20] sm:$0x1] %v583
      %593 = vst [vmem:[#allocation2 + $0x28] sm:$0x1] %v584
      %594 = vrot.lane.b32.xlu0 %v567, 18
      %v595 = vpop.permute.xlu0 %594
      %596 = vrot.lane.b32.xlu0 %v568, 18
      %v597 = vpop.permute.xlu0 %596
      %598 = vrot.lane.b32.xlu0 %v569, 18
      %v599 = vpop.permute.xlu0 %598
      %v600 = vsel %vm215, %v597, %v599
      %v601 = vsel %vm215, %v595, %v597
      %v602 = vsel %vm215, %v599, %v595
      %v606 = vrot.slane %v602, 7
      %v607 = vrot.slane %v601, 7
      %v608 = vrot.slane %v600, 7
      %612 = vst [vmem:[#allocation2 + $0x18] sm:$0xfe] %v606
      %613 = vst [vmem:[#allocation2 + $0x20] sm:$0xfe] %v607
      %614 = vst [vmem:[#allocation2 + $0x28] sm:$0xfe] %v608
      %615 = vst [vmem:[#allocation2 + $0x30] sm:$0x1] %v606
      %616 = vst [vmem:[#allocation2 + $0x38] sm:$0x1] %v607
      %617 = vst [vmem:[#allocation2 + $0x40] sm:$0x1] %v608
      %618 = vrot.lane.b32.xlu0 %v567, 17
      %v619 = vpop.permute.xlu0 %618
      %620 = vrot.lane.b32.xlu0 %v568, 17
      %v621 = vpop.permute.xlu0 %620
      %622 = vrot.lane.b32.xlu0 %v569, 17
      %v623 = vpop.permute.xlu0 %622
      %v624 = vsel %vm240, %v621, %v623
      %v625 = vsel %vm240, %v619, %v621
      %v626 = vsel %vm240, %v623, %v619
      %v630 = vrot.slane %v626, 7
      %v631 = vrot.slane %v625, 7
      %v632 = vrot.slane %v624, 7
      %636 = vst [vmem:[#allocation2 + $0x30] sm:$0xfe] %v630
      %637 = vst [vmem:[#allocation2 + $0x38] sm:$0xfe] %v631
      %638 = vst [vmem:[#allocation2 + $0x40] sm:$0xfe] %v632
      %639 = vst [vmem:[#allocation2 + $0x48] sm:$0x1] %v630
      %640 = vst [vmem:[#allocation2 + $0x50] sm:$0x1] %v631
      %641 = vst [vmem:[#allocation2 + $0x58] sm:$0x1] %v632
      %642 = vrot.lane.b32.xlu0 %v567, 1
      %v643 = vpop.permute.xlu0 %642
      %644 = vrot.lane.b32.xlu0 %v568, 1
      %v645 = vpop.permute.xlu0 %644
      %646 = vrot.lane.b32.xlu0 %v569, 1
      %v647 = vpop.permute.xlu0 %646
      %v648 = vsel %vm262, %v645, %v647
      %v649 = vsel %vm262, %v643, %v645
      %v650 = vsel %vm262, %v647, %v643
      %v654 = vrot.slane %v650, 7
      %v655 = vrot.slane %v649, 7
      %v656 = vrot.slane %v648, 7
      %660 = vst [vmem:[#allocation2 + $0x48] sm:$0xfe] %v654
      %661 = vst [vmem:[#allocation2 + $0x50] sm:$0xfe] %v655
      %662 = vst [vmem:[#allocation2 + $0x58] sm:$0xfe] %v656
      %663 = vst [vmem:[#allocation2 + $0x60] sm:$0x1] %v654
      %664 = vst [vmem:[#allocation2 + $0x68] sm:$0x1] %v655
      %665 = vst [vmem:[#allocation2 + $0x70] sm:$0x1] %v656
      %v669 = vrot.slane %v567, 7
      %v670 = vrot.slane %v568, 7
      %v671 = vrot.slane %v569, 7
      %675 = vst [vmem:[#allocation2 + $0x60] sm:$0xfe] %v669
      %676 = vst [vmem:[#allocation2 + $0x68] sm:$0xfe] %v670
      %677 = vst [vmem:[#allocation2 + $0x70] sm:$0xfe] %v671
      %678 = vst [vmem:[#allocation2 + $0x78] sm:$0x1] %v669
      %679 = vst [vmem:[#allocation2 + $0x80] sm:$0x1] %v670
      %680 = vst [vmem:[#allocation2 + $0x88] sm:$0x1] %v671
      %681 = vrot.lane.b32.xlu0 %v567, 127
      %v682 = vpop.permute.xlu0 %681
      %683 = vrot.lane.b32.xlu0 %v568, 127
      %v684 = vpop.permute.xlu0 %683
      %685 = vrot.lane.b32.xlu0 %v569, 127
      %v686 = vpop.permute.xlu0 %685
      %v687 = vsel %vm296, %v684, %v686
      %v688 = vsel %vm296, %v682, %v684
      %v689 = vsel %vm296, %v686, %v682
      %v693 = vrot.slane %v688, 7
      %v694 = vrot.slane %v687, 7
      %v695 = vrot.slane %v689, 7
      %699 = vst [vmem:[#allocation2 + $0x78] sm:$0xfe] %v693
      %700 = vst [vmem:[#allocation2 + $0x80] sm:$0xfe] %v694
      %701 = vst [vmem:[#allocation2 + $0x88] sm:$0xfe] %v695
      %702 = vst [vmem:[#allocation2 + $0x90] sm:$0x1] %v693
      %703 = vst [vmem:[#allocation2 + $0x98] sm:$0x1] %v694
      %704 = vst [vmem:[#allocation2 + $0xa0] sm:$0x1] %v695
      %705 = vrot.lane.b32.xlu0 %v567, 111
      %v706 = vpop.permute.xlu0 %705
      %707 = vrot.lane.b32.xlu0 %v568, 111
      %v708 = vpop.permute.xlu0 %707
      %709 = vrot.lane.b32.xlu0 %v569, 111
      %v710 = vpop.permute.xlu0 %709
      %v711 = vsel %vm321, %v708, %v710
      %v712 = vsel %vm321, %v706, %v708
      %v713 = vsel %vm321, %v710, %v706
      %v717 = vrot.slane %v712, 7
      %v718 = vrot.slane %v711, 7
      %v719 = vrot.slane %v713, 7
      %723 = vst [vmem:[#allocation2 + $0x90] sm:$0xfe] %v717
      %724 = vst [vmem:[#allocation2 + $0x98] sm:$0xfe] %v718
      %725 = vst [vmem:[#allocation2 + $0xa0] sm:$0xfe] %v719
      %726 = vst [vmem:[#allocation2 + $0xa8] sm:$0x1] %v717
      %727 = vst [vmem:[#allocation2 + $0xb0] sm:$0x1] %v718
      %728 = vst [vmem:[#allocation2 + $0xb8] sm:$0x1] %v719
      %729 = vrot.lane.b32.xlu0 %v567, 110
      %v730 = vpop.permute.xlu0 %729
      %731 = vrot.lane.b32.xlu0 %v568, 110
      %v732 = vpop.permute.xlu0 %731
      %733 = vrot.lane.b32.xlu0 %v569, 110
      %v734 = vpop.permute.xlu0 %733
      %v735 = vsel %vm343, %v732, %v734
      %v736 = vsel %vm343, %v730, %v732
      %v737 = vsel %vm343, %v734, %v730
      %v741 = vrot.slane %v736, 7
      %v742 = vrot.slane %v735, 7
      %v743 = vrot.slane %v737, 7
      %747 = vst [vmem:[#allocation2 + $0xa8] sm:$0xfe] %v741
      %748 = vst [vmem:[#allocation2 + $0xb0] sm:$0xfe] %v742
      %749 = vst [vmem:[#allocation2 + $0xb8] sm:$0xfe] %v743
      %750 = vst [vmem:[#allocation2 + $0xc0] sm:$0x1] %v741
      %751 = vst [vmem:[#allocation2 + $0xc8] sm:$0x1] %v742
      %752 = vst [vmem:[#allocation2 + $0xd0] sm:$0x1] %v743
      %753 = vrot.lane.b32.xlu0 %v567, 109
      %v754 = vpop.permute.xlu0 %753
      %755 = vrot.lane.b32.xlu0 %v568, 109
      %v756 = vpop.permute.xlu0 %755
      %757 = vrot.lane.b32.xlu0 %v569, 109
      %v758 = vpop.permute.xlu0 %757
      %v759 = vsel %vm368, %v756, %v758
      %v760 = vsel %vm368, %v754, %v756
      %v761 = vsel %vm368, %v758, %v754
      %v765 = vrot.slane %v760, 7
      %v766 = vrot.slane %v759, 7
      %v767 = vrot.slane %v761, 7
      %771 = vst [vmem:[#allocation2 + $0xc0] sm:$0xfe] %v765
      %772 = vst [vmem:[#allocation2 + $0xc8] sm:$0xfe] %v766
      %773 = vst [vmem:[#allocation2 + $0xd0] sm:$0xfe] %v767
      %774 = vst [vmem:[#allocation2 + $0xd8] sm:$0x1] %v765
      %775 = vst [vmem:[#allocation2 + $0xe0] sm:$0x1] %v766
      %776 = vst [vmem:[#allocation2 + $0xe8] sm:$0x1] %v767
      %777 = vst [vmem:[#allocation2 + $0xd8] sm:$0xfe] 0.0
      %778 = vst [vmem:[#allocation2 + $0xe0] sm:$0xfe] 0.0
      %779 = vst [vmem:[#allocation2 + $0xe8] sm:$0xfe] 0.0
      %v780 = vld [vmem:[%s1 + $0x8] sm:$0xff]
      %v781 = vld [vmem:[%s1 + $0xb0] sm:$0xff]
      %v782 = vld [vmem:[#allocation2] sm:$0xff]
      %v783 = vld [vmem:[#allocation2 + $0x8] sm:$0xff]
      %v784 = vld [vmem:[#allocation2 + $0x10] sm:$0xff]
      %v785 = vld [vmem:[#allocation2 + $0x18] sm:$0xff]
      %v786 = vld [vmem:[#allocation2 + $0x20] sm:$0xff]
      %v787 = vld [vmem:[#allocation2 + $0x28] sm:$0xff]
      %v788 = vld [vmem:[#allocation2 + $0x30] sm:$0xff]
      %v789 = vld [vmem:[#allocation2 + $0x38] sm:$0xff]
      %v790 = vld [vmem:[#allocation2 + $0x40] sm:$0xff]
      %v791 = vld [vmem:[#allocation2 + $0x48] sm:$0xff]
      %v792 = vld [vmem:[#allocation2 + $0x50] sm:$0xff]
      %v793 = vld [vmem:[#allocation2 + $0x58] sm:$0xff]
      %v794 = vld [vmem:[#allocation2 + $0x60] sm:$0xff]
      %v795 = vld [vmem:[#allocation2 + $0x68] sm:$0xff]
      %v796 = vld [vmem:[#allocation2 + $0x70] sm:$0xff]
      %v797 = vld [vmem:[#allocation2 + $0x78] sm:$0xff]
      %v798 = vld [vmem:[#allocation2 + $0x80] sm:$0xff]
      %v799 = vld [vmem:[#allocation2 + $0x88] sm:$0xff]
      %v800 = vld [vmem:[#allocation2 + $0x90] sm:$0xff]
      %v801 = vld [vmem:[#allocation2 + $0x98] sm:$0xff]
      %v802 = vld [vmem:[#allocation2 + $0xa0] sm:$0xff]
      %v803 = vld [vmem:[#allocation2 + $0xa8] sm:$0xff]
      %v804 = vld [vmem:[#allocation2 + $0xb0] sm:$0xff]
      %v805 = vld [vmem:[#allocation2 + $0xb8] sm:$0xff]
      %v806 = vld [vmem:[#allocation2 + $0xc0] sm:$0xff]
      %v807 = vld [vmem:[#allocation2 + $0xc8] sm:$0xff]
      %v808 = vld [vmem:[#allocation2 + $0xd0] sm:$0xff]
      %v809 = vld [vmem:[#allocation2 + $0xd8] sm:$0xff]
      %v810 = vld [vmem:[#allocation2 + $0xe0] sm:$0xff]
      %v811 = vld [vmem:[#allocation2 + $0xe8] sm:$0xff]
      %vm812 = vcmask 654336
      %v814 = vsel %vm812, %v780, 0
      %v817 = vsel %vm812, %v781, 0
      %819 = vmatprep.subr.mxu0 %v783
      %820 = vmatpush1.msra.mxu0 %v782
      %821 = vmatprep.subr.mxu0 %v786
      %822 = vmatpush1.msra.mxu0 %v785
      %823 = vmatprep.subr.mxu0 %v789
      %824 = vmatpush1.msra.mxu0 %v788
      %825 = vmatprep.subr.mxu0 %v792
      %826 = vmatpush1.msra.mxu0 %v791
      %827 = vmatprep.subr.mxu0 %v795
      %828 = vmatpush1.msra.mxu0 %v794
      %829 = vmatprep.subr.mxu0 %v798
      %830 = vmatpush1.msra.mxu0 %v797
      %831 = vmatprep.subr.mxu0 %v801
      %832 = vmatpush1.msra.mxu0 %v800
      %833 = vmatprep.subr.mxu0 %v804
      %834 = vmatpush1.msra.mxu0 %v803
      %835 = vmatprep.subr.mxu0 %v807
      %836 = vmatpush1.msra.mxu0 %v806
      %837 = vmatprep.subr.mxu0 %v810
      %838 = vmatpush1.msra.mxu0 %v809
      %839 = vmatprep.subr.mxu0 0.0
      %840 = vmatpush1.msra.mxu0 0.0
      %841 = vmatprep.subr.mxu0 0.0
      %842 = vmatpush1.msra.mxu0 0.0
      %843 = vmatprep.subr.mxu0 0.0
      %844 = vmatpush1.msra.mxu0 0.0
      %845 = vmatprep.subr.mxu0 0.0
      %846 = vmatpush1.msra.mxu0 0.0
      %847 = vmatprep.subr.mxu0 0.0
      %848 = vmatpush1.msra.mxu0 0.0
      %849 = vmatprep.subr.mxu0 0.0
      %850 = vmatpush1.msra.mxu0 0.0
      %851 = vmatprep.subr.mxu0 0.0
      %852 = vmatpush1.msra.mxu0 0.0
      %853 = vmatprep.subr.mxu0 0.0
      %854 = vmatpush1.msra.mxu0 0.0
      %855 = vmatprep.subr.mxu0 0.0
      %856 = vmatpush1.msra.mxu0 0.0
      %857 = vmatprep.subr.mxu0 0.0
      %858 = vmatpush1.msra.mxu0 0.0
      %859 = vmatprep.subr.mxu0 0.0
      %860 = vmatpush1.msra.mxu0 0.0
      %861 = vmatprep.subr.mxu0 0.0
      %862 = vmatpush1.msra.mxu0 0.0
      %863 = vmatprep.subr.mxu0 0.0
      %864 = vmatpush1.msra.mxu0 0.0
      %865 = vmatprep.subr.mxu0 0.0
      %866 = vmatpush1.msra.mxu0 0.0
      %867 = vmatprep.subr.mxu0 0.0
      %868 = vmatpush1.msra.mxu0 0.0
      %869 = vmatprep.subr.mxu0 0.0
      %870 = vmatpush1.msra.mxu0 0.0
      %871 = vmatprep.subr.mxu0 0.0
      %872 = vmatpush1.msra.mxu0 0.0
      %873 = vmatprep.subr.mxu0 0.0
      %874 = vmatpush1.msra.mxu0 0.0
      %875 = vmatprep.subr.mxu0 0.0
      %876 = vmatpush1.msra.mxu0 0.0
      %877 = vmatprep.subr.mxu0 0.0
      %878 = vmatpush1.msra.mxu0 0.0
      %879 = vmatprep.subr.mxu0 0.0
      %880 = vmatpush1.msra.mxu0 0.0
      %881 = vmatprep.subr.mxu0 0.0
      %882 = vmatpush1.msra.mxu0 0.0
      %883 = vmatprep.mubr.f32.mxu0 0.0
      %884 = vmatmul.mubr.f32.gmra.mrb[0].mxu0 %v814
      %v885 = vpop.f32.mrb[0].mxu0
      %v886 = vadd.f32 0.0, %v885
      %v887 = vpop.f32.mrb[0].mxu0
      %v888 = vadd.f32 0.0, %v887
      %889 = vmatprep.mubr.f32.mxu0 0.0
      %890 = vmatmul.mubr.f32.gmra.mrb[0].mxu0 %v817
      %v891 = vpop.f32.mrb[0].mxu0
      %v892 = vadd.f32 0.0, %v891
      %v893 = vpop.f32.mrb[0].mxu0
      %v894 = vadd.f32 0.0, %v893
      %895 = vdwg.mxu0
      %896 = vmatprep.subr.mxu0 0.0
      %897 = vmatpush1.msra.mxu0 %v784
      %898 = vmatprep.subr.mxu0 0.0
      %899 = vmatpush1.msra.mxu0 %v787
      %900 = vmatprep.subr.mxu0 0.0
      %901 = vmatpush1.msra.mxu0 %v790
      %902 = vmatprep.subr.mxu0 0.0
      %903 = vmatpush1.msra.mxu0 %v793
      %904 = vmatprep.subr.mxu0 0.0
      %905 = vmatpush1.msra.mxu0 %v796
      %906 = vmatprep.subr.mxu0 0.0
      %907 = vmatpush1.msra.mxu0 %v799
      %908 = vmatprep.subr.mxu0 0.0
      %909 = vmatpush1.msra.mxu0 %v802
      %910 = vmatprep.subr.mxu0 0.0
      %911 = vmatpush1.msra.mxu0 %v805
      %912 = vmatprep.subr.mxu0 0.0
      %913 = vmatpush1.msra.mxu0 %v808
      %914 = vmatprep.subr.mxu0 0.0
      %915 = vmatpush1.msra.mxu0 %v811
      %916 = vmatprep.subr.mxu0 0.0
      %917 = vmatpush1.msra.mxu0 0.0
      %918 = vmatprep.subr.mxu0 0.0
      %919 = vmatpush1.msra.mxu0 0.0
      %920 = vmatprep.subr.mxu0 0.0
      %921 = vmatpush1.msra.mxu0 0.0
      %922 = vmatprep.subr.mxu0 0.0
      %923 = vmatpush1.msra.mxu0 0.0
      %924 = vmatprep.subr.mxu0 0.0
      %925 = vmatpush1.msra.mxu0 0.0
      %926 = vmatprep.subr.mxu0 0.0
      %927 = vmatpush1.msra.mxu0 0.0
      %928 = vmatprep.subr.mxu0 0.0
      %929 = vmatpush1.msra.mxu0 0.0
      %930 = vmatprep.subr.mxu0 0.0
      %931 = vmatpush1.msra.mxu0 0.0
      %932 = vmatprep.subr.mxu0 0.0
      %933 = vmatpush1.msra.mxu0 0.0
      %934 = vmatprep.subr.mxu0 0.0
      %935 = vmatpush1.msra.mxu0 0.0
      %936 = vmatprep.subr.mxu0 0.0
      %937 = vmatpush1.msra.mxu0 0.0
      %938 = vmatprep.subr.mxu0 0.0
      %939 = vmatpush1.msra.mxu0 0.0
      %940 = vmatprep.subr.mxu0 0.0
      %941 = vmatpush1.msra.mxu0 0.0
      %942 = vmatprep.subr.mxu0 0.0
      %943 = vmatpush1.msra.mxu0 0.0
      %944 = vmatprep.subr.mxu0 0.0
      %945 = vmatpush1.msra.mxu0 0.0
      %946 = vmatprep.subr.mxu0 0.0
      %947 = vmatpush1.msra.mxu0 0.0
      %948 = vmatprep.subr.mxu0 0.0
      %949 = vmatpush1.msra.mxu0 0.0
      %950 = vmatprep.subr.mxu0 0.0
      %951 = vmatpush1.msra.mxu0 0.0
      %952 = vmatprep.subr.mxu0 0.0
      %953 = vmatpush1.msra.mxu0 0.0
      %954 = vmatprep.subr.mxu0 0.0
      %955 = vmatpush1.msra.mxu0 0.0
      %956 = vmatprep.subr.mxu0 0.0
      %957 = vmatpush1.msra.mxu0 0.0
      %958 = vmatprep.subr.mxu0 0.0
      %959 = vmatpush1.msra.mxu0 0.0
      %960 = vmatprep.mubr.f32.mxu0 0.0
      %961 = vmatmul.mubr.f32.gmra.mrb[0].mxu0 %v814
      %v962 = vpop.f32.mrb[0].mxu0
      %v963 = vadd.f32 0.0, %v962
      %v964 = vpop.f32.mrb[0].mxu0
      %965 = vmatprep.mubr.f32.mxu0 0.0
      %966 = vmatmul.mubr.f32.gmra.mrb[0].mxu0 %v817
      %v967 = vpop.f32.mrb[0].mxu0
      %v968 = vadd.f32 0.0, %v967
      %v969 = vpop.f32.mrb[0].mxu0
      %970 = vdwg.mxu0
      %v971 = vmax.f32 %v886, 0.0
      %v972 = vmax.f32 %v888, 0.0
      %v973 = vmax.f32 %v963, 0.0
      %v974 = vmax.f32 %v892, 0.0
      %v975 = vmax.f32 %v894, 0.0
      %v976 = vmax.f32 %v968, 0.0
      %v977 = vsel %vm564, %v971, 0.0
      %v978 = vsel %vm565, %v972, 0.0
      %v979 = vsel %vm566, %v973, 0.0
      %v980 = vsel %vm564, %v974, 0.0
      %v981 = vsel %vm565, %v975, 0.0
      %v982 = vsel %vm566, %v976, 0.0
      %983 = vrot.lane.b32.xlu0 %v977, 19
      %v984 = vpop.permute.xlu0 %983
      %985 = vrot.lane.b32.xlu0 %v980, 19
      %v986 = vpop.permute.xlu0 %985
      %987 = vrot.lane.b32.xlu0 %v978, 19
      %v988 = vpop.permute.xlu0 %987
      %989 = vrot.lane.b32.xlu0 %v981, 19
      %v990 = vpop.permute.xlu0 %989
      %991 = vrot.lane.b32.xlu0 %v979, 19
      %v992 = vpop.permute.xlu0 %991
      %993 = vrot.lane.b32.xlu0 %v982, 19
      %v994 = vpop.permute.xlu0 %993
      %v995 = vsel %vm193, %v988, %v992
      %v996 = vsel %vm193, %v990, %v994
      %v997 = vsel %vm193, %v984, %v988
      %v998 = vsel %vm193, %v986, %v990
      %v999 = vsel %vm193, %v992, %v984
      %v1000 = vsel %vm193, %v994, %v986
      %vm1007 = vcmask 1040384
      %v1008 = vrot.slane %v999, 7
      %v1009 = vrot.slane %v997, 7
      %v1010 = vrot.slane %v995, 7
      %v1011 = vrot.slane %v1000, 7
      %v1012 = vsel %vm1007, %v1008, %v1011
      %v1013 = vrot.slane %v998, 7
      %v1014 = vsel %vm1007, %v1009, %v1013
      %v1015 = vrot.slane %v996, 7
      %v1016 = vsel %vm1007, %v1010, %v1015
      %1026 = vst [vmem:[#allocation2] sm:$0xfe] %v1008
      %1027 = vst [vmem:[#allocation2 + $0x8] sm:$0xfe] %v1009
      %1028 = vst [vmem:[#allocation2 + $0x10] sm:$0xfe] %v1010
      %1029 = vst [vmem:[#allocation2 + $0x18] sm:$0xff] %v1012
      %1030 = vst [vmem:[#allocation2 + $0x20] sm:$0xff] %v1014
      %1031 = vst [vmem:[#allocation2 + $0x28] sm:$0xff] %v1016
      %1032 = vst [vmem:[#allocation2 + $0x30] sm:$0x1] %v1011
      %1033 = vst [vmem:[#allocation2 + $0x38] sm:$0x1] %v1013
      %1034 = vst [vmem:[#allocation2 + $0x40] sm:$0x1] %v1015
      %1035 = vrot.lane.b32.xlu0 %v977, 18
      %v1036 = vpop.permute.xlu0 %1035
      %1037 = vrot.lane.b32.xlu0 %v980, 18
      %v1038 = vpop.permute.xlu0 %1037
      %1039 = vrot.lane.b32.xlu0 %v978, 18
      %v1040 = vpop.permute.xlu0 %1039
      %1041 = vrot.lane.b32.xlu0 %v981, 18
      %v1042 = vpop.permute.xlu0 %1041
      %1043 = vrot.lane.b32.xlu0 %v979, 18
      %v1044 = vpop.permute.xlu0 %1043
      %1045 = vrot.lane.b32.xlu0 %v982, 18
      %v1046 = vpop.permute.xlu0 %1045
      %v1047 = vsel %vm215, %v1040, %v1044
      %v1048 = vsel %vm215, %v1042, %v1046
      %v1049 = vsel %vm215, %v1036, %v1040
      %v1050 = vsel %vm215, %v1038, %v1042
      %v1051 = vsel %vm215, %v1044, %v1036
      %v1052 = vsel %vm215, %v1046, %v1038
      %v1059 = vrot.slane %v1051, 7
      %v1060 = vrot.slane %v1049, 7
      %v1061 = vrot.slane %v1047, 7
      %v1062 = vrot.slane %v1052, 7
      %v1063 = vsel %vm1007, %v1059, %v1062
      %v1064 = vrot.slane %v1050, 7
      %v1065 = vsel %vm1007, %v1060, %v1064
      %v1066 = vrot.slane %v1048, 7
      %v1067 = vsel %vm1007, %v1061, %v1066
      %1077 = vst [vmem:[#allocation2 + $0x30] sm:$0xfe] %v1059
      %1078 = vst [vmem:[#allocation2 + $0x38] sm:$0xfe] %v1060
      %1079 = vst [vmem:[#allocation2 + $0x40] sm:$0xfe] %v1061
      %1080 = vst [vmem:[#allocation2 + $0x48] sm:$0xff] %v1063
      %1081 = vst [vmem:[#allocation2 + $0x50] sm:$0xff] %v1065
      %1082 = vst [vmem:[#allocation2 + $0x58] sm:$0xff] %v1067
      %1083 = vst [vmem:[#allocation2 + $0x60] sm:$0x1] %v1062
      %1084 = vst [vmem:[#allocation2 + $0x68] sm:$0x1] %v1064
      %1085 = vst [vmem:[#allocation2 + $0x70] sm:$0x1] %v1066
      %1086 = vrot.lane.b32.xlu0 %v977, 17
      %v1087 = vpop.permute.xlu0 %1086
      %1088 = vrot.lane.b32.xlu0 %v980, 17
      %v1089 = vpop.permute.xlu0 %1088
      %1090 = vrot.lane.b32.xlu0 %v978, 17
      %v1091 = vpop.permute.xlu0 %1090
      %1092 = vrot.lane.b32.xlu0 %v981, 17
      %v1093 = vpop.permute.xlu0 %1092
      %1094 = vrot.lane.b32.xlu0 %v979, 17
      %v1095 = vpop.permute.xlu0 %1094
      %1096 = vrot.lane.b32.xlu0 %v982, 17
      %v1097 = vpop.permute.xlu0 %1096
      %v1098 = vsel %vm240, %v1091, %v1095
      %v1099 = vsel %vm240, %v1093, %v1097
      %v1100 = vsel %vm240, %v1087, %v1091
      %v1101 = vsel %vm240, %v1089, %v1093
      %v1102 = vsel %vm240, %v1095, %v1087
      %v1103 = vsel %vm240, %v1097, %v1089
      %v1110 = vrot.slane %v1102, 7
      %v1111 = vrot.slane %v1100, 7
      %v1112 = vrot.slane %v1098, 7
      %v1113 = vrot.slane %v1103, 7
      %v1114 = vsel %vm1007, %v1110, %v1113
      %v1115 = vrot.slane %v1101, 7
      %v1116 = vsel %vm1007, %v1111, %v1115
      %v1117 = vrot.slane %v1099, 7
      %v1118 = vsel %vm1007, %v1112, %v1117
      %1128 = vst [vmem:[#allocation2 + $0x60] sm:$0xfe] %v1110
      %1129 = vst [vmem:[#allocation2 + $0x68] sm:$0xfe] %v1111
      %1130 = vst [vmem:[#allocation2 + $0x70] sm:$0xfe] %v1112
      %1131 = vst [vmem:[#allocation2 + $0x78] sm:$0xff] %v1114
      %1132 = vst [vmem:[#allocation2 + $0x80] sm:$0xff] %v1116
      %1133 = vst [vmem:[#allocation2 + $0x88] sm:$0xff] %v1118
      %1134 = vst [vmem:[#allocation2 + $0x90] sm:$0x1] %v1113
      %1135 = vst [vmem:[#allocation2 + $0x98] sm:$0x1] %v1115
      %1136 = vst [vmem:[#allocation2 + $0xa0] sm:$0x1] %v1117
      %1137 = vrot.lane.b32.xlu0 %v977, 1
      %v1138 = vpop.permute.xlu0 %1137
      %1139 = vrot.lane.b32.xlu0 %v980, 1
      %v1140 = vpop.permute.xlu0 %1139
      %1141 = vrot.lane.b32.xlu0 %v978, 1
      %v1142 = vpop.permute.xlu0 %1141
      %1143 = vrot.lane.b32.xlu0 %v981, 1
      %v1144 = vpop.permute.xlu0 %1143
      %1145 = vrot.lane.b32.xlu0 %v979, 1
      %v1146 = vpop.permute.xlu0 %1145
      %1147 = vrot.lane.b32.xlu0 %v982, 1
      %v1148 = vpop.permute.xlu0 %1147
      %v1149 = vsel %vm262, %v1142, %v1146
      %v1150 = vsel %vm262, %v1144, %v1148
      %v1151 = vsel %vm262, %v1138, %v1142
      %v1152 = vsel %vm262, %v1140, %v1144
      %v1153 = vsel %vm262, %v1146, %v1138
      %v1154 = vsel %vm262, %v1148, %v1140
      %v1161 = vrot.slane %v1153, 7
      %v1162 = vrot.slane %v1151, 7
      %v1163 = vrot.slane %v1149, 7
      %v1164 = vrot.slane %v1154, 7
      %v1165 = vsel %vm1007, %v1161, %v1164
      %v1166 = vrot.slane %v1152, 7
      %v1167 = vsel %vm1007, %v1162, %v1166
      %v1168 = vrot.slane %v1150, 7
      %v1169 = vsel %vm1007, %v1163, %v1168
      %1179 = vst [vmem:[#allocation2 + $0x90] sm:$0xfe] %v1161
      %1180 = vst [vmem:[#allocation2 + $0x98] sm:$0xfe] %v1162
      %1181 = vst [vmem:[#allocation2 + $0xa0] sm:$0xfe] %v1163
      %1182 = vst [vmem:[#allocation2 + $0xa8] sm:$0xff] %v1165
      %1183 = vst [vmem:[#allocation2 + $0xb0] sm:$0xff] %v1167
      %1184 = vst [vmem:[#allocation2 + $0xb8] sm:$0xff] %v1169
      %1185 = vst [vmem:[#allocation2 + $0xc0] sm:$0x1] %v1164
      %1186 = vst [vmem:[#allocation2 + $0xc8] sm:$0x1] %v1166
      %1187 = vst [vmem:[#allocation2 + $0xd0] sm:$0x1] %v1168
      %v1194 = vrot.slane %v977, 7
      %v1195 = vrot.slane %v978, 7
      %v1196 = vrot.slane %v979, 7
      %v1197 = vrot.slane %v980, 7
      %v1198 = vsel %vm1007, %v1194, %v1197
      %v1199 = vrot.slane %v981, 7
      %v1200 = vsel %vm1007, %v1195, %v1199
      %v1201 = vrot.slane %v982, 7
      %v1202 = vsel %vm1007, %v1196, %v1201
      %1212 = vst [vmem:[#allocation2 + $0xc0] sm:$0xfe] %v1194
      %1213 = vst [vmem:[#allocation2 + $0xc8] sm:$0xfe] %v1195
      %1214 = vst [vmem:[#allocation2 + $0xd0] sm:$0xfe] %v1196
      %1215 = vst [vmem:[#allocation2 + $0xd8] sm:$0xff] %v1198
      %1216 = vst [vmem:[#allocation2 + $0xe0] sm:$0xff] %v1200
      %1217 = vst [vmem:[#allocation2 + $0xe8] sm:$0xff] %v1202
      %1218 = vst [vmem:[#allocation2 + $0xf0] sm:$0x1] %v1197
      %1219 = vst [vmem:[#allocation2 + $0xf8] sm:$0x1] %v1199
      %1220 = vst [vmem:[#allocation2 + $0x100] sm:$0x1] %v1201
      %1221 = vrot.lane.b32.xlu0 %v977, 127
      %v1222 = vpop.permute.xlu0 %1221
      %1223 = vrot.lane.b32.xlu0 %v980, 127
      %v1224 = vpop.permute.xlu0 %1223
      %1225 = vrot.lane.b32.xlu0 %v978, 127
      %v1226 = vpop.permute.xlu0 %1225
      %1227 = vrot.lane.b32.xlu0 %v981, 127
      %v1228 = vpop.permute.xlu0 %1227
      %1229 = vrot.lane.b32.xlu0 %v979, 127
      %v1230 = vpop.permute.xlu0 %1229
      %1231 = vrot.lane.b32.xlu0 %v982, 127
      %v1232 = vpop.permute.xlu0 %1231
      %v1233 = vsel %vm296, %v1226, %v1230
      %v1234 = vsel %vm296, %v1228, %v1232
      %v1235 = vsel %vm296, %v1222, %v1226
      %v1236 = vsel %vm296, %v1224, %v1228
      %v1237 = vsel %vm296, %v1230, %v1222
      %v1238 = vsel %vm296, %v1232, %v1224
      %v1245 = vrot.slane %v1235, 7
      %v1246 = vrot.slane %v1233, 7
      %v1247 = vrot.slane %v1237, 7
      %v1248 = vrot.slane %v1236, 7
      %v1249 = vsel %vm1007, %v1245, %v1248
      %v1250 = vrot.slane %v1234, 7
      %v1251 = vsel %vm1007, %v1246, %v1250
      %v1252 = vrot.slane %v1238, 7
      %v1253 = vsel %vm1007, %v1247, %v1252
      %1263 = vst [vmem:[#allocation2 + $0xf0] sm:$0xfe] %v1245
      %1264 = vst [vmem:[#allocation2 + $0xf8] sm:$0xfe] %v1246
      %1265 = vst [vmem:[#allocation2 + $0x100] sm:$0xfe] %v1247
      %1266 = vst [vmem:[#allocation2 + $0x108] sm:$0xff] %v1249
      %1267 = vst [vmem:[#allocation2 + $0x110] sm:$0xff] %v1251
      %1268 = vst [vmem:[#allocation2 + $0x118] sm:$0xff] %v1253
      %1269 = vst [vmem:[#allocation2 + $0x120] sm:$0x1] %v1248
      %1270 = vst [vmem:[#allocation2 + $0x128] sm:$0x1] %v1250
      %1271 = vst [vmem:[#allocation2 + $0x130] sm:$0x1] %v1252
      %1272 = vrot.lane.b32.xlu0 %v977, 111
      %v1273 = vpop.permute.xlu0 %1272
      %1274 = vrot.lane.b32.xlu0 %v980, 111
      %v1275 = vpop.permute.xlu0 %1274
      %1276 = vrot.lane.b32.xlu0 %v978, 111
      %v1277 = vpop.permute.xlu0 %1276
      %1278 = vrot.lane.b32.xlu0 %v981, 111
      %v1279 = vpop.permute.xlu0 %1278
      %1280 = vrot.lane.b32.xlu0 %v979, 111
      %v1281 = vpop.permute.xlu0 %1280
      %1282 = vrot.lane.b32.xlu0 %v982, 111
      %v1283 = vpop.permute.xlu0 %1282
      %v1284 = vsel %vm321, %v1277, %v1281
      %v1285 = vsel %vm321, %v1279, %v1283
      %v1286 = vsel %vm321, %v1273, %v1277
      %v1287 = vsel %vm321, %v1275, %v1279
      %v1288 = vsel %vm321, %v1281, %v1273
      %v1289 = vsel %vm321, %v1283, %v1275
      %v1296 = vrot.slane %v1286, 7
      %v1297 = vrot.slane %v1284, 7
      %v1298 = vrot.slane %v1288, 7
      %v1299 = vrot.slane %v1287, 7
      %v1300 = vsel %vm1007, %v1296, %v1299
      %v1301 = vrot.slane %v1285, 7
      %v1302 = vsel %vm1007, %v1297, %v1301
      %v1303 = vrot.slane %v1289, 7
      %v1304 = vsel %vm1007, %v1298, %v1303
      %1314 = vst [vmem:[#allocation2 + $0x120] sm:$0xfe] %v1296
      %1315 = vst [vmem:[#allocation2 + $0x128] sm:$0xfe] %v1297
      %1316 = vst [vmem:[#allocation2 + $0x130] sm:$0xfe] %v1298
      %1317 = vst [vmem:[#allocation2 + $0x138] sm:$0xff] %v1300
      %1318 = vst [vmem:[#allocation2 + $0x140] sm:$0xff] %v1302
      %1319 = vst [vmem:[#allocation2 + $0x148] sm:$0xff] %v1304
      %1320 = vst [vmem:[#allocation2 + $0x150] sm:$0x1] %v1299
      %1321 = vst [vmem:[#allocation2 + $0x158] sm:$0x1] %v1301
      %1322 = vst [vmem:[#allocation2 + $0x160] sm:$0x1] %v1303
      %1323 = vrot.lane.b32.xlu0 %v977, 110
      %v1324 = vpop.permute.xlu0 %1323
      %1325 = vrot.lane.b32.xlu0 %v980, 110
      %v1326 = vpop.permute.xlu0 %1325
      %1327 = vrot.lane.b32.xlu0 %v978, 110
      %v1328 = vpop.permute.xlu0 %1327
      %1329 = vrot.lane.b32.xlu0 %v981, 110
      %v1330 = vpop.permute.xlu0 %1329
      %1331 = vrot.lane.b32.xlu0 %v979, 110
      %v1332 = vpop.permute.xlu0 %1331
      %1333 = vrot.lane.b32.xlu0 %v982, 110
      %v1334 = vpop.permute.xlu0 %1333
      %v1335 = vsel %vm343, %v1328, %v1332
      %v1336 = vsel %vm343, %v1330, %v1334
      %v1337 = vsel %vm343, %v1324, %v1328
      %v1338 = vsel %vm343, %v1326, %v1330
      %v1339 = vsel %vm343, %v1332, %v1324
      %v1340 = vsel %vm343, %v1334, %v1326
      %v1347 = vrot.slane %v1337, 7
      %v1348 = vrot.slane %v1335, 7
      %v1349 = vrot.slane %v1339, 7
      %v1350 = vrot.slane %v1338, 7
      %v1351 = vsel %vm1007, %v1347, %v1350
      %v1352 = vrot.slane %v1336, 7
      %v1353 = vsel %vm1007, %v1348, %v1352
      %v1354 = vrot.slane %v1340, 7
      %v1355 = vsel %vm1007, %v1349, %v1354
      %1365 = vst [vmem:[#allocation2 + $0x150] sm:$0xfe] %v1347
      %1366 = vst [vmem:[#allocation2 + $0x158] sm:$0xfe] %v1348
      %1367 = vst [vmem:[#allocation2 + $0x160] sm:$0xfe] %v1349
      %1368 = vst [vmem:[#allocation2 + $0x168] sm:$0xff] %v1351
      %1369 = vst [vmem:[#allocation2 + $0x170] sm:$0xff] %v1353
      %1370 = vst [vmem:[#allocation2 + $0x178] sm:$0xff] %v1355
      %1371 = vst [vmem:[#allocation2 + $0x180] sm:$0x1] %v1350
      %1372 = vst [vmem:[#allocation2 + $0x188] sm:$0x1] %v1352
      %1373 = vst [vmem:[#allocation2 + $0x190] sm:$0x1] %v1354
      %1374 = vrot.lane.b32.xlu0 %v977, 109
      %v1375 = vpop.permute.xlu0 %1374
      %1376 = vrot.lane.b32.xlu0 %v980, 109
      %v1377 = vpop.permute.xlu0 %1376
      %1378 = vrot.lane.b32.xlu0 %v978, 109
      %v1379 = vpop.permute.xlu0 %1378
      %1380 = vrot.lane.b32.xlu0 %v981, 109
      %v1381 = vpop.permute.xlu0 %1380
      %1382 = vrot.lane.b32.xlu0 %v979, 109
      %v1383 = vpop.permute.xlu0 %1382
      %1384 = vrot.lane.b32.xlu0 %v982, 109
      %v1385 = vpop.permute.xlu0 %1384
      %v1386 = vsel %vm368, %v1379, %v1383
      %v1387 = vsel %vm368, %v1381, %v1385
      %v1388 = vsel %vm368, %v1375, %v1379
      %v1389 = vsel %vm368, %v1377, %v1381
      %v1390 = vsel %vm368, %v1383, %v1375
      %v1391 = vsel %vm368, %v1385, %v1377
      %v1398 = vrot.slane %v1388, 7
      %v1399 = vrot.slane %v1386, 7
      %v1400 = vrot.slane %v1390, 7
      %v1401 = vrot.slane %v1389, 7
      %v1402 = vsel %vm1007, %v1398, %v1401
      %v1403 = vrot.slane %v1387, 7
      %v1404 = vsel %vm1007, %v1399, %v1403
      %v1405 = vrot.slane %v1391, 7
      %v1406 = vsel %vm1007, %v1400, %v1405
      %1416 = vst [vmem:[#allocation2 + $0x180] sm:$0xfe] %v1398
      %1417 = vst [vmem:[#allocation2 + $0x188] sm:$0xfe] %v1399
      %1418 = vst [vmem:[#allocation2 + $0x190] sm:$0xfe] %v1400
      %1419 = vst [vmem:[#allocation2 + $0x198] sm:$0xff] %v1402
      %1420 = vst [vmem:[#allocation2 + $0x1a0] sm:$0xff] %v1404
      %1421 = vst [vmem:[#allocation2 + $0x1a8] sm:$0xff] %v1406
      %1422 = vst [vmem:[#allocation2 + $0x1b0] sm:$0x1] %v1401
      %1423 = vst [vmem:[#allocation2 + $0x1b8] sm:$0x1] %v1403
      %1424 = vst [vmem:[#allocation2 + $0x1c0] sm:$0x1] %v1405
      %1425 = vst [vmem:[#allocation2 + $0x1b0] sm:$0xfe] 0.0
      %1426 = vst [vmem:[#allocation2 + $0x1b8] sm:$0xfe] 0.0
      %1427 = vst [vmem:[#allocation2 + $0x1c0] sm:$0xfe] 0.0
      %v1428 = vld [vmem:[%s1 + $0x10] sm:$0xff]
      %v1429 = vld [vmem:[%s1 + $0x18] sm:$0xff]
      %v1430 = vld [vmem:[%s1 + $0xb8] sm:$0xff]
      %v1431 = vld [vmem:[%s1 + $0xc0] sm:$0xff]
      %v1432 = vld [vmem:[#allocation2] sm:$0xff]
      %v1433 = vld [vmem:[#allocation2 + $0x8] sm:$0xff]
      %v1434 = vld [vmem:[#allocation2 + $0x10] sm:$0xff]
      %v1435 = vld [vmem:[#allocation2 + $0x18] sm:$0xff]
      %v1436 = vld [vmem:[#allocation2 + $0x20] sm:$0xff]
      %v1437 = vld [vmem:[#allocation2 + $0x28] sm:$0xff]
      %v1438 = vld [vmem:[#allocation2 + $0x30] sm:$0xff]
      %v1439 = vld [vmem:[#allocation2 + $0x38] sm:$0xff]
      %v1440 = vld [vmem:[#allocation2 + $0x40] sm:$0xff]
      %v1441 = vld [vmem:[#allocation2 + $0x48] sm:$0xff]
      %v1442 = vld [vmem:[#allocation2 + $0x50] sm:$0xff]
      %v1443 = vld [vmem:[#allocation2 + $0x58] sm:$0xff]
      %v1444 = vld [vmem:[#allocation2 + $0x60] sm:$0xff]
      %v1445 = vld [vmem:[#allocation2 + $0x68] sm:$0xff]
      %v1446 = vld [vmem:[#allocation2 + $0x70] sm:$0xff]
      %v1447 = vld [vmem:[#allocation2 + $0x78] sm:$0xff]
      %v1448 = vld [vmem:[#allocation2 + $0x80] sm:$0xff]
      %v1449 = vld [vmem:[#allocation2 + $0x88] sm:$0xff]
      %v1450 = vld [vmem:[#allocation2 + $0x90] sm:$0xff]
      %v1451 = vld [vmem:[#allocation2 + $0x98] sm:$0xff]
      %v1452 = vld [vmem:[#allocation2 + $0xa0] sm:$0xff]
      %v1453 = vld [vmem:[#allocation2 + $0xa8] sm:$0xff]
      %v1454 = vld [vmem:[#allocation2 + $0xb0] sm:$0xff]
      %v1455 = vld [vmem:[#allocation2 + $0xb8] sm:$0xff]
      %v1456 = vld [vmem:[#allocation2 + $0xc0] sm:$0xff]
      %v1457 = vld [vmem:[#allocation2 + $0xc8] sm:$0xff]
      %v1458 = vld [vmem:[#allocation2 + $0xd0] sm:$0xff]
      %v1459 = vld [vmem:[#allocation2 + $0xd8] sm:$0xff]
      %v1460 = vld [vmem:[#allocation2 + $0xe0] sm:$0xff]
      %v1461 = vld [vmem:[#allocation2 + $0xe8] sm:$0xff]
      %v1462 = vld [vmem:[#allocation2 + $0xf0] sm:$0xff]
      %v1463 = vld [vmem:[#allocation2 + $0xf8] sm:$0xff]
      %v1464 = vld [vmem:[#allocation2 + $0x100] sm:$0xff]
      %v1465 = vld [vmem:[#allocation2 + $0x108] sm:$0xff]
      %v1466 = vld [vmem:[#allocation2 + $0x110] sm:$0xff]
      %v1467 = vld [vmem:[#allocation2 + $0x118] sm:$0xff]
      %v1468 = vld [vmem:[#allocation2 + $0x120] sm:$0xff]
      %v1469 = vld [vmem:[#allocation2 + $0x128] sm:$0xff]
      %v1470 = vld [vmem:[#allocation2 + $0x130] sm:$0xff]
      %v1471 = vld [vmem:[#allocation2 + $0x138] sm:$0xff]
      %v1472 = vld [vmem:[#allocation2 + $0x140] sm:$0xff]
      %v1473 = vld [vmem:[#allocation2 + $0x148] sm:$0xff]
      %v1474 = vld [vmem:[#allocation2 + $0x150] sm:$0xff]
      %v1475 = vld [vmem:[#allocation2 + $0x158] sm:$0xff]
      %v1476 = vld [vmem:[#allocation2 + $0x160] sm:$0xff]
      %v1477 = vld [vmem:[#allocation2 + $0x168] sm:$0xff]
      %v1478 = vld [vmem:[#allocation2 + $0x170] sm:$0xff]
      %v1479 = vld [vmem:[#allocation2 + $0x178] sm:$0xff]
      %v1480 = vld [vmem:[#allocation2 + $0x180] sm:$0xff]
      %v1481 = vld [vmem:[#allocation2 + $0x188] sm:$0xff]
      %v1482 = vld [vmem:[#allocation2 + $0x190] sm:$0xff]
      %v1483 = vld [vmem:[#allocation2 + $0x198] sm:$0xff]
      %v1484 = vld [vmem:[#allocation2 + $0x1a0] sm:$0xff]
      %v1485 = vld [vmem:[#allocation2 + $0x1a8] sm:$0xff]
      %v1486 = vld [vmem:[#allocation2 + $0x1b0] sm:$0xff]
      %v1487 = vld [vmem:[#allocation2 + $0x1b8] sm:$0xff]
      %v1488 = vld [vmem:[#allocation2 + $0x1c0] sm:$0xff]
      %vm1489 = vcmask 195584
      %v1491 = vsel %vm1489, %v1429, 0
      %v1494 = vsel %vm1489, %v1431, 0
      %1496 = vmatprep.subr.mxu0 %v1433
      %1497 = vmatpush1.msra.mxu0 %v1432
      %1498 = vmatprep.subr.mxu0 %v1436
      %1499 = vmatpush1.msra.mxu0 %v1435
      %1500 = vmatprep.subr.mxu0 %v1439
      %1501 = vmatpush1.msra.mxu0 %v1438
      %1502 = vmatprep.subr.mxu0 %v1442
      %1503 = vmatpush1.msra.mxu0 %v1441
      %1504 = vmatprep.subr.mxu0 %v1445
      %1505 = vmatpush1.msra.mxu0 %v1444
      %1506 = vmatprep.subr.mxu0 %v1448
      %1507 = vmatpush1.msra.mxu0 %v1447
      %1508 = vmatprep.subr.mxu0 %v1451
      %1509 = vmatpush1.msra.mxu0 %v1450
      %1510 = vmatprep.subr.mxu0 %v1454
      %1511 = vmatpush1.msra.mxu0 %v1453
      %1512 = vmatprep.subr.mxu0 %v1457
      %1513 = vmatpush1.msra.mxu0 %v1456
      %1514 = vmatprep.subr.mxu0 %v1460
      %1515 = vmatpush1.msra.mxu0 %v1459
      %1516 = vmatprep.subr.mxu0 %v1463
      %1517 = vmatpush1.msra.mxu0 %v1462
      %1518 = vmatprep.subr.mxu0 %v1466
      %1519 = vmatpush1.msra.mxu0 %v1465
      %1520 = vmatprep.subr.mxu0 %v1469
      %1521 = vmatpush1.msra.mxu0 %v1468
      %1522 = vmatprep.subr.mxu0 %v1472
      %1523 = vmatpush1.msra.mxu0 %v1471
      %1524 = vmatprep.subr.mxu0 %v1475
      %1525 = vmatpush1.msra.mxu0 %v1474
      %1526 = vmatprep.subr.mxu0 %v1478
      %1527 = vmatpush1.msra.mxu0 %v1477
      %1528 = vmatprep.subr.mxu0 %v1481
      %1529 = vmatpush1.msra.mxu0 %v1480
      %1530 = vmatprep.subr.mxu0 %v1484
      %1531 = vmatpush1.msra.mxu0 %v1483
      %1532 = vmatprep.subr.mxu0 %v1487
      %1533 = vmatpush1.msra.mxu0 %v1486
      %1534 = vmatprep.subr.mxu0 0.0
      %1535 = vmatpush1.msra.mxu0 0.0
      %1536 = vmatprep.subr.mxu0 0.0
      %1537 = vmatpush1.msra.mxu0 0.0
      %1538 = vmatprep.subr.mxu0 0.0
      %1539 = vmatpush1.msra.mxu0 0.0
      %1540 = vmatprep.subr.mxu0 0.0
      %1541 = vmatpush1.msra.mxu0 0.0
      %1542 = vmatprep.subr.mxu0 0.0
      %1543 = vmatpush1.msra.mxu0 0.0
      %1544 = vmatprep.subr.mxu0 0.0
      %1545 = vmatpush1.msra.mxu0 0.0
      %1546 = vmatprep.subr.mxu0 0.0
      %1547 = vmatpush1.msra.mxu0 0.0
      %1548 = vmatprep.subr.mxu0 0.0
      %1549 = vmatpush1.msra.mxu0 0.0
      %1550 = vmatprep.subr.mxu0 0.0
      %1551 = vmatpush1.msra.mxu0 0.0
      %1552 = vmatprep.subr.mxu0 0.0
      %1553 = vmatpush1.msra.mxu0 0.0
      %1554 = vmatprep.subr.mxu0 0.0
      %1555 = vmatpush1.msra.mxu0 0.0
      %1556 = vmatprep.subr.mxu0 0.0
      %1557 = vmatpush1.msra.mxu0 0.0
      %1558 = vmatprep.subr.mxu0 0.0
      %1559 = vmatpush1.msra.mxu0 0.0
      %1560 = vmatprep.mubr.f32.mxu0 %v1491
      %1561 = vmatmul.mubr.f32.gmra.mrb[0].mxu0 %v1428
      %v1562 = vpop.f32.mrb[0].mxu0
      %v1563 = vadd.f32 0.0, %v1562
      %v1564 = vpop.f32.mrb[0].mxu0
      %v1565 = vadd.f32 0.0, %v1564
      %1566 = vmatprep.mubr.f32.mxu0 %v1494
      %1567 = vmatmul.mubr.f32.gmra.mrb[0].mxu0 %v1430
      %v1568 = vpop.f32.mrb[0].mxu0
      %v1569 = vadd.f32 0.0, %v1568
      %v1570 = vpop.f32.mrb[0].mxu0
      %v1571 = vadd.f32 0.0, %v1570
      %1572 = vdwg.mxu0
      %1573 = vmatprep.subr.mxu0 0.0
      %1574 = vmatpush1.msra.mxu0 %v1434
      %1575 = vmatprep.subr.mxu0 0.0
      %1576 = vmatpush1.msra.mxu0 %v1437
      %1577 = vmatprep.subr.mxu0 0.0
      %1578 = vmatpush1.msra.mxu0 %v1440
      %1579 = vmatprep.subr.mxu0 0.0
      %1580 = vmatpush1.msra.mxu0 %v1443
      %1581 = vmatprep.subr.mxu0 0.0
      %1582 = vmatpush1.msra.mxu0 %v1446
      %1583 = vmatprep.subr.mxu0 0.0
      %1584 = vmatpush1.msra.mxu0 %v1449
      %1585 = vmatprep.subr.mxu0 0.0
      %1586 = vmatpush1.msra.mxu0 %v1452
      %1587 = vmatprep.subr.mxu0 0.0
      %1588 = vmatpush1.msra.mxu0 %v1455
      %1589 = vmatprep.subr.mxu0 0.0
      %1590 = vmatpush1.msra.mxu0 %v1458
      %1591 = vmatprep.subr.mxu0 0.0
      %1592 = vmatpush1.msra.mxu0 %v1461
      %1593 = vmatprep.subr.mxu0 0.0
      %1594 = vmatpush1.msra.mxu0 %v1464
      %1595 = vmatprep.subr.mxu0 0.0
      %1596 = vmatpush1.msra.mxu0 %v1467
      %1597 = vmatprep.subr.mxu0 0.0
      %1598 = vmatpush1.msra.mxu0 %v1470
      %1599 = vmatprep.subr.mxu0 0.0
      %1600 = vmatpush1.msra.mxu0 %v1473
      %1601 = vmatprep.subr.mxu0 0.0
      %1602 = vmatpush1.msra.mxu0 %v1476
      %1603 = vmatprep.subr.mxu0 0.0
      %1604 = vmatpush1.msra.mxu0 %v1479
      %1605 = vmatprep.subr.mxu0 0.0
      %1606 = vmatpush1.msra.mxu0 %v1482
      %1607 = vmatprep.subr.mxu0 0.0
      %1608 = vmatpush1.msra.mxu0 %v1485
      %1609 = vmatprep.subr.mxu0 0.0
      %1610 = vmatpush1.msra.mxu0 %v1488
      %1611 = vmatprep.subr.mxu0 0.0
      %1612 = vmatpush1.msra.mxu0 0.0
      %1613 = vmatprep.subr.mxu0 0.0
      %1614 = vmatpush1.msra.mxu0 0.0
      %1615 = vmatprep.subr.mxu0 0.0
      %1616 = vmatpush1.msra.mxu0 0.0
      %1617 = vmatprep.subr.mxu0 0.0
      %1618 = vmatpush1.msra.mxu0 0.0
      %1619 = vmatprep.subr.mxu0 0.0
      %1620 = vmatpush1.msra.mxu0 0.0
      %1621 = vmatprep.subr.mxu0 0.0
      %1622 = vmatpush1.msra.mxu0 0.0
      %1623 = vmatprep.subr.mxu0 0.0
      %1624 = vmatpush1.msra.mxu0 0.0
      %1625 = vmatprep.subr.mxu0 0.0
      %1626 = vmatpush1.msra.mxu0 0.0
      %1627 = vmatprep.subr.mxu0 0.0
      %1628 = vmatpush1.msra.mxu0 0.0
      %1629 = vmatprep.subr.mxu0 0.0
      %1630 = vmatpush1.msra.mxu0 0.0
      %1631 = vmatprep.subr.mxu0 0.0
      %1632 = vmatpush1.msra.mxu0 0.0
      %1633 = vmatprep.subr.mxu0 0.0
      %1634 = vmatpush1.msra.mxu0 0.0
      %1635 = vmatprep.subr.mxu0 0.0
      %1636 = vmatpush1.msra.mxu0 0.0
      %1637 = vmatprep.mubr.f32.mxu0 %v1491
      %1638 = vmatmul.mubr.f32.gmra.mrb[0].mxu0 %v1428
      %v1639 = vpop.f32.mrb[0].mxu0
      %v1640 = vadd.f32 0.0, %v1639
      %v1641 = vpop.f32.mrb[0].mxu0
      %1642 = vmatprep.mubr.f32.mxu0 %v1494
      %1643 = vmatmul.mubr.f32.gmra.mrb[0].mxu0 %v1430
      %v1644 = vpop.f32.mrb[0].mxu0
      %v1645 = vadd.f32 0.0, %v1644
      %v1646 = vpop.f32.mrb[0].mxu0
      %1647 = vdwg.mxu0
      %v1648 = vmax.f32 %v1563, 0.0
      %v1649 = vmax.f32 %v1565, 0.0
      %v1650 = vmax.f32 %v1640, 0.0
      %v1651 = vmax.f32 %v1569, 0.0
      %v1652 = vmax.f32 %v1571, 0.0
      %v1653 = vmax.f32 %v1645, 0.0
      %v1654 = vsel %vm564, %v1648, 0.0
      %v1655 = vsel %vm565, %v1649, 0.0
      %v1656 = vsel %vm566, %v1650, 0.0
      %v1657 = vsel %vm564, %v1651, 0.0
      %v1658 = vsel %vm565, %v1652, 0.0
      %v1659 = vsel %vm566, %v1653, 0.0
      %1660 = vrot.lane.b32.xlu0 %v1654, 19
      %v1661 = vpop.permute.xlu0 %1660
      %1662 = vrot.lane.b32.xlu0 %v1657, 19
      %v1663 = vpop.permute.xlu0 %1662
      %1664 = vrot.lane.b32.xlu0 %v1655, 19
      %v1665 = vpop.permute.xlu0 %1664
      %1666 = vrot.lane.b32.xlu0 %v1658, 19
      %v1667 = vpop.permute.xlu0 %1666
      %1668 = vrot.lane.b32.xlu0 %v1656, 19
      %v1669 = vpop.permute.xlu0 %1668
      %1670 = vrot.lane.b32.xlu0 %v1659, 19
      %v1671 = vpop.permute.xlu0 %1670
      %v1672 = vsel %vm193, %v1665, %v1669
      %v1673 = vsel %vm193, %v1667, %v1671
      %v1674 = vsel %vm193, %v1661, %v1665
      %v1675 = vsel %vm193, %v1663, %v1667
      %v1676 = vsel %vm193, %v1669, %v1661
      %v1677 = vsel %vm193, %v1671, %v1663
      %v1684 = vrot.slane %v1676, 7
      %v1685 = vrot.slane %v1674, 7
      %v1686 = vrot.slane %v1672, 7
      %v1687 = vrot.slane %v1677, 7
      %v1688 = vsel %vm1007, %v1684, %v1687
      %v1689 = vrot.slane %v1675, 7
      %v1690 = vsel %vm1007, %v1685, %v1689
      %v1691 = vrot.slane %v1673, 7
      %v1692 = vsel %vm1007, %v1686, %v1691
      %1702 = vst [vmem:[#allocation2] sm:$0xfe] %v1684
      %1703 = vst [vmem:[#allocation2 + $0x8] sm:$0xfe] %v1685
      %1704 = vst [vmem:[#allocation2 + $0x10] sm:$0xfe] %v1686
      %1705 = vst [vmem:[#allocation2 + $0x18] sm:$0xff] %v1688
      %1706 = vst [vmem:[#allocation2 + $0x20] sm:$0xff] %v1690
      %1707 = vst [vmem:[#allocation2 + $0x28] sm:$0xff] %v1692
      %1708 = vst [vmem:[#allocation2 + $0x30] sm:$0x1] %v1687
      %1709 = vst [vmem:[#allocation2 + $0x38] sm:$0x1] %v1689
      %1710 = vst [vmem:[#allocation2 + $0x40] sm:$0x1] %v1691
      %1711 = vrot.lane.b32.xlu0 %v1654, 18
      %v1712 = vpop.permute.xlu0 %1711
      %1713 = vrot.lane.b32.xlu0 %v1657, 18
      %v1714 = vpop.permute.xlu0 %1713
      %1715 = vrot.lane.b32.xlu0 %v1655, 18
      %v1716 = vpop.permute.xlu0 %1715
      %1717 = vrot.lane.b32.xlu0 %v1658, 18
      %v1718 = vpop.permute.xlu0 %1717
      %1719 = vrot.lane.b32.xlu0 %v1656, 18
      %v1720 = vpop.permute.xlu0 %1719
      %1721 = vrot.lane.b32.xlu0 %v1659, 18
      %v1722 = vpop.permute.xlu0 %1721
      %v1723 = vsel %vm215, %v1716, %v1720
      %v1724 = vsel %vm215, %v1718, %v1722
      %v1725 = vsel %vm215, %v1712, %v1716
      %v1726 = vsel %vm215, %v1714, %v1718
      %v1727 = vsel %vm215, %v1720, %v1712
      %v1728 = vsel %vm215, %v1722, %v1714
      %v1735 = vrot.slane %v1727, 7
      %v1736 = vrot.slane %v1725, 7
      %v1737 = vrot.slane %v1723, 7
      %v1738 = vrot.slane %v1728, 7
      %v1739 = vsel %vm1007, %v1735, %v1738
      %v1740 = vrot.slane %v1726, 7
      %v1741 = vsel %vm1007, %v1736, %v1740
      %v1742 = vrot.slane %v1724, 7
      %v1743 = vsel %vm1007, %v1737, %v1742
      %1753 = vst [vmem:[#allocation2 + $0x30] sm:$0xfe] %v1735
      %1754 = vst [vmem:[#allocation2 + $0x38] sm:$0xfe] %v1736
      %1755 = vst [vmem:[#allocation2 + $0x40] sm:$0xfe] %v1737
      %1756 = vst [vmem:[#allocation2 + $0x48] sm:$0xff] %v1739
      %1757 = vst [vmem:[#allocation2 + $0x50] sm:$0xff] %v1741
      %1758 = vst [vmem:[#allocation2 + $0x58] sm:$0xff] %v1743
      %1759 = vst [vmem:[#allocation2 + $0x60] sm:$0x1] %v1738
      %1760 = vst [vmem:[#allocation2 + $0x68] sm:$0x1] %v1740
      %1761 = vst [vmem:[#allocation2 + $0x70] sm:$0x1] %v1742
      %1762 = vrot.lane.b32.xlu0 %v1654, 17
      %v1763 = vpop.permute.xlu0 %1762
      %1764 = vrot.lane.b32.xlu0 %v1657, 17
      %v1765 = vpop.permute.xlu0 %1764
      %1766 = vrot.lane.b32.xlu0 %v1655, 17
      %v1767 = vpop.permute.xlu0 %1766
      %1768 = vrot.lane.b32.xlu0 %v1658, 17
      %v1769 = vpop.permute.xlu0 %1768
      %1770 = vrot.lane.b32.xlu0 %v1656, 17
      %v1771 = vpop.permute.xlu0 %1770
      %1772 = vrot.lane.b32.xlu0 %v1659, 17
      %v1773 = vpop.permute.xlu0 %1772
      %v1774 = vsel %vm240, %v1767, %v1771
      %v1775 = vsel %vm240, %v1769, %v1773
      %v1776 = vsel %vm240, %v1763, %v1767
      %v1777 = vsel %vm240, %v1765, %v1769
      %v1778 = vsel %vm240, %v1771, %v1763
      %v1779 = vsel %vm240, %v1773, %v1765
      %v1786 = vrot.slane %v1778, 7
      %v1787 = vrot.slane %v1776, 7
      %v1788 = vrot.slane %v1774, 7
      %v1789 = vrot.slane %v1779, 7
      %v1790 = vsel %vm1007, %v1786, %v1789
      %v1791 = vrot.slane %v1777, 7
      %v1792 = vsel %vm1007, %v1787, %v1791
      %v1793 = vrot.slane %v1775, 7
      %v1794 = vsel %vm1007, %v1788, %v1793
      %1804 = vst [vmem:[#allocation2 + $0x60] sm:$0xfe] %v1786
      %1805 = vst [vmem:[#allocation2 + $0x68] sm:$0xfe] %v1787
      %1806 = vst [vmem:[#allocation2 + $0x70] sm:$0xfe] %v1788
      %1807 = vst [vmem:[#allocation2 + $0x78] sm:$0xff] %v1790
      %1808 = vst [vmem:[#allocation2 + $0x80] sm:$0xff] %v1792
      %1809 = vst [vmem:[#allocation2 + $0x88] sm:$0xff] %v1794
      %1810 = vst [vmem:[#allocation2 + $0x90] sm:$0x1] %v1789
      %1811 = vst [vmem:[#allocation2 + $0x98] sm:$0x1] %v1791
      %1812 = vst [vmem:[#allocation2 + $0xa0] sm:$0x1] %v1793
      %1813 = vrot.lane.b32.xlu0 %v1654, 1
      %v1814 = vpop.permute.xlu0 %1813
      %1815 = vrot.lane.b32.xlu0 %v1657, 1
      %v1816 = vpop.permute.xlu0 %1815
      %1817 = vrot.lane.b32.xlu0 %v1655, 1
      %v1818 = vpop.permute.xlu0 %1817
      %1819 = vrot.lane.b32.xlu0 %v1658, 1
      %v1820 = vpop.permute.xlu0 %1819
      %1821 = vrot.lane.b32.xlu0 %v1656, 1
      %v1822 = vpop.permute.xlu0 %1821
      %1823 = vrot.lane.b32.xlu0 %v1659, 1
      %v1824 = vpop.permute.xlu0 %1823
      %v1825 = vsel %vm262, %v1818, %v1822
      %v1826 = vsel %vm262, %v1820, %v1824
      %v1827 = vsel %vm262, %v1814, %v1818
      %v1828 = vsel %vm262, %v1816, %v1820
      %v1829 = vsel %vm262, %v1822, %v1814
      %v1830 = vsel %vm262, %v1824, %v1816
      %v1837 = vrot.slane %v1829, 7
      %v1838 = vrot.slane %v1827, 7
      %v1839 = vrot.slane %v1825, 7
      %v1840 = vrot.slane %v1830, 7
      %v1841 = vsel %vm1007, %v1837, %v1840
      %v1842 = vrot.slane %v1828, 7
      %v1843 = vsel %vm1007, %v1838, %v1842
      %v1844 = vrot.slane %v1826, 7
      %v1845 = vsel %vm1007, %v1839, %v1844
      %1855 = vst [vmem:[#allocation2 + $0x90] sm:$0xfe] %v1837
      %1856 = vst [vmem:[#allocation2 + $0x98] sm:$0xfe] %v1838
      %1857 = vst [vmem:[#allocation2 + $0xa0] sm:$0xfe] %v1839
      %1858 = vst [vmem:[#allocation2 + $0xa8] sm:$0xff] %v1841
      %1859 = vst [vmem:[#allocation2 + $0xb0] sm:$0xff] %v1843
      %1860 = vst [vmem:[#allocation2 + $0xb8] sm:$0xff] %v1845
      %1861 = vst [vmem:[#allocation2 + $0xc0] sm:$0x1] %v1840
      %1862 = vst [vmem:[#allocation2 + $0xc8] sm:$0x1] %v1842
      %1863 = vst [vmem:[#allocation2 + $0xd0] sm:$0x1] %v1844
      %v1870 = vrot.slane %v1654, 7
      %v1871 = vrot.slane %v1655, 7
      %v1872 = vrot.slane %v1656, 7
      %v1873 = vrot.slane %v1657, 7
      %v1874 = vsel %vm1007, %v1870, %v1873
      %v1875 = vrot.slane %v1658, 7
      %v1876 = vsel %vm1007, %v1871, %v1875
      %v1877 = vrot.slane %v1659, 7
      %v1878 = vsel %vm1007, %v1872, %v1877
      %1888 = vst [vmem:[#allocation2 + $0xc0] sm:$0xfe] %v1870
      %1889 = vst [vmem:[#allocation2 + $0xc8] sm:$0xfe] %v1871
      %1890 = vst [vmem:[#allocation2 + $0xd0] sm:$0xfe] %v1872
      %1891 = vst [vmem:[#allocation2 + $0xd8] sm:$0xff] %v1874
      %1892 = vst [vmem:[#allocation2 + $0xe0] sm:$0xff] %v1876
      %1893 = vst [vmem:[#allocation2 + $0xe8] sm:$0xff] %v1878
      %1894 = vst [vmem:[#allocation2 + $0xf0] sm:$0x1] %v1873
      %1895 = vst [vmem:[#allocation2 + $0xf8] sm:$0x1] %v1875
      %1896 = vst [vmem:[#allocation2 + $0x100] sm:$0x1] %v1877
      %1897 = vrot.lane.b32.xlu0 %v1654, 127
      %v1898 = vpop.permute.xlu0 %1897
      %1899 = vrot.lane.b32.xlu0 %v1657, 127
      %v1900 = vpop.permute.xlu0 %1899
      %1901 = vrot.lane.b32.xlu0 %v1655, 127
      %v1902 = vpop.permute.xlu0 %1901
      %1903 = vrot.lane.b32.xlu0 %v1658, 127
      %v1904 = vpop.permute.xlu0 %1903
      %1905 = vrot.lane.b32.xlu0 %v1656, 127
      %v1906 = vpop.permute.xlu0 %1905
      %1907 = vrot.lane.b32.xlu0 %v1659, 127
      %v1908 = vpop.permute.xlu0 %1907
      %v1909 = vsel %vm296, %v1902, %v1906
      %v1910 = vsel %vm296, %v1904, %v1908
      %v1911 = vsel %vm296, %v1898, %v1902
      %v1912 = vsel %vm296, %v1900, %v1904
      %v1913 = vsel %vm296, %v1906, %v1898
      %v1914 = vsel %vm296, %v1908, %v1900
      %v1921 = vrot.slane %v1911, 7
      %v1922 = vrot.slane %v1909, 7
      %v1923 = vrot.slane %v1913, 7
      %v1924 = vrot.slane %v1912, 7
      %v1925 = vsel %vm1007, %v1921, %v1924
      %v1926 = vrot.slane %v1910, 7
      %v1927 = vsel %vm1007, %v1922, %v1926
      %v1928 = vrot.slane %v1914, 7
      %v1929 = vsel %vm1007, %v1923, %v1928
      %1939 = vst [vmem:[#allocation2 + $0xf0] sm:$0xfe] %v1921
      %1940 = vst [vmem:[#allocation2 + $0xf8] sm:$0xfe] %v1922
      %1941 = vst [vmem:[#allocation2 + $0x100] sm:$0xfe] %v1923
      %1942 = vst [vmem:[#allocation2 + $0x108] sm:$0xff] %v1925
      %1943 = vst [vmem:[#allocation2 + $0x110] sm:$0xff] %v1927
      %1944 = vst [vmem:[#allocation2 + $0x118] sm:$0xff] %v1929
      %1945 = vst [vmem:[#allocation2 + $0x120] sm:$0x1] %v1924
      %1946 = vst [vmem:[#allocation2 + $0x128] sm:$0x1] %v1926
      %1947 = vst [vmem:[#allocation2 + $0x130] sm:$0x1] %v1928
      %1948 = vrot.lane.b32.xlu0 %v1654, 111
      %v1949 = vpop.permute.xlu0 %1948
      %1950 = vrot.lane.b32.xlu0 %v1657, 111
      %v1951 = vpop.permute.xlu0 %1950
      %1952 = vrot.lane.b32.xlu0 %v1655, 111
      %v1953 = vpop.permute.xlu0 %1952
      %1954 = vrot.lane.b32.xlu0 %v1658, 111
      %v1955 = vpop.permute.xlu0 %1954
      %1956 = vrot.lane.b32.xlu0 %v1656, 111
      %v1957 = vpop.permute.xlu0 %1956
      %1958 = vrot.lane.b32.xlu0 %v1659, 111
      %v1959 = vpop.permute.xlu0 %1958
      %v1960 = vsel %vm321, %v1953, %v1957
      %v1961 = vsel %vm321, %v1955, %v1959
      %v1962 = vsel %vm321, %v1949, %v1953
      %v1963 = vsel %vm321, %v1951, %v1955
      %v1964 = vsel %vm321, %v1957, %v1949
      %v1965 = vsel %vm321, %v1959, %v1951
      %v1972 = vrot.slane %v1962, 7
      %v1973 = vrot.slane %v1960, 7
      %v1974 = vrot.slane %v1964, 7
      %v1975 = vrot.slane %v1963, 7
      %v1976 = vsel %vm1007, %v1972, %v1975
      %v1977 = vrot.slane %v1961, 7
      %v1978 = vsel %vm1007, %v1973, %v1977
      %v1979 = vrot.slane %v1965, 7
      %v1980 = vsel %vm1007, %v1974, %v1979
      %1990 = vst [vmem:[#allocation2 + $0x120] sm:$0xfe] %v1972
      %1991 = vst [vmem:[#allocation2 + $0x128] sm:$0xfe] %v1973
      %1992 = vst [vmem:[#allocation2 + $0x130] sm:$0xfe] %v1974
      %1993 = vst [vmem:[#allocation2 + $0x138] sm:$0xff] %v1976
      %1994 = vst [vmem:[#allocation2 + $0x140] sm:$0xff] %v1978
      %1995 = vst [vmem:[#allocation2 + $0x148] sm:$0xff] %v1980
      %1996 = vst [vmem:[#allocation2 + $0x150] sm:$0x1] %v1975
      %1997 = vst [vmem:[#allocation2 + $0x158] sm:$0x1] %v1977
      %1998 = vst [vmem:[#allocation2 + $0x160] sm:$0x1] %v1979
      %1999 = vrot.lane.b32.xlu0 %v1654, 110
      %v2000 = vpop.permute.xlu0 %1999
      %2001 = vrot.lane.b32.xlu0 %v1657, 110
      %v2002 = vpop.permute.xlu0 %2001
      %2003 = vrot.lane.b32.xlu0 %v1655, 110
      %v2004 = vpop.permute.xlu0 %2003
      %2005 = vrot.lane.b32.xlu0 %v1658, 110
      %v2006 = vpop.permute.xlu0 %2005
      %2007 = vrot.lane.b32.xlu0 %v1656, 110
      %v2008 = vpop.permute.xlu0 %2007
      %2009 = vrot.lane.b32.xlu0 %v1659, 110
      %v2010 = vpop.permute.xlu0 %2009
      %v2011 = vsel %vm343, %v2004, %v2008
      %v2012 = vsel %vm343, %v2006, %v2010
      %v2013 = vsel %vm343, %v2000, %v2004
      %v2014 = vsel %vm343, %v2002, %v2006
      %v2015 = vsel %vm343, %v2008, %v2000
      %v2016 = vsel %vm343, %v2010, %v2002
      %v2023 = vrot.slane %v2013, 7
      %v2024 = vrot.slane %v2011, 7
      %v2025 = vrot.slane %v2015, 7
      %v2026 = vrot.slane %v2014, 7
      %v2027 = vsel %vm1007, %v2023, %v2026
      %v2028 = vrot.slane %v2012, 7
      %v2029 = vsel %vm1007, %v2024, %v2028
      %v2030 = vrot.slane %v2016, 7
      %v2031 = vsel %vm1007, %v2025, %v2030
      %2041 = vst [vmem:[#allocation2 + $0x150] sm:$0xfe] %v2023
      %2042 = vst [vmem:[#allocation2 + $0x158] sm:$0xfe] %v2024
      %2043 = vst [vmem:[#allocation2 + $0x160] sm:$0xfe] %v2025
      %2044 = vst [vmem:[#allocation2 + $0x168] sm:$0xff] %v2027
      %2045 = vst [vmem:[#allocation2 + $0x170] sm:$0xff] %v2029
      %2046 = vst [vmem:[#allocation2 + $0x178] sm:$0xff] %v2031
      %2047 = vst [vmem:[#allocation2 + $0x180] sm:$0x1] %v2026
      %2048 = vst [vmem:[#allocation2 + $0x188] sm:$0x1] %v2028
      %2049 = vst [vmem:[#allocation2 + $0x190] sm:$0x1] %v2030
      %2050 = vrot.lane.b32.xlu0 %v1654, 109
      %v2051 = vpop.permute.xlu0 %2050
      %2052 = vrot.lane.b32.xlu0 %v1657, 109
      %v2053 = vpop.permute.xlu0 %2052
      %2054 = vrot.lane.b32.xlu0 %v1655, 109
      %v2055 = vpop.permute.xlu0 %2054
      %2056 = vrot.lane.b32.xlu0 %v1658, 109
      %v2057 = vpop.permute.xlu0 %2056
      %2058 = vrot.lane.b32.xlu0 %v1656, 109
      %v2059 = vpop.permute.xlu0 %2058
      %2060 = vrot.lane.b32.xlu0 %v1659, 109
      %v2061 = vpop.permute.xlu0 %2060
      %v2062 = vsel %vm368, %v2055, %v2059
      %v2063 = vsel %vm368, %v2057, %v2061
      %v2064 = vsel %vm368, %v2051, %v2055
      %v2065 = vsel %vm368, %v2053, %v2057
      %v2066 = vsel %vm368, %v2059, %v2051
      %v2067 = vsel %vm368, %v2061, %v2053
      %v2074 = vrot.slane %v2064, 7
      %v2075 = vrot.slane %v2062, 7
      %v2076 = vrot.slane %v2066, 7
      %v2077 = vrot.slane %v2065, 7
      %v2078 = vsel %vm1007, %v2074, %v2077
      %v2079 = vrot.slane %v2063, 7
      %v2080 = vsel %vm1007, %v2075, %v2079
      %v2081 = vrot.slane %v2067, 7
      %v2082 = vsel %vm1007, %v2076, %v2081
      %2092 = vst [vmem:[#allocation2 + $0x180] sm:$0xfe] %v2074
      %2093 = vst [vmem:[#allocation2 + $0x188] sm:$0xfe] %v2075
      %2094 = vst [vmem:[#allocation2 + $0x190] sm:$0xfe] %v2076
      %2095 = vst [vmem:[#allocation2 + $0x198] sm:$0xff] %v2078
      %2096 = vst [vmem:[#allocation2 + $0x1a0] sm:$0xff] %v2080
      %2097 = vst [vmem:[#allocation2 + $0x1a8] sm:$0xff] %v2082
      %2098 = vst [vmem:[#allocation2 + $0x1b0] sm:$0x1] %v2077
      %2099 = vst [vmem:[#allocation2 + $0x1b8] sm:$0x1] %v2079
      %2100 = vst [vmem:[#allocation2 + $0x1c0] sm:$0x1] %v2081
      %2101 = vst [vmem:[#allocation2 + $0x1b0] sm:$0xfe] %v1008
      %2102 = vst [vmem:[#allocation2 + $0x1b8] sm:$0xfe] %v1009
      %2103 = vst [vmem:[#allocation2 + $0x1c0] sm:$0xfe] %v1010
      %2104 = vst [vmem:[#allocation2 + $0x1c8] sm:$0xff] %v1012
      %2105 = vst [vmem:[#allocation2 + $0x1d0] sm:$0xff] %v1014
      %2106 = vst [vmem:[#allocation2 + $0x1d8] sm:$0xff] %v1016
      %2107 = vst [vmem:[#allocation2 + $0x1e0] sm:$0x1] %v1011
      %2108 = vst [vmem:[#allocation2 + $0x1e8] sm:$0x1] %v1013
      %2109 = vst [vmem:[#allocation2 + $0x1f0] sm:$0x1] %v1015
      %2110 = vst [vmem:[#allocation2 + $0x1e0] sm:$0xfe] %v1059
      %2111 = vst [vmem:[#allocation2 + $0x1e8] sm:$0xfe] %v1060
      %2112 = vst [vmem:[#allocation2 + $0x1f0] sm:$0xfe] %v1061
      %2113 = vst [vmem:[#allocation2 + $0x1f8] sm:$0xff] %v1063
      %2114 = vst [vmem:[#allocation2 + $0x200] sm:$0xff] %v1065
      %2115 = vst [vmem:[#allocation2 + $0x208] sm:$0xff] %v1067
      %2116 = vst [vmem:[#allocation2 + $0x210] sm:$0x1] %v1062
      %2117 = vst [vmem:[#allocation2 + $0x218] sm:$0x1] %v1064
      %2118 = vst [vmem:[#allocation2 + $0x220] sm:$0x1] %v1066
      %2119 = vst [vmem:[#allocation2 + $0x210] sm:$0xfe] %v1110
      %2120 = vst [vmem:[#allocation2 + $0x218] sm:$0xfe] %v1111
      %2121 = vst [vmem:[#allocation2 + $0x220] sm:$0xfe] %v1112
      %2122 = vst [vmem:[#allocation2 + $0x228] sm:$0xff] %v1114
      %2123 = vst [vmem:[#allocation2 + $0x230] sm:$0xff] %v1116
      %2124 = vst [vmem:[#allocation2 + $0x238] sm:$0xff] %v1118
      %2125 = vst [vmem:[#allocation2 + $0x240] sm:$0x1] %v1113
      %2126 = vst [vmem:[#allocation2 + $0x248] sm:$0x1] %v1115
      %2127 = vst [vmem:[#allocation2 + $0x250] sm:$0x1] %v1117
      %2128 = vst [vmem:[#allocation2 + $0x240] sm:$0xfe] %v1161
      %2129 = vst [vmem:[#allocation2 + $0x248] sm:$0xfe] %v1162
      %2130 = vst [vmem:[#allocation2 + $0x250] sm:$0xfe] %v1163
      %2131 = vst [vmem:[#allocation2 + $0x258] sm:$0xff] %v1165
      %2132 = vst [vmem:[#allocation2 + $0x260] sm:$0xff] %v1167
      %2133 = vst [vmem:[#allocation2 + $0x268] sm:$0xff] %v1169
      %2134 = vst [vmem:[#allocation2 + $0x270] sm:$0x1] %v1164
      %2135 = vst [vmem:[#allocation2 + $0x278] sm:$0x1] %v1166
      %2136 = vst [vmem:[#allocation2 + $0x280] sm:$0x1] %v1168
      %2137 = vst [vmem:[#allocation2 + $0x270] sm:$0xfe] %v1194
      %2138 = vst [vmem:[#allocation2 + $0x278] sm:$0xfe] %v1195
      %2139 = vst [vmem:[#allocation2 + $0x280] sm:$0xfe] %v1196
      %2140 = vst [vmem:[#allocation2 + $0x288] sm:$0xff] %v1198
      %2141 = vst [vmem:[#allocation2 + $0x290] sm:$0xff] %v1200
      %2142 = vst [vmem:[#allocation2 + $0x298] sm:$0xff] %v1202
      %2143 = vst [vmem:[#allocation2 + $0x2a0] sm:$0x1] %v1197
      %2144 = vst [vmem:[#allocation2 + $0x2a8] sm:$0x1] %v1199
      %2145 = vst [vmem:[#allocation2 + $0x2b0] sm:$0x1] %v1201
      %2146 = vst [vmem:[#allocation2 + $0x2a0] sm:$0xfe] %v1245
      %2147 = vst [vmem:[#allocation2 + $0x2a8] sm:$0xfe] %v1246
      %2148 = vst [vmem:[#allocation2 + $0x2b0] sm:$0xfe] %v1247
      %2149 = vst [vmem:[#allocation2 + $0x2b8] sm:$0xff] %v1249
      %2150 = vst [vmem:[#allocation2 + $0x2c0] sm:$0xff] %v1251
      %2151 = vst [vmem:[#allocation2 + $0x2c8] sm:$0xff] %v1253
      %2152 = vst [vmem:[#allocation2 + $0x2d0] sm:$0x1] %v1248
      %2153 = vst [vmem:[#allocation2 + $0x2d8] sm:$0x1] %v1250
      %2154 = vst [vmem:[#allocation2 + $0x2e0] sm:$0x1] %v1252
      %2155 = vst [vmem:[#allocation2 + $0x2d0] sm:$0xfe] %v1296
      %2156 = vst [vmem:[#allocation2 + $0x2d8] sm:$0xfe] %v1297
      %2157 = vst [vmem:[#allocation2 + $0x2e0] sm:$0xfe] %v1298
      %2158 = vst [vmem:[#allocation2 + $0x2e8] sm:$0xff] %v1300
      %2159 = vst [vmem:[#allocation2 + $0x2f0] sm:$0xff] %v1302
      %2160 = vst [vmem:[#allocation2 + $0x2f8] sm:$0xff] %v1304
      %2161 = vst [vmem:[#allocation2 + $0x300] sm:$0x1] %v1299
      %2162 = vst [vmem:[#allocation2 + $0x308] sm:$0x1] %v1301
      %2163 = vst [vmem:[#allocation2 + $0x310] sm:$0x1] %v1303
      %2164 = vst [vmem:[#allocation2 + $0x300] sm:$0xfe] %v1347
      %2165 = vst [vmem:[#allocation2 + $0x308] sm:$0xfe] %v1348
      %2166 = vst [vmem:[#allocation2 + $0x310] sm:$0xfe] %v1349
      %2167 = vst [vmem:[#allocation2 + $0x318] sm:$0xff] %v1351
      %2168 = vst [vmem:[#allocation2 + $0x320] sm:$0xff] %v1353
      %2169 = vst [vmem:[#allocation2 + $0x328] sm:$0xff] %v1355
      %2170 = vst [vmem:[#allocation2 + $0x330] sm:$0x1] %v1350
      %2171 = vst [vmem:[#allocation2 + $0x338] sm:$0x1] %v1352
      %2172 = vst [vmem:[#allocation2 + $0x340] sm:$0x1] %v1354
      %2173 = vst [vmem:[#allocation2 + $0x330] sm:$0xfe] %v1398
      %2174 = vst [vmem:[#allocation2 + $0x338] sm:$0xfe] %v1399
      %2175 = vst [vmem:[#allocation2 + $0x340] sm:$0xfe] %v1400
      %2176 = vst [vmem:[#allocation2 + $0x348] sm:$0xff] %v1402
      %2177 = vst [vmem:[#allocation2 + $0x350] sm:$0xff] %v1404
      %2178 = vst [vmem:[#allocation2 + $0x358] sm:$0xff] %v1406
      %2179 = vst [vmem:[#allocation2 + $0x360] sm:$0x1] %v1401
      %2180 = vst [vmem:[#allocation2 + $0x368] sm:$0x1] %v1403
      %2181 = vst [vmem:[#allocation2 + $0x370] sm:$0x1] %v1405
      %2182 = vst [vmem:[#allocation2 + $0x360] sm:$0xfe] 0.0
      %2183 = vst [vmem:[#allocation2 + $0x368] sm:$0xfe] 0.0
      %2184 = vst [vmem:[#allocation2 + $0x370] sm:$0xfe] 0.0
      %v2185 = vld [vmem:[%s1 + $0x20] sm:$0xff]
      %v2186 = vld [vmem:[%s1 + $0x28] sm:$0xff]
      %v2187 = vld [vmem:[%s1 + $0x30] sm:$0xff]
      %v2188 = vld [vmem:[#allocation2] sm:$0xff]
      %v2189 = vld [vmem:[#allocation2 + $0x8] sm:$0xff]
      %v2190 = vld [vmem:[#allocation2 + $0x10] sm:$0xff]
      %v2191 = vld [vmem:[#allocation2 + $0x18] sm:$0xff]
      %v2192 = vld [vmem:[#allocation2 + $0x20] sm:$0xff]
      %v2193 = vld [vmem:[#allocation2 + $0x28] sm:$0xff]
      %v2194 = vld [vmem:[#allocation2 + $0x30] sm:$0xff]
      %v2195 = vld [vmem:[#allocation2 + $0x38] sm:$0xff]
      %v2196 = vld [vmem:[#allocation2 + $0x40] sm:$0xff]
      %v2197 = vld [vmem:[#allocation2 + $0x48] sm:$0xff]
      %v2198 = vld [vmem:[#allocation2 + $0x50] sm:$0xff]
      %v2199 = vld [vmem:[#allocation2 + $0x58] sm:$0xff]
      %v2200 = vld [vmem:[#allocation2 + $0x60] sm:$0xff]
      %v2201 = vld [vmem:[#allocation2 + $0x68] sm:$0xff]
      %v2202 = vld [vmem:[#allocation2 + $0x70] sm:$0xff]
      %v2203 = vld [vmem:[#allocation2 + $0x78] sm:$0xff]
      %v2204 = vld [vmem:[#allocation2 + $0x80] sm:$0xff]
      %v2205 = vld [vmem:[#allocation2 + $0x88] sm:$0xff]
      %v2206 = vld [vmem:[#allocation2 + $0x90] sm:$0xff]
      %v2207 = vld [vmem:[#allocation2 + $0x98] sm:$0xff]
      %v2208 = vld [vmem:[#allocation2 + $0xa0] sm:$0xff]
      %v2209 = vld [vmem:[#allocation2 + $0xa8] sm:$0xff]
      %v2210 = vld [vmem:[#allocation2 + $0xb0] sm:$0xff]
      %v2211 = vld [vmem:[#allocation2 + $0xb8] sm:$0xff]
      %v2212 = vld [vmem:[#allocation2 + $0xc0] sm:$0xff]
      %v2213 = vld [vmem:[#allocation2 + $0xc8] sm:$0xff]
      %v2214 = vld [vmem:[#allocation2 + $0xd0] sm:$0xff]
      %v2215 = vld [vmem:[#allocation2 + $0xd8] sm:$0xff]
      %v2216 = vld [vmem:[#allocation2 + $0xe0] sm:$0xff]
      %v2217 = vld [vmem:[#allocation2 + $0xe8] sm:$0xff]
      %v2218 = vld [vmem:[#allocation2 + $0xf0] sm:$0xff]
      %v2219 = vld [vmem:[#allocation2 + $0xf8] sm:$0xff]
      %v2220 = vld [vmem:[#allocation2 + $0x100] sm:$0xff]
      %v2221 = vld [vmem:[#allocation2 + $0x108] sm:$0xff]
      %v2222 = vld [vmem:[#allocation2 + $0x110] sm:$0xff]
      %v2223 = vld [vmem:[#allocation2 + $0x118] sm:$0xff]
      %v2224 = vld [vmem:[#allocation2 + $0x120] sm:$0xff]
      %v2225 = vld [vmem:[#allocation2 + $0x128] sm:$0xff]
      %v2226 = vld [vmem:[#allocation2 + $0x130] sm:$0xff]
      %v2227 = vld [vmem:[#allocation2 + $0x138] sm:$0xff]
      %v2228 = vld [vmem:[#allocation2 + $0x140] sm:$0xff]
      %v2229 = vld [vmem:[#allocation2 + $0x148] sm:$0xff]
      %v2230 = vld [vmem:[#allocation2 + $0x150] sm:$0xff]
      %v2231 = vld [vmem:[#allocation2 + $0x158] sm:$0xff]
      %v2232 = vld [vmem:[#allocation2 + $0x160] sm:$0xff]
      %v2233 = vld [vmem:[#allocation2 + $0x168] sm:$0xff]
      %v2234 = vld [vmem:[#allocation2 + $0x170] sm:$0xff]
      %v2235 = vld [vmem:[#allocation2 + $0x178] sm:$0xff]
      %v2236 = vld [vmem:[#allocation2 + $0x180] sm:$0xff]
      %v2237 = vld [vmem:[#allocation2 + $0x188] sm:$0xff]
      %v2238 = vld [vmem:[#allocation2 + $0x190] sm:$0xff]
      %v2239 = vld [vmem:[#allocation2 + $0x198] sm:$0xff]
      %v2240 = vld [vmem:[#allocation2 + $0x1a0] sm:$0xff]
      %v2241 = vld [vmem:[#allocation2 + $0x1a8] sm:$0xff]
      %v2242 = vld [vmem:[#allocation2 + $0x1b0] sm:$0xff]
      %v2243 = vld [vmem:[#allocation2 + $0x1b8] sm:$0xff]
      %v2244 = vld [vmem:[#allocation2 + $0x1c0] sm:$0xff]
      %v2245 = vld [vmem:[#allocation2 + $0x1c8] sm:$0xff]
      %v2246 = vld [vmem:[#allocation2 + $0x1d0] sm:$0xff]
      %v2247 = vld [vmem:[#allocation2 + $0x1d8] sm:$0xff]
      %v2248 = vld [vmem:[#allocation2 + $0x1e0] sm:$0xff]
      %v2249 = vld [vmem:[#allocation2 + $0x1e8] sm:$0xff]
      %v2250 = vld [vmem:[#allocation2 + $0x1f0] sm:$0xff]
      %v2251 = vld [vmem:[#allocation2 + $0x1f8] sm:$0xff]
      %v2252 = vld [vmem:[#allocation2 + $0x200] sm:$0xff]
      %v2253 = vld [vmem:[#allocation2 + $0x208] sm:$0xff]
      %v2254 = vld [vmem:[#allocation2 + $0x210] sm:$0xff]
      %v2255 = vld [vmem:[#allocation2 + $0x218] sm:$0xff]
      %v2256 = vld [vmem:[#allocation2 + $0x220] sm:$0xff]
      %v2257 = vld [vmem:[#allocation2 + $0x228] sm:$0xff]
      %v2258 = vld [vmem:[#allocation2 + $0x230] sm:$0xff]
      %v2259 = vld [vmem:[#allocation2 + $0x238] sm:$0xff]
      %v2260 = vld [vmem:[#allocation2 + $0x240] sm:$0xff]
      %v2261 = vld [vmem:[#allocation2 + $0x248] sm:$0xff]
      %v2262 = vld [vmem:[#allocation2 + $0x250] sm:$0xff]
      %v2263 = vld [vmem:[#allocation2 + $0x258] sm:$0xff]
      %v2264 = vld [vmem:[#allocation2 + $0x260] sm:$0xff]
      %v2265 = vld [vmem:[#allocation2 + $0x268] sm:$0xff]
      %v2266 = vld [vmem:[#allocation2 + $0x270] sm:$0xff]
      %v2267 = vld [vmem:[#allocation2 + $0x278] sm:$0xff]
      %v2268 = vld [vmem:[#allocation2 + $0x280] sm:$0xff]
      %v2269 = vld [vmem:[#allocation2 + $0x288] sm:$0xff]
      %v2270 = vld [vmem:[#allocation2 + $0x290] sm:$0xff]
      %v2271 = vld [vmem:[#allocation2 + $0x298] sm:$0xff]
      %v2272 = vld [vmem:[#allocation2 + $0x2a0] sm:$0xff]
      %v2273 = vld [vmem:[#allocation2 + $0x2a8] sm:$0xff]
      %v2274 = vld [vmem:[#allocation2 + $0x2b0] sm:$0xff]
      %v2275 = vld [vmem:[#allocation2 + $0x2b8] sm:$0xff]
      %v2276 = vld [vmem:[#allocation2 + $0x2c0] sm:$0xff]
      %v2277 = vld [vmem:[#allocation2 + $0x2c8] sm:$0xff]
      %v2278 = vld [vmem:[#allocation2 + $0x2d0] sm:$0xff]
      %v2279 = vld [vmem:[#allocation2 + $0x2d8] sm:$0xff]
      %v2280 = vld [vmem:[#allocation2 + $0x2e0] sm:$0xff]
      %v2281 = vld [vmem:[#allocation2 + $0x2e8] sm:$0xff]
      %v2282 = vld [vmem:[#allocation2 + $0x2f0] sm:$0xff]
      %v2283 = vld [vmem:[#allocation2 + $0x2f8] sm:$0xff]
      %v2284 = vld [vmem:[#allocation2 + $0x300] sm:$0xff]
      %v2285 = vld [vmem:[#allocation2 + $0x308] sm:$0xff]
      %v2286 = vld [vmem:[#allocation2 + $0x310] sm:$0xff]
      %v2287 = vld [vmem:[#allocation2 + $0x318] sm:$0xff]
      %v2288 = vld [vmem:[#allocation2 + $0x320] sm:$0xff]
      %v2289 = vld [vmem:[#allocation2 + $0x328] sm:$0xff]
      %v2290 = vld [vmem:[#allocation2 + $0x330] sm:$0xff]
      %v2291 = vld [vmem:[#allocation2 + $0x338] sm:$0xff]
      %v2292 = vld [vmem:[#allocation2 + $0x340] sm:$0xff]
      %v2293 = vld [vmem:[#allocation2 + $0x348] sm:$0xff]
      %v2294 = vld [vmem:[#allocation2 + $0x350] sm:$0xff]
      %v2295 = vld [vmem:[#allocation2 + $0x358] sm:$0xff]
      %v2296 = vld [vmem:[#allocation2 + $0x360] sm:$0xff]
      %v2297 = vld [vmem:[#allocation2 + $0x368] sm:$0xff]
      %v2298 = vld [vmem:[#allocation2 + $0x370] sm:$0xff]
      %v2300 = vsel %vm403, %v2187, 0
      %2302 = vmatprep.subr.mxu0 %v2189
      %2303 = vmatpush1.msra.mxu0 %v2188
      %2304 = vmatprep.subr.mxu0 %v2192
      %2305 = vmatpush1.msra.mxu0 %v2191
      %2306 = vmatprep.subr.mxu0 %v2195
      %2307 = vmatpush1.msra.mxu0 %v2194
      %2308 = vmatprep.subr.mxu0 %v2198
      %2309 = vmatpush1.msra.mxu0 %v2197
      %2310 = vmatprep.subr.mxu0 %v2201
      %2311 = vmatpush1.msra.mxu0 %v2200
      %2312 = vmatprep.subr.mxu0 %v2204
      %2313 = vmatpush1.msra.mxu0 %v2203
      %2314 = vmatprep.subr.mxu0 %v2207
      %2315 = vmatpush1.msra.mxu0 %v2206
      %2316 = vmatprep.subr.mxu0 %v2210
      %2317 = vmatpush1.msra.mxu0 %v2209
      %2318 = vmatprep.subr.mxu0 %v2213
      %2319 = vmatpush1.msra.mxu0 %v2212
      %2320 = vmatprep.subr.mxu0 %v2216
      %2321 = vmatpush1.msra.mxu0 %v2215
      %2322 = vmatprep.subr.mxu0 %v2219
      %2323 = vmatpush1.msra.mxu0 %v2218
      %2324 = vmatprep.subr.mxu0 %v2222
      %2325 = vmatpush1.msra.mxu0 %v2221
      %2326 = vmatprep.subr.mxu0 %v2225
      %2327 = vmatpush1.msra.mxu0 %v2224
      %2328 = vmatprep.subr.mxu0 %v2228
      %2329 = vmatpush1.msra.mxu0 %v2227
      %2330 = vmatprep.subr.mxu0 %v2231
      %2331 = vmatpush1.msra.mxu0 %v2230
      %2332 = vmatprep.subr.mxu0 %v2234
      %2333 = vmatpush1.msra.mxu0 %v2233
      %2334 = vmatprep.subr.mxu0 %v2237
      %2335 = vmatpush1.msra.mxu0 %v2236
      %2336 = vmatprep.subr.mxu0 %v2240
      %2337 = vmatpush1.msra.mxu0 %v2239
      %2338 = vmatprep.subr.mxu0 %v2243
      %2339 = vmatpush1.msra.mxu0 %v2242
      %2340 = vmatprep.subr.mxu0 %v2246
      %2341 = vmatpush1.msra.mxu0 %v2245
      %2342 = vmatprep.subr.mxu0 %v2249
      %2343 = vmatpush1.msra.mxu0 %v2248
      %2344 = vmatprep.subr.mxu0 %v2252
      %2345 = vmatpush1.msra.mxu0 %v2251
      %2346 = vmatprep.subr.mxu0 %v2255
      %2347 = vmatpush1.msra.mxu0 %v2254
      %2348 = vmatprep.subr.mxu0 %v2258
      %2349 = vmatpush1.msra.mxu0 %v2257
      %2350 = vmatprep.subr.mxu0 %v2261
      %2351 = vmatpush1.msra.mxu0 %v2260
      %2352 = vmatprep.subr.mxu0 %v2264
      %2353 = vmatpush1.msra.mxu0 %v2263
      %2354 = vmatprep.subr.mxu0 %v2267
      %2355 = vmatpush1.msra.mxu0 %v2266
      %2356 = vmatprep.subr.mxu0 %v2270
      %2357 = vmatpush1.msra.mxu0 %v2269
      %2358 = vmatprep.subr.mxu0 %v2273
      %2359 = vmatpush1.msra.mxu0 %v2272
      %2360 = vmatprep.subr.mxu0 %v2276
      %2361 = vmatpush1.msra.mxu0 %v2275
      %2362 = vmatprep.subr.mxu0 %v2279
      %2363 = vmatpush1.msra.mxu0 %v2278
      %2364 = vmatprep.subr.mxu0 %v2282
      %2365 = vmatpush1.msra.mxu0 %v2281
      %2366 = vmatprep.mubr.f32.mxu0 %v2186
      %2367 = vmatmul.mubr.f32.gmra.mrb[0].mxu0 %v2185
      %v2368 = vpop.f32.mrb[0].mxu0
      %v2369 = vadd.f32 0.0, %v2368
      %v2370 = vpop.f32.mrb[0].mxu0
      %v2371 = vadd.f32 0.0, %v2370
      %2372 = vdwg.mxu0
      %2373 = vmatprep.subr.mxu0 %v2285
      %2374 = vmatpush1.msra.mxu0 %v2284
      %2375 = vmatprep.subr.mxu0 %v2288
      %2376 = vmatpush1.msra.mxu0 %v2287
      %2377 = vmatprep.subr.mxu0 %v2291
      %2378 = vmatpush1.msra.mxu0 %v2290
      %2379 = vmatprep.subr.mxu0 %v2294
      %2380 = vmatpush1.msra.mxu0 %v2293
      %2381 = vmatprep.subr.mxu0 %v2297
      %2382 = vmatpush1.msra.mxu0 %v2296
      %2383 = vmatprep.subr.mxu0 0.0
      %2384 = vmatpush1.msra.mxu0 0.0
      %2385 = vmatprep.subr.mxu0 0.0
      %2386 = vmatpush1.msra.mxu0 0.0
      %2387 = vmatprep.subr.mxu0 0.0
      %2388 = vmatpush1.msra.mxu0 0.0
      %2389 = vmatprep.subr.mxu0 0.0
      %2390 = vmatpush1.msra.mxu0 0.0
      %2391 = vmatprep.subr.mxu0 0.0
      %2392 = vmatpush1.msra.mxu0 0.0
      %2393 = vmatprep.subr.mxu0 0.0
      %2394 = vmatpush1.msra.mxu0 0.0
      %2395 = vmatprep.subr.mxu0 0.0
      %2396 = vmatpush1.msra.mxu0 0.0
      %2397 = vmatprep.subr.mxu0 0.0
      %2398 = vmatpush1.msra.mxu0 0.0
      %2399 = vmatprep.subr.mxu0 0.0
      %2400 = vmatpush1.msra.mxu0 0.0
      %2401 = vmatprep.subr.mxu0 0.0
      %2402 = vmatpush1.msra.mxu0 0.0
      %2403 = vmatprep.subr.mxu0 0.0
      %2404 = vmatpush1.msra.mxu0 0.0
      %2405 = vmatprep.subr.mxu0 0.0
      %2406 = vmatpush1.msra.mxu0 0.0
      %2407 = vmatprep.subr.mxu0 0.0
      %2408 = vmatpush1.msra.mxu0 0.0
      %2409 = vmatprep.subr.mxu0 0.0
      %2410 = vmatpush1.msra.mxu0 0.0
      %2411 = vmatprep.subr.mxu0 0.0
      %2412 = vmatpush1.msra.mxu0 0.0
      %2413 = vmatprep.subr.mxu0 0.0
      %2414 = vmatpush1.msra.mxu0 0.0
      %2415 = vmatprep.subr.mxu0 0.0
      %2416 = vmatpush1.msra.mxu0 0.0
      %2417 = vmatprep.subr.mxu0 0.0
      %2418 = vmatpush1.msra.mxu0 0.0
      %2419 = vmatprep.subr.mxu0 0.0
      %2420 = vmatpush1.msra.mxu0 0.0
      %2421 = vmatprep.subr.mxu0 0.0
      %2422 = vmatpush1.msra.mxu0 0.0
      %2423 = vmatprep.subr.mxu0 0.0
      %2424 = vmatpush1.msra.mxu0 0.0
      %2425 = vmatprep.subr.mxu0 0.0
      %2426 = vmatpush1.msra.mxu0 0.0
      %2427 = vmatprep.subr.mxu0 0.0
      %2428 = vmatpush1.msra.mxu0 0.0
      %2429 = vmatprep.subr.mxu0 0.0
      %2430 = vmatpush1.msra.mxu0 0.0
      %2431 = vmatprep.subr.mxu0 0.0
      %2432 = vmatpush1.msra.mxu0 0.0
      %2433 = vmatprep.subr.mxu0 0.0
      %2434 = vmatpush1.msra.mxu0 0.0
      %2435 = vmatprep.subr.mxu0 0.0
      %2436 = vmatpush1.msra.mxu0 0.0
      %2437 = vmatprep.mubr.f32.mxu0 0.0
      %2438 = vmatmul.mubr.f32.gmra.mrb[0].mxu0 %v2300
      %v2439 = vpop.f32.mrb[0].mxu0
      %v2440 = vadd.f32 %v2369, %v2439
      %v2441 = vpop.f32.mrb[0].mxu0
      %v2442 = vadd.f32 %v2371, %v2441
      %2443 = vdwg.mxu0
      %2444 = vmatprep.subr.mxu0 0.0
      %2445 = vmatpush1.msra.mxu0 %v2190
      %2446 = vmatprep.subr.mxu0 0.0
      %2447 = vmatpush1.msra.mxu0 %v2193
      %2448 = vmatprep.subr.mxu0 0.0
      %2449 = vmatpush1.msra.mxu0 %v2196
      %2450 = vmatprep.subr.mxu0 0.0
      %2451 = vmatpush1.msra.mxu0 %v2199
      %2452 = vmatprep.subr.mxu0 0.0
      %2453 = vmatpush1.msra.mxu0 %v2202
      %2454 = vmatprep.subr.mxu0 0.0
      %2455 = vmatpush1.msra.mxu0 %v2205
      %2456 = vmatprep.subr.mxu0 0.0
      %2457 = vmatpush1.msra.mxu0 %v2208
      %2458 = vmatprep.subr.mxu0 0.0
      %2459 = vmatpush1.msra.mxu0 %v2211
      %2460 = vmatprep.subr.mxu0 0.0
      %2461 = vmatpush1.msra.mxu0 %v2214
      %2462 = vmatprep.subr.mxu0 0.0
      %2463 = vmatpush1.msra.mxu0 %v2217
      %2464 = vmatprep.subr.mxu0 0.0
      %2465 = vmatpush1.msra.mxu0 %v2220
      %2466 = vmatprep.subr.mxu0 0.0
      %2467 = vmatpush1.msra.mxu0 %v2223
      %2468 = vmatprep.subr.mxu0 0.0
      %2469 = vmatpush1.msra.mxu0 %v2226
      %2470 = vmatprep.subr.mxu0 0.0
      %2471 = vmatpush1.msra.mxu0 %v2229
      %2472 = vmatprep.subr.mxu0 0.0
      %2473 = vmatpush1.msra.mxu0 %v2232
      %2474 = vmatprep.subr.mxu0 0.0
      %2475 = vmatpush1.msra.mxu0 %v2235
      %2476 = vmatprep.subr.mxu0 0.0
      %2477 = vmatpush1.msra.mxu0 %v2238
      %2478 = vmatprep.subr.mxu0 0.0
      %2479 = vmatpush1.msra.mxu0 %v2241
      %2480 = vmatprep.subr.mxu0 0.0
      %2481 = vmatpush1.msra.mxu0 %v2244
      %2482 = vmatprep.subr.mxu0 0.0
      %2483 = vmatpush1.msra.mxu0 %v2247
      %2484 = vmatprep.subr.mxu0 0.0
      %2485 = vmatpush1.msra.mxu0 %v2250
      %2486 = vmatprep.subr.mxu0 0.0
      %2487 = vmatpush1.msra.mxu0 %v2253
      %2488 = vmatprep.subr.mxu0 0.0
      %2489 = vmatpush1.msra.mxu0 %v2256
      %2490 = vmatprep.subr.mxu0 0.0
      %2491 = vmatpush1.msra.mxu0 %v2259
      %2492 = vmatprep.subr.mxu0 0.0
      %2493 = vmatpush1.msra.mxu0 %v2262
      %2494 = vmatprep.subr.mxu0 0.0
      %2495 = vmatpush1.msra.mxu0 %v2265
      %2496 = vmatprep.subr.mxu0 0.0
      %2497 = vmatpush1.msra.mxu0 %v2268
      %2498 = vmatprep.subr.mxu0 0.0
      %2499 = vmatpush1.msra.mxu0 %v2271
      %2500 = vmatprep.subr.mxu0 0.0
      %2501 = vmatpush1.msra.mxu0 %v2274
      %2502 = vmatprep.subr.mxu0 0.0
      %2503 = vmatpush1.msra.mxu0 %v2277
      %2504 = vmatprep.subr.mxu0 0.0
      %2505 = vmatpush1.msra.mxu0 %v2280
      %2506 = vmatprep.subr.mxu0 0.0
      %2507 = vmatpush1.msra.mxu0 %v2283
      %2508 = vmatprep.mubr.f32.mxu0 %v2186
      %2509 = vmatmul.mubr.f32.gmra.mrb[0].mxu0 %v2185
      %v2510 = vpop.f32.mrb[0].mxu0
      %v2511 = vadd.f32 0.0, %v2510
      %v2512 = vpop.f32.mrb[0].mxu0
      %2513 = vdwg.mxu0
      %2514 = vmatprep.subr.mxu0 0.0
      %2515 = vmatpush1.msra.mxu0 %v2286
      %2516 = vmatprep.subr.mxu0 0.0
      %2517 = vmatpush1.msra.mxu0 %v2289
      %2518 = vmatprep.subr.mxu0 0.0
      %2519 = vmatpush1.msra.mxu0 %v2292
      %2520 = vmatprep.subr.mxu0 0.0
      %2521 = vmatpush1.msra.mxu0 %v2295
      %2522 = vmatprep.subr.mxu0 0.0
      %2523 = vmatpush1.msra.mxu0 %v2298
      %2524 = vmatprep.subr.mxu0 0.0
      %2525 = vmatpush1.msra.mxu0 0.0
      %2526 = vmatprep.subr.mxu0 0.0
      %2527 = vmatpush1.msra.mxu0 0.0
      %2528 = vmatprep.subr.mxu0 0.0
      %2529 = vmatpush1.msra.mxu0 0.0
      %2530 = vmatprep.subr.mxu0 0.0
      %2531 = vmatpush1.msra.mxu0 0.0
      %2532 = vmatprep.subr.mxu0 0.0
      %2533 = vmatpush1.msra.mxu0 0.0
      %2534 = vmatprep.subr.mxu0 0.0
      %2535 = vmatpush1.msra.mxu0 0.0
      %2536 = vmatprep.subr.mxu0 0.0
      %2537 = vmatpush1.msra.mxu0 0.0
      %2538 = vmatprep.subr.mxu0 0.0
      %2539 = vmatpush1.msra.mxu0 0.0
      %2540 = vmatprep.subr.mxu0 0.0
      %2541 = vmatpush1.msra.mxu0 0.0
      %2542 = vmatprep.subr.mxu0 0.0
      %2543 = vmatpush1.msra.mxu0 0.0
      %2544 = vmatprep.subr.mxu0 0.0
      %2545 = vmatpush1.msra.mxu0 0.0
      %2546 = vmatprep.subr.mxu0 0.0
      %2547 = vmatpush1.msra.mxu0 0.0
      %2548 = vmatprep.subr.mxu0 0.0
      %2549 = vmatpush1.msra.mxu0 0.0
      %2550 = vmatprep.subr.mxu0 0.0
      %2551 = vmatpush1.msra.mxu0 0.0
      %2552 = vmatprep.subr.mxu0 0.0
      %2553 = vmatpush1.msra.mxu0 0.0
      %2554 = vmatprep.subr.mxu0 0.0
      %2555 = vmatpush1.msra.mxu0 0.0
      %2556 = vmatprep.subr.mxu0 0.0
      %2557 = vmatpush1.msra.mxu0 0.0
      %2558 = vmatprep.subr.mxu0 0.0
      %2559 = vmatpush1.msra.mxu0 0.0
      %2560 = vmatprep.subr.mxu0 0.0
      %2561 = vmatpush1.msra.mxu0 0.0
      %2562 = vmatprep.subr.mxu0 0.0
      %2563 = vmatpush1.msra.mxu0 0.0
      %2564 = vmatprep.subr.mxu0 0.0
      %2565 = vmatpush1.msra.mxu0 0.0
      %2566 = vmatprep.subr.mxu0 0.0
      %2567 = vmatpush1.msra.mxu0 0.0
      %2568 = vmatprep.subr.mxu0 0.0
      %2569 = vmatpush1.msra.mxu0 0.0
      %2570 = vmatprep.subr.mxu0 0.0
      %2571 = vmatpush1.msra.mxu0 0.0
      %2572 = vmatprep.subr.mxu0 0.0
      %2573 = vmatpush1.msra.mxu0 0.0
      %2574 = vmatprep.subr.mxu0 0.0
      %2575 = vmatpush1.msra.mxu0 0.0
      %2576 = vmatprep.subr.mxu0 0.0
      %2577 = vmatpush1.msra.mxu0 0.0
      %2578 = vmatprep.mubr.f32.mxu0 0.0
      %2579 = vmatmul.mubr.f32.gmra.mrb[0].mxu0 %v2300
      %v2580 = vpop.f32.mrb[0].mxu0
      %v2581 = vadd.f32 %v2511, %v2580
      %v2582 = vpop.f32.mrb[0].mxu0
      %2583 = vdwg.mxu0
      %v2584 = vmax.f32 %v2440, 0.0
      %v2585 = vmax.f32 %v2442, 0.0
      %v2586 = vmax.f32 %v2581, 0.0
      %v2587 = vsel %vm564, %v2584, 0.0
      %v2588 = vsel %vm565, %v2585, 0.0
      %v2589 = vsel %vm566, %v2586, 0.0
      %2590 = vrot.lane.b32.xlu0 %v2587, 19
      %v2591 = vpop.permute.xlu0 %2590
      %2592 = vrot.lane.b32.xlu0 %v2588, 19
      %v2593 = vpop.permute.xlu0 %2592
      %2594 = vrot.lane.b32.xlu0 %v2589, 19
      %v2595 = vpop.permute.xlu0 %2594
      %v2596 = vsel %vm193, %v2593, %v2595
      %v2597 = vsel %vm193, %v2591, %v2593
      %v2598 = vsel %vm193, %v2595, %v2591
      %v2602 = vrot.slane %v2598, 7
      %v2603 = vrot.slane %v2597, 7
      %v2604 = vrot.slane %v2596, 7
      %2608 = vst [vmem:[#allocation2] sm:$0xfe] %v2602
      %2609 = vst [vmem:[#allocation2 + $0x8] sm:$0xfe] %v2603
      %2610 = vst [vmem:[#allocation2 + $0x10] sm:$0xfe] %v2604
      %2611 = vst [vmem:[#allocation2 + $0x18] sm:$0x1] %v2602
      %2612 = vst [vmem:[#allocation2 + $0x20] sm:$0x1] %v2603
      %2613 = vst [vmem:[#allocation2 + $0x28] sm:$0x1] %v2604
      %2614 = vrot.lane.b32.xlu0 %v2587, 18
      %v2615 = vpop.permute.xlu0 %2614
      %2616 = vrot.lane.b32.xlu0 %v2588, 18
      %v2617 = vpop.permute.xlu0 %2616
      %2618 = vrot.lane.b32.xlu0 %v2589, 18
      %v2619 = vpop.permute.xlu0 %2618
      %v2620 = vsel %vm215, %v2617, %v2619
      %v2621 = vsel %vm215, %v2615, %v2617
      %v2622 = vsel %vm215, %v2619, %v2615
      %v2626 = vrot.slane %v2622, 7
      %v2627 = vrot.slane %v2621, 7
      %v2628 = vrot.slane %v2620, 7
      %2632 = vst [vmem:[#allocation2 + $0x18] sm:$0xfe] %v2626
      %2633 = vst [vmem:[#allocation2 + $0x20] sm:$0xfe] %v2627
      %2634 = vst [vmem:[#allocation2 + $0x28] sm:$0xfe] %v2628
      %2635 = vst [vmem:[#allocation2 + $0x30] sm:$0x1] %v2626
      %2636 = vst [vmem:[#allocation2 + $0x38] sm:$0x1] %v2627
      %2637 = vst [vmem:[#allocation2 + $0x40] sm:$0x1] %v2628
      %2638 = vrot.lane.b32.xlu0 %v2587, 17
      %v2639 = vpop.permute.xlu0 %2638
      %2640 = vrot.lane.b32.xlu0 %v2588, 17
      %v2641 = vpop.permute.xlu0 %2640
      %2642 = vrot.lane.b32.xlu0 %v2589, 17
      %v2643 = vpop.permute.xlu0 %2642
      %v2644 = vsel %vm240, %v2641, %v2643
      %v2645 = vsel %vm240, %v2639, %v2641
      %v2646 = vsel %vm240, %v2643, %v2639
      %v2650 = vrot.slane %v2646, 7
      %v2651 = vrot.slane %v2645, 7
      %v2652 = vrot.slane %v2644, 7
      %2656 = vst [vmem:[#allocation2 + $0x30] sm:$0xfe] %v2650
      %2657 = vst [vmem:[#allocation2 + $0x38] sm:$0xfe] %v2651
      %2658 = vst [vmem:[#allocation2 + $0x40] sm:$0xfe] %v2652
      %2659 = vst [vmem:[#allocation2 + $0x48] sm:$0x1] %v2650
      %2660 = vst [vmem:[#allocation2 + $0x50] sm:$0x1] %v2651
      %2661 = vst [vmem:[#allocation2 + $0x58] sm:$0x1] %v2652
      %2662 = vrot.lane.b32.xlu0 %v2587, 1
      %v2663 = vpop.permute.xlu0 %2662
      %2664 = vrot.lane.b32.xlu0 %v2588, 1
      %v2665 = vpop.permute.xlu0 %2664
      %2666 = vrot.lane.b32.xlu0 %v2589, 1
      %v2667 = vpop.permute.xlu0 %2666
      %v2668 = vsel %vm262, %v2665, %v2667
      %v2669 = vsel %vm262, %v2663, %v2665
      %v2670 = vsel %vm262, %v2667, %v2663
      %v2674 = vrot.slane %v2670, 7
      %v2675 = vrot.slane %v2669, 7
      %v2676 = vrot.slane %v2668, 7
      %2680 = vst [vmem:[#allocation2 + $0x48] sm:$0xfe] %v2674
      %2681 = vst [vmem:[#allocation2 + $0x50] sm:$0xfe] %v2675
      %2682 = vst [vmem:[#allocation2 + $0x58] sm:$0xfe] %v2676
      %2683 = vst [vmem:[#allocation2 + $0x60] sm:$0x1] %v2674
      %2684 = vst [vmem:[#allocation2 + $0x68] sm:$0x1] %v2675
      %2685 = vst [vmem:[#allocation2 + $0x70] sm:$0x1] %v2676
      %v2689 = vrot.slane %v2587, 7
      %v2690 = vrot.slane %v2588, 7
      %v2691 = vrot.slane %v2589, 7
      %2695 = vst [vmem:[#allocation2 + $0x60] sm:$0xfe] %v2689
      %2696 = vst [vmem:[#allocation2 + $0x68] sm:$0xfe] %v2690
      %2697 = vst [vmem:[#allocation2 + $0x70] sm:$0xfe] %v2691
      %2698 = vst [vmem:[#allocation2 + $0x78] sm:$0x1] %v2689
      %2699 = vst [vmem:[#allocation2 + $0x80] sm:$0x1] %v2690
      %2700 = vst [vmem:[#allocation2 + $0x88] sm:$0x1] %v2691
      %2701 = vrot.lane.b32.xlu0 %v2587, 127
      %v2702 = vpop.permute.xlu0 %2701
      %2703 = vrot.lane.b32.xlu0 %v2588, 127
      %v2704 = vpop.permute.xlu0 %2703
      %2705 = vrot.lane.b32.xlu0 %v2589, 127
      %v2706 = vpop.permute.xlu0 %2705
      %v2707 = vsel %vm296, %v2704, %v2706
      %v2708 = vsel %vm296, %v2702, %v2704
      %v2709 = vsel %vm296, %v2706, %v2702
      %v2713 = vrot.slane %v2708, 7
      %v2714 = vrot.slane %v2707, 7
      %v2715 = vrot.slane %v2709, 7
      %2719 = vst [vmem:[#allocation2 + $0x78] sm:$0xfe] %v2713
      %2720 = vst [vmem:[#allocation2 + $0x80] sm:$0xfe] %v2714
      %2721 = vst [vmem:[#allocation2 + $0x88] sm:$0xfe] %v2715
      %2722 = vst [vmem:[#allocation2 + $0x90] sm:$0x1] %v2713
      %2723 = vst [vmem:[#allocation2 + $0x98] sm:$0x1] %v2714
      %2724 = vst [vmem:[#allocation2 + $0xa0] sm:$0x1] %v2715
      %2725 = vrot.lane.b32.xlu0 %v2587, 111
      %v2726 = vpop.permute.xlu0 %2725
      %2727 = vrot.lane.b32.xlu0 %v2588, 111
      %v2728 = vpop.permute.xlu0 %2727
      %2729 = vrot.lane.b32.xlu0 %v2589, 111
      %v2730 = vpop.permute.xlu0 %2729
      %v2731 = vsel %vm321, %v2728, %v2730
      %v2732 = vsel %vm321, %v2726, %v2728
      %v2733 = vsel %vm321, %v2730, %v2726
      %v2737 = vrot.slane %v2732, 7
      %v2738 = vrot.slane %v2731, 7
      %v2739 = vrot.slane %v2733, 7
      %2743 = vst [vmem:[#allocation2 + $0x90] sm:$0xfe] %v2737
      %2744 = vst [vmem:[#allocation2 + $0x98] sm:$0xfe] %v2738
      %2745 = vst [vmem:[#allocation2 + $0xa0] sm:$0xfe] %v2739
      %2746 = vst [vmem:[#allocation2 + $0xa8] sm:$0x1] %v2737
      %2747 = vst [vmem:[#allocation2 + $0xb0] sm:$0x1] %v2738
      %2748 = vst [vmem:[#allocation2 + $0xb8] sm:$0x1] %v2739
      %2749 = vrot.lane.b32.xlu0 %v2587, 110
      %v2750 = vpop.permute.xlu0 %2749
      %2751 = vrot.lane.b32.xlu0 %v2588, 110
      %v2752 = vpop.permute.xlu0 %2751
      %2753 = vrot.lane.b32.xlu0 %v2589, 110
      %v2754 = vpop.permute.xlu0 %2753
      %v2755 = vsel %vm343, %v2752, %v2754
      %v2756 = vsel %vm343, %v2750, %v2752
      %v2757 = vsel %vm343, %v2754, %v2750
      %v2761 = vrot.slane %v2756, 7
      %v2762 = vrot.slane %v2755, 7
      %v2763 = vrot.slane %v2757, 7
      %2767 = vst [vmem:[#allocation2 + $0xa8] sm:$0xfe] %v2761
      %2768 = vst [vmem:[#allocation2 + $0xb0] sm:$0xfe] %v2762
      %2769 = vst [vmem:[#allocation2 + $0xb8] sm:$0xfe] %v2763
      %2770 = vst [vmem:[#allocation2 + $0xc0] sm:$0x1] %v2761
      %2771 = vst [vmem:[#allocation2 + $0xc8] sm:$0x1] %v2762
      %2772 = vst [vmem:[#allocation2 + $0xd0] sm:$0x1] %v2763
      %2773 = vrot.lane.b32.xlu0 %v2587, 109
      %v2774 = vpop.permute.xlu0 %2773
      %2775 = vrot.lane.b32.xlu0 %v2588, 109
      %v2776 = vpop.permute.xlu0 %2775
      %2777 = vrot.lane.b32.xlu0 %v2589, 109
      %v2778 = vpop.permute.xlu0 %2777
      %v2779 = vsel %vm368, %v2776, %v2778
      %v2780 = vsel %vm368, %v2774, %v2776
      %v2781 = vsel %vm368, %v2778, %v2774
      %v2785 = vrot.slane %v2780, 7
      %v2786 = vrot.slane %v2779, 7
      %v2787 = vrot.slane %v2781, 7
      %2791 = vst [vmem:[#allocation2 + $0xc0] sm:$0xfe] %v2785
      %2792 = vst [vmem:[#allocation2 + $0xc8] sm:$0xfe] %v2786
      %2793 = vst [vmem:[#allocation2 + $0xd0] sm:$0xfe] %v2787
      %2794 = vst [vmem:[#allocation2 + $0xd8] sm:$0x1] %v2785
      %2795 = vst [vmem:[#allocation2 + $0xe0] sm:$0x1] %v2786
      %2796 = vst [vmem:[#allocation2 + $0xe8] sm:$0x1] %v2787
      %2797 = vst [vmem:[#allocation2 + $0xd8] sm:$0xfe] %v582
      %2798 = vst [vmem:[#allocation2 + $0xe0] sm:$0xfe] %v583
      %2799 = vst [vmem:[#allocation2 + $0xe8] sm:$0xfe] %v584
      %2800 = vst [vmem:[#allocation2 + $0xf0] sm:$0x1] %v582
      %2801 = vst [vmem:[#allocation2 + $0xf8] sm:$0x1] %v583
      %2802 = vst [vmem:[#allocation2 + $0x100] sm:$0x1] %v584
      %2803 = vst [vmem:[#allocation2 + $0xf0] sm:$0xfe] %v606
      %2804 = vst [vmem:[#allocation2 + $0xf8] sm:$0xfe] %v607
      %2805 = vst [vmem:[#allocation2 + $0x100] sm:$0xfe] %v608
      %2806 = vst [vmem:[#allocation2 + $0x108] sm:$0x1] %v606
      %2807 = vst [vmem:[#allocation2 + $0x110] sm:$0x1] %v607
      %2808 = vst [vmem:[#allocation2 + $0x118] sm:$0x1] %v608
      %2809 = vst [vmem:[#allocation2 + $0x108] sm:$0xfe] %v630
      %2810 = vst [vmem:[#allocation2 + $0x110] sm:$0xfe] %v631
      %2811 = vst [vmem:[#allocation2 + $0x118] sm:$0xfe] %v632
      %2812 = vst [vmem:[#allocation2 + $0x120] sm:$0x1] %v630
      %2813 = vst [vmem:[#allocation2 + $0x128] sm:$0x1] %v631
      %2814 = vst [vmem:[#allocation2 + $0x130] sm:$0x1] %v632
      %2815 = vst [vmem:[#allocation2 + $0x120] sm:$0xfe] %v654
      %2816 = vst [vmem:[#allocation2 + $0x128] sm:$0xfe] %v655
      %2817 = vst [vmem:[#allocation2 + $0x130] sm:$0xfe] %v656
      %2818 = vst [vmem:[#allocation2 + $0x138] sm:$0x1] %v654
      %2819 = vst [vmem:[#allocation2 + $0x140] sm:$0x1] %v655
      %2820 = vst [vmem:[#allocation2 + $0x148] sm:$0x1] %v656
      %2821 = vst [vmem:[#allocation2 + $0x138] sm:$0xfe] %v669
      %2822 = vst [vmem:[#allocation2 + $0x140] sm:$0xfe] %v670
      %2823 = vst [vmem:[#allocation2 + $0x148] sm:$0xfe] %v671
      %2824 = vst [vmem:[#allocation2 + $0x150] sm:$0x1] %v669
      %2825 = vst [vmem:[#allocation2 + $0x158] sm:$0x1] %v670
      %2826 = vst [vmem:[#allocation2 + $0x160] sm:$0x1] %v671
      %2827 = vst [vmem:[#allocation2 + $0x150] sm:$0xfe] %v693
      %2828 = vst [vmem:[#allocation2 + $0x158] sm:$0xfe] %v694
      %2829 = vst [vmem:[#allocation2 + $0x160] sm:$0xfe] %v695
      %2830 = vst [vmem:[#allocation2 + $0x168] sm:$0x1] %v693
      %2831 = vst [vmem:[#allocation2 + $0x170] sm:$0x1] %v694
      %2832 = vst [vmem:[#allocation2 + $0x178] sm:$0x1] %v695
      %2833 = vst [vmem:[#allocation2 + $0x168] sm:$0xfe] %v717
      %2834 = vst [vmem:[#allocation2 + $0x170] sm:$0xfe] %v718
      %2835 = vst [vmem:[#allocation2 + $0x178] sm:$0xfe] %v719
      %2836 = vst [vmem:[#allocation2 + $0x180] sm:$0x1] %v717
      %2837 = vst [vmem:[#allocation2 + $0x188] sm:$0x1] %v718
      %2838 = vst [vmem:[#allocation2 + $0x190] sm:$0x1] %v719
      %2839 = vst [vmem:[#allocation2 + $0x180] sm:$0xfe] %v741
      %2840 = vst [vmem:[#allocation2 + $0x188] sm:$0xfe] %v742
      %2841 = vst [vmem:[#allocation2 + $0x190] sm:$0xfe] %v743
      %2842 = vst [vmem:[#allocation2 + $0x198] sm:$0x1] %v741
      %2843 = vst [vmem:[#allocation2 + $0x1a0] sm:$0x1] %v742
      %2844 = vst [vmem:[#allocation2 + $0x1a8] sm:$0x1] %v743
      %2845 = vst [vmem:[#allocation2 + $0x198] sm:$0xfe] %v765
      %2846 = vst [vmem:[#allocation2 + $0x1a0] sm:$0xfe] %v766
      %2847 = vst [vmem:[#allocation2 + $0x1a8] sm:$0xfe] %v767
      %2848 = vst [vmem:[#allocation2 + $0x1b0] sm:$0x1] %v765
      %2849 = vst [vmem:[#allocation2 + $0x1b8] sm:$0x1] %v766
      %2850 = vst [vmem:[#allocation2 + $0x1c0] sm:$0x1] %v767
      %2851 = vst [vmem:[#allocation2 + $0x1b0] sm:$0xfe] 0.0
      %2852 = vst [vmem:[#allocation2 + $0x1b8] sm:$0xfe] 0.0
      %2853 = vst [vmem:[#allocation2 + $0x1c0] sm:$0xfe] 0.0
      %v2854 = vld [vmem:[%s1 + $0x38] sm:$0xf]
      %v2855 = vld [vmem:[%s1 + $0x40] sm:$0xf]
      %v2856 = vld [vmem:[#allocation2] sm:$0xff]
      %v2857 = vld [vmem:[#allocation2 + $0x8] sm:$0xff]
      %v2858 = vld [vmem:[#allocation2 + $0x10] sm:$0xff]
      %v2859 = vld [vmem:[#allocation2 + $0x18] sm:$0xff]
      %v2860 = vld [vmem:[#allocation2 + $0x20] sm:$0xff]
      %v2861 = vld [vmem:[#allocation2 + $0x28] sm:$0xff]
      %v2862 = vld [vmem:[#allocation2 + $0x30] sm:$0xff]
      %v2863 = vld [vmem:[#allocation2 + $0x38] sm:$0xff]
      %v2864 = vld [vmem:[#allocation2 + $0x40] sm:$0xff]
      %v2865 = vld [vmem:[#allocation2 + $0x48] sm:$0xff]
      %v2866 = vld [vmem:[#allocation2 + $0x50] sm:$0xff]
      %v2867 = vld [vmem:[#allocation2 + $0x58] sm:$0xff]
      %v2868 = vld [vmem:[#allocation2 + $0x60] sm:$0xff]
      %v2869 = vld [vmem:[#allocation2 + $0x68] sm:$0xff]
      %v2870 = vld [vmem:[#allocation2 + $0x70] sm:$0xff]
      %v2871 = vld [vmem:[#allocation2 + $0x78] sm:$0xff]
      %v2872 = vld [vmem:[#allocation2 + $0x80] sm:$0xff]
      %v2873 = vld [vmem:[#allocation2 + $0x88] sm:$0xff]
      %v2874 = vld [vmem:[#allocation2 + $0x90] sm:$0xff]
      %v2875 = vld [vmem:[#allocation2 + $0x98] sm:$0xff]
      %v2876 = vld [vmem:[#allocation2 + $0xa0] sm:$0xff]
      %v2877 = vld [vmem:[#allocation2 + $0xa8] sm:$0xff]
      %v2878 = vld [vmem:[#allocation2 + $0xb0] sm:$0xff]
      %v2879 = vld [vmem:[#allocation2 + $0xb8] sm:$0xff]
      %v2880 = vld [vmem:[#allocation2 + $0xc0] sm:$0xff]
      %v2881 = vld [vmem:[#allocation2 + $0xc8] sm:$0xff]
      %v2882 = vld [vmem:[#allocation2 + $0xd0] sm:$0xff]
      %v2883 = vld [vmem:[#allocation2 + $0xd8] sm:$0xff]
      %v2884 = vld [vmem:[#allocation2 + $0xe0] sm:$0xff]
      %v2885 = vld [vmem:[#allocation2 + $0xe8] sm:$0xff]
      %v2886 = vld [vmem:[#allocation2 + $0xf0] sm:$0xff]
      %v2887 = vld [vmem:[#allocation2 + $0xf8] sm:$0xff]
      %v2888 = vld [vmem:[#allocation2 + $0x100] sm:$0xff]
      %v2889 = vld [vmem:[#allocation2 + $0x108] sm:$0xff]
      %v2890 = vld [vmem:[#allocation2 + $0x110] sm:$0xff]
      %v2891 = vld [vmem:[#allocation2 + $0x118] sm:$0xff]
      %v2892 = vld [vmem:[#allocation2 + $0x120] sm:$0xff]
      %v2893 = vld [vmem:[#allocation2 + $0x128] sm:$0xff]
      %v2894 = vld [vmem:[#allocation2 + $0x130] sm:$0xff]
      %v2895 = vld [vmem:[#allocation2 + $0x138] sm:$0xff]
      %v2896 = vld [vmem:[#allocation2 + $0x140] sm:$0xff]
      %v2897 = vld [vmem:[#allocation2 + $0x148] sm:$0xff]
      %v2898 = vld [vmem:[#allocation2 + $0x150] sm:$0xff]
      %v2899 = vld [vmem:[#allocation2 + $0x158] sm:$0xff]
      %v2900 = vld [vmem:[#allocation2 + $0x160] sm:$0xff]
      %v2901 = vld [vmem:[#allocation2 + $0x168] sm:$0xff]
      %v2902 = vld [vmem:[#allocation2 + $0x170] sm:$0xff]
      %v2903 = vld [vmem:[#allocation2 + $0x178] sm:$0xff]
      %v2904 = vld [vmem:[#allocation2 + $0x180] sm:$0xff]
      %v2905 = vld [vmem:[#allocation2 + $0x188] sm:$0xff]
      %v2906 = vld [vmem:[#allocation2 + $0x190] sm:$0xff]
      %v2907 = vld [vmem:[#allocation2 + $0x198] sm:$0xff]
      %v2908 = vld [vmem:[#allocation2 + $0x1a0] sm:$0xff]
      %v2909 = vld [vmem:[#allocation2 + $0x1a8] sm:$0xff]
      %v2910 = vld [vmem:[#allocation2 + $0x1b0] sm:$0xff]
      %v2911 = vld [vmem:[#allocation2 + $0x1b8] sm:$0xff]
      %v2912 = vld [vmem:[#allocation2 + $0x1c0] sm:$0xff]
      %v2914 = vsel %vm1489, %v2855, 0
      %2916 = vmatprep.subr.mxu0 %v2857
      %2917 = vmatpush1.msra.mxu0 %v2856
      %2918 = vmatprep.subr.mxu0 %v2860
      %2919 = vmatpush1.msra.mxu0 %v2859
      %2920 = vmatprep.subr.mxu0 %v2863
      %2921 = vmatpush1.msra.mxu0 %v2862
      %2922 = vmatprep.subr.mxu0 %v2866
      %2923 = vmatpush1.msra.mxu0 %v2865
      %2924 = vmatprep.subr.mxu0 %v2869
      %2925 = vmatpush1.msra.mxu0 %v2868
      %2926 = vmatprep.subr.mxu0 %v2872
      %2927 = vmatpush1.msra.mxu0 %v2871
      %2928 = vmatprep.subr.mxu0 %v2875
      %2929 = vmatpush1.msra.mxu0 %v2874
      %2930 = vmatprep.subr.mxu0 %v2878
      %2931 = vmatpush1.msra.mxu0 %v2877
      %2932 = vmatprep.subr.mxu0 %v2881
      %2933 = vmatpush1.msra.mxu0 %v2880
      %2934 = vmatprep.subr.mxu0 %v2884
      %2935 = vmatpush1.msra.mxu0 %v2883
      %2936 = vmatprep.subr.mxu0 %v2887
      %2937 = vmatpush1.msra.mxu0 %v2886
      %2938 = vmatprep.subr.mxu0 %v2890
      %2939 = vmatpush1.msra.mxu0 %v2889
      %2940 = vmatprep.subr.mxu0 %v2893
      %2941 = vmatpush1.msra.mxu0 %v2892
      %2942 = vmatprep.subr.mxu0 %v2896
      %2943 = vmatpush1.msra.mxu0 %v2895
      %2944 = vmatprep.subr.mxu0 %v2899
      %2945 = vmatpush1.msra.mxu0 %v2898
      %2946 = vmatprep.subr.mxu0 %v2902
      %2947 = vmatpush1.msra.mxu0 %v2901
      %2948 = vmatprep.subr.mxu0 %v2905
      %2949 = vmatpush1.msra.mxu0 %v2904
      %2950 = vmatprep.subr.mxu0 %v2908
      %2951 = vmatpush1.msra.mxu0 %v2907
      %2952 = vmatprep.subr.mxu0 %v2911
      %2953 = vmatpush1.msra.mxu0 %v2910
      %2954 = vmatprep.subr.mxu0 0.0
      %2955 = vmatpush1.msra.mxu0 0.0
      %2956 = vmatprep.subr.mxu0 0.0
      %2957 = vmatpush1.msra.mxu0 0.0
      %2958 = vmatprep.subr.mxu0 0.0
      %2959 = vmatpush1.msra.mxu0 0.0
      %2960 = vmatprep.subr.mxu0 0.0
      %2961 = vmatpush1.msra.mxu0 0.0
      %2962 = vmatprep.subr.mxu0 0.0
      %2963 = vmatpush1.msra.mxu0 0.0
      %2964 = vmatprep.subr.mxu0 0.0
      %2965 = vmatpush1.msra.mxu0 0.0
      %2966 = vmatprep.subr.mxu0 0.0
      %2967 = vmatpush1.msra.mxu0 0.0
      %2968 = vmatprep.subr.mxu0 0.0
      %2969 = vmatpush1.msra.mxu0 0.0
      %2970 = vmatprep.subr.mxu0 0.0
      %2971 = vmatpush1.msra.mxu0 0.0
      %2972 = vmatprep.subr.mxu0 0.0
      %2973 = vmatpush1.msra.mxu0 0.0
      %2974 = vmatprep.subr.mxu0 0.0
      %2975 = vmatpush1.msra.mxu0 0.0
      %2976 = vmatprep.subr.mxu0 0.0
      %2977 = vmatpush1.msra.mxu0 0.0
      %2978 = vmatprep.subr.mxu0 0.0
      %2979 = vmatpush1.msra.mxu0 0.0
      %2980 = vmatprep.mubr.f32.mxu0 %v2914
      %2981 = vmatmul.mubr.f32.gmra.mrb[0].mxu0 %v2854
      %v2982 = vpop.f32.mrb[0].mxu0
      %v2983 = vadd.f32 0.0, %v2982
      %v2984 = vpop.f32.mrb[0].mxu0
      %v2985 = vadd.f32 0.0, %v2984
      %2986 = vdwg.mxu0
      %2987 = vmatprep.subr.mxu0 0.0
      %2988 = vmatpush1.msra.mxu0 %v2858
      %2989 = vmatprep.subr.mxu0 0.0
      %2990 = vmatpush1.msra.mxu0 %v2861
      %2991 = vmatprep.subr.mxu0 0.0
      %2992 = vmatpush1.msra.mxu0 %v2864
      %2993 = vmatprep.subr.mxu0 0.0
      %2994 = vmatpush1.msra.mxu0 %v2867
      %2995 = vmatprep.subr.mxu0 0.0
      %2996 = vmatpush1.msra.mxu0 %v2870
      %2997 = vmatprep.subr.mxu0 0.0
      %2998 = vmatpush1.msra.mxu0 %v2873
      %2999 = vmatprep.subr.mxu0 0.0
      %3000 = vmatpush1.msra.mxu0 %v2876
      %3001 = vmatprep.subr.mxu0 0.0
      %3002 = vmatpush1.msra.mxu0 %v2879
      %3003 = vmatprep.subr.mxu0 0.0
      %3004 = vmatpush1.msra.mxu0 %v2882
      %3005 = vmatprep.subr.mxu0 0.0
      %3006 = vmatpush1.msra.mxu0 %v2885
      %3007 = vmatprep.subr.mxu0 0.0
      %3008 = vmatpush1.msra.mxu0 %v2888
      %3009 = vmatprep.subr.mxu0 0.0
      %3010 = vmatpush1.msra.mxu0 %v2891
      %3011 = vmatprep.subr.mxu0 0.0
      %3012 = vmatpush1.msra.mxu0 %v2894
      %3013 = vmatprep.subr.mxu0 0.0
      %3014 = vmatpush1.msra.mxu0 %v2897
      %3015 = vmatprep.subr.mxu0 0.0
      %3016 = vmatpush1.msra.mxu0 %v2900
      %3017 = vmatprep.subr.mxu0 0.0
      %3018 = vmatpush1.msra.mxu0 %v2903
      %3019 = vmatprep.subr.mxu0 0.0
      %3020 = vmatpush1.msra.mxu0 %v2906
      %3021 = vmatprep.subr.mxu0 0.0
      %3022 = vmatpush1.msra.mxu0 %v2909
      %3023 = vmatprep.subr.mxu0 0.0
      %3024 = vmatpush1.msra.mxu0 %v2912
      %3025 = vmatprep.subr.mxu0 0.0
      %3026 = vmatpush1.msra.mxu0 0.0
      %3027 = vmatprep.subr.mxu0 0.0
      %3028 = vmatpush1.msra.mxu0 0.0
      %3029 = vmatprep.subr.mxu0 0.0
      %3030 = vmatpush1.msra.mxu0 0.0
      %3031 = vmatprep.subr.mxu0 0.0
      %3032 = vmatpush1.msra.mxu0 0.0
      %3033 = vmatprep.subr.mxu0 0.0
      %3034 = vmatpush1.msra.mxu0 0.0
      %3035 = vmatprep.subr.mxu0 0.0
      %3036 = vmatpush1.msra.mxu0 0.0
      %3037 = vmatprep.subr.mxu0 0.0
      %3038 = vmatpush1.msra.mxu0 0.0
      %3039 = vmatprep.subr.mxu0 0.0
      %3040 = vmatpush1.msra.mxu0 0.0
      %3041 = vmatprep.subr.mxu0 0.0
      %3042 = vmatpush1.msra.mxu0 0.0
      %3043 = vmatprep.subr.mxu0 0.0
      %3044 = vmatpush1.msra.mxu0 0.0
      %3045 = vmatprep.subr.mxu0 0.0
      %3046 = vmatpush1.msra.mxu0 0.0
      %3047 = vmatprep.subr.mxu0 0.0
      %3048 = vmatpush1.msra.mxu0 0.0
      %3049 = vmatprep.subr.mxu0 0.0
      %3050 = vmatpush1.msra.mxu0 0.0
      %3051 = vmatprep.mubr.f32.mxu0 %v2914
      %3052 = vmatmul.mubr.f32.gmra.mrb[0].mxu0 %v2854
      %v3053 = vpop.f32.mrb[0].mxu0
      %v3054 = vadd.f32 0.0, %v3053
      %v3055 = vpop.f32.mrb[0].mxu0
      %3056 = vdwg.mxu0
      %v3057 = vmax.f32 %v2983, 0.0
      %v3058 = vmax.f32 %v2985, 0.0
      %v3059 = vmax.f32 %v3054, 0.0
      %v3060 = vsel %vm564, %v3057, 0.0
      %v3061 = vsel %vm565, %v3058, 0.0
      %v3062 = vsel %vm566, %v3059, 0.0
      %3063 = vrot.lane.b32.xlu0 %v3060, 19
      %v3064 = vpop.permute.xlu0 %3063
      %3065 = vrot.lane.b32.xlu0 %v3061, 19
      %v3066 = vpop.permute.xlu0 %3065
      %3067 = vrot.lane.b32.xlu0 %v3062, 19
      %v3068 = vpop.permute.xlu0 %3067
      %v3069 = vsel %vm193, %v3066, %v3068
      %v3070 = vsel %vm193, %v3064, %v3066
      %v3071 = vsel %vm193, %v3068, %v3064
      %v3075 = vrot.slane %v3071, 7
      %v3076 = vrot.slane %v3070, 7
      %v3077 = vrot.slane %v3069, 7
      %3081 = vst [vmem:[#allocation2] sm:$0x1e] %v3075
      %3082 = vst [vmem:[#allocation2 + $0x8] sm:$0x1e] %v3076
      %3083 = vst [vmem:[#allocation2 + $0x10] sm:$0x1e] %v3077
      %3084 = vrot.lane.b32.xlu0 %v3060, 18
      %v3085 = vpop.permute.xlu0 %3084
      %3086 = vrot.lane.b32.xlu0 %v3061, 18
      %v3087 = vpop.permute.xlu0 %3086
      %3088 = vrot.lane.b32.xlu0 %v3062, 18
      %v3089 = vpop.permute.xlu0 %3088
      %v3090 = vsel %vm215, %v3087, %v3089
      %v3091 = vsel %vm215, %v3085, %v3087
      %v3092 = vsel %vm215, %v3089, %v3085
      %v3096 = vrot.slane %v3092, 3
      %v3097 = vrot.slane %v3091, 3
      %v3098 = vrot.slane %v3090, 3
      %3102 = vst [vmem:[#allocation2] sm:$0xe0] %v3096
      %3103 = vst [vmem:[#allocation2 + $0x8] sm:$0xe0] %v3097
      %3104 = vst [vmem:[#allocation2 + $0x10] sm:$0xe0] %v3098
      %3105 = vst [vmem:[#allocation2 + $0x18] sm:$0x1] %v3096
      %3106 = vst [vmem:[#allocation2 + $0x20] sm:$0x1] %v3097
      %3107 = vst [vmem:[#allocation2 + $0x28] sm:$0x1] %v3098
      %3108 = vrot.lane.b32.xlu0 %v3060, 17
      %v3109 = vpop.permute.xlu0 %3108
      %3110 = vrot.lane.b32.xlu0 %v3061, 17
      %v3111 = vpop.permute.xlu0 %3110
      %3112 = vrot.lane.b32.xlu0 %v3062, 17
      %v3113 = vpop.permute.xlu0 %3112
      %v3114 = vsel %vm240, %v3111, %v3113
      %v3115 = vsel %vm240, %v3109, %v3111
      %v3116 = vsel %vm240, %v3113, %v3109
      %v3120 = vrot.slane %v3116, 7
      %v3121 = vrot.slane %v3115, 7
      %v3122 = vrot.slane %v3114, 7
      %3126 = vst [vmem:[#allocation2 + $0x18] sm:$0x1e] %v3120
      %3127 = vst [vmem:[#allocation2 + $0x20] sm:$0x1e] %v3121
      %3128 = vst [vmem:[#allocation2 + $0x28] sm:$0x1e] %v3122
      %3129 = vrot.lane.b32.xlu0 %v3060, 1
      %v3130 = vpop.permute.xlu0 %3129
      %3131 = vrot.lane.b32.xlu0 %v3061, 1
      %v3132 = vpop.permute.xlu0 %3131
      %3133 = vrot.lane.b32.xlu0 %v3062, 1
      %v3134 = vpop.permute.xlu0 %3133
      %v3135 = vsel %vm262, %v3132, %v3134
      %v3136 = vsel %vm262, %v3130, %v3132
      %v3137 = vsel %vm262, %v3134, %v3130
      %v3141 = vrot.slane %v3137, 3
      %v3142 = vrot.slane %v3136, 3
      %v3143 = vrot.slane %v3135, 3
      %3147 = vst [vmem:[#allocation2 + $0x18] sm:$0xe0] %v3141
      %3148 = vst [vmem:[#allocation2 + $0x20] sm:$0xe0] %v3142
      %3149 = vst [vmem:[#allocation2 + $0x28] sm:$0xe0] %v3143
      %3150 = vst [vmem:[#allocation2 + $0x30] sm:$0x1] %v3141
      %3151 = vst [vmem:[#allocation2 + $0x38] sm:$0x1] %v3142
      %3152 = vst [vmem:[#allocation2 + $0x40] sm:$0x1] %v3143
      %v3156 = vrot.slane %v3060, 7
      %v3157 = vrot.slane %v3061, 7
      %v3158 = vrot.slane %v3062, 7
      %3162 = vst [vmem:[#allocation2 + $0x30] sm:$0x1e] %v3156
      %3163 = vst [vmem:[#allocation2 + $0x38] sm:$0x1e] %v3157
      %3164 = vst [vmem:[#allocation2 + $0x40] sm:$0x1e] %v3158
      %3165 = vrot.lane.b32.xlu0 %v3060, 127
      %v3166 = vpop.permute.xlu0 %3165
      %3167 = vrot.lane.b32.xlu0 %v3061, 127
      %v3168 = vpop.permute.xlu0 %3167
      %3169 = vrot.lane.b32.xlu0 %v3062, 127
      %v3170 = vpop.permute.xlu0 %3169
      %v3171 = vsel %vm296, %v3168, %v3170
      %v3172 = vsel %vm296, %v3166, %v3168
      %v3173 = vsel %vm296, %v3170, %v3166
      %v3177 = vrot.slane %v3172, 3
      %v3178 = vrot.slane %v3171, 3
      %v3179 = vrot.slane %v3173, 3
      %3183 = vst [vmem:[#allocation2 + $0x30] sm:$0xe0] %v3177
      %3184 = vst [vmem:[#allocation2 + $0x38] sm:$0xe0] %v3178
      %3185 = vst [vmem:[#allocation2 + $0x40] sm:$0xe0] %v3179
      %3186 = vst [vmem:[#allocation2 + $0x48] sm:$0x1] %v3177
      %3187 = vst [vmem:[#allocation2 + $0x50] sm:$0x1] %v3178
      %3188 = vst [vmem:[#allocation2 + $0x58] sm:$0x1] %v3179
      %3189 = vrot.lane.b32.xlu0 %v3060, 111
      %v3190 = vpop.permute.xlu0 %3189
      %3191 = vrot.lane.b32.xlu0 %v3061, 111
      %v3192 = vpop.permute.xlu0 %3191
      %3193 = vrot.lane.b32.xlu0 %v3062, 111
      %v3194 = vpop.permute.xlu0 %3193
      %v3195 = vsel %vm321, %v3192, %v3194
      %v3196 = vsel %vm321, %v3190, %v3192
      %v3197 = vsel %vm321, %v3194, %v3190
      %v3201 = vrot.slane %v3196, 7
      %v3202 = vrot.slane %v3195, 7
      %v3203 = vrot.slane %v3197, 7
      %3207 = vst [vmem:[#allocation2 + $0x48] sm:$0x1e] %v3201
      %3208 = vst [vmem:[#allocation2 + $0x50] sm:$0x1e] %v3202
      %3209 = vst [vmem:[#allocation2 + $0x58] sm:$0x1e] %v3203
      %3210 = vrot.lane.b32.xlu0 %v3060, 110
      %v3211 = vpop.permute.xlu0 %3210
      %3212 = vrot.lane.b32.xlu0 %v3061, 110
      %v3213 = vpop.permute.xlu0 %3212
      %3214 = vrot.lane.b32.xlu0 %v3062, 110
      %v3215 = vpop.permute.xlu0 %3214
      %v3216 = vsel %vm343, %v3213, %v3215
      %v3217 = vsel %vm343, %v3211, %v3213
      %v3218 = vsel %vm343, %v3215, %v3211
      %v3222 = vrot.slane %v3217, 3
      %v3223 = vrot.slane %v3216, 3
      %v3224 = vrot.slane %v3218, 3
      %3228 = vst [vmem:[#allocation2 + $0x48] sm:$0xe0] %v3222
      %3229 = vst [vmem:[#allocation2 + $0x50] sm:$0xe0] %v3223
      %3230 = vst [vmem:[#allocation2 + $0x58] sm:$0xe0] %v3224
      %3231 = vst [vmem:[#allocation2 + $0x60] sm:$0x1] %v3222
      %3232 = vst [vmem:[#allocation2 + $0x68] sm:$0x1] %v3223
      %3233 = vst [vmem:[#allocation2 + $0x70] sm:$0x1] %v3224
      %3234 = vrot.lane.b32.xlu0 %v3060, 109
      %v3235 = vpop.permute.xlu0 %3234
      %3236 = vrot.lane.b32.xlu0 %v3061, 109
      %v3237 = vpop.permute.xlu0 %3236
      %3238 = vrot.lane.b32.xlu0 %v3062, 109
      %v3239 = vpop.permute.xlu0 %3238
      %v3240 = vsel %vm368, %v3237, %v3239
      %v3241 = vsel %vm368, %v3235, %v3237
      %v3242 = vsel %vm368, %v3239, %v3235
      %v3246 = vrot.slane %v3241, 7
      %v3247 = vrot.slane %v3240, 7
      %v3248 = vrot.slane %v3242, 7
      %3252 = vst [vmem:[#allocation2 + $0x60] sm:$0x1e] %v3246
      %3253 = vst [vmem:[#allocation2 + $0x68] sm:$0x1e] %v3247
      %3254 = vst [vmem:[#allocation2 + $0x70] sm:$0x1e] %v3248
      %3255 = vst [vmem:[#allocation2 + $0x60] sm:$0xe0] 0.0
      %3256 = vst [vmem:[#allocation2 + $0x68] sm:$0xe0] 0.0
      %3257 = vst [vmem:[#allocation2 + $0x70] sm:$0xe0] 0.0
      %v3258 = vld [vmem:[%s1 + $0x48] sm:$0xff]
      %v3259 = vld [vmem:[#allocation2] sm:$0xff]
      %v3260 = vld [vmem:[#allocation2 + $0x8] sm:$0xff]
      %v3261 = vld [vmem:[#allocation2 + $0x10] sm:$0xff]
      %v3262 = vld [vmem:[#allocation2 + $0x18] sm:$0xff]
      %v3263 = vld [vmem:[#allocation2 + $0x20] sm:$0xff]
      %v3264 = vld [vmem:[#allocation2 + $0x28] sm:$0xff]
      %v3265 = vld [vmem:[#allocation2 + $0x30] sm:$0xff]
      %v3266 = vld [vmem:[#allocation2 + $0x38] sm:$0xff]
      %v3267 = vld [vmem:[#allocation2 + $0x40] sm:$0xff]
      %v3268 = vld [vmem:[#allocation2 + $0x48] sm:$0xff]
      %v3269 = vld [vmem:[#allocation2 + $0x50] sm:$0xff]
      %v3270 = vld [vmem:[#allocation2 + $0x58] sm:$0xff]
      %v3271 = vld [vmem:[#allocation2 + $0x60] sm:$0xff]
      %v3272 = vld [vmem:[#allocation2 + $0x68] sm:$0xff]
      %v3273 = vld [vmem:[#allocation2 + $0x70] sm:$0xff]
      %v3275 = vsel %vm403, %v3258, 0
      %3277 = vmatprep.subr.mxu0 %v3260
      %3278 = vmatpush1.msra.mxu0 %v3259
      %3279 = vmatprep.subr.mxu0 %v3263
      %3280 = vmatpush1.msra.mxu0 %v3262
      %3281 = vmatprep.subr.mxu0 %v3266
      %3282 = vmatpush1.msra.mxu0 %v3265
      %3283 = vmatprep.subr.mxu0 %v3269
      %3284 = vmatpush1.msra.mxu0 %v3268
      %3285 = vmatprep.subr.mxu0 %v3272
      %3286 = vmatpush1.msra.mxu0 %v3271
      %3287 = vmatprep.subr.mxu0 0.0
      %3288 = vmatpush1.msra.mxu0 0.0
      %3289 = vmatprep.subr.mxu0 0.0
      %3290 = vmatpush1.msra.mxu0 0.0
      %3291 = vmatprep.subr.mxu0 0.0
      %3292 = vmatpush1.msra.mxu0 0.0
      %3293 = vmatprep.subr.mxu0 0.0
      %3294 = vmatpush1.msra.mxu0 0.0
      %3295 = vmatprep.subr.mxu0 0.0
      %3296 = vmatpush1.msra.mxu0 0.0
      %3297 = vmatprep.subr.mxu0 0.0
      %3298 = vmatpush1.msra.mxu0 0.0
      %3299 = vmatprep.subr.mxu0 0.0
      %3300 = vmatpush1.msra.mxu0 0.0
      %3301 = vmatprep.subr.mxu0 0.0
      %3302 = vmatpush1.msra.mxu0 0.0
      %3303 = vmatprep.subr.mxu0 0.0
      %3304 = vmatpush1.msra.mxu0 0.0
      %3305 = vmatprep.subr.mxu0 0.0
      %3306 = vmatpush1.msra.mxu0 0.0
      %3307 = vmatprep.subr.mxu0 0.0
      %3308 = vmatpush1.msra.mxu0 0.0
      %3309 = vmatprep.subr.mxu0 0.0
      %3310 = vmatpush1.msra.mxu0 0.0
      %3311 = vmatprep.subr.mxu0 0.0
      %3312 = vmatpush1.msra.mxu0 0.0
      %3313 = vmatprep.subr.mxu0 0.0
      %3314 = vmatpush1.msra.mxu0 0.0
      %3315 = vmatprep.subr.mxu0 0.0
      %3316 = vmatpush1.msra.mxu0 0.0
      %3317 = vmatprep.subr.mxu0 0.0
      %3318 = vmatpush1.msra.mxu0 0.0
      %3319 = vmatprep.subr.mxu0 0.0
      %3320 = vmatpush1.msra.mxu0 0.0
      %3321 = vmatprep.subr.mxu0 0.0
      %3322 = vmatpush1.msra.mxu0 0.0
      %3323 = vmatprep.subr.mxu0 0.0
      %3324 = vmatpush1.msra.mxu0 0.0
      %3325 = vmatprep.subr.mxu0 0.0
      %3326 = vmatpush1.msra.mxu0 0.0
      %3327 = vmatprep.subr.mxu0 0.0
      %3328 = vmatpush1.msra.mxu0 0.0
      %3329 = vmatprep.subr.mxu0 0.0
      %3330 = vmatpush1.msra.mxu0 0.0
      %3331 = vmatprep.subr.mxu0 0.0
      %3332 = vmatpush1.msra.mxu0 0.0
      %3333 = vmatprep.subr.mxu0 0.0
      %3334 = vmatpush1.msra.mxu0 0.0
      %3335 = vmatprep.subr.mxu0 0.0
      %3336 = vmatpush1.msra.mxu0 0.0
      %3337 = vmatprep.subr.mxu0 0.0
      %3338 = vmatpush1.msra.mxu0 0.0
      %3339 = vmatprep.subr.mxu0 0.0
      %3340 = vmatpush1.msra.mxu0 0.0
      %3341 = vmatprep.mubr.f32.mxu0 0.0
      %3342 = vmatmul.mubr.f32.gmra.mrb[0].mxu0 %v3275
      %v3343 = vpop.f32.mrb[0].mxu0
      %v3344 = vadd.f32 0.0, %v3343
      %v3345 = vpop.f32.mrb[0].mxu0
      %v3346 = vadd.f32 0.0, %v3345
      %3347 = vdwg.mxu0
      %3348 = vmatprep.subr.mxu0 0.0
      %3349 = vmatpush1.msra.mxu0 %v3261
      %3350 = vmatprep.subr.mxu0 0.0
      %3351 = vmatpush1.msra.mxu0 %v3264
      %3352 = vmatprep.subr.mxu0 0.0
      %3353 = vmatpush1.msra.mxu0 %v3267
      %3354 = vmatprep.subr.mxu0 0.0
      %3355 = vmatpush1.msra.mxu0 %v3270
      %3356 = vmatprep.subr.mxu0 0.0
      %3357 = vmatpush1.msra.mxu0 %v3273
      %3358 = vmatprep.subr.mxu0 0.0
      %3359 = vmatpush1.msra.mxu0 0.0
      %3360 = vmatprep.subr.mxu0 0.0
      %3361 = vmatpush1.msra.mxu0 0.0
      %3362 = vmatprep.subr.mxu0 0.0
      %3363 = vmatpush1.msra.mxu0 0.0
      %3364 = vmatprep.subr.mxu0 0.0
      %3365 = vmatpush1.msra.mxu0 0.0
      %3366 = vmatprep.subr.mxu0 0.0
      %3367 = vmatpush1.msra.mxu0 0.0
      %3368 = vmatprep.subr.mxu0 0.0
      %3369 = vmatpush1.msra.mxu0 0.0
      %3370 = vmatprep.subr.mxu0 0.0
      %3371 = vmatpush1.msra.mxu0 0.0
      %3372 = vmatprep.subr.mxu0 0.0
      %3373 = vmatpush1.msra.mxu0 0.0
      %3374 = vmatprep.subr.mxu0 0.0
      %3375 = vmatpush1.msra.mxu0 0.0
      %3376 = vmatprep.subr.mxu0 0.0
      %3377 = vmatpush1.msra.mxu0 0.0
      %3378 = vmatprep.subr.mxu0 0.0
      %3379 = vmatpush1.msra.mxu0 0.0
      %3380 = vmatprep.subr.mxu0 0.0
      %3381 = vmatpush1.msra.mxu0 0.0
      %3382 = vmatprep.subr.mxu0 0.0
      %3383 = vmatpush1.msra.mxu0 0.0
      %3384 = vmatprep.subr.mxu0 0.0
      %3385 = vmatpush1.msra.mxu0 0.0
      %3386 = vmatprep.subr.mxu0 0.0
      %3387 = vmatpush1.msra.mxu0 0.0
      %3388 = vmatprep.subr.mxu0 0.0
      %3389 = vmatpush1.msra.mxu0 0.0
      %3390 = vmatprep.subr.mxu0 0.0
      %3391 = vmatpush1.msra.mxu0 0.0
      %3392 = vmatprep.subr.mxu0 0.0
      %3393 = vmatpush1.msra.mxu0 0.0
      %3394 = vmatprep.subr.mxu0 0.0
      %3395 = vmatpush1.msra.mxu0 0.0
      %3396 = vmatprep.subr.mxu0 0.0
      %3397 = vmatpush1.msra.mxu0 0.0
      %3398 = vmatprep.subr.mxu0 0.0
      %3399 = vmatpush1.msra.mxu0 0.0
      %3400 = vmatprep.subr.mxu0 0.0
      %3401 = vmatpush1.msra.mxu0 0.0
      %3402 = vmatprep.subr.mxu0 0.0
      %3403 = vmatpush1.msra.mxu0 0.0
      %3404 = vmatprep.subr.mxu0 0.0
      %3405 = vmatpush1.msra.mxu0 0.0
      %3406 = vmatprep.subr.mxu0 0.0
      %3407 = vmatpush1.msra.mxu0 0.0
      %3408 = vmatprep.subr.mxu0 0.0
      %3409 = vmatpush1.msra.mxu0 0.0
      %3410 = vmatprep.subr.mxu0 0.0
      %3411 = vmatpush1.msra.mxu0 0.0
      %3412 = vmatprep.mubr.f32.mxu0 0.0
      %3413 = vmatmul.mubr.f32.gmra.mrb[0].mxu0 %v3275
      %v3414 = vpop.f32.mrb[0].mxu0
      %v3415 = vadd.f32 0.0, %v3414
      %v3416 = vpop.f32.mrb[0].mxu0
      %3417 = vdwg.mxu0
      %v3418 = vmax.f32 %v3344, 0.0
      %v3419 = vmax.f32 %v3346, 0.0
      %v3420 = vmax.f32 %v3415, 0.0
      %v3421 = vsel %vm564, %v3418, 0.0
      %v3422 = vsel %vm565, %v3419, 0.0
      %v3423 = vsel %vm566, %v3420, 0.0
      %v3424 = vadd.f32 %v567, %v3421
      %v3425 = vadd.f32 %v568, %v3422
      %v3426 = vadd.f32 %v569, %v3423
      %3427 = vrot.lane.b32.xlu0 %v3421, 19
      %v3428 = vpop.permute.xlu0 %3427
      %3429 = vrot.lane.b32.xlu0 %v3422, 19
      %v3430 = vpop.permute.xlu0 %3429
      %3431 = vrot.lane.b32.xlu0 %v3423, 19
      %v3432 = vpop.permute.xlu0 %3431
      %v3433 = vsel %vm193, %v3430, %v3432
      %v3434 = vsel %vm193, %v3428, %v3430
      %v3435 = vsel %vm193, %v3432, %v3428
      %v3439 = vrot.slane %v3435, 7
      %v3440 = vrot.slane %v3434, 7
      %v3441 = vrot.slane %v3433, 7
      %3445 = vst [vmem:[#allocation2] sm:$0xfe] %v3439
      %3446 = vst [vmem:[#allocation2 + $0x8] sm:$0xfe] %v3440
      %3447 = vst [vmem:[#allocation2 + $0x10] sm:$0xfe] %v3441
      %3448 = vst [vmem:[#allocation2 + $0x18] sm:$0x1] %v3439
      %3449 = vst [vmem:[#allocation2 + $0x20] sm:$0x1] %v3440
      %3450 = vst [vmem:[#allocation2 + $0x28] sm:$0x1] %v3441
      %3451 = vrot.lane.b32.xlu0 %v3421, 18
      %v3452 = vpop.permute.xlu0 %3451
      %3453 = vrot.lane.b32.xlu0 %v3422, 18
      %v3454 = vpop.permute.xlu0 %3453
      %3455 = vrot.lane.b32.xlu0 %v3423, 18
      %v3456 = vpop.permute.xlu0 %3455
      %v3457 = vsel %vm215, %v3454, %v3456
      %v3458 = vsel %vm215, %v3452, %v3454
      %v3459 = vsel %vm215, %v3456, %v3452
      %v3463 = vrot.slane %v3459, 7
      %v3464 = vrot.slane %v3458, 7
      %v3465 = vrot.slane %v3457, 7
      %3469 = vst [vmem:[#allocation2 + $0x18] sm:$0xfe] %v3463
      %3470 = vst [vmem:[#allocation2 + $0x20] sm:$0xfe] %v3464
      %3471 = vst [vmem:[#allocation2 + $0x28] sm:$0xfe] %v3465
      %3472 = vst [vmem:[#allocation2 + $0x30] sm:$0x1] %v3463
      %3473 = vst [vmem:[#allocation2 + $0x38] sm:$0x1] %v3464
      %3474 = vst [vmem:[#allocation2 + $0x40] sm:$0x1] %v3465
      %3475 = vrot.lane.b32.xlu0 %v3421, 17
      %v3476 = vpop.permute.xlu0 %3475
      %3477 = vrot.lane.b32.xlu0 %v3422, 17
      %v3478 = vpop.permute.xlu0 %3477
      %3479 = vrot.lane.b32.xlu0 %v3423, 17
      %v3480 = vpop.permute.xlu0 %3479
      %v3481 = vsel %vm240, %v3478, %v3480
      %v3482 = vsel %vm240, %v3476, %v3478
      %v3483 = vsel %vm240, %v3480, %v3476
      %v3487 = vrot.slane %v3483, 7
      %v3488 = vrot.slane %v3482, 7
      %v3489 = vrot.slane %v3481, 7
      %3493 = vst [vmem:[#allocation2 + $0x30] sm:$0xfe] %v3487
      %3494 = vst [vmem:[#allocation2 + $0x38] sm:$0xfe] %v3488
      %3495 = vst [vmem:[#allocation2 + $0x40] sm:$0xfe] %v3489
      %3496 = vst [vmem:[#allocation2 + $0x48] sm:$0x1] %v3487
      %3497 = vst [vmem:[#allocation2 + $0x50] sm:$0x1] %v3488
      %3498 = vst [vmem:[#allocation2 + $0x58] sm:$0x1] %v3489
      %3499 = vrot.lane.b32.xlu0 %v3421, 1
      %v3500 = vpop.permute.xlu0 %3499
      %3501 = vrot.lane.b32.xlu0 %v3422, 1
      %v3502 = vpop.permute.xlu0 %3501
      %3503 = vrot.lane.b32.xlu0 %v3423, 1
      %v3504 = vpop.permute.xlu0 %3503
      %v3505 = vsel %vm262, %v3502, %v3504
      %v3506 = vsel %vm262, %v3500, %v3502
      %v3507 = vsel %vm262, %v3504, %v3500
      %v3511 = vrot.slane %v3507, 7
      %v3512 = vrot.slane %v3506, 7
      %v3513 = vrot.slane %v3505, 7
      %3517 = vst [vmem:[#allocation2 + $0x48] sm:$0xfe] %v3511
      %3518 = vst [vmem:[#allocation2 + $0x50] sm:$0xfe] %v3512
      %3519 = vst [vmem:[#allocation2 + $0x58] sm:$0xfe] %v3513
      %3520 = vst [vmem:[#allocation2 + $0x60] sm:$0x1] %v3511
      %3521 = vst [vmem:[#allocation2 + $0x68] sm:$0x1] %v3512
      %3522 = vst [vmem:[#allocation2 + $0x70] sm:$0x1] %v3513
      %v3526 = vrot.slane %v3421, 7
      %v3527 = vrot.slane %v3422, 7
      %v3528 = vrot.slane %v3423, 7
      %3532 = vst [vmem:[#allocation2 + $0x60] sm:$0xfe] %v3526
      %3533 = vst [vmem:[#allocation2 + $0x68] sm:$0xfe] %v3527
      %3534 = vst [vmem:[#allocation2 + $0x70] sm:$0xfe] %v3528
      %3535 = vst [vmem:[#allocation2 + $0x78] sm:$0x1] %v3526
      %3536 = vst [vmem:[#allocation2 + $0x80] sm:$0x1] %v3527
      %3537 = vst [vmem:[#allocation2 + $0x88] sm:$0x1] %v3528
      %3538 = vrot.lane.b32.xlu0 %v3421, 127
      %v3539 = vpop.permute.xlu0 %3538
      %3540 = vrot.lane.b32.xlu0 %v3422, 127
      %v3541 = vpop.permute.xlu0 %3540
      %3542 = vrot.lane.b32.xlu0 %v3423, 127
      %v3543 = vpop.permute.xlu0 %3542
      %v3544 = vsel %vm296, %v3541, %v3543
      %v3545 = vsel %vm296, %v3539, %v3541
      %v3546 = vsel %vm296, %v3543, %v3539
      %v3550 = vrot.slane %v3545, 7
      %v3551 = vrot.slane %v3544, 7
      %v3552 = vrot.slane %v3546, 7
      %3556 = vst [vmem:[#allocation2 + $0x78] sm:$0xfe] %v3550
      %3557 = vst [vmem:[#allocation2 + $0x80] sm:$0xfe] %v3551
      %3558 = vst [vmem:[#allocation2 + $0x88] sm:$0xfe] %v3552
      %3559 = vst [vmem:[#allocation2 + $0x90] sm:$0x1] %v3550
      %3560 = vst [vmem:[#allocation2 + $0x98] sm:$0x1] %v3551
      %3561 = vst [vmem:[#allocation2 + $0xa0] sm:$0x1] %v3552
      %3562 = vrot.lane.b32.xlu0 %v3421, 111
      %v3563 = vpop.permute.xlu0 %3562
      %3564 = vrot.lane.b32.xlu0 %v3422, 111
      %v3565 = vpop.permute.xlu0 %3564
      %3566 = vrot.lane.b32.xlu0 %v3423, 111
      %v3567 = vpop.permute.xlu0 %3566
      %v3568 = vsel %vm321, %v3565, %v3567
      %v3569 = vsel %vm321, %v3563, %v3565
      %v3570 = vsel %vm321, %v3567, %v3563
      %v3574 = vrot.slane %v3569, 7
      %v3575 = vrot.slane %v3568, 7
      %v3576 = vrot.slane %v3570, 7
      %3580 = vst [vmem:[#allocation2 + $0x90] sm:$0xfe] %v3574
      %3581 = vst [vmem:[#allocation2 + $0x98] sm:$0xfe] %v3575
      %3582 = vst [vmem:[#allocation2 + $0xa0] sm:$0xfe] %v3576
      %3583 = vst [vmem:[#allocation2 + $0xa8] sm:$0x1] %v3574
      %3584 = vst [vmem:[#allocation2 + $0xb0] sm:$0x1] %v3575
      %3585 = vst [vmem:[#allocation2 + $0xb8] sm:$0x1] %v3576
      %3586 = vrot.lane.b32.xlu0 %v3421, 110
      %v3587 = vpop.permute.xlu0 %3586
      %3588 = vrot.lane.b32.xlu0 %v3422, 110
      %v3589 = vpop.permute.xlu0 %3588
      %3590 = vrot.lane.b32.xlu0 %v3423, 110
      %v3591 = vpop.permute.xlu0 %3590
      %v3592 = vsel %vm343, %v3589, %v3591
      %v3593 = vsel %vm343, %v3587, %v3589
      %v3594 = vsel %vm343, %v3591, %v3587
      %v3598 = vrot.slane %v3593, 7
      %v3599 = vrot.slane %v3592, 7
      %v3600 = vrot.slane %v3594, 7
      %3604 = vst [vmem:[#allocation2 + $0xa8] sm:$0xfe] %v3598
      %3605 = vst [vmem:[#allocation2 + $0xb0] sm:$0xfe] %v3599
      %3606 = vst [vmem:[#allocation2 + $0xb8] sm:$0xfe] %v3600
      %3607 = vst [vmem:[#allocation2 + $0xc0] sm:$0x1] %v3598
      %3608 = vst [vmem:[#allocation2 + $0xc8] sm:$0x1] %v3599
      %3609 = vst [vmem:[#allocation2 + $0xd0] sm:$0x1] %v3600
      %3610 = vrot.lane.b32.xlu0 %v3421, 109
      %v3611 = vpop.permute.xlu0 %3610
      %3612 = vrot.lane.b32.xlu0 %v3422, 109
      %v3613 = vpop.permute.xlu0 %3612
      %3614 = vrot.lane.b32.xlu0 %v3423, 109
      %v3615 = vpop.permute.xlu0 %3614
      %v3616 = vsel %vm368, %v3613, %v3615
      %v3617 = vsel %vm368, %v3611, %v3613
      %v3618 = vsel %vm368, %v3615, %v3611
      %v3622 = vrot.slane %v3617, 7
      %v3623 = vrot.slane %v3616, 7
      %v3624 = vrot.slane %v3618, 7
      %3628 = vst [vmem:[#allocation2 + $0xc0] sm:$0xfe] %v3622
      %3629 = vst [vmem:[#allocation2 + $0xc8] sm:$0xfe] %v3623
      %3630 = vst [vmem:[#allocation2 + $0xd0] sm:$0xfe] %v3624
      %3631 = vst [vmem:[#allocation2 + $0xd8] sm:$0x1] %v3622
      %3632 = vst [vmem:[#allocation2 + $0xe0] sm:$0x1] %v3623
      %3633 = vst [vmem:[#allocation2 + $0xe8] sm:$0x1] %v3624
      %3634 = vst [vmem:[#allocation2 + $0xd8] sm:$0xfe] %v2602
      %3635 = vst [vmem:[#allocation2 + $0xe0] sm:$0xfe] %v2603
      %3636 = vst [vmem:[#allocation2 + $0xe8] sm:$0xfe] %v2604
      %3637 = vst [vmem:[#allocation2 + $0xf0] sm:$0x1] %v2602
      %3638 = vst [vmem:[#allocation2 + $0xf8] sm:$0x1] %v2603
      %3639 = vst [vmem:[#allocation2 + $0x100] sm:$0x1] %v2604
      %3640 = vst [vmem:[#allocation2 + $0xf0] sm:$0xfe] %v2626
      %3641 = vst [vmem:[#allocation2 + $0xf8] sm:$0xfe] %v2627
      %3642 = vst [vmem:[#allocation2 + $0x100] sm:$0xfe] %v2628
      %3643 = vst [vmem:[#allocation2 + $0x108] sm:$0x1] %v2626
      %3644 = vst [vmem:[#allocation2 + $0x110] sm:$0x1] %v2627
      %3645 = vst [vmem:[#allocation2 + $0x118] sm:$0x1] %v2628
      %3646 = vst [vmem:[#allocation2 + $0x108] sm:$0xfe] %v2650
      %3647 = vst [vmem:[#allocation2 + $0x110] sm:$0xfe] %v2651
      %3648 = vst [vmem:[#allocation2 + $0x118] sm:$0xfe] %v2652
      %3649 = vst [vmem:[#allocation2 + $0x120] sm:$0x1] %v2650
      %3650 = vst [vmem:[#allocation2 + $0x128] sm:$0x1] %v2651
      %3651 = vst [vmem:[#allocation2 + $0x130] sm:$0x1] %v2652
      %3652 = vst [vmem:[#allocation2 + $0x120] sm:$0xfe] %v2674
      %3653 = vst [vmem:[#allocation2 + $0x128] sm:$0xfe] %v2675
      %3654 = vst [vmem:[#allocation2 + $0x130] sm:$0xfe] %v2676
      %3655 = vst [vmem:[#allocation2 + $0x138] sm:$0x1] %v2674
      %3656 = vst [vmem:[#allocation2 + $0x140] sm:$0x1] %v2675
      %3657 = vst [vmem:[#allocation2 + $0x148] sm:$0x1] %v2676
      %3658 = vst [vmem:[#allocation2 + $0x138] sm:$0xfe] %v2689
      %3659 = vst [vmem:[#allocation2 + $0x140] sm:$0xfe] %v2690
      %3660 = vst [vmem:[#allocation2 + $0x148] sm:$0xfe] %v2691
      %3661 = vst [vmem:[#allocation2 + $0x150] sm:$0x1] %v2689
      %3662 = vst [vmem:[#allocation2 + $0x158] sm:$0x1] %v2690
      %3663 = vst [vmem:[#allocation2 + $0x160] sm:$0x1] %v2691
      %3664 = vst [vmem:[#allocation2 + $0x150] sm:$0xfe] %v2713
      %3665 = vst [vmem:[#allocation2 + $0x158] sm:$0xfe] %v2714
      %3666 = vst [vmem:[#allocation2 + $0x160] sm:$0xfe] %v2715
      %3667 = vst [vmem:[#allocation2 + $0x168] sm:$0x1] %v2713
      %3668 = vst [vmem:[#allocation2 + $0x170] sm:$0x1] %v2714
      %3669 = vst [vmem:[#allocation2 + $0x178] sm:$0x1] %v2715
      %3670 = vst [vmem:[#allocation2 + $0x168] sm:$0xfe] %v2737
      %3671 = vst [vmem:[#allocation2 + $0x170] sm:$0xfe] %v2738
      %3672 = vst [vmem:[#allocation2 + $0x178] sm:$0xfe] %v2739
      %3673 = vst [vmem:[#allocation2 + $0x180] sm:$0x1] %v2737
      %3674 = vst [vmem:[#allocation2 + $0x188] sm:$0x1] %v2738
      %3675 = vst [vmem:[#allocation2 + $0x190] sm:$0x1] %v2739
      %3676 = vst [vmem:[#allocation2 + $0x180] sm:$0xfe] %v2761
      %3677 = vst [vmem:[#allocation2 + $0x188] sm:$0xfe] %v2762
      %3678 = vst [vmem:[#allocation2 + $0x190] sm:$0xfe] %v2763
      %3679 = vst [vmem:[#allocation2 + $0x198] sm:$0x1] %v2761
      %3680 = vst [vmem:[#allocation2 + $0x1a0] sm:$0x1] %v2762
      %3681 = vst [vmem:[#allocation2 + $0x1a8] sm:$0x1] %v2763
      %3682 = vst [vmem:[#allocation2 + $0x198] sm:$0xfe] %v2785
      %3683 = vst [vmem:[#allocation2 + $0x1a0] sm:$0xfe] %v2786
      %3684 = vst [vmem:[#allocation2 + $0x1a8] sm:$0xfe] %v2787
      %3685 = vst [vmem:[#allocation2 + $0x1b0] sm:$0x1] %v2785
      %3686 = vst [vmem:[#allocation2 + $0x1b8] sm:$0x1] %v2786
      %3687 = vst [vmem:[#allocation2 + $0x1c0] sm:$0x1] %v2787
      %3688 = vst [vmem:[#allocation2 + $0x1b0] sm:$0xfe] 0.0
      %3689 = vst [vmem:[#allocation2 + $0x1b8] sm:$0xfe] 0.0
      %3690 = vst [vmem:[#allocation2 + $0x1c0] sm:$0xfe] 0.0
      %v3691 = vld [vmem:[%s1 + $0x50] sm:$0xff]
      %v3692 = vld [vmem:[%s1 + $0x58] sm:$0xff]
      %v3693 = vld [vmem:[%s1 + $0xf8] sm:$0xff]
      %v3694 = vld [vmem:[%s1 + $0x100] sm:$0xff]
      %v3695 = vld [vmem:[#allocation2] sm:$0xff]
      %v3696 = vld [vmem:[#allocation2 + $0x8] sm:$0xff]
      %v3697 = vld [vmem:[#allocation2 + $0x10] sm:$0xff]
      %v3698 = vld [vmem:[#allocation2 + $0x18] sm:$0xff]
      %v3699 = vld [vmem:[#allocation2 + $0x20] sm:$0xff]
      %v3700 = vld [vmem:[#allocation2 + $0x28] sm:$0xff]
      %v3701 = vld [vmem:[#allocation2 + $0x30] sm:$0xff]
      %v3702 = vld [vmem:[#allocation2 + $0x38] sm:$0xff]
      %v3703 = vld [vmem:[#allocation2 + $0x40] sm:$0xff]
      %v3704 = vld [vmem:[#allocation2 + $0x48] sm:$0xff]
      %v3705 = vld [vmem:[#allocation2 + $0x50] sm:$0xff]
      %v3706 = vld [vmem:[#allocation2 + $0x58] sm:$0xff]
      %v3707 = vld [vmem:[#allocation2 + $0x60] sm:$0xff]
      %v3708 = vld [vmem:[#allocation2 + $0x68] sm:$0xff]
      %v3709 = vld [vmem:[#allocation2 + $0x70] sm:$0xff]
      %v3710 = vld [vmem:[#allocation2 + $0x78] sm:$0xff]
      %v3711 = vld [vmem:[#allocation2 + $0x80] sm:$0xff]
      %v3712 = vld [vmem:[#allocation2 + $0x88] sm:$0xff]
      %v3713 = vld [vmem:[#allocation2 + $0x90] sm:$0xff]
      %v3714 = vld [vmem:[#allocation2 + $0x98] sm:$0xff]
      %v3715 = vld [vmem:[#allocation2 + $0xa0] sm:$0xff]
      %v3716 = vld [vmem:[#allocation2 + $0xa8] sm:$0xff]
      %v3717 = vld [vmem:[#allocation2 + $0xb0] sm:$0xff]
      %v3718 = vld [vmem:[#allocation2 + $0xb8] sm:$0xff]
      %v3719 = vld [vmem:[#allocation2 + $0xc0] sm:$0xff]
      %v3720 = vld [vmem:[#allocation2 + $0xc8] sm:$0xff]
      %v3721 = vld [vmem:[#allocation2 + $0xd0] sm:$0xff]
      %v3722 = vld [vmem:[#allocation2 + $0xd8] sm:$0xff]
      %v3723 = vld [vmem:[#allocation2 + $0xe0] sm:$0xff]
      %v3724 = vld [vmem:[#allocation2 + $0xe8] sm:$0xff]
      %v3725 = vld [vmem:[#allocation2 + $0xf0] sm:$0xff]
      %v3726 = vld [vmem:[#allocation2 + $0xf8] sm:$0xff]
      %v3727 = vld [vmem:[#allocation2 + $0x100] sm:$0xff]
      %v3728 = vld [vmem:[#allocation2 + $0x108] sm:$0xff]
      %v3729 = vld [vmem:[#allocation2 + $0x110] sm:$0xff]
      %v3730 = vld [vmem:[#allocation2 + $0x118] sm:$0xff]
      %v3731 = vld [vmem:[#allocation2 + $0x120] sm:$0xff]
      %v3732 = vld [vmem:[#allocation2 + $0x128] sm:$0xff]
      %v3733 = vld [vmem:[#allocation2 + $0x130] sm:$0xff]
      %v3734 = vld [vmem:[#allocation2 + $0x138] sm:$0xff]
      %v3735 = vld [vmem:[#allocation2 + $0x140] sm:$0xff]
      %v3736 = vld [vmem:[#allocation2 + $0x148] sm:$0xff]
      %v3737 = vld [vmem:[#allocation2 + $0x150] sm:$0xff]
      %v3738 = vld [vmem:[#allocation2 + $0x158] sm:$0xff]
      %v3739 = vld [vmem:[#allocation2 + $0x160] sm:$0xff]
      %v3740 = vld [vmem:[#allocation2 + $0x168] sm:$0xff]
      %v3741 = vld [vmem:[#allocation2 + $0x170] sm:$0xff]
      %v3742 = vld [vmem:[#allocation2 + $0x178] sm:$0xff]
      %v3743 = vld [vmem:[#allocation2 + $0x180] sm:$0xff]
      %v3744 = vld [vmem:[#allocation2 + $0x188] sm:$0xff]
      %v3745 = vld [vmem:[#allocation2 + $0x190] sm:$0xff]
      %v3746 = vld [vmem:[#allocation2 + $0x198] sm:$0xff]
      %v3747 = vld [vmem:[#allocation2 + $0x1a0] sm:$0xff]
      %v3748 = vld [vmem:[#allocation2 + $0x1a8] sm:$0xff]
      %v3749 = vld [vmem:[#allocation2 + $0x1b0] sm:$0xff]
      %v3750 = vld [vmem:[#allocation2 + $0x1b8] sm:$0xff]
      %v3751 = vld [vmem:[#allocation2 + $0x1c0] sm:$0xff]
      %v3753 = vsel %vm1489, %v3692, 0
      %v3756 = vsel %vm1489, %v3694, 0
      %3758 = vmatprep.subr.mxu0 %v3696
      %3759 = vmatpush1.msra.mxu0 %v3695
      %3760 = vmatprep.subr.mxu0 %v3699
      %3761 = vmatpush1.msra.mxu0 %v3698
      %3762 = vmatprep.subr.mxu0 %v3702
      %3763 = vmatpush1.msra.mxu0 %v3701
      %3764 = vmatprep.subr.mxu0 %v3705
      %3765 = vmatpush1.msra.mxu0 %v3704
      %3766 = vmatprep.subr.mxu0 %v3708
      %3767 = vmatpush1.msra.mxu0 %v3707
      %3768 = vmatprep.subr.mxu0 %v3711
      %3769 = vmatpush1.msra.mxu0 %v3710
      %3770 = vmatprep.subr.mxu0 %v3714
      %3771 = vmatpush1.msra.mxu0 %v3713
      %3772 = vmatprep.subr.mxu0 %v3717
      %3773 = vmatpush1.msra.mxu0 %v3716
      %3774 = vmatprep.subr.mxu0 %v3720
      %3775 = vmatpush1.msra.mxu0 %v3719
      %3776 = vmatprep.subr.mxu0 %v3723
      %3777 = vmatpush1.msra.mxu0 %v3722
      %3778 = vmatprep.subr.mxu0 %v3726
      %3779 = vmatpush1.msra.mxu0 %v3725
      %3780 = vmatprep.subr.mxu0 %v3729
      %3781 = vmatpush1.msra.mxu0 %v3728
      %3782 = vmatprep.subr.mxu0 %v3732
      %3783 = vmatpush1.msra.mxu0 %v3731
      %3784 = vmatprep.subr.mxu0 %v3735
      %3785 = vmatpush1.msra.mxu0 %v3734
      %3786 = vmatprep.subr.mxu0 %v3738
      %3787 = vmatpush1.msra.mxu0 %v3737
      %3788 = vmatprep.subr.mxu0 %v3741
      %3789 = vmatpush1.msra.mxu0 %v3740
      %3790 = vmatprep.subr.mxu0 %v3744
      %3791 = vmatpush1.msra.mxu0 %v3743
      %3792 = vmatprep.subr.mxu0 %v3747
      %3793 = vmatpush1.msra.mxu0 %v3746
      %3794 = vmatprep.subr.mxu0 %v3750
      %3795 = vmatpush1.msra.mxu0 %v3749
      %3796 = vmatprep.subr.mxu0 0.0
      %3797 = vmatpush1.msra.mxu0 0.0
      %3798 = vmatprep.subr.mxu0 0.0
      %3799 = vmatpush1.msra.mxu0 0.0
      %3800 = vmatprep.subr.mxu0 0.0
      %3801 = vmatpush1.msra.mxu0 0.0
      %3802 = vmatprep.subr.mxu0 0.0
      %3803 = vmatpush1.msra.mxu0 0.0
      %3804 = vmatprep.subr.mxu0 0.0
      %3805 = vmatpush1.msra.mxu0 0.0
      %3806 = vmatprep.subr.mxu0 0.0
      %3807 = vmatpush1.msra.mxu0 0.0
      %3808 = vmatprep.subr.mxu0 0.0
      %3809 = vmatpush1.msra.mxu0 0.0
      %3810 = vmatprep.subr.mxu0 0.0
      %3811 = vmatpush1.msra.mxu0 0.0
      %3812 = vmatprep.subr.mxu0 0.0
      %3813 = vmatpush1.msra.mxu0 0.0
      %3814 = vmatprep.subr.mxu0 0.0
      %3815 = vmatpush1.msra.mxu0 0.0
      %3816 = vmatprep.subr.mxu0 0.0
      %3817 = vmatpush1.msra.mxu0 0.0
      %3818 = vmatprep.subr.mxu0 0.0
      %3819 = vmatpush1.msra.mxu0 0.0
      %3820 = vmatprep.subr.mxu0 0.0
      %3821 = vmatpush1.msra.mxu0 0.0
      %3822 = vmatprep.mubr.f32.mxu0 %v3753
      %3823 = vmatmul.mubr.f32.gmra.mrb[0].mxu0 %v3691
      %v3824 = vpop.f32.mrb[0].mxu0
      %v3825 = vadd.f32 0.0, %v3824
      %v3826 = vpop.f32.mrb[0].mxu0
      %v3827 = vadd.f32 0.0, %v3826
      %3828 = vmatprep.mubr.f32.mxu0 %v3756
      %3829 = vmatmul.mubr.f32.gmra.mrb[0].mxu0 %v3693
      %v3830 = vpop.f32.mrb[0].mxu0
      %v3831 = vadd.f32 0.0, %v3830
      %v3832 = vpop.f32.mrb[0].mxu0
      %v3833 = vadd.f32 0.0, %v3832
      %3834 = vdwg.mxu0
      %3835 = vmatprep.subr.mxu0 0.0
      %3836 = vmatpush1.msra.mxu0 %v3697
      %3837 = vmatprep.subr.mxu0 0.0
      %3838 = vmatpush1.msra.mxu0 %v3700
      %3839 = vmatprep.subr.mxu0 0.0
      %3840 = vmatpush1.msra.mxu0 %v3703
      %3841 = vmatprep.subr.mxu0 0.0
      %3842 = vmatpush1.msra.mxu0 %v3706
      %3843 = vmatprep.subr.mxu0 0.0
      %3844 = vmatpush1.msra.mxu0 %v3709
      %3845 = vmatprep.subr.mxu0 0.0
      %3846 = vmatpush1.msra.mxu0 %v3712
      %3847 = vmatprep.subr.mxu0 0.0
      %3848 = vmatpush1.msra.mxu0 %v3715
      %3849 = vmatprep.subr.mxu0 0.0
      %3850 = vmatpush1.msra.mxu0 %v3718
      %3851 = vmatprep.subr.mxu0 0.0
      %3852 = vmatpush1.msra.mxu0 %v3721
      %3853 = vmatprep.subr.mxu0 0.0
      %3854 = vmatpush1.msra.mxu0 %v3724
      %3855 = vmatprep.subr.mxu0 0.0
      %3856 = vmatpush1.msra.mxu0 %v3727
      %3857 = vmatprep.subr.mxu0 0.0
      %3858 = vmatpush1.msra.mxu0 %v3730
      %3859 = vmatprep.subr.mxu0 0.0
      %3860 = vmatpush1.msra.mxu0 %v3733
      %3861 = vmatprep.subr.mxu0 0.0
      %3862 = vmatpush1.msra.mxu0 %v3736
      %3863 = vmatprep.subr.mxu0 0.0
      %3864 = vmatpush1.msra.mxu0 %v3739
      %3865 = vmatprep.subr.mxu0 0.0
      %3866 = vmatpush1.msra.mxu0 %v3742
      %3867 = vmatprep.subr.mxu0 0.0
      %3868 = vmatpush1.msra.mxu0 %v3745
      %3869 = vmatprep.subr.mxu0 0.0
      %3870 = vmatpush1.msra.mxu0 %v3748
      %3871 = vmatprep.subr.mxu0 0.0
      %3872 = vmatpush1.msra.mxu0 %v3751
      %3873 = vmatprep.subr.mxu0 0.0
      %3874 = vmatpush1.msra.mxu0 0.0
      %3875 = vmatprep.subr.mxu0 0.0
      %3876 = vmatpush1.msra.mxu0 0.0
      %3877 = vmatprep.subr.mxu0 0.0
      %3878 = vmatpush1.msra.mxu0 0.0
      %3879 = vmatprep.subr.mxu0 0.0
      %3880 = vmatpush1.msra.mxu0 0.0
      %3881 = vmatprep.subr.mxu0 0.0
      %3882 = vmatpush1.msra.mxu0 0.0
      %3883 = vmatprep.subr.mxu0 0.0
      %3884 = vmatpush1.msra.mxu0 0.0
      %3885 = vmatprep.subr.mxu0 0.0
      %3886 = vmatpush1.msra.mxu0 0.0
      %3887 = vmatprep.subr.mxu0 0.0
      %3888 = vmatpush1.msra.mxu0 0.0
      %3889 = vmatprep.subr.mxu0 0.0
      %3890 = vmatpush1.msra.mxu0 0.0
      %3891 = vmatprep.subr.mxu0 0.0
      %3892 = vmatpush1.msra.mxu0 0.0
      %3893 = vmatprep.subr.mxu0 0.0
      %3894 = vmatpush1.msra.mxu0 0.0
      %3895 = vmatprep.subr.mxu0 0.0
      %3896 = vmatpush1.msra.mxu0 0.0
      %3897 = vmatprep.subr.mxu0 0.0
      %3898 = vmatpush1.msra.mxu0 0.0
      %3899 = vmatprep.mubr.f32.mxu0 %v3753
      %3900 = vmatmul.mubr.f32.gmra.mrb[0].mxu0 %v3691
      %v3901 = vpop.f32.mrb[0].mxu0
      %v3902 = vadd.f32 0.0, %v3901
      %v3903 = vpop.f32.mrb[0].mxu0
      %3904 = vmatprep.mubr.f32.mxu0 %v3756
      %3905 = vmatmul.mubr.f32.gmra.mrb[0].mxu0 %v3693
      %v3906 = vpop.f32.mrb[0].mxu0
      %v3907 = vadd.f32 0.0, %v3906
      %v3908 = vpop.f32.mrb[0].mxu0
      %3909 = vdwg.mxu0
      %v3910 = vmax.f32 %v3825, 0.0
      %v3911 = vmax.f32 %v3827, 0.0
      %v3912 = vmax.f32 %v3902, 0.0
      %v3913 = vmax.f32 %v3831, 0.0
      %v3914 = vmax.f32 %v3833, 0.0
      %v3915 = vmax.f32 %v3907, 0.0
      %v3916 = vsel %vm564, %v3910, 0.0
      %v3917 = vsel %vm565, %v3911, 0.0
      %v3918 = vsel %vm566, %v3912, 0.0
      %v3919 = vsel %vm564, %v3913, 0.0
      %v3920 = vsel %vm565, %v3914, 0.0
      %v3921 = vsel %vm566, %v3915, 0.0
      %v3922 = vadd.f32 %v977, %v3916
      %v3923 = vadd.f32 %v978, %v3917
      %v3924 = vadd.f32 %v979, %v3918
      %v3925 = vadd.f32 %v980, %v3919
      %v3926 = vadd.f32 %v981, %v3920
      %v3927 = vadd.f32 %v982, %v3921
      %3928 = vrot.lane.b32.xlu0 %v3916, 19
      %v3929 = vpop.permute.xlu0 %3928
      %3930 = vrot.lane.b32.xlu0 %v3919, 19
      %v3931 = vpop.permute.xlu0 %3930
      %3932 = vrot.lane.b32.xlu0 %v3917, 19
      %v3933 = vpop.permute.xlu0 %3932
      %3934 = vrot.lane.b32.xlu0 %v3920, 19
      %v3935 = vpop.permute.xlu0 %3934
      %3936 = vrot.lane.b32.xlu0 %v3918, 19
      %v3937 = vpop.permute.xlu0 %3936
      %3938 = vrot.lane.b32.xlu0 %v3921, 19
      %v3939 = vpop.permute.xlu0 %3938
      %v3940 = vsel %vm193, %v3933, %v3937
      %v3941 = vsel %vm193, %v3935, %v3939
      %v3942 = vsel %vm193, %v3929, %v3933
      %v3943 = vsel %vm193, %v3931, %v3935
      %v3944 = vsel %vm193, %v3937, %v3929
      %v3945 = vsel %vm193, %v3939, %v3931
      %v3952 = vrot.slane %v3944, 7
      %v3953 = vrot.slane %v3942, 7
      %v3954 = vrot.slane %v3940, 7
      %v3955 = vrot.slane %v3945, 7
      %v3956 = vsel %vm1007, %v3952, %v3955
      %v3957 = vrot.slane %v3943, 7
      %v3958 = vsel %vm1007, %v3953, %v3957
      %v3959 = vrot.slane %v3941, 7
      %v3960 = vsel %vm1007, %v3954, %v3959
      %3970 = vst [vmem:[#allocation2] sm:$0xfe] %v3952
      %3971 = vst [vmem:[#allocation2 + $0x8] sm:$0xfe] %v3953
      %3972 = vst [vmem:[#allocation2 + $0x10] sm:$0xfe] %v3954
      %3973 = vst [vmem:[#allocation2 + $0x18] sm:$0xff] %v3956
      %3974 = vst [vmem:[#allocation2 + $0x20] sm:$0xff] %v3958
      %3975 = vst [vmem:[#allocation2 + $0x28] sm:$0xff] %v3960
      %3976 = vst [vmem:[#allocation2 + $0x30] sm:$0x1] %v3955
      %3977 = vst [vmem:[#allocation2 + $0x38] sm:$0x1] %v3957
      %3978 = vst [vmem:[#allocation2 + $0x40] sm:$0x1] %v3959
      %3979 = vrot.lane.b32.xlu0 %v3916, 18
      %v3980 = vpop.permute.xlu0 %3979
      %3981 = vrot.lane.b32.xlu0 %v3919, 18
      %v3982 = vpop.permute.xlu0 %3981
      %3983 = vrot.lane.b32.xlu0 %v3917, 18
      %v3984 = vpop.permute.xlu0 %3983
      %3985 = vrot.lane.b32.xlu0 %v3920, 18
      %v3986 = vpop.permute.xlu0 %3985
      %3987 = vrot.lane.b32.xlu0 %v3918, 18
      %v3988 = vpop.permute.xlu0 %3987
      %3989 = vrot.lane.b32.xlu0 %v3921, 18
      %v3990 = vpop.permute.xlu0 %3989
      %v3991 = vsel %vm215, %v3984, %v3988
      %v3992 = vsel %vm215, %v3986, %v3990
      %v3993 = vsel %vm215, %v3980, %v3984
      %v3994 = vsel %vm215, %v3982, %v3986
      %v3995 = vsel %vm215, %v3988, %v3980
      %v3996 = vsel %vm215, %v3990, %v3982
      %v4003 = vrot.slane %v3995, 7
      %v4004 = vrot.slane %v3993, 7
      %v4005 = vrot.slane %v3991, 7
      %v4006 = vrot.slane %v3996, 7
      %v4007 = vsel %vm1007, %v4003, %v4006
      %v4008 = vrot.slane %v3994, 7
      %v4009 = vsel %vm1007, %v4004, %v4008
      %v4010 = vrot.slane %v3992, 7
      %v4011 = vsel %vm1007, %v4005, %v4010
      %4021 = vst [vmem:[#allocation2 + $0x30] sm:$0xfe] %v4003
      %4022 = vst [vmem:[#allocation2 + $0x38] sm:$0xfe] %v4004
      %4023 = vst [vmem:[#allocation2 + $0x40] sm:$0xfe] %v4005
      %4024 = vst [vmem:[#allocation2 + $0x48] sm:$0xff] %v4007
      %4025 = vst [vmem:[#allocation2 + $0x50] sm:$0xff] %v4009
      %4026 = vst [vmem:[#allocation2 + $0x58] sm:$0xff] %v4011
      %4027 = vst [vmem:[#allocation2 + $0x60] sm:$0x1] %v4006
      %4028 = vst [vmem:[#allocation2 + $0x68] sm:$0x1] %v4008
      %4029 = vst [vmem:[#allocation2 + $0x70] sm:$0x1] %v4010
      %4030 = vrot.lane.b32.xlu0 %v3916, 17
      %v4031 = vpop.permute.xlu0 %4030
      %4032 = vrot.lane.b32.xlu0 %v3919, 17
      %v4033 = vpop.permute.xlu0 %4032
      %4034 = vrot.lane.b32.xlu0 %v3917, 17
      %v4035 = vpop.permute.xlu0 %4034
      %4036 = vrot.lane.b32.xlu0 %v3920, 17
      %v4037 = vpop.permute.xlu0 %4036
      %4038 = vrot.lane.b32.xlu0 %v3918, 17
      %v4039 = vpop.permute.xlu0 %4038
      %4040 = vrot.lane.b32.xlu0 %v3921, 17
      %v4041 = vpop.permute.xlu0 %4040
      %v4042 = vsel %vm240, %v4035, %v4039
      %v4043 = vsel %vm240, %v4037, %v4041
      %v4044 = vsel %vm240, %v4031, %v4035
      %v4045 = vsel %vm240, %v4033, %v4037
      %v4046 = vsel %vm240, %v4039, %v4031
      %v4047 = vsel %vm240, %v4041, %v4033
      %v4054 = vrot.slane %v4046, 7
      %v4055 = vrot.slane %v4044, 7
      %v4056 = vrot.slane %v4042, 7
      %v4057 = vrot.slane %v4047, 7
      %v4058 = vsel %vm1007, %v4054, %v4057
      %v4059 = vrot.slane %v4045, 7
      %v4060 = vsel %vm1007, %v4055, %v4059
      %v4061 = vrot.slane %v4043, 7
      %v4062 = vsel %vm1007, %v4056, %v4061
      %4072 = vst [vmem:[#allocation2 + $0x60] sm:$0xfe] %v4054
      %4073 = vst [vmem:[#allocation2 + $0x68] sm:$0xfe] %v4055
      %4074 = vst [vmem:[#allocation2 + $0x70] sm:$0xfe] %v4056
      %4075 = vst [vmem:[#allocation2 + $0x78] sm:$0xff] %v4058
      %4076 = vst [vmem:[#allocation2 + $0x80] sm:$0xff] %v4060
      %4077 = vst [vmem:[#allocation2 + $0x88] sm:$0xff] %v4062
      %4078 = vst [vmem:[#allocation2 + $0x90] sm:$0x1] %v4057
      %4079 = vst [vmem:[#allocation2 + $0x98] sm:$0x1] %v4059
      %4080 = vst [vmem:[#allocation2 + $0xa0] sm:$0x1] %v4061
      %4081 = vrot.lane.b32.xlu0 %v3916, 1
      %v4082 = vpop.permute.xlu0 %4081
      %4083 = vrot.lane.b32.xlu0 %v3919, 1
      %v4084 = vpop.permute.xlu0 %4083
      %4085 = vrot.lane.b32.xlu0 %v3917, 1
      %v4086 = vpop.permute.xlu0 %4085
      %4087 = vrot.lane.b32.xlu0 %v3920, 1
      %v4088 = vpop.permute.xlu0 %4087
      %4089 = vrot.lane.b32.xlu0 %v3918, 1
      %v4090 = vpop.permute.xlu0 %4089
      %4091 = vrot.lane.b32.xlu0 %v3921, 1
      %v4092 = vpop.permute.xlu0 %4091
      %v4093 = vsel %vm262, %v4086, %v4090
      %v4094 = vsel %vm262, %v4088, %v4092
      %v4095 = vsel %vm262, %v4082, %v4086
      %v4096 = vsel %vm262, %v4084, %v4088
      %v4097 = vsel %vm262, %v4090, %v4082
      %v4098 = vsel %vm262, %v4092, %v4084
      %v4105 = vrot.slane %v4097, 7
      %v4106 = vrot.slane %v4095, 7
      %v4107 = vrot.slane %v4093, 7
      %v4108 = vrot.slane %v4098, 7
      %v4109 = vsel %vm1007, %v4105, %v4108
      %v4110 = vrot.slane %v4096, 7
      %v4111 = vsel %vm1007, %v4106, %v4110
      %v4112 = vrot.slane %v4094, 7
      %v4113 = vsel %vm1007, %v4107, %v4112
      %4123 = vst [vmem:[#allocation2 + $0x90] sm:$0xfe] %v4105
      %4124 = vst [vmem:[#allocation2 + $0x98] sm:$0xfe] %v4106
      %4125 = vst [vmem:[#allocation2 + $0xa0] sm:$0xfe] %v4107
      %4126 = vst [vmem:[#allocation2 + $0xa8] sm:$0xff] %v4109
      %4127 = vst [vmem:[#allocation2 + $0xb0] sm:$0xff] %v4111
      %4128 = vst [vmem:[#allocation2 + $0xb8] sm:$0xff] %v4113
      %4129 = vst [vmem:[#allocation2 + $0xc0] sm:$0x1] %v4108
      %4130 = vst [vmem:[#allocation2 + $0xc8] sm:$0x1] %v4110
      %4131 = vst [vmem:[#allocation2 + $0xd0] sm:$0x1] %v4112
      %v4138 = vrot.slane %v3916, 7
      %v4139 = vrot.slane %v3917, 7
      %v4140 = vrot.slane %v3918, 7
      %v4141 = vrot.slane %v3919, 7
      %v4142 = vsel %vm1007, %v4138, %v4141
      %v4143 = vrot.slane %v3920, 7
      %v4144 = vsel %vm1007, %v4139, %v4143
      %v4145 = vrot.slane %v3921, 7
      %v4146 = vsel %vm1007, %v4140, %v4145
      %4156 = vst [vmem:[#allocation2 + $0xc0] sm:$0xfe] %v4138
      %4157 = vst [vmem:[#allocation2 + $0xc8] sm:$0xfe] %v4139
      %4158 = vst [vmem:[#allocation2 + $0xd0] sm:$0xfe] %v4140
      %4159 = vst [vmem:[#allocation2 + $0xd8] sm:$0xff] %v4142
      %4160 = vst [vmem:[#allocation2 + $0xe0] sm:$0xff] %v4144
      %4161 = vst [vmem:[#allocation2 + $0xe8] sm:$0xff] %v4146
      %4162 = vst [vmem:[#allocation2 + $0xf0] sm:$0x1] %v4141
      %4163 = vst [vmem:[#allocation2 + $0xf8] sm:$0x1] %v4143
      %4164 = vst [vmem:[#allocation2 + $0x100] sm:$0x1] %v4145
      %4165 = vrot.lane.b32.xlu0 %v3916, 127
      %v4166 = vpop.permute.xlu0 %4165
      %4167 = vrot.lane.b32.xlu0 %v3919, 127
      %v4168 = vpop.permute.xlu0 %4167
      %4169 = vrot.lane.b32.xlu0 %v3917, 127
      %v4170 = vpop.permute.xlu0 %4169
      %4171 = vrot.lane.b32.xlu0 %v3920, 127
      %v4172 = vpop.permute.xlu0 %4171
      %4173 = vrot.lane.b32.xlu0 %v3918, 127
      %v4174 = vpop.permute.xlu0 %4173
      %4175 = vrot.lane.b32.xlu0 %v3921, 127
      %v4176 = vpop.permute.xlu0 %4175
      %v4177 = vsel %vm296, %v4170, %v4174
      %v4178 = vsel %vm296, %v4172, %v4176
      %v4179 = vsel %vm296, %v4166, %v4170
      %v4180 = vsel %vm296, %v4168, %v4172
      %v4181 = vsel %vm296, %v4174, %v4166
      %v4182 = vsel %vm296, %v4176, %v4168
      %v4189 = vrot.slane %v4179, 7
      %v4190 = vrot.slane %v4177, 7
      %v4191 = vrot.slane %v4181, 7
      %v4192 = vrot.slane %v4180, 7
      %v4193 = vsel %vm1007, %v4189, %v4192
      %v4194 = vrot.slane %v4178, 7
      %v4195 = vsel %vm1007, %v4190, %v4194
      %v4196 = vrot.slane %v4182, 7
      %v4197 = vsel %vm1007, %v4191, %v4196
      %4207 = vst [vmem:[#allocation2 + $0xf0] sm:$0xfe] %v4189
      %4208 = vst [vmem:[#allocation2 + $0xf8] sm:$0xfe] %v4190
      %4209 = vst [vmem:[#allocation2 + $0x100] sm:$0xfe] %v4191
      %4210 = vst [vmem:[#allocation2 + $0x108] sm:$0xff] %v4193
      %4211 = vst [vmem:[#allocation2 + $0x110] sm:$0xff] %v4195
      %4212 = vst [vmem:[#allocation2 + $0x118] sm:$0xff] %v4197
      %4213 = vst [vmem:[#allocation2 + $0x120] sm:$0x1] %v4192
      %4214 = vst [vmem:[#allocation2 + $0x128] sm:$0x1] %v4194
      %4215 = vst [vmem:[#allocation2 + $0x130] sm:$0x1] %v4196
      %4216 = vrot.lane.b32.xlu0 %v3916, 111
      %v4217 = vpop.permute.xlu0 %4216
      %4218 = vrot.lane.b32.xlu0 %v3919, 111
      %v4219 = vpop.permute.xlu0 %4218
      %4220 = vrot.lane.b32.xlu0 %v3917, 111
      %v4221 = vpop.permute.xlu0 %4220
      %4222 = vrot.lane.b32.xlu0 %v3920, 111
      %v4223 = vpop.permute.xlu0 %4222
      %4224 = vrot.lane.b32.xlu0 %v3918, 111
      %v4225 = vpop.permute.xlu0 %4224
      %4226 = vrot.lane.b32.xlu0 %v3921, 111
      %v4227 = vpop.permute.xlu0 %4226
      %v4228 = vsel %vm321, %v4221, %v4225
      %v4229 = vsel %vm321, %v4223, %v4227
      %v4230 = vsel %vm321, %v4217, %v4221
      %v4231 = vsel %vm321, %v4219, %v4223
      %v4232 = vsel %vm321, %v4225, %v4217
      %v4233 = vsel %vm321, %v4227, %v4219
      %v4240 = vrot.slane %v4230, 7
      %v4241 = vrot.slane %v4228, 7
      %v4242 = vrot.slane %v4232, 7
      %v4243 = vrot.slane %v4231, 7
      %v4244 = vsel %vm1007, %v4240, %v4243
      %v4245 = vrot.slane %v4229, 7
      %v4246 = vsel %vm1007, %v4241, %v4245
      %v4247 = vrot.slane %v4233, 7
      %v4248 = vsel %vm1007, %v4242, %v4247
      %4258 = vst [vmem:[#allocation2 + $0x120] sm:$0xfe] %v4240
      %4259 = vst [vmem:[#allocation2 + $0x128] sm:$0xfe] %v4241
      %4260 = vst [vmem:[#allocation2 + $0x130] sm:$0xfe] %v4242
      %4261 = vst [vmem:[#allocation2 + $0x138] sm:$0xff] %v4244
      %4262 = vst [vmem:[#allocation2 + $0x140] sm:$0xff] %v4246
      %4263 = vst [vmem:[#allocation2 + $0x148] sm:$0xff] %v4248
      %4264 = vst [vmem:[#allocation2 + $0x150] sm:$0x1] %v4243
      %4265 = vst [vmem:[#allocation2 + $0x158] sm:$0x1] %v4245
      %4266 = vst [vmem:[#allocation2 + $0x160] sm:$0x1] %v4247
      %4267 = vrot.lane.b32.xlu0 %v3916, 110
      %v4268 = vpop.permute.xlu0 %4267
      %4269 = vrot.lane.b32.xlu0 %v3919, 110
      %v4270 = vpop.permute.xlu0 %4269
      %4271 = vrot.lane.b32.xlu0 %v3917, 110
      %v4272 = vpop.permute.xlu0 %4271
      %4273 = vrot.lane.b32.xlu0 %v3920, 110
      %v4274 = vpop.permute.xlu0 %4273
      %4275 = vrot.lane.b32.xlu0 %v3918, 110
      %v4276 = vpop.permute.xlu0 %4275
      %4277 = vrot.lane.b32.xlu0 %v3921, 110
      %v4278 = vpop.permute.xlu0 %4277
      %v4279 = vsel %vm343, %v4272, %v4276
      %v4280 = vsel %vm343, %v4274, %v4278
      %v4281 = vsel %vm343, %v4268, %v4272
      %v4282 = vsel %vm343, %v4270, %v4274
      %v4283 = vsel %vm343, %v4276, %v4268
      %v4284 = vsel %vm343, %v4278, %v4270
      %v4291 = vrot.slane %v4281, 7
      %v4292 = vrot.slane %v4279, 7
      %v4293 = vrot.slane %v4283, 7
      %v4294 = vrot.slane %v4282, 7
      %v4295 = vsel %vm1007, %v4291, %v4294
      %v4296 = vrot.slane %v4280, 7
      %v4297 = vsel %vm1007, %v4292, %v4296
      %v4298 = vrot.slane %v4284, 7
      %v4299 = vsel %vm1007, %v4293, %v4298
      %4309 = vst [vmem:[#allocation2 + $0x150] sm:$0xfe] %v4291
      %4310 = vst [vmem:[#allocation2 + $0x158] sm:$0xfe] %v4292
      %4311 = vst [vmem:[#allocation2 + $0x160] sm:$0xfe] %v4293
      %4312 = vst [vmem:[#allocation2 + $0x168] sm:$0xff] %v4295
      %4313 = vst [vmem:[#allocation2 + $0x170] sm:$0xff] %v4297
      %4314 = vst [vmem:[#allocation2 + $0x178] sm:$0xff] %v4299
      %4315 = vst [vmem:[#allocation2 + $0x180] sm:$0x1] %v4294
      %4316 = vst [vmem:[#allocation2 + $0x188] sm:$0x1] %v4296
      %4317 = vst [vmem:[#allocation2 + $0x190] sm:$0x1] %v4298
      %4318 = vrot.lane.b32.xlu0 %v3916, 109
      %v4319 = vpop.permute.xlu0 %4318
      %4320 = vrot.lane.b32.xlu0 %v3919, 109
      %v4321 = vpop.permute.xlu0 %4320
      %4322 = vrot.lane.b32.xlu0 %v3917, 109
      %v4323 = vpop.permute.xlu0 %4322
      %4324 = vrot.lane.b32.xlu0 %v3920, 109
      %v4325 = vpop.permute.xlu0 %4324
      %4326 = vrot.lane.b32.xlu0 %v3918, 109
      %v4327 = vpop.permute.xlu0 %4326
      %4328 = vrot.lane.b32.xlu0 %v3921, 109
      %v4329 = vpop.permute.xlu0 %4328
      %v4330 = vsel %vm368, %v4323, %v4327
      %v4331 = vsel %vm368, %v4325, %v4329
      %v4332 = vsel %vm368, %v4319, %v4323
      %v4333 = vsel %vm368, %v4321, %v4325
      %v4334 = vsel %vm368, %v4327, %v4319
      %v4335 = vsel %vm368, %v4329, %v4321
      %v4342 = vrot.slane %v4332, 7
      %v4343 = vrot.slane %v4330, 7
      %v4344 = vrot.slane %v4334, 7
      %v4345 = vrot.slane %v4333, 7
      %v4346 = vsel %vm1007, %v4342, %v4345
      %v4347 = vrot.slane %v4331, 7
      %v4348 = vsel %vm1007, %v4343, %v4347
      %v4349 = vrot.slane %v4335, 7
      %v4350 = vsel %vm1007, %v4344, %v4349
      %4360 = vst [vmem:[#allocation2 + $0x180] sm:$0xfe] %v4342
      %4361 = vst [vmem:[#allocation2 + $0x188] sm:$0xfe] %v4343
      %4362 = vst [vmem:[#allocation2 + $0x190] sm:$0xfe] %v4344
      %4363 = vst [vmem:[#allocation2 + $0x198] sm:$0xff] %v4346
      %4364 = vst [vmem:[#allocation2 + $0x1a0] sm:$0xff] %v4348
      %4365 = vst [vmem:[#allocation2 + $0x1a8] sm:$0xff] %v4350
      %4366 = vst [vmem:[#allocation2 + $0x1b0] sm:$0x1] %v4345
      %4367 = vst [vmem:[#allocation2 + $0x1b8] sm:$0x1] %v4347
      %4368 = vst [vmem:[#allocation2 + $0x1c0] sm:$0x1] %v4349
      %4369 = vst [vmem:[#allocation2 + $0x1b0] sm:$0xfe] %v1684
      %4370 = vst [vmem:[#allocation2 + $0x1b8] sm:$0xfe] %v1685
      %4371 = vst [vmem:[#allocation2 + $0x1c0] sm:$0xfe] %v1686
      %4372 = vst [vmem:[#allocation2 + $0x1c8] sm:$0xff] %v1688
      %4373 = vst [vmem:[#allocation2 + $0x1d0] sm:$0xff] %v1690
      %4374 = vst [vmem:[#allocation2 + $0x1d8] sm:$0xff] %v1692
      %4375 = vst [vmem:[#allocation2 + $0x1e0] sm:$0x1] %v1687
      %4376 = vst [vmem:[#allocation2 + $0x1e8] sm:$0x1] %v1689
      %4377 = vst [vmem:[#allocation2 + $0x1f0] sm:$0x1] %v1691
      %4378 = vst [vmem:[#allocation2 + $0x1e0] sm:$0xfe] %v1735
      %4379 = vst [vmem:[#allocation2 + $0x1e8] sm:$0xfe] %v1736
      %4380 = vst [vmem:[#allocation2 + $0x1f0] sm:$0xfe] %v1737
      %4381 = vst [vmem:[#allocation2 + $0x1f8] sm:$0xff] %v1739
      %4382 = vst [vmem:[#allocation2 + $0x200] sm:$0xff] %v1741
      %4383 = vst [vmem:[#allocation2 + $0x208] sm:$0xff] %v1743
      %4384 = vst [vmem:[#allocation2 + $0x210] sm:$0x1] %v1738
      %4385 = vst [vmem:[#allocation2 + $0x218] sm:$0x1] %v1740
      %4386 = vst [vmem:[#allocation2 + $0x220] sm:$0x1] %v1742
      %4387 = vst [vmem:[#allocation2 + $0x210] sm:$0xfe] %v1786
      %4388 = vst [vmem:[#allocation2 + $0x218] sm:$0xfe] %v1787
      %4389 = vst [vmem:[#allocation2 + $0x220] sm:$0xfe] %v1788
      %4390 = vst [vmem:[#allocation2 + $0x228] sm:$0xff] %v1790
      %4391 = vst [vmem:[#allocation2 + $0x230] sm:$0xff] %v1792
      %4392 = vst [vmem:[#allocation2 + $0x238] sm:$0xff] %v1794
      %4393 = vst [vmem:[#allocation2 + $0x240] sm:$0x1] %v1789
      %4394 = vst [vmem:[#allocation2 + $0x248] sm:$0x1] %v1791
      %4395 = vst [vmem:[#allocation2 + $0x250] sm:$0x1] %v1793
      %4396 = vst [vmem:[#allocation2 + $0x240] sm:$0xfe] %v1837
      %4397 = vst [vmem:[#allocation2 + $0x248] sm:$0xfe] %v1838
      %4398 = vst [vmem:[#allocation2 + $0x250] sm:$0xfe] %v1839
      %4399 = vst [vmem:[#allocation2 + $0x258] sm:$0xff] %v1841
      %4400 = vst [vmem:[#allocation2 + $0x260] sm:$0xff] %v1843
      %4401 = vst [vmem:[#allocation2 + $0x268] sm:$0xff] %v1845
      %4402 = vst [vmem:[#allocation2 + $0x270] sm:$0x1] %v1840
      %4403 = vst [vmem:[#allocation2 + $0x278] sm:$0x1] %v1842
      %4404 = vst [vmem:[#allocation2 + $0x280] sm:$0x1] %v1844
      %4405 = vst [vmem:[#allocation2 + $0x270] sm:$0xfe] %v1870
      %4406 = vst [vmem:[#allocation2 + $0x278] sm:$0xfe] %v1871
      %4407 = vst [vmem:[#allocation2 + $0x280] sm:$0xfe] %v1872
      %4408 = vst [vmem:[#allocation2 + $0x288] sm:$0xff] %v1874
      %4409 = vst [vmem:[#allocation2 + $0x290] sm:$0xff] %v1876
      %4410 = vst [vmem:[#allocation2 + $0x298] sm:$0xff] %v1878
      %4411 = vst [vmem:[#allocation2 + $0x2a0] sm:$0x1] %v1873
      %4412 = vst [vmem:[#allocation2 + $0x2a8] sm:$0x1] %v1875
      %4413 = vst [vmem:[#allocation2 + $0x2b0] sm:$0x1] %v1877
      %4414 = vst [vmem:[#allocation2 + $0x2a0] sm:$0xfe] %v1921
      %4415 = vst [vmem:[#allocation2 + $0x2a8] sm:$0xfe] %v1922
      %4416 = vst [vmem:[#allocation2 + $0x2b0] sm:$0xfe] %v1923
      %4417 = vst [vmem:[#allocation2 + $0x2b8] sm:$0xff] %v1925
      %4418 = vst [vmem:[#allocation2 + $0x2c0] sm:$0xff] %v1927
      %4419 = vst [vmem:[#allocation2 + $0x2c8] sm:$0xff] %v1929
      %4420 = vst [vmem:[#allocation2 + $0x2d0] sm:$0x1] %v1924
      %4421 = vst [vmem:[#allocation2 + $0x2d8] sm:$0x1] %v1926
      %4422 = vst [vmem:[#allocation2 + $0x2e0] sm:$0x1] %v1928
      %4423 = vst [vmem:[#allocation2 + $0x2d0] sm:$0xfe] %v1972
      %4424 = vst [vmem:[#allocation2 + $0x2d8] sm:$0xfe] %v1973
      %4425 = vst [vmem:[#allocation2 + $0x2e0] sm:$0xfe] %v1974
      %4426 = vst [vmem:[#allocation2 + $0x2e8] sm:$0xff] %v1976
      %4427 = vst [vmem:[#allocation2 + $0x2f0] sm:$0xff] %v1978
      %4428 = vst [vmem:[#allocation2 + $0x2f8] sm:$0xff] %v1980
      %4429 = vst [vmem:[#allocation2 + $0x300] sm:$0x1] %v1975
      %4430 = vst [vmem:[#allocation2 + $0x308] sm:$0x1] %v1977
      %4431 = vst [vmem:[#allocation2 + $0x310] sm:$0x1] %v1979
      %4432 = vst [vmem:[#allocation2 + $0x300] sm:$0xfe] %v2023
      %4433 = vst [vmem:[#allocation2 + $0x308] sm:$0xfe] %v2024
      %4434 = vst [vmem:[#allocation2 + $0x310] sm:$0xfe] %v2025
      %4435 = vst [vmem:[#allocation2 + $0x318] sm:$0xff] %v2027
      %4436 = vst [vmem:[#allocation2 + $0x320] sm:$0xff] %v2029
      %4437 = vst [vmem:[#allocation2 + $0x328] sm:$0xff] %v2031
      %4438 = vst [vmem:[#allocation2 + $0x330] sm:$0x1] %v2026
      %4439 = vst [vmem:[#allocation2 + $0x338] sm:$0x1] %v2028
      %4440 = vst [vmem:[#allocation2 + $0x340] sm:$0x1] %v2030
      %4441 = vst [vmem:[#allocation2 + $0x330] sm:$0xfe] %v2074
      %4442 = vst [vmem:[#allocation2 + $0x338] sm:$0xfe] %v2075
      %4443 = vst [vmem:[#allocation2 + $0x340] sm:$0xfe] %v2076
      %4444 = vst [vmem:[#allocation2 + $0x348] sm:$0xff] %v2078
      %4445 = vst [vmem:[#allocation2 + $0x350] sm:$0xff] %v2080
      %4446 = vst [vmem:[#allocation2 + $0x358] sm:$0xff] %v2082
      %4447 = vst [vmem:[#allocation2 + $0x360] sm:$0x1] %v2077
      %4448 = vst [vmem:[#allocation2 + $0x368] sm:$0x1] %v2079
      %4449 = vst [vmem:[#allocation2 + $0x370] sm:$0x1] %v2081
      %4450 = vst [vmem:[#allocation2 + $0x360] sm:$0xfe] 0.0
      %4451 = vst [vmem:[#allocation2 + $0x368] sm:$0xfe] 0.0
      %4452 = vst [vmem:[#allocation2 + $0x370] sm:$0xfe] 0.0
      %v4453 = vld [vmem:[%s1 + $0x60] sm:$0xff]
      %v4454 = vld [vmem:[%s1 + $0x68] sm:$0xff]
      %v4455 = vld [vmem:[%s1 + $0x70] sm:$0xff]
      %v4456 = vld [vmem:[%s1 + $0x108] sm:$0xff]
      %v4457 = vld [vmem:[%s1 + $0x110] sm:$0xff]
      %v4458 = vld [vmem:[%s1 + $0x118] sm:$0xff]
      %v4459 = vld [vmem:[#allocation2] sm:$0xff]
      %v4460 = vld [vmem:[#allocation2 + $0x8] sm:$0xff]
      %v4461 = vld [vmem:[#allocation2 + $0x10] sm:$0xff]
      %v4462 = vld [vmem:[#allocation2 + $0x18] sm:$0xff]
      %v4463 = vld [vmem:[#allocation2 + $0x20] sm:$0xff]
      %v4464 = vld [vmem:[#allocation2 + $0x28] sm:$0xff]
      %v4465 = vld [vmem:[#allocation2 + $0x30] sm:$0xff]
      %v4466 = vld [vmem:[#allocation2 + $0x38] sm:$0xff]
      %v4467 = vld [vmem:[#allocation2 + $0x40] sm:$0xff]
      %v4468 = vld [vmem:[#allocation2 + $0x48] sm:$0xff]
      %v4469 = vld [vmem:[#allocation2 + $0x50] sm:$0xff]
      %v4470 = vld [vmem:[#allocation2 + $0x58] sm:$0xff]
      %v4471 = vld [vmem:[#allocation2 + $0x60] sm:$0xff]
      %v4472 = vld [vmem:[#allocation2 + $0x68] sm:$0xff]
      %v4473 = vld [vmem:[#allocation2 + $0x70] sm:$0xff]
      %v4474 = vld [vmem:[#allocation2 + $0x78] sm:$0xff]
      %v4475 = vld [vmem:[#allocation2 + $0x80] sm:$0xff]
      %v4476 = vld [vmem:[#allocation2 + $0x88] sm:$0xff]
      %v4477 = vld [vmem:[#allocation2 + $0x90] sm:$0xff]
      %v4478 = vld [vmem:[#allocation2 + $0x98] sm:$0xff]
      %v4479 = vld [vmem:[#allocation2 + $0xa0] sm:$0xff]
      %v4480 = vld [vmem:[#allocation2 + $0xa8] sm:$0xff]
      %v4481 = vld [vmem:[#allocation2 + $0xb0] sm:$0xff]
      %v4482 = vld [vmem:[#allocation2 + $0xb8] sm:$0xff]
      %v4483 = vld [vmem:[#allocation2 + $0xc0] sm:$0xff]
      %v4484 = vld [vmem:[#allocation2 + $0xc8] sm:$0xff]
      %v4485 = vld [vmem:[#allocation2 + $0xd0] sm:$0xff]
      %v4486 = vld [vmem:[#allocation2 + $0xd8] sm:$0xff]
      %v4487 = vld [vmem:[#allocation2 + $0xe0] sm:$0xff]
      %v4488 = vld [vmem:[#allocation2 + $0xe8] sm:$0xff]
      %v4489 = vld [vmem:[#allocation2 + $0xf0] sm:$0xff]
      %v4490 = vld [vmem:[#allocation2 + $0xf8] sm:$0xff]
      %v4491 = vld [vmem:[#allocation2 + $0x100] sm:$0xff]
      %v4492 = vld [vmem:[#allocation2 + $0x108] sm:$0xff]
      %v4493 = vld [vmem:[#allocation2 + $0x110] sm:$0xff]
      %v4494 = vld [vmem:[#allocation2 + $0x118] sm:$0xff]
      %v4495 = vld [vmem:[#allocation2 + $0x120] sm:$0xff]
      %v4496 = vld [vmem:[#allocation2 + $0x128] sm:$0xff]
      %v4497 = vld [vmem:[#allocation2 + $0x130] sm:$0xff]
      %v4498 = vld [vmem:[#allocation2 + $0x138] sm:$0xff]
      %v4499 = vld [vmem:[#allocation2 + $0x140] sm:$0xff]
      %v4500 = vld [vmem:[#allocation2 + $0x148] sm:$0xff]
      %v4501 = vld [vmem:[#allocation2 + $0x150] sm:$0xff]
      %v4502 = vld [vmem:[#allocation2 + $0x158] sm:$0xff]
      %v4503 = vld [vmem:[#allocation2 + $0x160] sm:$0xff]
      %v4504 = vld [vmem:[#allocation2 + $0x168] sm:$0xff]
      %v4505 = vld [vmem:[#allocation2 + $0x170] sm:$0xff]
      %v4506 = vld [vmem:[#allocation2 + $0x178] sm:$0xff]
      %v4507 = vld [vmem:[#allocation2 + $0x180] sm:$0xff]
      %v4508 = vld [vmem:[#allocation2 + $0x188] sm:$0xff]
      %v4509 = vld [vmem:[#allocation2 + $0x190] sm:$0xff]
      %v4510 = vld [vmem:[#allocation2 + $0x198] sm:$0xff]
      %v4511 = vld [vmem:[#allocation2 + $0x1a0] sm:$0xff]
      %v4512 = vld [vmem:[#allocation2 + $0x1a8] sm:$0xff]
      %v4513 = vld [vmem:[#allocation2 + $0x1b0] sm:$0xff]
      %v4514 = vld [vmem:[#allocation2 + $0x1b8] sm:$0xff]
      %v4515 = vld [vmem:[#allocation2 + $0x1c0] sm:$0xff]
      %v4516 = vld [vmem:[#allocation2 + $0x1c8] sm:$0xff]
      %v4517 = vld [vmem:[#allocation2 + $0x1d0] sm:$0xff]
      %v4518 = vld [vmem:[#allocation2 + $0x1d8] sm:$0xff]
      %v4519 = vld [vmem:[#allocation2 + $0x1e0] sm:$0xff]
      %v4520 = vld [vmem:[#allocation2 + $0x1e8] sm:$0xff]
      %v4521 = vld [vmem:[#allocation2 + $0x1f0] sm:$0xff]
      %v4522 = vld [vmem:[#allocation2 + $0x1f8] sm:$0xff]
      %v4523 = vld [vmem:[#allocation2 + $0x200] sm:$0xff]
      %v4524 = vld [vmem:[#allocation2 + $0x208] sm:$0xff]
      %v4525 = vld [vmem:[#allocation2 + $0x210] sm:$0xff]
      %v4526 = vld [vmem:[#allocation2 + $0x218] sm:$0xff]
      %v4527 = vld [vmem:[#allocation2 + $0x220] sm:$0xff]
      %v4528 = vld [vmem:[#allocation2 + $0x228] sm:$0xff]
      %v4529 = vld [vmem:[#allocation2 + $0x230] sm:$0xff]
      %v4530 = vld [vmem:[#allocation2 + $0x238] sm:$0xff]
      %v4531 = vld [vmem:[#allocation2 + $0x240] sm:$0xff]
      %v4532 = vld [vmem:[#allocation2 + $0x248] sm:$0xff]
      %v4533 = vld [vmem:[#allocation2 + $0x250] sm:$0xff]
      %v4534 = vld [vmem:[#allocation2 + $0x258] sm:$0xff]
      %v4535 = vld [vmem:[#allocation2 + $0x260] sm:$0xff]
      %v4536 = vld [vmem:[#allocation2 + $0x268] sm:$0xff]
      %v4537 = vld [vmem:[#allocation2 + $0x270] sm:$0xff]
      %v4538 = vld [vmem:[#allocation2 + $0x278] sm:$0xff]
      %v4539 = vld [vmem:[#allocation2 + $0x280] sm:$0xff]
      %v4540 = vld [vmem:[#allocation2 + $0x288] sm:$0xff]
      %v4541 = vld [vmem:[#allocation2 + $0x290] sm:$0xff]
      %v4542 = vld [vmem:[#allocation2 + $0x298] sm:$0xff]
      %v4543 = vld [vmem:[#allocation2 + $0x2a0] sm:$0xff]
      %v4544 = vld [vmem:[#allocation2 + $0x2a8] sm:$0xff]
      %v4545 = vld [vmem:[#allocation2 + $0x2b0] sm:$0xff]
      %v4546 = vld [vmem:[#allocation2 + $0x2b8] sm:$0xff]
      %v4547 = vld [vmem:[#allocation2 + $0x2c0] sm:$0xff]
      %v4548 = vld [vmem:[#allocation2 + $0x2c8] sm:$0xff]
      %v4549 = vld [vmem:[#allocation2 + $0x2d0] sm:$0xff]
      %v4550 = vld [vmem:[#allocation2 + $0x2d8] sm:$0xff]
      %v4551 = vld [vmem:[#allocation2 + $0x2e0] sm:$0xff]
      %v4552 = vld [vmem:[#allocation2 + $0x2e8] sm:$0xff]
      %v4553 = vld [vmem:[#allocation2 + $0x2f0] sm:$0xff]
      %v4554 = vld [vmem:[#allocation2 + $0x2f8] sm:$0xff]
      %v4555 = vld [vmem:[#allocation2 + $0x300] sm:$0xff]
      %v4556 = vld [vmem:[#allocation2 + $0x308] sm:$0xff]
      %v4557 = vld [vmem:[#allocation2 + $0x310] sm:$0xff]
      %v4558 = vld [vmem:[#allocation2 + $0x318] sm:$0xff]
      %v4559 = vld [vmem:[#allocation2 + $0x320] sm:$0xff]
      %v4560 = vld [vmem:[#allocation2 + $0x328] sm:$0xff]
      %v4561 = vld [vmem:[#allocation2 + $0x330] sm:$0xff]
      %v4562 = vld [vmem:[#allocation2 + $0x338] sm:$0xff]
      %v4563 = vld [vmem:[#allocation2 + $0x340] sm:$0xff]
      %v4564 = vld [vmem:[#allocation2 + $0x348] sm:$0xff]
      %v4565 = vld [vmem:[#allocation2 + $0x350] sm:$0xff]
      %v4566 = vld [vmem:[#allocation2 + $0x358] sm:$0xff]
      %v4567 = vld [vmem:[#allocation2 + $0x360] sm:$0xff]
      %v4568 = vld [vmem:[#allocation2 + $0x368] sm:$0xff]
      %v4569 = vld [vmem:[#allocation2 + $0x370] sm:$0xff]
      %v4571 = vsel %vm403, %v4455, 0
      %v4574 = vsel %vm403, %v4458, 0
      %4576 = vmatprep.subr.mxu0 %v4460
      %4577 = vmatpush1.msra.mxu0 %v4459
      %4578 = vmatprep.subr.mxu0 %v4463
      %4579 = vmatpush1.msra.mxu0 %v4462
      %4580 = vmatprep.subr.mxu0 %v4466
      %4581 = vmatpush1.msra.mxu0 %v4465
      %4582 = vmatprep.subr.mxu0 %v4469
      %4583 = vmatpush1.msra.mxu0 %v4468
      %4584 = vmatprep.subr.mxu0 %v4472
      %4585 = vmatpush1.msra.mxu0 %v4471
      %4586 = vmatprep.subr.mxu0 %v4475
      %4587 = vmatpush1.msra.mxu0 %v4474
      %4588 = vmatprep.subr.mxu0 %v4478
      %4589 = vmatpush1.msra.mxu0 %v4477
      %4590 = vmatprep.subr.mxu0 %v4481
      %4591 = vmatpush1.msra.mxu0 %v4480
      %4592 = vmatprep.subr.mxu0 %v4484
      %4593 = vmatpush1.msra.mxu0 %v4483
      %4594 = vmatprep.subr.mxu0 %v4487
      %4595 = vmatpush1.msra.mxu0 %v4486
      %4596 = vmatprep.subr.mxu0 %v4490
      %4597 = vmatpush1.msra.mxu0 %v4489
      %4598 = vmatprep.subr.mxu0 %v4493
      %4599 = vmatpush1.msra.mxu0 %v4492
      %4600 = vmatprep.subr.mxu0 %v4496
      %4601 = vmatpush1.msra.mxu0 %v4495
      %4602 = vmatprep.subr.mxu0 %v4499
      %4603 = vmatpush1.msra.mxu0 %v4498
      %4604 = vmatprep.subr.mxu0 %v4502
      %4605 = vmatpush1.msra.mxu0 %v4501
      %4606 = vmatprep.subr.mxu0 %v4505
      %4607 = vmatpush1.msra.mxu0 %v4504
      %4608 = vmatprep.subr.mxu0 %v4508
      %4609 = vmatpush1.msra.mxu0 %v4507
      %4610 = vmatprep.subr.mxu0 %v4511
      %4611 = vmatpush1.msra.mxu0 %v4510
      %4612 = vmatprep.subr.mxu0 %v4514
      %4613 = vmatpush1.msra.mxu0 %v4513
      %4614 = vmatprep.subr.mxu0 %v4517
      %4615 = vmatpush1.msra.mxu0 %v4516
      %4616 = vmatprep.subr.mxu0 %v4520
      %4617 = vmatpush1.msra.mxu0 %v4519
      %4618 = vmatprep.subr.mxu0 %v4523
      %4619 = vmatpush1.msra.mxu0 %v4522
      %4620 = vmatprep.subr.mxu0 %v4526
      %4621 = vmatpush1.msra.mxu0 %v4525
      %4622 = vmatprep.subr.mxu0 %v4529
      %4623 = vmatpush1.msra.mxu0 %v4528
      %4624 = vmatprep.subr.mxu0 %v4532
      %4625 = vmatpush1.msra.mxu0 %v4531
      %4626 = vmatprep.subr.mxu0 %v4535
      %4627 = vmatpush1.msra.mxu0 %v4534
      %4628 = vmatprep.subr.mxu0 %v4538
      %4629 = vmatpush1.msra.mxu0 %v4537
      %4630 = vmatprep.subr.mxu0 %v4541
      %4631 = vmatpush1.msra.mxu0 %v4540
      %4632 = vmatprep.subr.mxu0 %v4544
      %4633 = vmatpush1.msra.mxu0 %v4543
      %4634 = vmatprep.subr.mxu0 %v4547
      %4635 = vmatpush1.msra.mxu0 %v4546
      %4636 = vmatprep.subr.mxu0 %v4550
      %4637 = vmatpush1.msra.mxu0 %v4549
      %4638 = vmatprep.subr.mxu0 %v4553
      %4639 = vmatpush1.msra.mxu0 %v4552
      %4640 = vmatprep.mubr.f32.mxu0 %v4454
      %4641 = vmatmul.mubr.f32.gmra.mrb[0].mxu0 %v4453
      %v4642 = vpop.f32.mrb[0].mxu0
      %v4643 = vadd.f32 0.0, %v4642
      %v4644 = vpop.f32.mrb[0].mxu0
      %v4645 = vadd.f32 0.0, %v4644
      %4646 = vmatprep.mubr.f32.mxu0 %v4457
      %4647 = vmatmul.mubr.f32.gmra.mrb[0].mxu0 %v4456
      %v4648 = vpop.f32.mrb[0].mxu0
      %v4649 = vadd.f32 0.0, %v4648
      %v4650 = vpop.f32.mrb[0].mxu0
      %v4651 = vadd.f32 0.0, %v4650
      %4652 = vdwg.mxu0
      %4653 = vmatprep.subr.mxu0 %v4556
      %4654 = vmatpush1.msra.mxu0 %v4555
      %4655 = vmatprep.subr.mxu0 %v4559
      %4656 = vmatpush1.msra.mxu0 %v4558
      %4657 = vmatprep.subr.mxu0 %v4562
      %4658 = vmatpush1.msra.mxu0 %v4561
      %4659 = vmatprep.subr.mxu0 %v4565
      %4660 = vmatpush1.msra.mxu0 %v4564
      %4661 = vmatprep.subr.mxu0 %v4568
      %4662 = vmatpush1.msra.mxu0 %v4567
      %4663 = vmatprep.subr.mxu0 0.0
      %4664 = vmatpush1.msra.mxu0 0.0
      %4665 = vmatprep.subr.mxu0 0.0
      %4666 = vmatpush1.msra.mxu0 0.0
      %4667 = vmatprep.subr.mxu0 0.0
      %4668 = vmatpush1.msra.mxu0 0.0
      %4669 = vmatprep.subr.mxu0 0.0
      %4670 = vmatpush1.msra.mxu0 0.0
      %4671 = vmatprep.subr.mxu0 0.0
      %4672 = vmatpush1.msra.mxu0 0.0
      %4673 = vmatprep.subr.mxu0 0.0
      %4674 = vmatpush1.msra.mxu0 0.0
      %4675 = vmatprep.subr.mxu0 0.0
      %4676 = vmatpush1.msra.mxu0 0.0
      %4677 = vmatprep.subr.mxu0 0.0
      %4678 = vmatpush1.msra.mxu0 0.0
      %4679 = vmatprep.subr.mxu0 0.0
      %4680 = vmatpush1.msra.mxu0 0.0
      %4681 = vmatprep.subr.mxu0 0.0
      %4682 = vmatpush1.msra.mxu0 0.0
      %4683 = vmatprep.subr.mxu0 0.0
      %4684 = vmatpush1.msra.mxu0 0.0
      %4685 = vmatprep.subr.mxu0 0.0
      %4686 = vmatpush1.msra.mxu0 0.0
      %4687 = vmatprep.subr.mxu0 0.0
      %4688 = vmatpush1.msra.mxu0 0.0
      %4689 = vmatprep.subr.mxu0 0.0
      %4690 = vmatpush1.msra.mxu0 0.0
      %4691 = vmatprep.subr.mxu0 0.0
      %4692 = vmatpush1.msra.mxu0 0.0
      %4693 = vmatprep.subr.mxu0 0.0
      %4694 = vmatpush1.msra.mxu0 0.0
      %4695 = vmatprep.subr.mxu0 0.0
      %4696 = vmatpush1.msra.mxu0 0.0
      %4697 = vmatprep.subr.mxu0 0.0
      %4698 = vmatpush1.msra.mxu0 0.0
      %4699 = vmatprep.subr.mxu0 0.0
      %4700 = vmatpush1.msra.mxu0 0.0
      %4701 = vmatprep.subr.mxu0 0.0
      %4702 = vmatpush1.msra.mxu0 0.0
      %4703 = vmatprep.subr.mxu0 0.0
      %4704 = vmatpush1.msra.mxu0 0.0
      %4705 = vmatprep.subr.mxu0 0.0
      %4706 = vmatpush1.msra.mxu0 0.0
      %4707 = vmatprep.subr.mxu0 0.0
      %4708 = vmatpush1.msra.mxu0 0.0
      %4709 = vmatprep.subr.mxu0 0.0
      %4710 = vmatpush1.msra.mxu0 0.0
      %4711 = vmatprep.subr.mxu0 0.0
      %4712 = vmatpush1.msra.mxu0 0.0
      %4713 = vmatprep.subr.mxu0 0.0
      %4714 = vmatpush1.msra.mxu0 0.0
      %4715 = vmatprep.subr.mxu0 0.0
      %4716 = vmatpush1.msra.mxu0 0.0
      %4717 = vmatprep.mubr.f32.mxu0 0.0
      %4718 = vmatmul.mubr.f32.gmra.mrb[0].mxu0 %v4571
      %v4719 = vpop.f32.mrb[0].mxu0
      %v4720 = vadd.f32 %v4643, %v4719
      %v4721 = vpop.f32.mrb[0].mxu0
      %v4722 = vadd.f32 %v4645, %v4721
      %4723 = vmatprep.mubr.f32.mxu0 0.0
      %4724 = vmatmul.mubr.f32.gmra.mrb[0].mxu0 %v4574
      %v4725 = vpop.f32.mrb[0].mxu0
      %v4726 = vadd.f32 %v4649, %v4725
      %v4727 = vpop.f32.mrb[0].mxu0
      %v4728 = vadd.f32 %v4651, %v4727
      %4729 = vdwg.mxu0
      %4730 = vmatprep.subr.mxu0 0.0
      %4731 = vmatpush1.msra.mxu0 %v4461
      %4732 = vmatprep.subr.mxu0 0.0
      %4733 = vmatpush1.msra.mxu0 %v4464
      %4734 = vmatprep.subr.mxu0 0.0
      %4735 = vmatpush1.msra.mxu0 %v4467
      %4736 = vmatprep.subr.mxu0 0.0
      %4737 = vmatpush1.msra.mxu0 %v4470
      %4738 = vmatprep.subr.mxu0 0.0
      %4739 = vmatpush1.msra.mxu0 %v4473
      %4740 = vmatprep.subr.mxu0 0.0
      %4741 = vmatpush1.msra.mxu0 %v4476
      %4742 = vmatprep.subr.mxu0 0.0
      %4743 = vmatpush1.msra.mxu0 %v4479
      %4744 = vmatprep.subr.mxu0 0.0
      %4745 = vmatpush1.msra.mxu0 %v4482
      %4746 = vmatprep.subr.mxu0 0.0
      %4747 = vmatpush1.msra.mxu0 %v4485
      %4748 = vmatprep.subr.mxu0 0.0
      %4749 = vmatpush1.msra.mxu0 %v4488
      %4750 = vmatprep.subr.mxu0 0.0
      %4751 = vmatpush1.msra.mxu0 %v4491
      %4752 = vmatprep.subr.mxu0 0.0
      %4753 = vmatpush1.msra.mxu0 %v4494
      %4754 = vmatprep.subr.mxu0 0.0
      %4755 = vmatpush1.msra.mxu0 %v4497
      %4756 = vmatprep.subr.mxu0 0.0
      %4757 = vmatpush1.msra.mxu0 %v4500
      %4758 = vmatprep.subr.mxu0 0.0
      %4759 = vmatpush1.msra.mxu0 %v4503
      %4760 = vmatprep.subr.mxu0 0.0
      %4761 = vmatpush1.msra.mxu0 %v4506
      %4762 = vmatprep.subr.mxu0 0.0
      %4763 = vmatpush1.msra.mxu0 %v4509
      %4764 = vmatprep.subr.mxu0 0.0
      %4765 = vmatpush1.msra.mxu0 %v4512
      %4766 = vmatprep.subr.mxu0 0.0
      %4767 = vmatpush1.msra.mxu0 %v4515
      %4768 = vmatprep.subr.mxu0 0.0
      %4769 = vmatpush1.msra.mxu0 %v4518
      %4770 = vmatprep.subr.mxu0 0.0
      %4771 = vmatpush1.msra.mxu0 %v4521
      %4772 = vmatprep.subr.mxu0 0.0
      %4773 = vmatpush1.msra.mxu0 %v4524
      %4774 = vmatprep.subr.mxu0 0.0
      %4775 = vmatpush1.msra.mxu0 %v4527
      %4776 = vmatprep.subr.mxu0 0.0
      %4777 = vmatpush1.msra.mxu0 %v4530
      %4778 = vmatprep.subr.mxu0 0.0
      %4779 = vmatpush1.msra.mxu0 %v4533
      %4780 = vmatprep.subr.mxu0 0.0
      %4781 = vmatpush1.msra.mxu0 %v4536
      %4782 = vmatprep.subr.mxu0 0.0
      %4783 = vmatpush1.msra.mxu0 %v4539
      %4784 = vmatprep.subr.mxu0 0.0
      %4785 = vmatpush1.msra.mxu0 %v4542
      %4786 = vmatprep.subr.mxu0 0.0
      %4787 = vmatpush1.msra.mxu0 %v4545
      %4788 = vmatprep.subr.mxu0 0.0
      %4789 = vmatpush1.msra.mxu0 %v4548
      %4790 = vmatprep.subr.mxu0 0.0
      %4791 = vmatpush1.msra.mxu0 %v4551
      %4792 = vmatprep.subr.mxu0 0.0
      %4793 = vmatpush1.msra.mxu0 %v4554
      %4794 = vmatprep.mubr.f32.mxu0 %v4454
      %4795 = vmatmul.mubr.f32.gmra.mrb[0].mxu0 %v4453
      %v4796 = vpop.f32.mrb[0].mxu0
      %v4797 = vadd.f32 0.0, %v4796
      %v4798 = vpop.f32.mrb[0].mxu0
      %4799 = vmatprep.mubr.f32.mxu0 %v4457
      %4800 = vmatmul.mubr.f32.gmra.mrb[0].mxu0 %v4456
      %v4801 = vpop.f32.mrb[0].mxu0
      %v4802 = vadd.f32 0.0, %v4801
      %v4803 = vpop.f32.mrb[0].mxu0
      %4804 = vdwg.mxu0
      %4805 = vmatprep.subr.mxu0 0.0
      %4806 = vmatpush1.msra.mxu0 %v4557
      %4807 = vmatprep.subr.mxu0 0.0
      %4808 = vmatpush1.msra.mxu0 %v4560
      %4809 = vmatprep.subr.mxu0 0.0
      %4810 = vmatpush1.msra.mxu0 %v4563
      %4811 = vmatprep.subr.mxu0 0.0
      %4812 = vmatpush1.msra.mxu0 %v4566
      %4813 = vmatprep.subr.mxu0 0.0
      %4814 = vmatpush1.msra.mxu0 %v4569
      %4815 = vmatprep.subr.mxu0 0.0
      %4816 = vmatpush1.msra.mxu0 0.0
      %4817 = vmatprep.subr.mxu0 0.0
      %4818 = vmatpush1.msra.mxu0 0.0
      %4819 = vmatprep.subr.mxu0 0.0
      %4820 = vmatpush1.msra.mxu0 0.0
      %4821 = vmatprep.subr.mxu0 0.0
      %4822 = vmatpush1.msra.mxu0 0.0
      %4823 = vmatprep.subr.mxu0 0.0
      %4824 = vmatpush1.msra.mxu0 0.0
      %4825 = vmatprep.subr.mxu0 0.0
      %4826 = vmatpush1.msra.mxu0 0.0
      %4827 = vmatprep.subr.mxu0 0.0
      %4828 = vmatpush1.msra.mxu0 0.0
      %4829 = vmatprep.subr.mxu0 0.0
      %4830 = vmatpush1.msra.mxu0 0.0
      %4831 = vmatprep.subr.mxu0 0.0
      %4832 = vmatpush1.msra.mxu0 0.0
      %4833 = vmatprep.subr.mxu0 0.0
      %4834 = vmatpush1.msra.mxu0 0.0
      %4835 = vmatprep.subr.mxu0 0.0
      %4836 = vmatpush1.msra.mxu0 0.0
      %4837 = vmatprep.subr.mxu0 0.0
      %4838 = vmatpush1.msra.mxu0 0.0
      %4839 = vmatprep.subr.mxu0 0.0
      %4840 = vmatpush1.msra.mxu0 0.0
      %4841 = vmatprep.subr.mxu0 0.0
      %4842 = vmatpush1.msra.mxu0 0.0
      %4843 = vmatprep.subr.mxu0 0.0
      %4844 = vmatpush1.msra.mxu0 0.0
      %4845 = vmatprep.subr.mxu0 0.0
      %4846 = vmatpush1.msra.mxu0 0.0
      %4847 = vmatprep.subr.mxu0 0.0
      %4848 = vmatpush1.msra.mxu0 0.0
      %4849 = vmatprep.subr.mxu0 0.0
      %4850 = vmatpush1.msra.mxu0 0.0
      %4851 = vmatprep.subr.mxu0 0.0
      %4852 = vmatpush1.msra.mxu0 0.0
      %4853 = vmatprep.subr.mxu0 0.0
      %4854 = vmatpush1.msra.mxu0 0.0
      %4855 = vmatprep.subr.mxu0 0.0
      %4856 = vmatpush1.msra.mxu0 0.0
      %4857 = vmatprep.subr.mxu0 0.0
      %4858 = vmatpush1.msra.mxu0 0.0
      %4859 = vmatprep.subr.mxu0 0.0
      %4860 = vmatpush1.msra.mxu0 0.0
      %4861 = vmatprep.subr.mxu0 0.0
      %4862 = vmatpush1.msra.mxu0 0.0
      %4863 = vmatprep.subr.mxu0 0.0
      %4864 = vmatpush1.msra.mxu0 0.0
      %4865 = vmatprep.subr.mxu0 0.0
      %4866 = vmatpush1.msra.mxu0 0.0
      %4867 = vmatprep.subr.mxu0 0.0
      %4868 = vmatpush1.msra.mxu0 0.0
      %4869 = vmatprep.mubr.f32.mxu0 0.0
      %4870 = vmatmul.mubr.f32.gmra.mrb[0].mxu0 %v4571
      %v4871 = vpop.f32.mrb[0].mxu0
      %v4872 = vadd.f32 %v4797, %v4871
      %v4873 = vpop.f32.mrb[0].mxu0
      %4874 = vmatprep.mubr.f32.mxu0 0.0
      %4875 = vmatmul.mubr.f32.gmra.mrb[0].mxu0 %v4574
      %v4876 = vpop.f32.mrb[0].mxu0
      %v4877 = vadd.f32 %v4802, %v4876
      %v4878 = vpop.f32.mrb[0].mxu0
      %4879 = vdwg.mxu0
      %v4880 = vmax.f32 %v4720, 0.0
      %v4881 = vmax.f32 %v4722, 0.0
      %v4882 = vmax.f32 %v4872, 0.0
      %v4883 = vmax.f32 %v4726, 0.0
      %v4884 = vmax.f32 %v4728, 0.0
      %v4885 = vmax.f32 %v4877, 0.0
      %v4886 = vsel %vm564, %v4880, 0.0
      %v4887 = vsel %vm565, %v4881, 0.0
      %v4888 = vsel %vm566, %v4882, 0.0
      %v4889 = vsel %vm564, %v4883, 0.0
      %v4890 = vsel %vm565, %v4884, 0.0
      %v4891 = vsel %vm566, %v4885, 0.0
      %4892 = vrot.lane.b32.xlu0 %v4886, 19
      %v4893 = vpop.permute.xlu0 %4892
      %4894 = vrot.lane.b32.xlu0 %v4889, 19
      %v4895 = vpop.permute.xlu0 %4894
      %4896 = vrot.lane.b32.xlu0 %v4887, 19
      %v4897 = vpop.permute.xlu0 %4896
      %4898 = vrot.lane.b32.xlu0 %v4890, 19
      %v4899 = vpop.permute.xlu0 %4898
      %4900 = vrot.lane.b32.xlu0 %v4888, 19
      %v4901 = vpop.permute.xlu0 %4900
      %4902 = vrot.lane.b32.xlu0 %v4891, 19
      %v4903 = vpop.permute.xlu0 %4902
      %v4904 = vsel %vm193, %v4897, %v4901
      %v4905 = vsel %vm193, %v4899, %v4903
      %v4906 = vsel %vm193, %v4893, %v4897
      %v4907 = vsel %vm193, %v4895, %v4899
      %v4908 = vsel %vm193, %v4901, %v4893
      %v4909 = vsel %vm193, %v4903, %v4895
      %v4916 = vrot.slane %v4908, 7
      %v4917 = vrot.slane %v4906, 7
      %v4918 = vrot.slane %v4904, 7
      %v4919 = vrot.slane %v4909, 7
      %v4920 = vsel %vm1007, %v4916, %v4919
      %v4921 = vrot.slane %v4907, 7
      %v4922 = vsel %vm1007, %v4917, %v4921
      %v4923 = vrot.slane %v4905, 7
      %v4924 = vsel %vm1007, %v4918, %v4923
      %4934 = vst [vmem:[#allocation2] sm:$0xfe] %v4916
      %4935 = vst [vmem:[#allocation2 + $0x8] sm:$0xfe] %v4917
      %4936 = vst [vmem:[#allocation2 + $0x10] sm:$0xfe] %v4918
      %4937 = vst [vmem:[#allocation2 + $0x18] sm:$0xff] %v4920
      %4938 = vst [vmem:[#allocation2 + $0x20] sm:$0xff] %v4922
      %4939 = vst [vmem:[#allocation2 + $0x28] sm:$0xff] %v4924
      %4940 = vst [vmem:[#allocation2 + $0x30] sm:$0x1] %v4919
      %4941 = vst [vmem:[#allocation2 + $0x38] sm:$0x1] %v4921
      %4942 = vst [vmem:[#allocation2 + $0x40] sm:$0x1] %v4923
      %4943 = vrot.lane.b32.xlu0 %v4886, 18
      %v4944 = vpop.permute.xlu0 %4943
      %4945 = vrot.lane.b32.xlu0 %v4889, 18
      %v4946 = vpop.permute.xlu0 %4945
      %4947 = vrot.lane.b32.xlu0 %v4887, 18
      %v4948 = vpop.permute.xlu0 %4947
      %4949 = vrot.lane.b32.xlu0 %v4890, 18
      %v4950 = vpop.permute.xlu0 %4949
      %4951 = vrot.lane.b32.xlu0 %v4888, 18
      %v4952 = vpop.permute.xlu0 %4951
      %4953 = vrot.lane.b32.xlu0 %v4891, 18
      %v4954 = vpop.permute.xlu0 %4953
      %v4955 = vsel %vm215, %v4948, %v4952
      %v4956 = vsel %vm215, %v4950, %v4954
      %v4957 = vsel %vm215, %v4944, %v4948
      %v4958 = vsel %vm215, %v4946, %v4950
      %v4959 = vsel %vm215, %v4952, %v4944
      %v4960 = vsel %vm215, %v4954, %v4946
      %v4967 = vrot.slane %v4959, 7
      %v4968 = vrot.slane %v4957, 7
      %v4969 = vrot.slane %v4955, 7
      %v4970 = vrot.slane %v4960, 7
      %v4971 = vsel %vm1007, %v4967, %v4970
      %v4972 = vrot.slane %v4958, 7
      %v4973 = vsel %vm1007, %v4968, %v4972
      %v4974 = vrot.slane %v4956, 7
      %v4975 = vsel %vm1007, %v4969, %v4974
      %4985 = vst [vmem:[#allocation2 + $0x30] sm:$0xfe] %v4967
      %4986 = vst [vmem:[#allocation2 + $0x38] sm:$0xfe] %v4968
      %4987 = vst [vmem:[#allocation2 + $0x40] sm:$0xfe] %v4969
      %4988 = vst [vmem:[#allocation2 + $0x48] sm:$0xff] %v4971
      %4989 = vst [vmem:[#allocation2 + $0x50] sm:$0xff] %v4973
      %4990 = vst [vmem:[#allocation2 + $0x58] sm:$0xff] %v4975
      %4991 = vst [vmem:[#allocation2 + $0x60] sm:$0x1] %v4970
      %4992 = vst [vmem:[#allocation2 + $0x68] sm:$0x1] %v4972
      %4993 = vst [vmem:[#allocation2 + $0x70] sm:$0x1] %v4974
      %4994 = vrot.lane.b32.xlu0 %v4886, 17
      %v4995 = vpop.permute.xlu0 %4994
      %4996 = vrot.lane.b32.xlu0 %v4889, 17
      %v4997 = vpop.permute.xlu0 %4996
      %4998 = vrot.lane.b32.xlu0 %v4887, 17
      %v4999 = vpop.permute.xlu0 %4998
      %5000 = vrot.lane.b32.xlu0 %v4890, 17
      %v5001 = vpop.permute.xlu0 %5000
      %5002 = vrot.lane.b32.xlu0 %v4888, 17
      %v5003 = vpop.permute.xlu0 %5002
      %5004 = vrot.lane.b32.xlu0 %v4891, 17
      %v5005 = vpop.permute.xlu0 %5004
      %v5006 = vsel %vm240, %v4999, %v5003
      %v5007 = vsel %vm240, %v5001, %v5005
      %v5008 = vsel %vm240, %v4995, %v4999
      %v5009 = vsel %vm240, %v4997, %v5001
      %v5010 = vsel %vm240, %v5003, %v4995
      %v5011 = vsel %vm240, %v5005, %v4997
      %v5018 = vrot.slane %v5010, 7
      %v5019 = vrot.slane %v5008, 7
      %v5020 = vrot.slane %v5006, 7
      %v5021 = vrot.slane %v5011, 7
      %v5022 = vsel %vm1007, %v5018, %v5021
      %v5023 = vrot.slane %v5009, 7
      %v5024 = vsel %vm1007, %v5019, %v5023
      %v5025 = vrot.slane %v5007, 7
      %v5026 = vsel %vm1007, %v5020, %v5025
      %5036 = vst [vmem:[#allocation2 + $0x60] sm:$0xfe] %v5018
      %5037 = vst [vmem:[#allocation2 + $0x68] sm:$0xfe] %v5019
      %5038 = vst [vmem:[#allocation2 + $0x70] sm:$0xfe] %v5020
      %5039 = vst [vmem:[#allocation2 + $0x78] sm:$0xff] %v5022
      %5040 = vst [vmem:[#allocation2 + $0x80] sm:$0xff] %v5024
      %5041 = vst [vmem:[#allocation2 + $0x88] sm:$0xff] %v5026
      %5042 = vst [vmem:[#allocation2 + $0x90] sm:$0x1] %v5021
      %5043 = vst [vmem:[#allocation2 + $0x98] sm:$0x1] %v5023
      %5044 = vst [vmem:[#allocation2 + $0xa0] sm:$0x1] %v5025
      %5045 = vrot.lane.b32.xlu0 %v4886, 1
      %v5046 = vpop.permute.xlu0 %5045
      %5047 = vrot.lane.b32.xlu0 %v4889, 1
      %v5048 = vpop.permute.xlu0 %5047
      %5049 = vrot.lane.b32.xlu0 %v4887, 1
      %v5050 = vpop.permute.xlu0 %5049
      %5051 = vrot.lane.b32.xlu0 %v4890, 1
      %v5052 = vpop.permute.xlu0 %5051
      %5053 = vrot.lane.b32.xlu0 %v4888, 1
      %v5054 = vpop.permute.xlu0 %5053
      %5055 = vrot.lane.b32.xlu0 %v4891, 1
      %v5056 = vpop.permute.xlu0 %5055
      %v5057 = vsel %vm262, %v5050, %v5054
      %v5058 = vsel %vm262, %v5052, %v5056
      %v5059 = vsel %vm262, %v5046, %v5050
      %v5060 = vsel %vm262, %v5048, %v5052
      %v5061 = vsel %vm262, %v5054, %v5046
      %v5062 = vsel %vm262, %v5056, %v5048
      %v5069 = vrot.slane %v5061, 7
      %v5070 = vrot.slane %v5059, 7
      %v5071 = vrot.slane %v5057, 7
      %v5072 = vrot.slane %v5062, 7
      %v5073 = vsel %vm1007, %v5069, %v5072
      %v5074 = vrot.slane %v5060, 7
      %v5075 = vsel %vm1007, %v5070, %v5074
      %v5076 = vrot.slane %v5058, 7
      %v5077 = vsel %vm1007, %v5071, %v5076
      %5087 = vst [vmem:[#allocation2 + $0x90] sm:$0xfe] %v5069
      %5088 = vst [vmem:[#allocation2 + $0x98] sm:$0xfe] %v5070
      %5089 = vst [vmem:[#allocation2 + $0xa0] sm:$0xfe] %v5071
      %5090 = vst [vmem:[#allocation2 + $0xa8] sm:$0xff] %v5073
      %5091 = vst [vmem:[#allocation2 + $0xb0] sm:$0xff] %v5075
      %5092 = vst [vmem:[#allocation2 + $0xb8] sm:$0xff] %v5077
      %5093 = vst [vmem:[#allocation2 + $0xc0] sm:$0x1] %v5072
      %5094 = vst [vmem:[#allocation2 + $0xc8] sm:$0x1] %v5074
      %5095 = vst [vmem:[#allocation2 + $0xd0] sm:$0x1] %v5076
      %v5102 = vrot.slane %v4886, 7
      %v5103 = vrot.slane %v4887, 7
      %v5104 = vrot.slane %v4888, 7
      %v5105 = vrot.slane %v4889, 7
      %v5106 = vsel %vm1007, %v5102, %v5105
      %v5107 = vrot.slane %v4890, 7
      %v5108 = vsel %vm1007, %v5103, %v5107
      %v5109 = vrot.slane %v4891, 7
      %v5110 = vsel %vm1007, %v5104, %v5109
      %5120 = vst [vmem:[#allocation2 + $0xc0] sm:$0xfe] %v5102
      %5121 = vst [vmem:[#allocation2 + $0xc8] sm:$0xfe] %v5103
      %5122 = vst [vmem:[#allocation2 + $0xd0] sm:$0xfe] %v5104
      %5123 = vst [vmem:[#allocation2 + $0xd8] sm:$0xff] %v5106
      %5124 = vst [vmem:[#allocation2 + $0xe0] sm:$0xff] %v5108
      %5125 = vst [vmem:[#allocation2 + $0xe8] sm:$0xff] %v5110
      %5126 = vst [vmem:[#allocation2 + $0xf0] sm:$0x1] %v5105
      %5127 = vst [vmem:[#allocation2 + $0xf8] sm:$0x1] %v5107
      %5128 = vst [vmem:[#allocation2 + $0x100] sm:$0x1] %v5109
      %5129 = vrot.lane.b32.xlu0 %v4886, 127
      %v5130 = vpop.permute.xlu0 %5129
      %5131 = vrot.lane.b32.xlu0 %v4889, 127
      %v5132 = vpop.permute.xlu0 %5131
      %5133 = vrot.lane.b32.xlu0 %v4887, 127
      %v5134 = vpop.permute.xlu0 %5133
      %5135 = vrot.lane.b32.xlu0 %v4890, 127
      %v5136 = vpop.permute.xlu0 %5135
      %5137 = vrot.lane.b32.xlu0 %v4888, 127
      %v5138 = vpop.permute.xlu0 %5137
      %5139 = vrot.lane.b32.xlu0 %v4891, 127
      %v5140 = vpop.permute.xlu0 %5139
      %v5141 = vsel %vm296, %v5134, %v5138
      %v5142 = vsel %vm296, %v5136, %v5140
      %v5143 = vsel %vm296, %v5130, %v5134
      %v5144 = vsel %vm296, %v5132, %v5136
      %v5145 = vsel %vm296, %v5138, %v5130
      %v5146 = vsel %vm296, %v5140, %v5132
      %v5153 = vrot.slane %v5143, 7
      %v5154 = vrot.slane %v5141, 7
      %v5155 = vrot.slane %v5145, 7
      %v5156 = vrot.slane %v5144, 7
      %v5157 = vsel %vm1007, %v5153, %v5156
      %v5158 = vrot.slane %v5142, 7
      %v5159 = vsel %vm1007, %v5154, %v5158
      %v5160 = vrot.slane %v5146, 7
      %v5161 = vsel %vm1007, %v5155, %v5160
      %5171 = vst [vmem:[#allocation2 + $0xf0] sm:$0xfe] %v5153
      %5172 = vst [vmem:[#allocation2 + $0xf8] sm:$0xfe] %v5154
      %5173 = vst [vmem:[#allocation2 + $0x100] sm:$0xfe] %v5155
      %5174 = vst [vmem:[#allocation2 + $0x108] sm:$0xff] %v5157
      %5175 = vst [vmem:[#allocation2 + $0x110] sm:$0xff] %v5159
      %5176 = vst [vmem:[#allocation2 + $0x118] sm:$0xff] %v5161
      %5177 = vst [vmem:[#allocation2 + $0x120] sm:$0x1] %v5156
      %5178 = vst [vmem:[#allocation2 + $0x128] sm:$0x1] %v5158
      %5179 = vst [vmem:[#allocation2 + $0x130] sm:$0x1] %v5160
      %5180 = vrot.lane.b32.xlu0 %v4886, 111
      %v5181 = vpop.permute.xlu0 %5180
      %5182 = vrot.lane.b32.xlu0 %v4889, 111
      %v5183 = vpop.permute.xlu0 %5182
      %5184 = vrot.lane.b32.xlu0 %v4887, 111
      %v5185 = vpop.permute.xlu0 %5184
      %5186 = vrot.lane.b32.xlu0 %v4890, 111
      %v5187 = vpop.permute.xlu0 %5186
      %5188 = vrot.lane.b32.xlu0 %v4888, 111
      %v5189 = vpop.permute.xlu0 %5188
      %5190 = vrot.lane.b32.xlu0 %v4891, 111
      %v5191 = vpop.permute.xlu0 %5190
      %v5192 = vsel %vm321, %v5185, %v5189
      %v5193 = vsel %vm321, %v5187, %v5191
      %v5194 = vsel %vm321, %v5181, %v5185
      %v5195 = vsel %vm321, %v5183, %v5187
      %v5196 = vsel %vm321, %v5189, %v5181
      %v5197 = vsel %vm321, %v5191, %v5183
      %v5204 = vrot.slane %v5194, 7
      %v5205 = vrot.slane %v5192, 7
      %v5206 = vrot.slane %v5196, 7
      %v5207 = vrot.slane %v5195, 7
      %v5208 = vsel %vm1007, %v5204, %v5207
      %v5209 = vrot.slane %v5193, 7
      %v5210 = vsel %vm1007, %v5205, %v5209
      %v5211 = vrot.slane %v5197, 7
      %v5212 = vsel %vm1007, %v5206, %v5211
      %5222 = vst [vmem:[#allocation2 + $0x120] sm:$0xfe] %v5204
      %5223 = vst [vmem:[#allocation2 + $0x128] sm:$0xfe] %v5205
      %5224 = vst [vmem:[#allocation2 + $0x130] sm:$0xfe] %v5206
      %5225 = vst [vmem:[#allocation2 + $0x138] sm:$0xff] %v5208
      %5226 = vst [vmem:[#allocation2 + $0x140] sm:$0xff] %v5210
      %5227 = vst [vmem:[#allocation2 + $0x148] sm:$0xff] %v5212
      %5228 = vst [vmem:[#allocation2 + $0x150] sm:$0x1] %v5207
      %5229 = vst [vmem:[#allocation2 + $0x158] sm:$0x1] %v5209
      %5230 = vst [vmem:[#allocation2 + $0x160] sm:$0x1] %v5211
      %5231 = vrot.lane.b32.xlu0 %v4886, 110
      %v5232 = vpop.permute.xlu0 %5231
      %5233 = vrot.lane.b32.xlu0 %v4889, 110
      %v5234 = vpop.permute.xlu0 %5233
      %5235 = vrot.lane.b32.xlu0 %v4887, 110
      %v5236 = vpop.permute.xlu0 %5235
      %5237 = vrot.lane.b32.xlu0 %v4890, 110
      %v5238 = vpop.permute.xlu0 %5237
      %5239 = vrot.lane.b32.xlu0 %v4888, 110
      %v5240 = vpop.permute.xlu0 %5239
      %5241 = vrot.lane.b32.xlu0 %v4891, 110
      %v5242 = vpop.permute.xlu0 %5241
      %v5243 = vsel %vm343, %v5236, %v5240
      %v5244 = vsel %vm343, %v5238, %v5242
      %v5245 = vsel %vm343, %v5232, %v5236
      %v5246 = vsel %vm343, %v5234, %v5238
      %v5247 = vsel %vm343, %v5240, %v5232
      %v5248 = vsel %vm343, %v5242, %v5234
      %v5255 = vrot.slane %v5245, 7
      %v5256 = vrot.slane %v5243, 7
      %v5257 = vrot.slane %v5247, 7
      %v5258 = vrot.slane %v5246, 7
      %v5259 = vsel %vm1007, %v5255, %v5258
      %v5260 = vrot.slane %v5244, 7
      %v5261 = vsel %vm1007, %v5256, %v5260
      %v5262 = vrot.slane %v5248, 7
      %v5263 = vsel %vm1007, %v5257, %v5262
      %5273 = vst [vmem:[#allocation2 + $0x150] sm:$0xfe] %v5255
      %5274 = vst [vmem:[#allocation2 + $0x158] sm:$0xfe] %v5256
      %5275 = vst [vmem:[#allocation2 + $0x160] sm:$0xfe] %v5257
      %5276 = vst [vmem:[#allocation2 + $0x168] sm:$0xff] %v5259
      %5277 = vst [vmem:[#allocation2 + $0x170] sm:$0xff] %v5261
      %5278 = vst [vmem:[#allocation2 + $0x178] sm:$0xff] %v5263
      %5279 = vst [vmem:[#allocation2 + $0x180] sm:$0x1] %v5258
      %5280 = vst [vmem:[#allocation2 + $0x188] sm:$0x1] %v5260
      %5281 = vst [vmem:[#allocation2 + $0x190] sm:$0x1] %v5262
      %5282 = vrot.lane.b32.xlu0 %v4886, 109
      %v5283 = vpop.permute.xlu0 %5282
      %5284 = vrot.lane.b32.xlu0 %v4889, 109
      %v5285 = vpop.permute.xlu0 %5284
      %5286 = vrot.lane.b32.xlu0 %v4887, 109
      %v5287 = vpop.permute.xlu0 %5286
      %5288 = vrot.lane.b32.xlu0 %v4890, 109
      %v5289 = vpop.permute.xlu0 %5288
      %5290 = vrot.lane.b32.xlu0 %v4888, 109
      %v5291 = vpop.permute.xlu0 %5290
      %5292 = vrot.lane.b32.xlu0 %v4891, 109
      %v5293 = vpop.permute.xlu0 %5292
      %v5294 = vsel %vm368, %v5287, %v5291
      %v5295 = vsel %vm368, %v5289, %v5293
      %v5296 = vsel %vm368, %v5283, %v5287
      %v5297 = vsel %vm368, %v5285, %v5289
      %v5298 = vsel %vm368, %v5291, %v5283
      %v5299 = vsel %vm368, %v5293, %v5285
      %v5306 = vrot.slane %v5296, 7
      %v5307 = vrot.slane %v5294, 7
      %v5308 = vrot.slane %v5298, 7
      %v5309 = vrot.slane %v5297, 7
      %v5310 = vsel %vm1007, %v5306, %v5309
      %v5311 = vrot.slane %v5295, 7
      %v5312 = vsel %vm1007, %v5307, %v5311
      %v5313 = vrot.slane %v5299, 7
      %v5314 = vsel %vm1007, %v5308, %v5313
      %5324 = vst [vmem:[#allocation2 + $0x180] sm:$0xfe] %v5306
      %5325 = vst [vmem:[#allocation2 + $0x188] sm:$0xfe] %v5307
      %5326 = vst [vmem:[#allocation2 + $0x190] sm:$0xfe] %v5308
      %5327 = vst [vmem:[#allocation2 + $0x198] sm:$0xff] %v5310
      %5328 = vst [vmem:[#allocation2 + $0x1a0] sm:$0xff] %v5312
      %5329 = vst [vmem:[#allocation2 + $0x1a8] sm:$0xff] %v5314
      %5330 = vst [vmem:[#allocation2 + $0x1b0] sm:$0x1] %v5309
      %5331 = vst [vmem:[#allocation2 + $0x1b8] sm:$0x1] %v5311
      %5332 = vst [vmem:[#allocation2 + $0x1c0] sm:$0x1] %v5313
      %5333 = vrot.lane.b32.xlu0 %v3922, 19
      %v5334 = vpop.permute.xlu0 %5333
      %5335 = vrot.lane.b32.xlu0 %v3925, 19
      %v5336 = vpop.permute.xlu0 %5335
      %5337 = vrot.lane.b32.xlu0 %v3923, 19
      %v5338 = vpop.permute.xlu0 %5337
      %5339 = vrot.lane.b32.xlu0 %v3926, 19
      %v5340 = vpop.permute.xlu0 %5339
      %5341 = vrot.lane.b32.xlu0 %v3924, 19
      %v5342 = vpop.permute.xlu0 %5341
      %5343 = vrot.lane.b32.xlu0 %v3927, 19
      %v5344 = vpop.permute.xlu0 %5343
      %v5345 = vsel %vm193, %v5338, %v5342
      %v5346 = vsel %vm193, %v5340, %v5344
      %v5347 = vsel %vm193, %v5334, %v5338
      %v5348 = vsel %vm193, %v5336, %v5340
      %v5349 = vsel %vm193, %v5342, %v5334
      %v5350 = vsel %vm193, %v5344, %v5336
      %v5357 = vrot.slane %v5349, 7
      %v5358 = vrot.slane %v5347, 7
      %v5359 = vrot.slane %v5345, 7
      %v5360 = vrot.slane %v5350, 7
      %v5361 = vsel %vm1007, %v5357, %v5360
      %v5362 = vrot.slane %v5348, 7
      %v5363 = vsel %vm1007, %v5358, %v5362
      %v5364 = vrot.slane %v5346, 7
      %v5365 = vsel %vm1007, %v5359, %v5364
      %5375 = vst [vmem:[#allocation2 + $0x1b0] sm:$0xfe] %v5357
      %5376 = vst [vmem:[#allocation2 + $0x1b8] sm:$0xfe] %v5358
      %5377 = vst [vmem:[#allocation2 + $0x1c0] sm:$0xfe] %v5359
      %5378 = vst [vmem:[#allocation2 + $0x1c8] sm:$0xff] %v5361
      %5379 = vst [vmem:[#allocation2 + $0x1d0] sm:$0xff] %v5363
      %5380 = vst [vmem:[#allocation2 + $0x1d8] sm:$0xff] %v5365
      %5381 = vst [vmem:[#allocation2 + $0x1e0] sm:$0x1] %v5360
      %5382 = vst [vmem:[#allocation2 + $0x1e8] sm:$0x1] %v5362
      %5383 = vst [vmem:[#allocation2 + $0x1f0] sm:$0x1] %v5364
      %5384 = vrot.lane.b32.xlu0 %v3922, 18
      %v5385 = vpop.permute.xlu0 %5384
      %5386 = vrot.lane.b32.xlu0 %v3925, 18
      %v5387 = vpop.permute.xlu0 %5386
      %5388 = vrot.lane.b32.xlu0 %v3923, 18
      %v5389 = vpop.permute.xlu0 %5388
      %5390 = vrot.lane.b32.xlu0 %v3926, 18
      %v5391 = vpop.permute.xlu0 %5390
      %5392 = vrot.lane.b32.xlu0 %v3924, 18
      %v5393 = vpop.permute.xlu0 %5392
      %5394 = vrot.lane.b32.xlu0 %v3927, 18
      %v5395 = vpop.permute.xlu0 %5394
      %v5396 = vsel %vm215, %v5389, %v5393
      %v5397 = vsel %vm215, %v5391, %v5395
      %v5398 = vsel %vm215, %v5385, %v5389
      %v5399 = vsel %vm215, %v5387, %v5391
      %v5400 = vsel %vm215, %v5393, %v5385
      %v5401 = vsel %vm215, %v5395, %v5387
      %v5408 = vrot.slane %v5400, 7
      %v5409 = vrot.slane %v5398, 7
      %v5410 = vrot.slane %v5396, 7
      %v5411 = vrot.slane %v5401, 7
      %v5412 = vsel %vm1007, %v5408, %v5411
      %v5413 = vrot.slane %v5399, 7
      %v5414 = vsel %vm1007, %v5409, %v5413
      %v5415 = vrot.slane %v5397, 7
      %v5416 = vsel %vm1007, %v5410, %v5415
      %5426 = vst [vmem:[#allocation2 + $0x1e0] sm:$0xfe] %v5408
      %5427 = vst [vmem:[#allocation2 + $0x1e8] sm:$0xfe] %v5409
      %5428 = vst [vmem:[#allocation2 + $0x1f0] sm:$0xfe] %v5410
      %5429 = vst [vmem:[#allocation2 + $0x1f8] sm:$0xff] %v5412
      %5430 = vst [vmem:[#allocation2 + $0x200] sm:$0xff] %v5414
      %5431 = vst [vmem:[#allocation2 + $0x208] sm:$0xff] %v5416
      %5432 = vst [vmem:[#allocation2 + $0x210] sm:$0x1] %v5411
      %5433 = vst [vmem:[#allocation2 + $0x218] sm:$0x1] %v5413
      %5434 = vst [vmem:[#allocation2 + $0x220] sm:$0x1] %v5415
      %5435 = vrot.lane.b32.xlu0 %v3922, 17
      %v5436 = vpop.permute.xlu0 %5435
      %5437 = vrot.lane.b32.xlu0 %v3925, 17
      %v5438 = vpop.permute.xlu0 %5437
      %5439 = vrot.lane.b32.xlu0 %v3923, 17
      %v5440 = vpop.permute.xlu0 %5439
      %5441 = vrot.lane.b32.xlu0 %v3926, 17
      %v5442 = vpop.permute.xlu0 %5441
      %5443 = vrot.lane.b32.xlu0 %v3924, 17
      %v5444 = vpop.permute.xlu0 %5443
      %5445 = vrot.lane.b32.xlu0 %v3927, 17
      %v5446 = vpop.permute.xlu0 %5445
      %v5447 = vsel %vm240, %v5440, %v5444
      %v5448 = vsel %vm240, %v5442, %v5446
      %v5449 = vsel %vm240, %v5436, %v5440
      %v5450 = vsel %vm240, %v5438, %v5442
      %v5451 = vsel %vm240, %v5444, %v5436
      %v5452 = vsel %vm240, %v5446, %v5438
      %v5459 = vrot.slane %v5451, 7
      %v5460 = vrot.slane %v5449, 7
      %v5461 = vrot.slane %v5447, 7
      %v5462 = vrot.slane %v5452, 7
      %v5463 = vsel %vm1007, %v5459, %v5462
      %v5464 = vrot.slane %v5450, 7
      %v5465 = vsel %vm1007, %v5460, %v5464
      %v5466 = vrot.slane %v5448, 7
      %v5467 = vsel %vm1007, %v5461, %v5466
      %5477 = vst [vmem:[#allocation2 + $0x210] sm:$0xfe] %v5459
      %5478 = vst [vmem:[#allocation2 + $0x218] sm:$0xfe] %v5460
      %5479 = vst [vmem:[#allocation2 + $0x220] sm:$0xfe] %v5461
      %5480 = vst [vmem:[#allocation2 + $0x228] sm:$0xff] %v5463
      %5481 = vst [vmem:[#allocation2 + $0x230] sm:$0xff] %v5465
      %5482 = vst [vmem:[#allocation2 + $0x238] sm:$0xff] %v5467
      %5483 = vst [vmem:[#allocation2 + $0x240] sm:$0x1] %v5462
      %5484 = vst [vmem:[#allocation2 + $0x248] sm:$0x1] %v5464
      %5485 = vst [vmem:[#allocation2 + $0x250] sm:$0x1] %v5466
      %5486 = vrot.lane.b32.xlu0 %v3922, 1
      %v5487 = vpop.permute.xlu0 %5486
      %5488 = vrot.lane.b32.xlu0 %v3925, 1
      %v5489 = vpop.permute.xlu0 %5488
      %5490 = vrot.lane.b32.xlu0 %v3923, 1
      %v5491 = vpop.permute.xlu0 %5490
      %5492 = vrot.lane.b32.xlu0 %v3926, 1
      %v5493 = vpop.permute.xlu0 %5492
      %5494 = vrot.lane.b32.xlu0 %v3924, 1
      %v5495 = vpop.permute.xlu0 %5494
      %5496 = vrot.lane.b32.xlu0 %v3927, 1
      %v5497 = vpop.permute.xlu0 %5496
      %v5498 = vsel %vm262, %v5491, %v5495
      %v5499 = vsel %vm262, %v5493, %v5497
      %v5500 = vsel %vm262, %v5487, %v5491
      %v5501 = vsel %vm262, %v5489, %v5493
      %v5502 = vsel %vm262, %v5495, %v5487
      %v5503 = vsel %vm262, %v5497, %v5489
      %v5510 = vrot.slane %v5502, 7
      %v5511 = vrot.slane %v5500, 7
      %v5512 = vrot.slane %v5498, 7
      %v5513 = vrot.slane %v5503, 7
      %v5514 = vsel %vm1007, %v5510, %v5513
      %v5515 = vrot.slane %v5501, 7
      %v5516 = vsel %vm1007, %v5511, %v5515
      %v5517 = vrot.slane %v5499, 7
      %v5518 = vsel %vm1007, %v5512, %v5517
      %5528 = vst [vmem:[#allocation2 + $0x240] sm:$0xfe] %v5510
      %5529 = vst [vmem:[#allocation2 + $0x248] sm:$0xfe] %v5511
      %5530 = vst [vmem:[#allocation2 + $0x250] sm:$0xfe] %v5512
      %5531 = vst [vmem:[#allocation2 + $0x258] sm:$0xff] %v5514
      %5532 = vst [vmem:[#allocation2 + $0x260] sm:$0xff] %v5516
      %5533 = vst [vmem:[#allocation2 + $0x268] sm:$0xff] %v5518
      %5534 = vst [vmem:[#allocation2 + $0x270] sm:$0x1] %v5513
      %5535 = vst [vmem:[#allocation2 + $0x278] sm:$0x1] %v5515
      %5536 = vst [vmem:[#allocation2 + $0x280] sm:$0x1] %v5517
      %v5543 = vrot.slane %v3922, 7
      %v5544 = vrot.slane %v3923, 7
      %v5545 = vrot.slane %v3924, 7
      %v5546 = vrot.slane %v3925, 7
      %v5547 = vsel %vm1007, %v5543, %v5546
      %v5548 = vrot.slane %v3926, 7
      %v5549 = vsel %vm1007, %v5544, %v5548
      %v5550 = vrot.slane %v3927, 7
      %v5551 = vsel %vm1007, %v5545, %v5550
      %5561 = vst [vmem:[#allocation2 + $0x270] sm:$0xfe] %v5543
      %5562 = vst [vmem:[#allocation2 + $0x278] sm:$0xfe] %v5544
      %5563 = vst [vmem:[#allocation2 + $0x280] sm:$0xfe] %v5545
      %5564 = vst [vmem:[#allocation2 + $0x288] sm:$0xff] %v5547
      %5565 = vst [vmem:[#allocation2 + $0x290] sm:$0xff] %v5549
      %5566 = vst [vmem:[#allocation2 + $0x298] sm:$0xff] %v5551
      %5567 = vst [vmem:[#allocation2 + $0x2a0] sm:$0x1] %v5546
      %5568 = vst [vmem:[#allocation2 + $0x2a8] sm:$0x1] %v5548
      %5569 = vst [vmem:[#allocation2 + $0x2b0] sm:$0x1] %v5550
      %5570 = vrot.lane.b32.xlu0 %v3922, 127
      %v5571 = vpop.permute.xlu0 %5570
      %5572 = vrot.lane.b32.xlu0 %v3925, 127
      %v5573 = vpop.permute.xlu0 %5572
      %5574 = vrot.lane.b32.xlu0 %v3923, 127
      %v5575 = vpop.permute.xlu0 %5574
      %5576 = vrot.lane.b32.xlu0 %v3926, 127
      %v5577 = vpop.permute.xlu0 %5576
      %5578 = vrot.lane.b32.xlu0 %v3924, 127
      %v5579 = vpop.permute.xlu0 %5578
      %5580 = vrot.lane.b32.xlu0 %v3927, 127
      %v5581 = vpop.permute.xlu0 %5580
      %v5582 = vsel %vm296, %v5575, %v5579
      %v5583 = vsel %vm296, %v5577, %v5581
      %v5584 = vsel %vm296, %v5571, %v5575
      %v5585 = vsel %vm296, %v5573, %v5577
      %v5586 = vsel %vm296, %v5579, %v5571
      %v5587 = vsel %vm296, %v5581, %v5573
      %v5594 = vrot.slane %v5584, 7
      %v5595 = vrot.slane %v5582, 7
      %v5596 = vrot.slane %v5586, 7
      %v5597 = vrot.slane %v5585, 7
      %v5598 = vsel %vm1007, %v5594, %v5597
      %v5599 = vrot.slane %v5583, 7
      %v5600 = vsel %vm1007, %v5595, %v5599
      %v5601 = vrot.slane %v5587, 7
      %v5602 = vsel %vm1007, %v5596, %v5601
      %5612 = vst [vmem:[#allocation2 + $0x2a0] sm:$0xfe] %v5594
      %5613 = vst [vmem:[#allocation2 + $0x2a8] sm:$0xfe] %v5595
      %5614 = vst [vmem:[#allocation2 + $0x2b0] sm:$0xfe] %v5596
      %5615 = vst [vmem:[#allocation2 + $0x2b8] sm:$0xff] %v5598
      %5616 = vst [vmem:[#allocation2 + $0x2c0] sm:$0xff] %v5600
      %5617 = vst [vmem:[#allocation2 + $0x2c8] sm:$0xff] %v5602
      %5618 = vst [vmem:[#allocation2 + $0x2d0] sm:$0x1] %v5597
      %5619 = vst [vmem:[#allocation2 + $0x2d8] sm:$0x1] %v5599
      %5620 = vst [vmem:[#allocation2 + $0x2e0] sm:$0x1] %v5601
      %5621 = vrot.lane.b32.xlu0 %v3922, 111
      %v5622 = vpop.permute.xlu0 %5621
      %5623 = vrot.lane.b32.xlu0 %v3925, 111
      %v5624 = vpop.permute.xlu0 %5623
      %5625 = vrot.lane.b32.xlu0 %v3923, 111
      %v5626 = vpop.permute.xlu0 %5625
      %5627 = vrot.lane.b32.xlu0 %v3926, 111
      %v5628 = vpop.permute.xlu0 %5627
      %5629 = vrot.lane.b32.xlu0 %v3924, 111
      %v5630 = vpop.permute.xlu0 %5629
      %5631 = vrot.lane.b32.xlu0 %v3927, 111
      %v5632 = vpop.permute.xlu0 %5631
      %v5633 = vsel %vm321, %v5626, %v5630
      %v5634 = vsel %vm321, %v5628, %v5632
      %v5635 = vsel %vm321, %v5622, %v5626
      %v5636 = vsel %vm321, %v5624, %v5628
      %v5637 = vsel %vm321, %v5630, %v5622
      %v5638 = vsel %vm321, %v5632, %v5624
      %v5645 = vrot.slane %v5635, 7
      %v5646 = vrot.slane %v5633, 7
      %v5647 = vrot.slane %v5637, 7
      %v5648 = vrot.slane %v5636, 7
      %v5649 = vsel %vm1007, %v5645, %v5648
      %v5650 = vrot.slane %v5634, 7
      %v5651 = vsel %vm1007, %v5646, %v5650
      %v5652 = vrot.slane %v5638, 7
      %v5653 = vsel %vm1007, %v5647, %v5652
      %5663 = vst [vmem:[#allocation2 + $0x2d0] sm:$0xfe] %v5645
      %5664 = vst [vmem:[#allocation2 + $0x2d8] sm:$0xfe] %v5646
      %5665 = vst [vmem:[#allocation2 + $0x2e0] sm:$0xfe] %v5647
      %5666 = vst [vmem:[#allocation2 + $0x2e8] sm:$0xff] %v5649
      %5667 = vst [vmem:[#allocation2 + $0x2f0] sm:$0xff] %v5651
      %5668 = vst [vmem:[#allocation2 + $0x2f8] sm:$0xff] %v5653
      %5669 = vst [vmem:[#allocation2 + $0x300] sm:$0x1] %v5648
      %5670 = vst [vmem:[#allocation2 + $0x308] sm:$0x1] %v5650
      %5671 = vst [vmem:[#allocation2 + $0x310] sm:$0x1] %v5652
      %5672 = vrot.lane.b32.xlu0 %v3922, 110
      %v5673 = vpop.permute.xlu0 %5672
      %5674 = vrot.lane.b32.xlu0 %v3925, 110
      %v5675 = vpop.permute.xlu0 %5674
      %5676 = vrot.lane.b32.xlu0 %v3923, 110
      %v5677 = vpop.permute.xlu0 %5676
      %5678 = vrot.lane.b32.xlu0 %v3926, 110
      %v5679 = vpop.permute.xlu0 %5678
      %5680 = vrot.lane.b32.xlu0 %v3924, 110
      %v5681 = vpop.permute.xlu0 %5680
      %5682 = vrot.lane.b32.xlu0 %v3927, 110
      %v5683 = vpop.permute.xlu0 %5682
      %v5684 = vsel %vm343, %v5677, %v5681
      %v5685 = vsel %vm343, %v5679, %v5683
      %v5686 = vsel %vm343, %v5673, %v5677
      %v5687 = vsel %vm343, %v5675, %v5679
      %v5688 = vsel %vm343, %v5681, %v5673
      %v5689 = vsel %vm343, %v5683, %v5675
      %v5696 = vrot.slane %v5686, 7
      %v5697 = vrot.slane %v5684, 7
      %v5698 = vrot.slane %v5688, 7
      %v5699 = vrot.slane %v5687, 7
      %v5700 = vsel %vm1007, %v5696, %v5699
      %v5701 = vrot.slane %v5685, 7
      %v5702 = vsel %vm1007, %v5697, %v5701
      %v5703 = vrot.slane %v5689, 7
      %v5704 = vsel %vm1007, %v5698, %v5703
      %5714 = vst [vmem:[#allocation2 + $0x300] sm:$0xfe] %v5696
      %5715 = vst [vmem:[#allocation2 + $0x308] sm:$0xfe] %v5697
      %5716 = vst [vmem:[#allocation2 + $0x310] sm:$0xfe] %v5698
      %5717 = vst [vmem:[#allocation2 + $0x318] sm:$0xff] %v5700
      %5718 = vst [vmem:[#allocation2 + $0x320] sm:$0xff] %v5702
      %5719 = vst [vmem:[#allocation2 + $0x328] sm:$0xff] %v5704
      %5720 = vst [vmem:[#allocation2 + $0x330] sm:$0x1] %v5699
      %5721 = vst [vmem:[#allocation2 + $0x338] sm:$0x1] %v5701
      %5722 = vst [vmem:[#allocation2 + $0x340] sm:$0x1] %v5703
      %5723 = vrot.lane.b32.xlu0 %v3922, 109
      %v5724 = vpop.permute.xlu0 %5723
      %5725 = vrot.lane.b32.xlu0 %v3925, 109
      %v5726 = vpop.permute.xlu0 %5725
      %5727 = vrot.lane.b32.xlu0 %v3923, 109
      %v5728 = vpop.permute.xlu0 %5727
      %5729 = vrot.lane.b32.xlu0 %v3926, 109
      %v5730 = vpop.permute.xlu0 %5729
      %5731 = vrot.lane.b32.xlu0 %v3924, 109
      %v5732 = vpop.permute.xlu0 %5731
      %5733 = vrot.lane.b32.xlu0 %v3927, 109
      %v5734 = vpop.permute.xlu0 %5733
      %v5735 = vsel %vm368, %v5728, %v5732
      %v5736 = vsel %vm368, %v5730, %v5734
      %v5737 = vsel %vm368, %v5724, %v5728
      %v5738 = vsel %vm368, %v5726, %v5730
      %v5739 = vsel %vm368, %v5732, %v5724
      %v5740 = vsel %vm368, %v5734, %v5726
      %v5747 = vrot.slane %v5737, 7
      %v5748 = vrot.slane %v5735, 7
      %v5749 = vrot.slane %v5739, 7
      %v5750 = vrot.slane %v5738, 7
      %v5751 = vsel %vm1007, %v5747, %v5750
      %v5752 = vrot.slane %v5736, 7
      %v5753 = vsel %vm1007, %v5748, %v5752
      %v5754 = vrot.slane %v5740, 7
      %v5755 = vsel %vm1007, %v5749, %v5754
      %5765 = vst [vmem:[#allocation2 + $0x330] sm:$0xfe] %v5747
      %5766 = vst [vmem:[#allocation2 + $0x338] sm:$0xfe] %v5748
      %5767 = vst [vmem:[#allocation2 + $0x340] sm:$0xfe] %v5749
      %5768 = vst [vmem:[#allocation2 + $0x348] sm:$0xff] %v5751
      %5769 = vst [vmem:[#allocation2 + $0x350] sm:$0xff] %v5753
      %5770 = vst [vmem:[#allocation2 + $0x358] sm:$0xff] %v5755
      %5771 = vst [vmem:[#allocation2 + $0x360] sm:$0x1] %v5750
      %5772 = vst [vmem:[#allocation2 + $0x368] sm:$0x1] %v5752
      %5773 = vst [vmem:[#allocation2 + $0x370] sm:$0x1] %v5754
      %5774 = vst [vmem:[#allocation2 + $0x360] sm:$0xfe] 0.0
      %5775 = vst [vmem:[#allocation2 + $0x368] sm:$0xfe] 0.0
      %5776 = vst [vmem:[#allocation2 + $0x370] sm:$0xfe] 0.0
      %v5777 = vld [vmem:[%s1 + $0x78] sm:$0xff]
      %v5778 = vld [vmem:[%s1 + $0x80] sm:$0xff]
      %v5779 = vld [vmem:[%s1 + $0x88] sm:$0xff]
      %v5780 = vld [vmem:[#allocation2] sm:$0xff]
      %v5781 = vld [vmem:[#allocation2 + $0x8] sm:$0xff]
      %v5782 = vld [vmem:[#allocation2 + $0x10] sm:$0xff]
      %v5783 = vld [vmem:[#allocation2 + $0x18] sm:$0xff]
      %v5784 = vld [vmem:[#allocation2 + $0x20] sm:$0xff]
      %v5785 = vld [vmem:[#allocation2 + $0x28] sm:$0xff]
      %v5786 = vld [vmem:[#allocation2 + $0x30] sm:$0xff]
      %v5787 = vld [vmem:[#allocation2 + $0x38] sm:$0xff]
      %v5788 = vld [vmem:[#allocation2 + $0x40] sm:$0xff]
      %v5789 = vld [vmem:[#allocation2 + $0x48] sm:$0xff]
      %v5790 = vld [vmem:[#allocation2 + $0x50] sm:$0xff]
      %v5791 = vld [vmem:[#allocation2 + $0x58] sm:$0xff]
      %v5792 = vld [vmem:[#allocation2 + $0x60] sm:$0xff]
      %v5793 = vld [vmem:[#allocation2 + $0x68] sm:$0xff]
      %v5794 = vld [vmem:[#allocation2 + $0x70] sm:$0xff]
      %v5795 = vld [vmem:[#allocation2 + $0x78] sm:$0xff]
      %v5796 = vld [vmem:[#allocation2 + $0x80] sm:$0xff]
      %v5797 = vld [vmem:[#allocation2 + $0x88] sm:$0xff]
      %v5798 = vld [vmem:[#allocation2 + $0x90] sm:$0xff]
      %v5799 = vld [vmem:[#allocation2 + $0x98] sm:$0xff]
      %v5800 = vld [vmem:[#allocation2 + $0xa0] sm:$0xff]
      %v5801 = vld [vmem:[#allocation2 + $0xa8] sm:$0xff]
      %v5802 = vld [vmem:[#allocation2 + $0xb0] sm:$0xff]
      %v5803 = vld [vmem:[#allocation2 + $0xb8] sm:$0xff]
      %v5804 = vld [vmem:[#allocation2 + $0xc0] sm:$0xff]
      %v5805 = vld [vmem:[#allocation2 + $0xc8] sm:$0xff]
      %v5806 = vld [vmem:[#allocation2 + $0xd0] sm:$0xff]
      %v5807 = vld [vmem:[#allocation2 + $0xd8] sm:$0xff]
      %v5808 = vld [vmem:[#allocation2 + $0xe0] sm:$0xff]
      %v5809 = vld [vmem:[#allocation2 + $0xe8] sm:$0xff]
      %v5810 = vld [vmem:[#allocation2 + $0xf0] sm:$0xff]
      %v5811 = vld [vmem:[#allocation2 + $0xf8] sm:$0xff]
      %v5812 = vld [vmem:[#allocation2 + $0x100] sm:$0xff]
      %v5813 = vld [vmem:[#allocation2 + $0x108] sm:$0xff]
      %v5814 = vld [vmem:[#allocation2 + $0x110] sm:$0xff]
      %v5815 = vld [vmem:[#allocation2 + $0x118] sm:$0xff]
      %v5816 = vld [vmem:[#allocation2 + $0x120] sm:$0xff]
      %v5817 = vld [vmem:[#allocation2 + $0x128] sm:$0xff]
      %v5818 = vld [vmem:[#allocation2 + $0x130] sm:$0xff]
      %v5819 = vld [vmem:[#allocation2 + $0x138] sm:$0xff]
      %v5820 = vld [vmem:[#allocation2 + $0x140] sm:$0xff]
      %v5821 = vld [vmem:[#allocation2 + $0x148] sm:$0xff]
      %v5822 = vld [vmem:[#allocation2 + $0x150] sm:$0xff]
      %v5823 = vld [vmem:[#allocation2 + $0x158] sm:$0xff]
      %v5824 = vld [vmem:[#allocation2 + $0x160] sm:$0xff]
      %v5825 = vld [vmem:[#allocation2 + $0x168] sm:$0xff]
      %v5826 = vld [vmem:[#allocation2 + $0x170] sm:$0xff]
      %v5827 = vld [vmem:[#allocation2 + $0x178] sm:$0xff]
      %v5828 = vld [vmem:[#allocation2 + $0x180] sm:$0xff]
      %v5829 = vld [vmem:[#allocation2 + $0x188] sm:$0xff]
      %v5830 = vld [vmem:[#allocation2 + $0x190] sm:$0xff]
      %v5831 = vld [vmem:[#allocation2 + $0x198] sm:$0xff]
      %v5832 = vld [vmem:[#allocation2 + $0x1a0] sm:$0xff]
      %v5833 = vld [vmem:[#allocation2 + $0x1a8] sm:$0xff]
      %v5834 = vld [vmem:[#allocation2 + $0x1b0] sm:$0xff]
      %v5835 = vld [vmem:[#allocation2 + $0x1b8] sm:$0xff]
      %v5836 = vld [vmem:[#allocation2 + $0x1c0] sm:$0xff]
      %v5837 = vld [vmem:[#allocation2 + $0x1c8] sm:$0xff]
      %v5838 = vld [vmem:[#allocation2 + $0x1d0] sm:$0xff]
      %v5839 = vld [vmem:[#allocation2 + $0x1d8] sm:$0xff]
      %v5840 = vld [vmem:[#allocation2 + $0x1e0] sm:$0xff]
      %v5841 = vld [vmem:[#allocation2 + $0x1e8] sm:$0xff]
      %v5842 = vld [vmem:[#allocation2 + $0x1f0] sm:$0xff]
      %v5843 = vld [vmem:[#allocation2 + $0x1f8] sm:$0xff]
      %v5844 = vld [vmem:[#allocation2 + $0x200] sm:$0xff]
      %v5845 = vld [vmem:[#allocation2 + $0x208] sm:$0xff]
      %v5846 = vld [vmem:[#allocation2 + $0x210] sm:$0xff]
      %v5847 = vld [vmem:[#allocation2 + $0x218] sm:$0xff]
      %v5848 = vld [vmem:[#allocation2 + $0x220] sm:$0xff]
      %v5849 = vld [vmem:[#allocation2 + $0x228] sm:$0xff]
      %v5850 = vld [vmem:[#allocation2 + $0x230] sm:$0xff]
      %v5851 = vld [vmem:[#allocation2 + $0x238] sm:$0xff]
      %v5852 = vld [vmem:[#allocation2 + $0x240] sm:$0xff]
      %v5853 = vld [vmem:[#allocation2 + $0x248] sm:$0xff]
      %v5854 = vld [vmem:[#allocation2 + $0x250] sm:$0xff]
      %v5855 = vld [vmem:[#allocation2 + $0x258] sm:$0xff]
      %v5856 = vld [vmem:[#allocation2 + $0x260] sm:$0xff]
      %v5857 = vld [vmem:[#allocation2 + $0x268] sm:$0xff]
      %v5858 = vld [vmem:[#allocation2 + $0x270] sm:$0xff]
      %v5859 = vld [vmem:[#allocation2 + $0x278] sm:$0xff]
      %v5860 = vld [vmem:[#allocation2 + $0x280] sm:$0xff]
      %v5861 = vld [vmem:[#allocation2 + $0x288] sm:$0xff]
      %v5862 = vld [vmem:[#allocation2 + $0x290] sm:$0xff]
      %v5863 = vld [vmem:[#allocation2 + $0x298] sm:$0xff]
      %v5864 = vld [vmem:[#allocation2 + $0x2a0] sm:$0xff]
      %v5865 = vld [vmem:[#allocation2 + $0x2a8] sm:$0xff]
      %v5866 = vld [vmem:[#allocation2 + $0x2b0] sm:$0xff]
      %v5867 = vld [vmem:[#allocation2 + $0x2b8] sm:$0xff]
      %v5868 = vld [vmem:[#allocation2 + $0x2c0] sm:$0xff]
      %v5869 = vld [vmem:[#allocation2 + $0x2c8] sm:$0xff]
      %v5870 = vld [vmem:[#allocation2 + $0x2d0] sm:$0xff]
      %v5871 = vld [vmem:[#allocation2 + $0x2d8] sm:$0xff]
      %v5872 = vld [vmem:[#allocation2 + $0x2e0] sm:$0xff]
      %v5873 = vld [vmem:[#allocation2 + $0x2e8] sm:$0xff]
      %v5874 = vld [vmem:[#allocation2 + $0x2f0] sm:$0xff]
      %v5875 = vld [vmem:[#allocation2 + $0x2f8] sm:$0xff]
      %v5876 = vld [vmem:[#allocation2 + $0x300] sm:$0xff]
      %v5877 = vld [vmem:[#allocation2 + $0x308] sm:$0xff]
      %v5878 = vld [vmem:[#allocation2 + $0x310] sm:$0xff]
      %v5879 = vld [vmem:[#allocation2 + $0x318] sm:$0xff]
      %v5880 = vld [vmem:[#allocation2 + $0x320] sm:$0xff]
      %v5881 = vld [vmem:[#allocation2 + $0x328] sm:$0xff]
      %v5882 = vld [vmem:[#allocation2 + $0x330] sm:$0xff]
      %v5883 = vld [vmem:[#allocation2 + $0x338] sm:$0xff]
      %v5884 = vld [vmem:[#allocation2 + $0x340] sm:$0xff]
      %v5885 = vld [vmem:[#allocation2 + $0x348] sm:$0xff]
      %v5886 = vld [vmem:[#allocation2 + $0x350] sm:$0xff]
      %v5887 = vld [vmem:[#allocation2 + $0x358] sm:$0xff]
      %v5888 = vld [vmem:[#allocation2 + $0x360] sm:$0xff]
      %v5889 = vld [vmem:[#allocation2 + $0x368] sm:$0xff]
      %v5890 = vld [vmem:[#allocation2 + $0x370] sm:$0xff]
      %v5892 = vsel %vm403, %v5779, 0
      %5894 = vmatprep.subr.mxu0 %v5781
      %5895 = vmatpush1.msra.mxu0 %v5780
      %5896 = vmatprep.subr.mxu0 %v5784
      %5897 = vmatpush1.msra.mxu0 %v5783
      %5898 = vmatprep.subr.mxu0 %v5787
      %5899 = vmatpush1.msra.mxu0 %v5786
      %5900 = vmatprep.subr.mxu0 %v5790
      %5901 = vmatpush1.msra.mxu0 %v5789
      %5902 = vmatprep.subr.mxu0 %v5793
      %5903 = vmatpush1.msra.mxu0 %v5792
      %5904 = vmatprep.subr.mxu0 %v5796
      %5905 = vmatpush1.msra.mxu0 %v5795
      %5906 = vmatprep.subr.mxu0 %v5799
      %5907 = vmatpush1.msra.mxu0 %v5798
      %5908 = vmatprep.subr.mxu0 %v5802
      %5909 = vmatpush1.msra.mxu0 %v5801
      %5910 = vmatprep.subr.mxu0 %v5805
      %5911 = vmatpush1.msra.mxu0 %v5804
      %5912 = vmatprep.subr.mxu0 %v5808
      %5913 = vmatpush1.msra.mxu0 %v5807
      %5914 = vmatprep.subr.mxu0 %v5811
      %5915 = vmatpush1.msra.mxu0 %v5810
      %5916 = vmatprep.subr.mxu0 %v5814
      %5917 = vmatpush1.msra.mxu0 %v5813
      %5918 = vmatprep.subr.mxu0 %v5817
      %5919 = vmatpush1.msra.mxu0 %v5816
      %5920 = vmatprep.subr.mxu0 %v5820
      %5921 = vmatpush1.msra.mxu0 %v5819
      %5922 = vmatprep.subr.mxu0 %v5823
      %5923 = vmatpush1.msra.mxu0 %v5822
      %5924 = vmatprep.subr.mxu0 %v5826
      %5925 = vmatpush1.msra.mxu0 %v5825
      %5926 = vmatprep.subr.mxu0 %v5829
      %5927 = vmatpush1.msra.mxu0 %v5828
      %5928 = vmatprep.subr.mxu0 %v5832
      %5929 = vmatpush1.msra.mxu0 %v5831
      %5930 = vmatprep.subr.mxu0 %v5835
      %5931 = vmatpush1.msra.mxu0 %v5834
      %5932 = vmatprep.subr.mxu0 %v5838
      %5933 = vmatpush1.msra.mxu0 %v5837
      %5934 = vmatprep.subr.mxu0 %v5841
      %5935 = vmatpush1.msra.mxu0 %v5840
      %5936 = vmatprep.subr.mxu0 %v5844
      %5937 = vmatpush1.msra.mxu0 %v5843
      %5938 = vmatprep.subr.mxu0 %v5847
      %5939 = vmatpush1.msra.mxu0 %v5846
      %5940 = vmatprep.subr.mxu0 %v5850
      %5941 = vmatpush1.msra.mxu0 %v5849
      %5942 = vmatprep.subr.mxu0 %v5853
      %5943 = vmatpush1.msra.mxu0 %v5852
      %5944 = vmatprep.subr.mxu0 %v5856
      %5945 = vmatpush1.msra.mxu0 %v5855
      %5946 = vmatprep.subr.mxu0 %v5859
      %5947 = vmatpush1.msra.mxu0 %v5858
      %5948 = vmatprep.subr.mxu0 %v5862
      %5949 = vmatpush1.msra.mxu0 %v5861
      %5950 = vmatprep.subr.mxu0 %v5865
      %5951 = vmatpush1.msra.mxu0 %v5864
      %5952 = vmatprep.subr.mxu0 %v5868
      %5953 = vmatpush1.msra.mxu0 %v5867
      %5954 = vmatprep.subr.mxu0 %v5871
      %5955 = vmatpush1.msra.mxu0 %v5870
      %5956 = vmatprep.subr.mxu0 %v5874
      %5957 = vmatpush1.msra.mxu0 %v5873
      %5958 = vmatprep.mubr.f32.mxu0 %v5778
      %5959 = vmatmul.mubr.f32.gmra.mrb[0].mxu0 %v5777
      %v5960 = vpop.f32.mrb[0].mxu0
      %v5961 = vadd.f32 0.0, %v5960
      %v5962 = vpop.f32.mrb[0].mxu0
      %v5963 = vadd.f32 0.0, %v5962
      %5964 = vdwg.mxu0
      %5965 = vmatprep.subr.mxu0 %v5877
      %5966 = vmatpush1.msra.mxu0 %v5876
      %5967 = vmatprep.subr.mxu0 %v5880
      %5968 = vmatpush1.msra.mxu0 %v5879
      %5969 = vmatprep.subr.mxu0 %v5883
      %5970 = vmatpush1.msra.mxu0 %v5882
      %5971 = vmatprep.subr.mxu0 %v5886
      %5972 = vmatpush1.msra.mxu0 %v5885
      %5973 = vmatprep.subr.mxu0 %v5889
      %5974 = vmatpush1.msra.mxu0 %v5888
      %5975 = vmatprep.subr.mxu0 0.0
      %5976 = vmatpush1.msra.mxu0 0.0
      %5977 = vmatprep.subr.mxu0 0.0
      %5978 = vmatpush1.msra.mxu0 0.0
      %5979 = vmatprep.subr.mxu0 0.0
      %5980 = vmatpush1.msra.mxu0 0.0
      %5981 = vmatprep.subr.mxu0 0.0
      %5982 = vmatpush1.msra.mxu0 0.0
      %5983 = vmatprep.subr.mxu0 0.0
      %5984 = vmatpush1.msra.mxu0 0.0
      %5985 = vmatprep.subr.mxu0 0.0
      %5986 = vmatpush1.msra.mxu0 0.0
      %5987 = vmatprep.subr.mxu0 0.0
      %5988 = vmatpush1.msra.mxu0 0.0
      %5989 = vmatprep.subr.mxu0 0.0
      %5990 = vmatpush1.msra.mxu0 0.0
      %5991 = vmatprep.subr.mxu0 0.0
      %5992 = vmatpush1.msra.mxu0 0.0
      %5993 = vmatprep.subr.mxu0 0.0
      %5994 = vmatpush1.msra.mxu0 0.0
      %5995 = vmatprep.subr.mxu0 0.0
      %5996 = vmatpush1.msra.mxu0 0.0
      %5997 = vmatprep.subr.mxu0 0.0
      %5998 = vmatpush1.msra.mxu0 0.0
      %5999 = vmatprep.subr.mxu0 0.0
      %6000 = vmatpush1.msra.mxu0 0.0
      %6001 = vmatprep.subr.mxu0 0.0
      %6002 = vmatpush1.msra.mxu0 0.0
      %6003 = vmatprep.subr.mxu0 0.0
      %6004 = vmatpush1.msra.mxu0 0.0
      %6005 = vmatprep.subr.mxu0 0.0
      %6006 = vmatpush1.msra.mxu0 0.0
      %6007 = vmatprep.subr.mxu0 0.0
      %6008 = vmatpush1.msra.mxu0 0.0
      %6009 = vmatprep.subr.mxu0 0.0
      %6010 = vmatpush1.msra.mxu0 0.0
      %6011 = vmatprep.subr.mxu0 0.0
      %6012 = vmatpush1.msra.mxu0 0.0
      %6013 = vmatprep.subr.mxu0 0.0
      %6014 = vmatpush1.msra.mxu0 0.0
      %6015 = vmatprep.subr.mxu0 0.0
      %6016 = vmatpush1.msra.mxu0 0.0
      %6017 = vmatprep.subr.mxu0 0.0
      %6018 = vmatpush1.msra.mxu0 0.0
      %6019 = vmatprep.subr.mxu0 0.0
      %6020 = vmatpush1.msra.mxu0 0.0
      %6021 = vmatprep.subr.mxu0 0.0
      %6022 = vmatpush1.msra.mxu0 0.0
      %6023 = vmatprep.subr.mxu0 0.0
      %6024 = vmatpush1.msra.mxu0 0.0
      %6025 = vmatprep.subr.mxu0 0.0
      %6026 = vmatpush1.msra.mxu0 0.0
      %6027 = vmatprep.subr.mxu0 0.0
      %6028 = vmatpush1.msra.mxu0 0.0
      %6029 = vmatprep.mubr.f32.mxu0 0.0
      %6030 = vmatmul.mubr.f32.gmra.mrb[0].mxu0 %v5892
      %v6031 = vpop.f32.mrb[0].mxu0
      %v6032 = vadd.f32 %v5961, %v6031
      %v6033 = vpop.f32.mrb[0].mxu0
      %v6034 = vadd.f32 %v5963, %v6033
      %6035 = vdwg.mxu0
      %6036 = vmatprep.subr.mxu0 0.0
      %6037 = vmatpush1.msra.mxu0 %v5782
      %6038 = vmatprep.subr.mxu0 0.0
      %6039 = vmatpush1.msra.mxu0 %v5785
      %6040 = vmatprep.subr.mxu0 0.0
      %6041 = vmatpush1.msra.mxu0 %v5788
      %6042 = vmatprep.subr.mxu0 0.0
      %6043 = vmatpush1.msra.mxu0 %v5791
      %6044 = vmatprep.subr.mxu0 0.0
      %6045 = vmatpush1.msra.mxu0 %v5794
      %6046 = vmatprep.subr.mxu0 0.0
      %6047 = vmatpush1.msra.mxu0 %v5797
      %6048 = vmatprep.subr.mxu0 0.0
      %6049 = vmatpush1.msra.mxu0 %v5800
      %6050 = vmatprep.subr.mxu0 0.0
      %6051 = vmatpush1.msra.mxu0 %v5803
      %6052 = vmatprep.subr.mxu0 0.0
      %6053 = vmatpush1.msra.mxu0 %v5806
      %6054 = vmatprep.subr.mxu0 0.0
      %6055 = vmatpush1.msra.mxu0 %v5809
      %6056 = vmatprep.subr.mxu0 0.0
      %6057 = vmatpush1.msra.mxu0 %v5812
      %6058 = vmatprep.subr.mxu0 0.0
      %6059 = vmatpush1.msra.mxu0 %v5815
      %6060 = vmatprep.subr.mxu0 0.0
      %6061 = vmatpush1.msra.mxu0 %v5818
      %6062 = vmatprep.subr.mxu0 0.0
      %6063 = vmatpush1.msra.mxu0 %v5821
      %6064 = vmatprep.subr.mxu0 0.0
      %6065 = vmatpush1.msra.mxu0 %v5824
      %6066 = vmatprep.subr.mxu0 0.0
      %6067 = vmatpush1.msra.mxu0 %v5827
      %6068 = vmatprep.subr.mxu0 0.0
      %6069 = vmatpush1.msra.mxu0 %v5830
      %6070 = vmatprep.subr.mxu0 0.0
      %6071 = vmatpush1.msra.mxu0 %v5833
      %6072 = vmatprep.subr.mxu0 0.0
      %6073 = vmatpush1.msra.mxu0 %v5836
      %6074 = vmatprep.subr.mxu0 0.0
      %6075 = vmatpush1.msra.mxu0 %v5839
      %6076 = vmatprep.subr.mxu0 0.0
      %6077 = vmatpush1.msra.mxu0 %v5842
      %6078 = vmatprep.subr.mxu0 0.0
      %6079 = vmatpush1.msra.mxu0 %v5845
      %6080 = vmatprep.subr.mxu0 0.0
      %6081 = vmatpush1.msra.mxu0 %v5848
      %6082 = vmatprep.subr.mxu0 0.0
      %6083 = vmatpush1.msra.mxu0 %v5851
      %6084 = vmatprep.subr.mxu0 0.0
      %6085 = vmatpush1.msra.mxu0 %v5854
      %6086 = vmatprep.subr.mxu0 0.0
      %6087 = vmatpush1.msra.mxu0 %v5857
      %6088 = vmatprep.subr.mxu0 0.0
      %6089 = vmatpush1.msra.mxu0 %v5860
      %6090 = vmatprep.subr.mxu0 0.0
      %6091 = vmatpush1.msra.mxu0 %v5863
      %6092 = vmatprep.subr.mxu0 0.0
      %6093 = vmatpush1.msra.mxu0 %v5866
      %6094 = vmatprep.subr.mxu0 0.0
      %6095 = vmatpush1.msra.mxu0 %v5869
      %6096 = vmatprep.subr.mxu0 0.0
      %6097 = vmatpush1.msra.mxu0 %v5872
      %6098 = vmatprep.subr.mxu0 0.0
      %6099 = vmatpush1.msra.mxu0 %v5875
      %6100 = vmatprep.mubr.f32.mxu0 %v5778
      %6101 = vmatmul.mubr.f32.gmra.mrb[0].mxu0 %v5777
      %v6102 = vpop.f32.mrb[0].mxu0
      %v6103 = vadd.f32 0.0, %v6102
      %v6104 = vpop.f32.mrb[0].mxu0
      %6105 = vdwg.mxu0
      %6106 = vmatprep.subr.mxu0 0.0
      %6107 = vmatpush1.msra.mxu0 %v5878
      %6108 = vmatprep.subr.mxu0 0.0
      %6109 = vmatpush1.msra.mxu0 %v5881
      %6110 = vmatprep.subr.mxu0 0.0
      %6111 = vmatpush1.msra.mxu0 %v5884
      %6112 = vmatprep.subr.mxu0 0.0
      %6113 = vmatpush1.msra.mxu0 %v5887
      %6114 = vmatprep.subr.mxu0 0.0
      %6115 = vmatpush1.msra.mxu0 %v5890
      %6116 = vmatprep.subr.mxu0 0.0
      %6117 = vmatpush1.msra.mxu0 0.0
      %6118 = vmatprep.subr.mxu0 0.0
      %6119 = vmatpush1.msra.mxu0 0.0
      %6120 = vmatprep.subr.mxu0 0.0
      %6121 = vmatpush1.msra.mxu0 0.0
      %6122 = vmatprep.subr.mxu0 0.0
      %6123 = vmatpush1.msra.mxu0 0.0
      %6124 = vmatprep.subr.mxu0 0.0
      %6125 = vmatpush1.msra.mxu0 0.0
      %6126 = vmatprep.subr.mxu0 0.0
      %6127 = vmatpush1.msra.mxu0 0.0
      %6128 = vmatprep.subr.mxu0 0.0
      %6129 = vmatpush1.msra.mxu0 0.0
      %6130 = vmatprep.subr.mxu0 0.0
      %6131 = vmatpush1.msra.mxu0 0.0
      %6132 = vmatprep.subr.mxu0 0.0
      %6133 = vmatpush1.msra.mxu0 0.0
      %6134 = vmatprep.subr.mxu0 0.0
      %6135 = vmatpush1.msra.mxu0 0.0
      %6136 = vmatprep.subr.mxu0 0.0
      %6137 = vmatpush1.msra.mxu0 0.0
      %6138 = vmatprep.subr.mxu0 0.0
      %6139 = vmatpush1.msra.mxu0 0.0
      %6140 = vmatprep.subr.mxu0 0.0
      %6141 = vmatpush1.msra.mxu0 0.0
      %6142 = vmatprep.subr.mxu0 0.0
      %6143 = vmatpush1.msra.mxu0 0.0
      %6144 = vmatprep.subr.mxu0 0.0
      %6145 = vmatpush1.msra.mxu0 0.0
      %6146 = vmatprep.subr.mxu0 0.0
      %6147 = vmatpush1.msra.mxu0 0.0
      %6148 = vmatprep.subr.mxu0 0.0
      %6149 = vmatpush1.msra.mxu0 0.0
      %6150 = vmatprep.subr.mxu0 0.0
      %6151 = vmatpush1.msra.mxu0 0.0
      %6152 = vmatprep.subr.mxu0 0.0
      %6153 = vmatpush1.msra.mxu0 0.0
      %6154 = vmatprep.subr.mxu0 0.0
      %6155 = vmatpush1.msra.mxu0 0.0
      %6156 = vmatprep.subr.mxu0 0.0
      %6157 = vmatpush1.msra.mxu0 0.0
      %6158 = vmatprep.subr.mxu0 0.0
      %6159 = vmatpush1.msra.mxu0 0.0
      %6160 = vmatprep.subr.mxu0 0.0
      %6161 = vmatpush1.msra.mxu0 0.0
      %6162 = vmatprep.subr.mxu0 0.0
      %6163 = vmatpush1.msra.mxu0 0.0
      %6164 = vmatprep.subr.mxu0 0.0
      %6165 = vmatpush1.msra.mxu0 0.0
      %6166 = vmatprep.subr.mxu0 0.0
      %6167 = vmatpush1.msra.mxu0 0.0
      %6168 = vmatprep.subr.mxu0 0.0
      %6169 = vmatpush1.msra.mxu0 0.0
      %6170 = vmatprep.mubr.f32.mxu0 0.0
      %6171 = vmatmul.mubr.f32.gmra.mrb[0].mxu0 %v5892
      %v6172 = vpop.f32.mrb[0].mxu0
      %v6173 = vadd.f32 %v6103, %v6172
      %v6174 = vpop.f32.mrb[0].mxu0
      %6175 = vdwg.mxu0
      %v6176 = vmax.f32 %v6032, 0.0
      %v6177 = vmax.f32 %v6034, 0.0
      %v6178 = vmax.f32 %v6173, 0.0
      %v6179 = vsel %vm564, %v6176, 0.0
      %v6180 = vsel %vm565, %v6177, 0.0
      %v6181 = vsel %vm566, %v6178, 0.0
      %6182 = vrot.lane.b32.xlu0 %v6179, 19
      %v6183 = vpop.permute.xlu0 %6182
      %6184 = vrot.lane.b32.xlu0 %v6180, 19
      %v6185 = vpop.permute.xlu0 %6184
      %6186 = vrot.lane.b32.xlu0 %v6181, 19
      %v6187 = vpop.permute.xlu0 %6186
      %v6188 = vsel %vm193, %v6185, %v6187
      %v6189 = vsel %vm193, %v6183, %v6185
      %v6190 = vsel %vm193, %v6187, %v6183
      %v6194 = vrot.slane %v6190, 7
      %v6195 = vrot.slane %v6189, 7
      %v6196 = vrot.slane %v6188, 7
      %6200 = vst [vmem:[#allocation2] sm:$0xfe] %v6194
      %6201 = vst [vmem:[#allocation2 + $0x8] sm:$0xfe] %v6195
      %6202 = vst [vmem:[#allocation2 + $0x10] sm:$0xfe] %v6196
      %6203 = vst [vmem:[#allocation2 + $0x18] sm:$0x1] %v6194
      %6204 = vst [vmem:[#allocation2 + $0x20] sm:$0x1] %v6195
      %6205 = vst [vmem:[#allocation2 + $0x28] sm:$0x1] %v6196
      %6206 = vrot.lane.b32.xlu0 %v6179, 18
      %v6207 = vpop.permute.xlu0 %6206
      %6208 = vrot.lane.b32.xlu0 %v6180, 18
      %v6209 = vpop.permute.xlu0 %6208
      %6210 = vrot.lane.b32.xlu0 %v6181, 18
      %v6211 = vpop.permute.xlu0 %6210
      %v6212 = vsel %vm215, %v6209, %v6211
      %v6213 = vsel %vm215, %v6207, %v6209
      %v6214 = vsel %vm215, %v6211, %v6207
      %v6218 = vrot.slane %v6214, 7
      %v6219 = vrot.slane %v6213, 7
      %v6220 = vrot.slane %v6212, 7
      %6224 = vst [vmem:[#allocation2 + $0x18] sm:$0xfe] %v6218
      %6225 = vst [vmem:[#allocation2 + $0x20] sm:$0xfe] %v6219
      %6226 = vst [vmem:[#allocation2 + $0x28] sm:$0xfe] %v6220
      %6227 = vst [vmem:[#allocation2 + $0x30] sm:$0x1] %v6218
      %6228 = vst [vmem:[#allocation2 + $0x38] sm:$0x1] %v6219
      %6229 = vst [vmem:[#allocation2 + $0x40] sm:$0x1] %v6220
      %6230 = vrot.lane.b32.xlu0 %v6179, 17
      %v6231 = vpop.permute.xlu0 %6230
      %6232 = vrot.lane.b32.xlu0 %v6180, 17
      %v6233 = vpop.permute.xlu0 %6232
      %6234 = vrot.lane.b32.xlu0 %v6181, 17
      %v6235 = vpop.permute.xlu0 %6234
      %v6236 = vsel %vm240, %v6233, %v6235
      %v6237 = vsel %vm240, %v6231, %v6233
      %v6238 = vsel %vm240, %v6235, %v6231
      %v6242 = vrot.slane %v6238, 7
      %v6243 = vrot.slane %v6237, 7
      %v6244 = vrot.slane %v6236, 7
      %6248 = vst [vmem:[#allocation2 + $0x30] sm:$0xfe] %v6242
      %6249 = vst [vmem:[#allocation2 + $0x38] sm:$0xfe] %v6243
      %6250 = vst [vmem:[#allocation2 + $0x40] sm:$0xfe] %v6244
      %6251 = vst [vmem:[#allocation2 + $0x48] sm:$0x1] %v6242
      %6252 = vst [vmem:[#allocation2 + $0x50] sm:$0x1] %v6243
      %6253 = vst [vmem:[#allocation2 + $0x58] sm:$0x1] %v6244
      %6254 = vrot.lane.b32.xlu0 %v6179, 1
      %v6255 = vpop.permute.xlu0 %6254
      %6256 = vrot.lane.b32.xlu0 %v6180, 1
      %v6257 = vpop.permute.xlu0 %6256
      %6258 = vrot.lane.b32.xlu0 %v6181, 1
      %v6259 = vpop.permute.xlu0 %6258
      %v6260 = vsel %vm262, %v6257, %v6259
      %v6261 = vsel %vm262, %v6255, %v6257
      %v6262 = vsel %vm262, %v6259, %v6255
      %v6266 = vrot.slane %v6262, 7
      %v6267 = vrot.slane %v6261, 7
      %v6268 = vrot.slane %v6260, 7
      %6272 = vst [vmem:[#allocation2 + $0x48] sm:$0xfe] %v6266
      %6273 = vst [vmem:[#allocation2 + $0x50] sm:$0xfe] %v6267
      %6274 = vst [vmem:[#allocation2 + $0x58] sm:$0xfe] %v6268
      %6275 = vst [vmem:[#allocation2 + $0x60] sm:$0x1] %v6266
      %6276 = vst [vmem:[#allocation2 + $0x68] sm:$0x1] %v6267
      %6277 = vst [vmem:[#allocation2 + $0x70] sm:$0x1] %v6268
      %v6281 = vrot.slane %v6179, 7
      %v6282 = vrot.slane %v6180, 7
      %v6283 = vrot.slane %v6181, 7
      %6287 = vst [vmem:[#allocation2 + $0x60] sm:$0xfe] %v6281
      %6288 = vst [vmem:[#allocation2 + $0x68] sm:$0xfe] %v6282
      %6289 = vst [vmem:[#allocation2 + $0x70] sm:$0xfe] %v6283
      %6290 = vst [vmem:[#allocation2 + $0x78] sm:$0x1] %v6281
      %6291 = vst [vmem:[#allocation2 + $0x80] sm:$0x1] %v6282
      %6292 = vst [vmem:[#allocation2 + $0x88] sm:$0x1] %v6283
      %6293 = vrot.lane.b32.xlu0 %v6179, 127
      %v6294 = vpop.permute.xlu0 %6293
      %6295 = vrot.lane.b32.xlu0 %v6180, 127
      %v6296 = vpop.permute.xlu0 %6295
      %6297 = vrot.lane.b32.xlu0 %v6181, 127
      %v6298 = vpop.permute.xlu0 %6297
      %v6299 = vsel %vm296, %v6296, %v6298
      %v6300 = vsel %vm296, %v6294, %v6296
      %v6301 = vsel %vm296, %v6298, %v6294
      %v6305 = vrot.slane %v6300, 7
      %v6306 = vrot.slane %v6299, 7
      %v6307 = vrot.slane %v6301, 7
      %6311 = vst [vmem:[#allocation2 + $0x78] sm:$0xfe] %v6305
      %6312 = vst [vmem:[#allocation2 + $0x80] sm:$0xfe] %v6306
      %6313 = vst [vmem:[#allocation2 + $0x88] sm:$0xfe] %v6307
      %6314 = vst [vmem:[#allocation2 + $0x90] sm:$0x1] %v6305
      %6315 = vst [vmem:[#allocation2 + $0x98] sm:$0x1] %v6306
      %6316 = vst [vmem:[#allocation2 + $0xa0] sm:$0x1] %v6307
      %6317 = vrot.lane.b32.xlu0 %v6179, 111
      %v6318 = vpop.permute.xlu0 %6317
      %6319 = vrot.lane.b32.xlu0 %v6180, 111
      %v6320 = vpop.permute.xlu0 %6319
      %6321 = vrot.lane.b32.xlu0 %v6181, 111
      %v6322 = vpop.permute.xlu0 %6321
      %v6323 = vsel %vm321, %v6320, %v6322
      %v6324 = vsel %vm321, %v6318, %v6320
      %v6325 = vsel %vm321, %v6322, %v6318
      %v6329 = vrot.slane %v6324, 7
      %v6330 = vrot.slane %v6323, 7
      %v6331 = vrot.slane %v6325, 7
      %6335 = vst [vmem:[#allocation2 + $0x90] sm:$0xfe] %v6329
      %6336 = vst [vmem:[#allocation2 + $0x98] sm:$0xfe] %v6330
      %6337 = vst [vmem:[#allocation2 + $0xa0] sm:$0xfe] %v6331
      %6338 = vst [vmem:[#allocation2 + $0xa8] sm:$0x1] %v6329
      %6339 = vst [vmem:[#allocation2 + $0xb0] sm:$0x1] %v6330
      %6340 = vst [vmem:[#allocation2 + $0xb8] sm:$0x1] %v6331
      %6341 = vrot.lane.b32.xlu0 %v6179, 110
      %v6342 = vpop.permute.xlu0 %6341
      %6343 = vrot.lane.b32.xlu0 %v6180, 110
      %v6344 = vpop.permute.xlu0 %6343
      %6345 = vrot.lane.b32.xlu0 %v6181, 110
      %v6346 = vpop.permute.xlu0 %6345
      %v6347 = vsel %vm343, %v6344, %v6346
      %v6348 = vsel %vm343, %v6342, %v6344
      %v6349 = vsel %vm343, %v6346, %v6342
      %v6353 = vrot.slane %v6348, 7
      %v6354 = vrot.slane %v6347, 7
      %v6355 = vrot.slane %v6349, 7
      %6359 = vst [vmem:[#allocation2 + $0xa8] sm:$0xfe] %v6353
      %6360 = vst [vmem:[#allocation2 + $0xb0] sm:$0xfe] %v6354
      %6361 = vst [vmem:[#allocation2 + $0xb8] sm:$0xfe] %v6355
      %6362 = vst [vmem:[#allocation2 + $0xc0] sm:$0x1] %v6353
      %6363 = vst [vmem:[#allocation2 + $0xc8] sm:$0x1] %v6354
      %6364 = vst [vmem:[#allocation2 + $0xd0] sm:$0x1] %v6355
      %6365 = vrot.lane.b32.xlu0 %v6179, 109
      %v6366 = vpop.permute.xlu0 %6365
      %6367 = vrot.lane.b32.xlu0 %v6180, 109
      %v6368 = vpop.permute.xlu0 %6367
      %6369 = vrot.lane.b32.xlu0 %v6181, 109
      %v6370 = vpop.permute.xlu0 %6369
      %v6371 = vsel %vm368, %v6368, %v6370
      %v6372 = vsel %vm368, %v6366, %v6368
      %v6373 = vsel %vm368, %v6370, %v6366
      %v6377 = vrot.slane %v6372, 7
      %v6378 = vrot.slane %v6371, 7
      %v6379 = vrot.slane %v6373, 7
      %6383 = vst [vmem:[#allocation2 + $0xc0] sm:$0xfe] %v6377
      %6384 = vst [vmem:[#allocation2 + $0xc8] sm:$0xfe] %v6378
      %6385 = vst [vmem:[#allocation2 + $0xd0] sm:$0xfe] %v6379
      %6386 = vst [vmem:[#allocation2 + $0xd8] sm:$0x1] %v6377
      %6387 = vst [vmem:[#allocation2 + $0xe0] sm:$0x1] %v6378
      %6388 = vst [vmem:[#allocation2 + $0xe8] sm:$0x1] %v6379
      %6389 = vrot.lane.b32.xlu0 %v3424, 19
      %v6390 = vpop.permute.xlu0 %6389
      %6391 = vrot.lane.b32.xlu0 %v3425, 19
      %v6392 = vpop.permute.xlu0 %6391
      %6393 = vrot.lane.b32.xlu0 %v3426, 19
      %v6394 = vpop.permute.xlu0 %6393
      %v6395 = vsel %vm193, %v6392, %v6394
      %v6396 = vsel %vm193, %v6390, %v6392
      %v6397 = vsel %vm193, %v6394, %v6390
      %v6401 = vrot.slane %v6397, 7
      %v6402 = vrot.slane %v6396, 7
      %v6403 = vrot.slane %v6395, 7
      %6407 = vst [vmem:[#allocation2 + $0xd8] sm:$0xfe] %v6401
      %6408 = vst [vmem:[#allocation2 + $0xe0] sm:$0xfe] %v6402
      %6409 = vst [vmem:[#allocation2 + $0xe8] sm:$0xfe] %v6403
      %6410 = vst [vmem:[#allocation2 + $0xf0] sm:$0x1] %v6401
      %6411 = vst [vmem:[#allocation2 + $0xf8] sm:$0x1] %v6402
      %6412 = vst [vmem:[#allocation2 + $0x100] sm:$0x1] %v6403
      %6413 = vrot.lane.b32.xlu0 %v3424, 18
      %v6414 = vpop.permute.xlu0 %6413
      %6415 = vrot.lane.b32.xlu0 %v3425, 18
      %v6416 = vpop.permute.xlu0 %6415
      %6417 = vrot.lane.b32.xlu0 %v3426, 18
      %v6418 = vpop.permute.xlu0 %6417
      %v6419 = vsel %vm215, %v6416, %v6418
      %v6420 = vsel %vm215, %v6414, %v6416
      %v6421 = vsel %vm215, %v6418, %v6414
      %v6425 = vrot.slane %v6421, 7
      %v6426 = vrot.slane %v6420, 7
      %v6427 = vrot.slane %v6419, 7
      %6431 = vst [vmem:[#allocation2 + $0xf0] sm:$0xfe] %v6425
      %6432 = vst [vmem:[#allocation2 + $0xf8] sm:$0xfe] %v6426
      %6433 = vst [vmem:[#allocation2 + $0x100] sm:$0xfe] %v6427
      %6434 = vst [vmem:[#allocation2 + $0x108] sm:$0x1] %v6425
      %6435 = vst [vmem:[#allocation2 + $0x110] sm:$0x1] %v6426
      %6436 = vst [vmem:[#allocation2 + $0x118] sm:$0x1] %v6427
      %6437 = vrot.lane.b32.xlu0 %v3424, 17
      %v6438 = vpop.permute.xlu0 %6437
      %6439 = vrot.lane.b32.xlu0 %v3425, 17
      %v6440 = vpop.permute.xlu0 %6439
      %6441 = vrot.lane.b32.xlu0 %v3426, 17
      %v6442 = vpop.permute.xlu0 %6441
      %v6443 = vsel %vm240, %v6440, %v6442
      %v6444 = vsel %vm240, %v6438, %v6440
      %v6445 = vsel %vm240, %v6442, %v6438
      %v6449 = vrot.slane %v6445, 7
      %v6450 = vrot.slane %v6444, 7
      %v6451 = vrot.slane %v6443, 7
      %6455 = vst [vmem:[#allocation2 + $0x108] sm:$0xfe] %v6449
      %6456 = vst [vmem:[#allocation2 + $0x110] sm:$0xfe] %v6450
      %6457 = vst [vmem:[#allocation2 + $0x118] sm:$0xfe] %v6451
      %6458 = vst [vmem:[#allocation2 + $0x120] sm:$0x1] %v6449
      %6459 = vst [vmem:[#allocation2 + $0x128] sm:$0x1] %v6450
      %6460 = vst [vmem:[#allocation2 + $0x130] sm:$0x1] %v6451
      %6461 = vrot.lane.b32.xlu0 %v3424, 1
      %v6462 = vpop.permute.xlu0 %6461
      %6463 = vrot.lane.b32.xlu0 %v3425, 1
      %v6464 = vpop.permute.xlu0 %6463
      %6465 = vrot.lane.b32.xlu0 %v3426, 1
      %v6466 = vpop.permute.xlu0 %6465
      %v6467 = vsel %vm262, %v6464, %v6466
      %v6468 = vsel %vm262, %v6462, %v6464
      %v6469 = vsel %vm262, %v6466, %v6462
      %v6473 = vrot.slane %v6469, 7
      %v6474 = vrot.slane %v6468, 7
      %v6475 = vrot.slane %v6467, 7
      %6479 = vst [vmem:[#allocation2 + $0x120] sm:$0xfe] %v6473
      %6480 = vst [vmem:[#allocation2 + $0x128] sm:$0xfe] %v6474
      %6481 = vst [vmem:[#allocation2 + $0x130] sm:$0xfe] %v6475
      %6482 = vst [vmem:[#allocation2 + $0x138] sm:$0x1] %v6473
      %6483 = vst [vmem:[#allocation2 + $0x140] sm:$0x1] %v6474
      %6484 = vst [vmem:[#allocation2 + $0x148] sm:$0x1] %v6475
      %v6488 = vrot.slane %v3424, 7
      %v6489 = vrot.slane %v3425, 7
      %v6490 = vrot.slane %v3426, 7
      %6494 = vst [vmem:[#allocation2 + $0x138] sm:$0xfe] %v6488
      %6495 = vst [vmem:[#allocation2 + $0x140] sm:$0xfe] %v6489
      %6496 = vst [vmem:[#allocation2 + $0x148] sm:$0xfe] %v6490
      %6497 = vst [vmem:[#allocation2 + $0x150] sm:$0x1] %v6488
      %6498 = vst [vmem:[#allocation2 + $0x158] sm:$0x1] %v6489
      %6499 = vst [vmem:[#allocation2 + $0x160] sm:$0x1] %v6490
      %6500 = vrot.lane.b32.xlu0 %v3424, 127
      %v6501 = vpop.permute.xlu0 %6500
      %6502 = vrot.lane.b32.xlu0 %v3425, 127
      %v6503 = vpop.permute.xlu0 %6502
      %6504 = vrot.lane.b32.xlu0 %v3426, 127
      %v6505 = vpop.permute.xlu0 %6504
      %v6506 = vsel %vm296, %v6503, %v6505
      %v6507 = vsel %vm296, %v6501, %v6503
      %v6508 = vsel %vm296, %v6505, %v6501
      %v6512 = vrot.slane %v6507, 7
      %v6513 = vrot.slane %v6506, 7
      %v6514 = vrot.slane %v6508, 7
      %6518 = vst [vmem:[#allocation2 + $0x150] sm:$0xfe] %v6512
      %6519 = vst [vmem:[#allocation2 + $0x158] sm:$0xfe] %v6513
      %6520 = vst [vmem:[#allocation2 + $0x160] sm:$0xfe] %v6514
      %6521 = vst [vmem:[#allocation2 + $0x168] sm:$0x1] %v6512
      %6522 = vst [vmem:[#allocation2 + $0x170] sm:$0x1] %v6513
      %6523 = vst [vmem:[#allocation2 + $0x178] sm:$0x1] %v6514
      %6524 = vrot.lane.b32.xlu0 %v3424, 111
      %v6525 = vpop.permute.xlu0 %6524
      %6526 = vrot.lane.b32.xlu0 %v3425, 111
      %v6527 = vpop.permute.xlu0 %6526
      %6528 = vrot.lane.b32.xlu0 %v3426, 111
      %v6529 = vpop.permute.xlu0 %6528
      %v6530 = vsel %vm321, %v6527, %v6529
      %v6531 = vsel %vm321, %v6525, %v6527
      %v6532 = vsel %vm321, %v6529, %v6525
      %v6536 = vrot.slane %v6531, 7
      %v6537 = vrot.slane %v6530, 7
      %v6538 = vrot.slane %v6532, 7
      %6542 = vst [vmem:[#allocation2 + $0x168] sm:$0xfe] %v6536
      %6543 = vst [vmem:[#allocation2 + $0x170] sm:$0xfe] %v6537
      %6544 = vst [vmem:[#allocation2 + $0x178] sm:$0xfe] %v6538
      %6545 = vst [vmem:[#allocation2 + $0x180] sm:$0x1] %v6536
      %6546 = vst [vmem:[#allocation2 + $0x188] sm:$0x1] %v6537
      %6547 = vst [vmem:[#allocation2 + $0x190] sm:$0x1] %v6538
      %6548 = vrot.lane.b32.xlu0 %v3424, 110
      %v6549 = vpop.permute.xlu0 %6548
      %6550 = vrot.lane.b32.xlu0 %v3425, 110
      %v6551 = vpop.permute.xlu0 %6550
      %6552 = vrot.lane.b32.xlu0 %v3426, 110
      %v6553 = vpop.permute.xlu0 %6552
      %v6554 = vsel %vm343, %v6551, %v6553
      %v6555 = vsel %vm343, %v6549, %v6551
      %v6556 = vsel %vm343, %v6553, %v6549
      %v6560 = vrot.slane %v6555, 7
      %v6561 = vrot.slane %v6554, 7
      %v6562 = vrot.slane %v6556, 7
      %6566 = vst [vmem:[#allocation2 + $0x180] sm:$0xfe] %v6560
      %6567 = vst [vmem:[#allocation2 + $0x188] sm:$0xfe] %v6561
      %6568 = vst [vmem:[#allocation2 + $0x190] sm:$0xfe] %v6562
      %6569 = vst [vmem:[#allocation2 + $0x198] sm:$0x1] %v6560
      %6570 = vst [vmem:[#allocation2 + $0x1a0] sm:$0x1] %v6561
      %6571 = vst [vmem:[#allocation2 + $0x1a8] sm:$0x1] %v6562
      %6572 = vrot.lane.b32.xlu0 %v3424, 109
      %v6573 = vpop.permute.xlu0 %6572
      %6574 = vrot.lane.b32.xlu0 %v3425, 109
      %v6575 = vpop.permute.xlu0 %6574
      %6576 = vrot.lane.b32.xlu0 %v3426, 109
      %v6577 = vpop.permute.xlu0 %6576
      %v6578 = vsel %vm368, %v6575, %v6577
      %v6579 = vsel %vm368, %v6573, %v6575
      %v6580 = vsel %vm368, %v6577, %v6573
      %v6584 = vrot.slane %v6579, 7
      %v6585 = vrot.slane %v6578, 7
      %v6586 = vrot.slane %v6580, 7
      %6590 = vst [vmem:[#allocation2 + $0x198] sm:$0xfe] %v6584
      %6591 = vst [vmem:[#allocation2 + $0x1a0] sm:$0xfe] %v6585
      %6592 = vst [vmem:[#allocation2 + $0x1a8] sm:$0xfe] %v6586
      %6593 = vst [vmem:[#allocation2 + $0x1b0] sm:$0x1] %v6584
      %6594 = vst [vmem:[#allocation2 + $0x1b8] sm:$0x1] %v6585
      %6595 = vst [vmem:[#allocation2 + $0x1c0] sm:$0x1] %v6586
      %6596 = vst [vmem:[#allocation2 + $0x1b0] sm:$0xfe] 0.0
      %6597 = vst [vmem:[#allocation2 + $0x1b8] sm:$0xfe] 0.0
      %6598 = vst [vmem:[#allocation2 + $0x1c0] sm:$0xfe] 0.0
      %v6599 = vld [vmem:[%s1 + $0x90] sm:$0xf]
      %v6600 = vld [vmem:[%s1 + $0x98] sm:$0xf]
      %v6601 = vld [vmem:[#allocation2] sm:$0xff]
      %v6602 = vld [vmem:[#allocation2 + $0x8] sm:$0xff]
      %v6603 = vld [vmem:[#allocation2 + $0x10] sm:$0xff]
      %v6604 = vld [vmem:[#allocation2 + $0x18] sm:$0xff]
      %v6605 = vld [vmem:[#allocation2 + $0x20] sm:$0xff]
      %v6606 = vld [vmem:[#allocation2 + $0x28] sm:$0xff]
      %v6607 = vld [vmem:[#allocation2 + $0x30] sm:$0xff]
      %v6608 = vld [vmem:[#allocation2 + $0x38] sm:$0xff]
      %v6609 = vld [vmem:[#allocation2 + $0x40] sm:$0xff]
      %v6610 = vld [vmem:[#allocation2 + $0x48] sm:$0xff]
      %v6611 = vld [vmem:[#allocation2 + $0x50] sm:$0xff]
      %v6612 = vld [vmem:[#allocation2 + $0x58] sm:$0xff]
      %v6613 = vld [vmem:[#allocation2 + $0x60] sm:$0xff]
      %v6614 = vld [vmem:[#allocation2 + $0x68] sm:$0xff]
      %v6615 = vld [vmem:[#allocation2 + $0x70] sm:$0xff]
      %v6616 = vld [vmem:[#allocation2 + $0x78] sm:$0xff]
      %v6617 = vld [vmem:[#allocation2 + $0x80] sm:$0xff]
      %v6618 = vld [vmem:[#allocation2 + $0x88] sm:$0xff]
      %v6619 = vld [vmem:[#allocation2 + $0x90] sm:$0xff]
      %v6620 = vld [vmem:[#allocation2 + $0x98] sm:$0xff]
      %v6621 = vld [vmem:[#allocation2 + $0xa0] sm:$0xff]
      %v6622 = vld [vmem:[#allocation2 + $0xa8] sm:$0xff]
      %v6623 = vld [vmem:[#allocation2 + $0xb0] sm:$0xff]
      %v6624 = vld [vmem:[#allocation2 + $0xb8] sm:$0xff]
      %v6625 = vld [vmem:[#allocation2 + $0xc0] sm:$0xff]
      %v6626 = vld [vmem:[#allocation2 + $0xc8] sm:$0xff]
      %v6627 = vld [vmem:[#allocation2 + $0xd0] sm:$0xff]
      %v6628 = vld [vmem:[#allocation2 + $0xd8] sm:$0xff]
      %v6629 = vld [vmem:[#allocation2 + $0xe0] sm:$0xff]
      %v6630 = vld [vmem:[#allocation2 + $0xe8] sm:$0xff]
      %v6631 = vld [vmem:[#allocation2 + $0xf0] sm:$0xff]
      %v6632 = vld [vmem:[#allocation2 + $0xf8] sm:$0xff]
      %v6633 = vld [vmem:[#allocation2 + $0x100] sm:$0xff]
      %v6634 = vld [vmem:[#allocation2 + $0x108] sm:$0xff]
      %v6635 = vld [vmem:[#allocation2 + $0x110] sm:$0xff]
      %v6636 = vld [vmem:[#allocation2 + $0x118] sm:$0xff]
      %v6637 = vld [vmem:[#allocation2 + $0x120] sm:$0xff]
      %v6638 = vld [vmem:[#allocation2 + $0x128] sm:$0xff]
      %v6639 = vld [vmem:[#allocation2 + $0x130] sm:$0xff]
      %v6640 = vld [vmem:[#allocation2 + $0x138] sm:$0xff]
      %v6641 = vld [vmem:[#allocation2 + $0x140] sm:$0xff]
      %v6642 = vld [vmem:[#allocation2 + $0x148] sm:$0xff]
      %v6643 = vld [vmem:[#allocation2 + $0x150] sm:$0xff]
      %v6644 = vld [vmem:[#allocation2 + $0x158] sm:$0xff]
      %v6645 = vld [vmem:[#allocation2 + $0x160] sm:$0xff]
      %v6646 = vld [vmem:[#allocation2 + $0x168] sm:$0xff]
      %v6647 = vld [vmem:[#allocation2 + $0x170] sm:$0xff]
      %v6648 = vld [vmem:[#allocation2 + $0x178] sm:$0xff]
      %v6649 = vld [vmem:[#allocation2 + $0x180] sm:$0xff]
      %v6650 = vld [vmem:[#allocation2 + $0x188] sm:$0xff]
      %v6651 = vld [vmem:[#allocation2 + $0x190] sm:$0xff]
      %v6652 = vld [vmem:[#allocation2 + $0x198] sm:$0xff]
      %v6653 = vld [vmem:[#allocation2 + $0x1a0] sm:$0xff]
      %v6654 = vld [vmem:[#allocation2 + $0x1a8] sm:$0xff]
      %v6655 = vld [vmem:[#allocation2 + $0x1b0] sm:$0xff]
      %v6656 = vld [vmem:[#allocation2 + $0x1b8] sm:$0xff]
      %v6657 = vld [vmem:[#allocation2 + $0x1c0] sm:$0xff]
      %v6659 = vsel %vm1489, %v6600, 0
      %6661 = vmatprep.subr.mxu0 %v6602
      %6662 = vmatpush1.msra.mxu0 %v6601
      %6663 = vmatprep.subr.mxu0 %v6605
      %6664 = vmatpush1.msra.mxu0 %v6604
      %6665 = vmatprep.subr.mxu0 %v6608
      %6666 = vmatpush1.msra.mxu0 %v6607
      %6667 = vmatprep.subr.mxu0 %v6611
      %6668 = vmatpush1.msra.mxu0 %v6610
      %6669 = vmatprep.subr.mxu0 %v6614
      %6670 = vmatpush1.msra.mxu0 %v6613
      %6671 = vmatprep.subr.mxu0 %v6617
      %6672 = vmatpush1.msra.mxu0 %v6616
      %6673 = vmatprep.subr.mxu0 %v6620
      %6674 = vmatpush1.msra.mxu0 %v6619
      %6675 = vmatprep.subr.mxu0 %v6623
      %6676 = vmatpush1.msra.mxu0 %v6622
      %6677 = vmatprep.subr.mxu0 %v6626
      %6678 = vmatpush1.msra.mxu0 %v6625
      %6679 = vmatprep.subr.mxu0 %v6629
      %6680 = vmatpush1.msra.mxu0 %v6628
      %6681 = vmatprep.subr.mxu0 %v6632
      %6682 = vmatpush1.msra.mxu0 %v6631
      %6683 = vmatprep.subr.mxu0 %v6635
      %6684 = vmatpush1.msra.mxu0 %v6634
      %6685 = vmatprep.subr.mxu0 %v6638
      %6686 = vmatpush1.msra.mxu0 %v6637
      %6687 = vmatprep.subr.mxu0 %v6641
      %6688 = vmatpush1.msra.mxu0 %v6640
      %6689 = vmatprep.subr.mxu0 %v6644
      %6690 = vmatpush1.msra.mxu0 %v6643
      %6691 = vmatprep.subr.mxu0 %v6647
      %6692 = vmatpush1.msra.mxu0 %v6646
      %6693 = vmatprep.subr.mxu0 %v6650
      %6694 = vmatpush1.msra.mxu0 %v6649
      %6695 = vmatprep.subr.mxu0 %v6653
      %6696 = vmatpush1.msra.mxu0 %v6652
      %6697 = vmatprep.subr.mxu0 %v6656
      %6698 = vmatpush1.msra.mxu0 %v6655
      %6699 = vmatprep.subr.mxu0 0.0
      %6700 = vmatpush1.msra.mxu0 0.0
      %6701 = vmatprep.subr.mxu0 0.0
      %6702 = vmatpush1.msra.mxu0 0.0
      %6703 = vmatprep.subr.mxu0 0.0
      %6704 = vmatpush1.msra.mxu0 0.0
      %6705 = vmatprep.subr.mxu0 0.0
      %6706 = vmatpush1.msra.mxu0 0.0
      %6707 = vmatprep.subr.mxu0 0.0
      %6708 = vmatpush1.msra.mxu0 0.0
      %6709 = vmatprep.subr.mxu0 0.0
      %6710 = vmatpush1.msra.mxu0 0.0
      %6711 = vmatprep.subr.mxu0 0.0
      %6712 = vmatpush1.msra.mxu0 0.0
      %6713 = vmatprep.subr.mxu0 0.0
      %6714 = vmatpush1.msra.mxu0 0.0
      %6715 = vmatprep.subr.mxu0 0.0
      %6716 = vmatpush1.msra.mxu0 0.0
      %6717 = vmatprep.subr.mxu0 0.0
      %6718 = vmatpush1.msra.mxu0 0.0
      %6719 = vmatprep.subr.mxu0 0.0
      %6720 = vmatpush1.msra.mxu0 0.0
      %6721 = vmatprep.subr.mxu0 0.0
      %6722 = vmatpush1.msra.mxu0 0.0
      %6723 = vmatprep.subr.mxu0 0.0
      %6724 = vmatpush1.msra.mxu0 0.0
      %6725 = vmatprep.mubr.f32.mxu0 %v6659
      %6726 = vmatmul.mubr.f32.gmra.mrb[0].mxu0 %v6599
      %v6727 = vpop.f32.mrb[0].mxu0
      %v6728 = vadd.f32 0.0, %v6727
      %v6729 = vpop.f32.mrb[0].mxu0
      %v6730 = vadd.f32 0.0, %v6729
      %6731 = vdwg.mxu0
      %6732 = vmatprep.subr.mxu0 0.0
      %6733 = vmatpush1.msra.mxu0 %v6603
      %6734 = vmatprep.subr.mxu0 0.0
      %6735 = vmatpush1.msra.mxu0 %v6606
      %6736 = vmatprep.subr.mxu0 0.0
      %6737 = vmatpush1.msra.mxu0 %v6609
      %6738 = vmatprep.subr.mxu0 0.0
      %6739 = vmatpush1.msra.mxu0 %v6612
      %6740 = vmatprep.subr.mxu0 0.0
      %6741 = vmatpush1.msra.mxu0 %v6615
      %6742 = vmatprep.subr.mxu0 0.0
      %6743 = vmatpush1.msra.mxu0 %v6618
      %6744 = vmatprep.subr.mxu0 0.0
      %6745 = vmatpush1.msra.mxu0 %v6621
      %6746 = vmatprep.subr.mxu0 0.0
      %6747 = vmatpush1.msra.mxu0 %v6624
      %6748 = vmatprep.subr.mxu0 0.0
      %6749 = vmatpush1.msra.mxu0 %v6627
      %6750 = vmatprep.subr.mxu0 0.0
      %6751 = vmatpush1.msra.mxu0 %v6630
      %6752 = vmatprep.subr.mxu0 0.0
      %6753 = vmatpush1.msra.mxu0 %v6633
      %6754 = vmatprep.subr.mxu0 0.0
      %6755 = vmatpush1.msra.mxu0 %v6636
      %6756 = vmatprep.subr.mxu0 0.0
      %6757 = vmatpush1.msra.mxu0 %v6639
      %6758 = vmatprep.subr.mxu0 0.0
      %6759 = vmatpush1.msra.mxu0 %v6642
      %6760 = vmatprep.subr.mxu0 0.0
      %6761 = vmatpush1.msra.mxu0 %v6645
      %6762 = vmatprep.subr.mxu0 0.0
      %6763 = vmatpush1.msra.mxu0 %v6648
      %6764 = vmatprep.subr.mxu0 0.0
      %6765 = vmatpush1.msra.mxu0 %v6651
      %6766 = vmatprep.subr.mxu0 0.0
      %6767 = vmatpush1.msra.mxu0 %v6654
      %6768 = vmatprep.subr.mxu0 0.0
      %6769 = vmatpush1.msra.mxu0 %v6657
      %6770 = vmatprep.subr.mxu0 0.0
      %6771 = vmatpush1.msra.mxu0 0.0
      %6772 = vmatprep.subr.mxu0 0.0
      %6773 = vmatpush1.msra.mxu0 0.0
      %6774 = vmatprep.subr.mxu0 0.0
      %6775 = vmatpush1.msra.mxu0 0.0
      %6776 = vmatprep.subr.mxu0 0.0
      %6777 = vmatpush1.msra.mxu0 0.0
      %6778 = vmatprep.subr.mxu0 0.0
      %6779 = vmatpush1.msra.mxu0 0.0
      %6780 = vmatprep.subr.mxu0 0.0
      %6781 = vmatpush1.msra.mxu0 0.0
      %6782 = vmatprep.subr.mxu0 0.0
      %6783 = vmatpush1.msra.mxu0 0.0
      %6784 = vmatprep.subr.mxu0 0.0
      %6785 = vmatpush1.msra.mxu0 0.0
      %6786 = vmatprep.subr.mxu0 0.0
      %6787 = vmatpush1.msra.mxu0 0.0
      %6788 = vmatprep.subr.mxu0 0.0
      %6789 = vmatpush1.msra.mxu0 0.0
      %6790 = vmatprep.subr.mxu0 0.0
      %6791 = vmatpush1.msra.mxu0 0.0
      %6792 = vmatprep.subr.mxu0 0.0
      %6793 = vmatpush1.msra.mxu0 0.0
      %6794 = vmatprep.subr.mxu0 0.0
      %6795 = vmatpush1.msra.mxu0 0.0
      %6796 = vmatprep.mubr.f32.mxu0 %v6659
      %6797 = vmatmul.mubr.f32.gmra.mrb[0].mxu0 %v6599
      %v6798 = vpop.f32.mrb[0].mxu0
      %v6799 = vadd.f32 0.0, %v6798
      %v6800 = vpop.f32.mrb[0].mxu0
      %6801 = vdwg.mxu0
      %v6802 = vmax.f32 %v6728, 0.0
      %v6803 = vmax.f32 %v6730, 0.0
      %v6804 = vmax.f32 %v6799, 0.0
      %v6805 = vsel %vm564, %v6802, 0.0
      %v6806 = vsel %vm565, %v6803, 0.0
      %v6807 = vsel %vm566, %v6804, 0.0
      %6808 = vrot.lane.b32.xlu0 %v6805, 19
      %v6809 = vpop.permute.xlu0 %6808
      %6810 = vrot.lane.b32.xlu0 %v6806, 19
      %v6811 = vpop.permute.xlu0 %6810
      %6812 = vrot.lane.b32.xlu0 %v6807, 19
      %v6813 = vpop.permute.xlu0 %6812
      %v6814 = vsel %vm193, %v6811, %v6813
      %v6815 = vsel %vm193, %v6809, %v6811
      %v6816 = vsel %vm193, %v6813, %v6809
      %v6820 = vrot.slane %v6816, 7
      %v6821 = vrot.slane %v6815, 7
      %v6822 = vrot.slane %v6814, 7
      %6826 = vst [vmem:[#allocation2] sm:$0x1e] %v6820
      %6827 = vst [vmem:[#allocation2 + $0x8] sm:$0x1e] %v6821
      %6828 = vst [vmem:[#allocation2 + $0x10] sm:$0x1e] %v6822
      %6829 = vrot.lane.b32.xlu0 %v6805, 18
      %v6830 = vpop.permute.xlu0 %6829
      %6831 = vrot.lane.b32.xlu0 %v6806, 18
      %v6832 = vpop.permute.xlu0 %6831
      %6833 = vrot.lane.b32.xlu0 %v6807, 18
      %v6834 = vpop.permute.xlu0 %6833
      %v6835 = vsel %vm215, %v6832, %v6834
      %v6836 = vsel %vm215, %v6830, %v6832
      %v6837 = vsel %vm215, %v6834, %v6830
      %v6841 = vrot.slane %v6837, 3
      %v6842 = vrot.slane %v6836, 3
      %v6843 = vrot.slane %v6835, 3
      %6847 = vst [vmem:[#allocation2] sm:$0xe0] %v6841
      %6848 = vst [vmem:[#allocation2 + $0x8] sm:$0xe0] %v6842
      %6849 = vst [vmem:[#allocation2 + $0x10] sm:$0xe0] %v6843
      %6850 = vst [vmem:[#allocation2 + $0x18] sm:$0x1] %v6841
      %6851 = vst [vmem:[#allocation2 + $0x20] sm:$0x1] %v6842
      %6852 = vst [vmem:[#allocation2 + $0x28] sm:$0x1] %v6843
      %6853 = vrot.lane.b32.xlu0 %v6805, 17
      %v6854 = vpop.permute.xlu0 %6853
      %6855 = vrot.lane.b32.xlu0 %v6806, 17
      %v6856 = vpop.permute.xlu0 %6855
      %6857 = vrot.lane.b32.xlu0 %v6807, 17
      %v6858 = vpop.permute.xlu0 %6857
      %v6859 = vsel %vm240, %v6856, %v6858
      %v6860 = vsel %vm240, %v6854, %v6856
      %v6861 = vsel %vm240, %v6858, %v6854
      %v6865 = vrot.slane %v6861, 7
      %v6866 = vrot.slane %v6860, 7
      %v6867 = vrot.slane %v6859, 7
      %6871 = vst [vmem:[#allocation2 + $0x18] sm:$0x1e] %v6865
      %6872 = vst [vmem:[#allocation2 + $0x20] sm:$0x1e] %v6866
      %6873 = vst [vmem:[#allocation2 + $0x28] sm:$0x1e] %v6867
      %6874 = vrot.lane.b32.xlu0 %v6805, 1
      %v6875 = vpop.permute.xlu0 %6874
      %6876 = vrot.lane.b32.xlu0 %v6806, 1
      %v6877 = vpop.permute.xlu0 %6876
      %6878 = vrot.lane.b32.xlu0 %v6807, 1
      %v6879 = vpop.permute.xlu0 %6878
      %v6880 = vsel %vm262, %v6877, %v6879
      %v6881 = vsel %vm262, %v6875, %v6877
      %v6882 = vsel %vm262, %v6879, %v6875
      %v6886 = vrot.slane %v6882, 3
      %v6887 = vrot.slane %v6881, 3
      %v6888 = vrot.slane %v6880, 3
      %6892 = vst [vmem:[#allocation2 + $0x18] sm:$0xe0] %v6886
      %6893 = vst [vmem:[#allocation2 + $0x20] sm:$0xe0] %v6887
      %6894 = vst [vmem:[#allocation2 + $0x28] sm:$0xe0] %v6888
      %6895 = vst [vmem:[#allocation2 + $0x30] sm:$0x1] %v6886
      %6896 = vst [vmem:[#allocation2 + $0x38] sm:$0x1] %v6887
      %6897 = vst [vmem:[#allocation2 + $0x40] sm:$0x1] %v6888
      %v6901 = vrot.slane %v6805, 7
      %v6902 = vrot.slane %v6806, 7
      %v6903 = vrot.slane %v6807, 7
      %6907 = vst [vmem:[#allocation2 + $0x30] sm:$0x1e] %v6901
      %6908 = vst [vmem:[#allocation2 + $0x38] sm:$0x1e] %v6902
      %6909 = vst [vmem:[#allocation2 + $0x40] sm:$0x1e] %v6903
      %6910 = vrot.lane.b32.xlu0 %v6805, 127
      %v6911 = vpop.permute.xlu0 %6910
      %6912 = vrot.lane.b32.xlu0 %v6806, 127
      %v6913 = vpop.permute.xlu0 %6912
      %6914 = vrot.lane.b32.xlu0 %v6807, 127
      %v6915 = vpop.permute.xlu0 %6914
      %v6916 = vsel %vm296, %v6913, %v6915
      %v6917 = vsel %vm296, %v6911, %v6913
      %v6918 = vsel %vm296, %v6915, %v6911
      %v6922 = vrot.slane %v6917, 3
      %v6923 = vrot.slane %v6916, 3
      %v6924 = vrot.slane %v6918, 3
      %6928 = vst [vmem:[#allocation2 + $0x30] sm:$0xe0] %v6922
      %6929 = vst [vmem:[#allocation2 + $0x38] sm:$0xe0] %v6923
      %6930 = vst [vmem:[#allocation2 + $0x40] sm:$0xe0] %v6924
      %6931 = vst [vmem:[#allocation2 + $0x48] sm:$0x1] %v6922
      %6932 = vst [vmem:[#allocation2 + $0x50] sm:$0x1] %v6923
      %6933 = vst [vmem:[#allocation2 + $0x58] sm:$0x1] %v6924
      %6934 = vrot.lane.b32.xlu0 %v6805, 111
      %v6935 = vpop.permute.xlu0 %6934
      %6936 = vrot.lane.b32.xlu0 %v6806, 111
      %v6937 = vpop.permute.xlu0 %6936
      %6938 = vrot.lane.b32.xlu0 %v6807, 111
      %v6939 = vpop.permute.xlu0 %6938
      %v6940 = vsel %vm321, %v6937, %v6939
      %v6941 = vsel %vm321, %v6935, %v6937
      %v6942 = vsel %vm321, %v6939, %v6935
      %v6946 = vrot.slane %v6941, 7
      %v6947 = vrot.slane %v6940, 7
      %v6948 = vrot.slane %v6942, 7
      %6952 = vst [vmem:[#allocation2 + $0x48] sm:$0x1e] %v6946
      %6953 = vst [vmem:[#allocation2 + $0x50] sm:$0x1e] %v6947
      %6954 = vst [vmem:[#allocation2 + $0x58] sm:$0x1e] %v6948
      %6955 = vrot.lane.b32.xlu0 %v6805, 110
      %v6956 = vpop.permute.xlu0 %6955
      %6957 = vrot.lane.b32.xlu0 %v6806, 110
      %v6958 = vpop.permute.xlu0 %6957
      %6959 = vrot.lane.b32.xlu0 %v6807, 110
      %v6960 = vpop.permute.xlu0 %6959
      %v6961 = vsel %vm343, %v6958, %v6960
      %v6962 = vsel %vm343, %v6956, %v6958
      %v6963 = vsel %vm343, %v6960, %v6956
      %v6967 = vrot.slane %v6962, 3
      %v6968 = vrot.slane %v6961, 3
      %v6969 = vrot.slane %v6963, 3
      %6973 = vst [vmem:[#allocation2 + $0x48] sm:$0xe0] %v6967
      %6974 = vst [vmem:[#allocation2 + $0x50] sm:$0xe0] %v6968
      %6975 = vst [vmem:[#allocation2 + $0x58] sm:$0xe0] %v6969
      %6976 = vst [vmem:[#allocation2 + $0x60] sm:$0x1] %v6967
      %6977 = vst [vmem:[#allocation2 + $0x68] sm:$0x1] %v6968
      %6978 = vst [vmem:[#allocation2 + $0x70] sm:$0x1] %v6969
      %6979 = vrot.lane.b32.xlu0 %v6805, 109
      %v6980 = vpop.permute.xlu0 %6979
      %6981 = vrot.lane.b32.xlu0 %v6806, 109
      %v6982 = vpop.permute.xlu0 %6981
      %6983 = vrot.lane.b32.xlu0 %v6807, 109
      %v6984 = vpop.permute.xlu0 %6983
      %v6985 = vsel %vm368, %v6982, %v6984
      %v6986 = vsel %vm368, %v6980, %v6982
      %v6987 = vsel %vm368, %v6984, %v6980
      %v6991 = vrot.slane %v6986, 7
      %v6992 = vrot.slane %v6985, 7
      %v6993 = vrot.slane %v6987, 7
      %6997 = vst [vmem:[#allocation2 + $0x60] sm:$0x1e] %v6991
      %6998 = vst [vmem:[#allocation2 + $0x68] sm:$0x1e] %v6992
      %6999 = vst [vmem:[#allocation2 + $0x70] sm:$0x1e] %v6993
      %7000 = vst [vmem:[#allocation2 + $0x60] sm:$0xe0] 0.0
      %7001 = vst [vmem:[#allocation2 + $0x68] sm:$0xe0] 0.0
      %7002 = vst [vmem:[#allocation2 + $0x70] sm:$0xe0] 0.0
      %v7003 = vld [vmem:[%s1 + $0xa0] sm:$0x3]
      %v7004 = vld [vmem:[#allocation2] sm:$0xff]
      %v7005 = vld [vmem:[#allocation2 + $0x8] sm:$0xff]
      %v7006 = vld [vmem:[#allocation2 + $0x10] sm:$0xff]
      %v7007 = vld [vmem:[#allocation2 + $0x18] sm:$0xff]
      %v7008 = vld [vmem:[#allocation2 + $0x20] sm:$0xff]
      %v7009 = vld [vmem:[#allocation2 + $0x28] sm:$0xff]
      %v7010 = vld [vmem:[#allocation2 + $0x30] sm:$0xff]
      %v7011 = vld [vmem:[#allocation2 + $0x38] sm:$0xff]
      %v7012 = vld [vmem:[#allocation2 + $0x40] sm:$0xff]
      %v7013 = vld [vmem:[#allocation2 + $0x48] sm:$0xff]
      %v7014 = vld [vmem:[#allocation2 + $0x50] sm:$0xff]
      %v7015 = vld [vmem:[#allocation2 + $0x58] sm:$0xff]
      %v7016 = vld [vmem:[#allocation2 + $0x60] sm:$0xff]
      %v7017 = vld [vmem:[#allocation2 + $0x68] sm:$0xff]
      %v7018 = vld [vmem:[#allocation2 + $0x70] sm:$0xff]
      %v7020 = vsel %vm403, %v7003, 0
      %7022 = vmatprep.subr.mxu0 %v7005
      %7023 = vmatpush1.msra.mxu0 %v7004
      %7024 = vmatprep.subr.mxu0 %v7008
      %7025 = vmatpush1.msra.mxu0 %v7007
      %7026 = vmatprep.subr.mxu0 %v7011
      %7027 = vmatpush1.msra.mxu0 %v7010
      %7028 = vmatprep.subr.mxu0 %v7014
      %7029 = vmatpush1.msra.mxu0 %v7013
      %7030 = vmatprep.subr.mxu0 %v7017
      %7031 = vmatpush1.msra.mxu0 %v7016
      %7032 = vmatprep.subr.mxu0 0.0
      %7033 = vmatpush1.msra.mxu0 0.0
      %7034 = vmatprep.subr.mxu0 0.0
      %7035 = vmatpush1.msra.mxu0 0.0
      %7036 = vmatprep.subr.mxu0 0.0
      %7037 = vmatpush1.msra.mxu0 0.0
      %7038 = vmatprep.subr.mxu0 0.0
      %7039 = vmatpush1.msra.mxu0 0.0
      %7040 = vmatprep.subr.mxu0 0.0
      %7041 = vmatpush1.msra.mxu0 0.0
      %7042 = vmatprep.subr.mxu0 0.0
      %7043 = vmatpush1.msra.mxu0 0.0
      %7044 = vmatprep.subr.mxu0 0.0
      %7045 = vmatpush1.msra.mxu0 0.0
      %7046 = vmatprep.subr.mxu0 0.0
      %7047 = vmatpush1.msra.mxu0 0.0
      %7048 = vmatprep.subr.mxu0 0.0
      %7049 = vmatpush1.msra.mxu0 0.0
      %7050 = vmatprep.subr.mxu0 0.0
      %7051 = vmatpush1.msra.mxu0 0.0
      %7052 = vmatprep.subr.mxu0 0.0
      %7053 = vmatpush1.msra.mxu0 0.0
      %7054 = vmatprep.subr.mxu0 0.0
      %7055 = vmatpush1.msra.mxu0 0.0
      %7056 = vmatprep.subr.mxu0 0.0
      %7057 = vmatpush1.msra.mxu0 0.0
      %7058 = vmatprep.subr.mxu0 0.0
      %7059 = vmatpush1.msra.mxu0 0.0
      %7060 = vmatprep.subr.mxu0 0.0
      %7061 = vmatpush1.msra.mxu0 0.0
      %7062 = vmatprep.subr.mxu0 0.0
      %7063 = vmatpush1.msra.mxu0 0.0
      %7064 = vmatprep.subr.mxu0 0.0
      %7065 = vmatpush1.msra.mxu0 0.0
      %7066 = vmatprep.subr.mxu0 0.0
      %7067 = vmatpush1.msra.mxu0 0.0
      %7068 = vmatprep.subr.mxu0 0.0
      %7069 = vmatpush1.msra.mxu0 0.0
      %7070 = vmatprep.subr.mxu0 0.0
      %7071 = vmatpush1.msra.mxu0 0.0
      %7072 = vmatprep.subr.mxu0 0.0
      %7073 = vmatpush1.msra.mxu0 0.0
      %7074 = vmatprep.subr.mxu0 0.0
      %7075 = vmatpush1.msra.mxu0 0.0
      %7076 = vmatprep.subr.mxu0 0.0
      %7077 = vmatpush1.msra.mxu0 0.0
      %7078 = vmatprep.subr.mxu0 0.0
      %7079 = vmatpush1.msra.mxu0 0.0
      %7080 = vmatprep.subr.mxu0 0.0
      %7081 = vmatpush1.msra.mxu0 0.0
      %7082 = vmatprep.subr.mxu0 0.0
      %7083 = vmatpush1.msra.mxu0 0.0
      %7084 = vmatprep.subr.mxu0 0.0
      %7085 = vmatpush1.msra.mxu0 0.0
      %7086 = vmatprep.mubr.f32.mxu0 0.0
      %7087 = vmatmul.mubr.f32.gmra.mrb[0].mxu0 %v7020
      %v7088 = vpop.f32.mrb[0].mxu0
      %v7089 = vadd.f32 0.0, %v7088
      %v7090 = vpop.f32.mrb[0].mxu0
      %v7091 = vadd.f32 0.0, %v7090
      %7092 = vdwg.mxu0
      %7093 = vmatprep.subr.mxu0 0.0
      %7094 = vmatpush1.msra.mxu0 %v7006
      %7095 = vmatprep.subr.mxu0 0.0
      %7096 = vmatpush1.msra.mxu0 %v7009
      %7097 = vmatprep.subr.mxu0 0.0
      %7098 = vmatpush1.msra.mxu0 %v7012
      %7099 = vmatprep.subr.mxu0 0.0
      %7100 = vmatpush1.msra.mxu0 %v7015
      %7101 = vmatprep.subr.mxu0 0.0
      %7102 = vmatpush1.msra.mxu0 %v7018
      %7103 = vmatprep.subr.mxu0 0.0
      %7104 = vmatpush1.msra.mxu0 0.0
      %7105 = vmatprep.subr.mxu0 0.0
      %7106 = vmatpush1.msra.mxu0 0.0
      %7107 = vmatprep.subr.mxu0 0.0
      %7108 = vmatpush1.msra.mxu0 0.0
      %7109 = vmatprep.subr.mxu0 0.0
      %7110 = vmatpush1.msra.mxu0 0.0
      %7111 = vmatprep.subr.mxu0 0.0
      %7112 = vmatpush1.msra.mxu0 0.0
      %7113 = vmatprep.subr.mxu0 0.0
      %7114 = vmatpush1.msra.mxu0 0.0
      %7115 = vmatprep.subr.mxu0 0.0
      %7116 = vmatpush1.msra.mxu0 0.0
      %7117 = vmatprep.subr.mxu0 0.0
      %7118 = vmatpush1.msra.mxu0 0.0
      %7119 = vmatprep.subr.mxu0 0.0
      %7120 = vmatpush1.msra.mxu0 0.0
      %7121 = vmatprep.subr.mxu0 0.0
      %7122 = vmatpush1.msra.mxu0 0.0
      %7123 = vmatprep.subr.mxu0 0.0
      %7124 = vmatpush1.msra.mxu0 0.0
      %7125 = vmatprep.subr.mxu0 0.0
      %7126 = vmatpush1.msra.mxu0 0.0
      %7127 = vmatprep.subr.mxu0 0.0
      %7128 = vmatpush1.msra.mxu0 0.0
      %7129 = vmatprep.subr.mxu0 0.0
      %7130 = vmatpush1.msra.mxu0 0.0
      %7131 = vmatprep.subr.mxu0 0.0
      %7132 = vmatpush1.msra.mxu0 0.0
      %7133 = vmatprep.subr.mxu0 0.0
      %7134 = vmatpush1.msra.mxu0 0.0
      %7135 = vmatprep.subr.mxu0 0.0
      %7136 = vmatpush1.msra.mxu0 0.0
      %7137 = vmatprep.subr.mxu0 0.0
      %7138 = vmatpush1.msra.mxu0 0.0
      %7139 = vmatprep.subr.mxu0 0.0
      %7140 = vmatpush1.msra.mxu0 0.0
      %7141 = vmatprep.subr.mxu0 0.0
      %7142 = vmatpush1.msra.mxu0 0.0
      %7143 = vmatprep.subr.mxu0 0.0
      %7144 = vmatpush1.msra.mxu0 0.0
      %7145 = vmatprep.subr.mxu0 0.0
      %7146 = vmatpush1.msra.mxu0 0.0
      %7147 = vmatprep.subr.mxu0 0.0
      %7148 = vmatpush1.msra.mxu0 0.0
      %7149 = vmatprep.subr.mxu0 0.0
      %7150 = vmatpush1.msra.mxu0 0.0
      %7151 = vmatprep.subr.mxu0 0.0
      %7152 = vmatpush1.msra.mxu0 0.0
      %7153 = vmatprep.subr.mxu0 0.0
      %7154 = vmatpush1.msra.mxu0 0.0
      %7155 = vmatprep.subr.mxu0 0.0
      %7156 = vmatpush1.msra.mxu0 0.0
      %7157 = vmatprep.mubr.f32.mxu0 0.0
      %7158 = vmatmul.mubr.f32.gmra.mrb[0].mxu0 %v7020
      %v7159 = vpop.f32.mrb[0].mxu0
      %v7160 = vadd.f32 0.0, %v7159
      %v7161 = vpop.f32.mrb[0].mxu0
      %7162 = vdwg.mxu0
      %v7163 = vxor.u32 %v7089, 2147483648
      %v7164 = vxor.u32 %v7091, 2147483648
      %v7165 = vxor.u32 %v7160, 2147483648
      %v7166 = vmul.f32 %v7163, 1.442695
      %v7167 = vpow.pop %v7166
      %v7168 = vmul.f32 %v7164, 1.442695
      %v7169 = vpow.pop %v7168
      %v7170 = vmul.f32 %v7165, 1.442695
      %v7171 = vpow.pop %v7170
      %v7172 = vadd.f32 %v7167, 1.0
      %v7173 = vadd.f32 %v7169, 1.0
      %v7174 = vadd.f32 %v7171, 1.0
      %v7175 = vrcp.pop %v7172
      %v7176 = vmul.f32 1.0, %v7175
      %v7177 = vrcp.pop %v7173
      %v7178 = vmul.f32 1.0, %v7177
      %v7179 = vrcp.pop %v7174
      %v7180 = vmul.f32 1.0, %v7179
      %v7181 = vsel %vm564, %v7176, 0.0
      %v7182 = vsel %vm565, %v7178, 0.0
      %v7183 = vsel %vm566, %v7180, 0.0
      %v7187 = vcombine.low %v7181, %v7182
      %v7189 = vunpack.c.l.s4 1983009808
      %v7190 = vunpack.c.0.s8 %v7189
      %v7191 = vlaneseq
      %v7192 = vshrl.u32 %v7191, 7
      %v7193 = vsub.s32 %v7190, %v7192
      %v7194 = vrot.slane %v7187, %v7193
      %v7196 = vunpack.c.l.s4 1983009808
      %v7197 = vunpack.c.0.s8 %v7196
      %v7198 = vlaneseq
      %v7199 = vshrl.u32 %v7198, 7
      %v7200 = vsub.s32 %v7197, %v7199
      %v7201 = vrot.slane %v7183, %v7200
      %v7202 = vcombine.low %v7194, %v7201
      %7204 = vst [vmem:[%s170] sm:$0x3f] %v7202
      %p7205 = scmp.lt.s32.totalorder %s14, 1
      %s7206 = scalar_select %p7205, %s14, 1
      %s7207 = smul.addr %s7206, 3
      %s7208 = smul.addr %s7207, 2
      %s7209 = scalar_lea.vmem %s3, %s7208
      // Predicated region
      $region33: #{wnet_forward.1} parent=31 // pred_check
        %p7210 = pneg %p100
      $region34: #{wnet_forward.1} parent=31 // pred_check_branch
        %7212 = sbr.rel (%p7210) target = $region36
      $region35: #{wnet_forward.1} parent=31 // pred_region
        _
      $region36: #{wnet_forward.1} parent=31 // pred_fallthru
        _
    $region32: #{wnet_forward.1} parent=5 // pred_fallthru
      _
    %p7213 = scmp.le.s32.totalorder 2, %s9
    // Predicated region
    $region37: #{wnet_forward.1} parent=5 // pred_check
      %p7214 = pneg %p7213
    $region38: #{wnet_forward.1} parent=5 // pred_check_branch
      %7216 = sbr.rel (%p7214) target = $region40
    $region39: #{wnet_forward.1} parent=5 // pred_region
      %s7217 = ssub.s32 %s9, 2
      // Predicated region
      $region41: #{wnet_forward.1} parent=39 // pred_check
        %p7218 = pneg %p106
      $region42: #{wnet_forward.1} parent=39 // pred_check_branch
        %7220 = sbr.rel (%p7218) target = $region44
      $region43: #{wnet_forward.1} parent=39 // pred_region
        %p7221 = scmp.lt.s32.totalorder %s15, 1
        %s7222 = scalar_select %p7221, %s15, 1
        %s7223 = smul.addr %s7222, 3
        %s7224 = smul.addr %s7223, 2
        %s7225 = scalar_lea.vmem %s3, %s7224
      $region44: #{wnet_forward.1} parent=39 // pred_fallthru
        _
    $region40: #{wnet_forward.1} parent=5 // pred_fallthru
      _
  $region6: #{wnet_forward.1} parent=0 // loop_footer
    %s13 = sadd.s32 1, %s9
  $region7: #{wnet_forward.1} parent=0 // loop_footer_branch
    %8 = sbr.rel target = $region3
  $region8: #{wnet_forward.1} parent=0 // loop_exit
    _

</llo_original>
